<compile_context>
chip_gen: v6e
topology: v6e:2x2x1
jax: 0.10.0
libtpu: 0.0.40
codegen_flags: <defaults>
</compile_context>

<pallas_src>
import jax
import jax.numpy as jnp
from jax.experimental import pallas as pl
from jax.experimental.pallas import tpu as pltpu

IMG_DIM = 2048      # ResNet50 feature dim
TXT_DIM = 768       # BERT pooler dim
HID_DIM = 1024      # fc_fusion output
NUM_ANSWERS = 128   # demo answer-vocab size (already lane-dense)
LANE = 128


def vqa_fusion_kernel(img_ref, q_ref, w1i_ref, w1q_ref, b1_ref,
                      w2_ref, b2_ref, out_ref):
    """Grid = (batch_tiles, hid_blocks). Axis 1 is the reduction over HID_DIM
    blocks of the second matmul; partials accumulate directly in out_ref
    (f32), which is VMEM-resident across axis 1."""
    j = pl.program_id(1)

    @pl.when(j == 0)
    def _():
        out_ref[...] = jnp.zeros_like(out_ref)

    # Cast activations to bf16 in-kernel (no host-side astype round-trip).
    img16 = img_ref[...].astype(jnp.bfloat16)
    q16 = q_ref[...].astype(jnp.bfloat16)

    # Slice of fc_fusion for this HID block:
    #   h_j = relu(img @ W1_img[:, j] + q @ W1_txt[:, j] + b1[j])
    h = jnp.dot(img16, w1i_ref[...], preferred_element_type=jnp.float32)
    h = h + jnp.dot(q16, w1q_ref[...], preferred_element_type=jnp.float32)
    h = jnp.maximum(h + b1_ref[...], 0.0)
    # Dropout(0.3): eval/inference mode -> identity (see TODO above).

    # Partial fc_out: out += h_j @ W2[j, :]  (bf16 x bf16 MXU, f32 accumulate)
    out_ref[...] += jnp.dot(h.astype(jnp.bfloat16), w2_ref[...],
                            preferred_element_type=jnp.float32)

    @pl.when(j == pl.num_programs(1) - 1)
    def _():
        out_ref[...] += b2_ref[...]


def prepare_fusion_params(w1, b1, w2, b2):
    """One-time (model-load) weight prep — NOT in the per-call hot path.

    w1: (1024, 2816) PyTorch (out, in);  b1: (1024,)
    w2: (num_answers, 1024);             b2: (num_answers,)
    Returns bf16 (in, out) weight halves + f32 row-vector biases, with the
    answer dimension zero-padded to a multiple of 128 (lane-dense stores).
    """
    n_ans = w2.shape[0]
    n_ans_pad = ((n_ans + LANE - 1) // LANE) * LANE

    w1_img = jnp.transpose(w1[:, :IMG_DIM]).astype(jnp.bfloat16)   # (2048, 1024)
    w1_txt = jnp.transpose(w1[:, IMG_DIM:]).astype(jnp.bfloat16)   # (768, 1024)
    b1_2d = b1.reshape(1, HID_DIM).astype(jnp.float32)

    w2_t = jnp.transpose(w2).astype(jnp.bfloat16)                  # (1024, A)
    b2_2d = b2.reshape(1, -1).astype(jnp.float32)
    if n_ans_pad != n_ans:
        w2_t = jnp.pad(w2_t, ((0, 0), (0, n_ans_pad - n_ans)))
        b2_2d = jnp.pad(b2_2d, ((0, 0), (0, n_ans_pad - n_ans)))
    return w1_img, w1_txt, b1_2d, w2_t, b2_2d, n_ans


def vqa_fusion_head(img_feats, q_feats, params, *, hid_block=1024,
                    batch_block=128):
    """img_feats: (B, 2048) f32/bf16, q_feats: (B, 768) f32/bf16,
       params: output of prepare_fusion_params."""
    w1i, w1q, b1_2d, w2_t, b2_2d, n_ans = params
    n_ans_pad = w2_t.shape[1]
    B = img_feats.shape[0]
    assert HID_DIM % hid_block == 0

    # Batch tiling: single full-B tile for small B; batch_block rows otherwise,
    # padding ragged batches instead of asserting.
    bb = B if B <= batch_block else batch_block
    pad_b = (-B) % bb
    if pad_b:
        img_feats = jnp.pad(img_feats, ((0, pad_b), (0, 0)))
        q_feats = jnp.pad(q_feats, ((0, pad_b), (0, 0)))
    Bp = B + pad_b
    grid = (Bp // bb, HID_DIM // hid_block)

    out = pl.pallas_call(
        vqa_fusion_kernel,
        out_shape=jax.ShapeDtypeStruct((Bp, n_ans_pad), jnp.float32),
        grid_spec=pltpu.PrefetchScalarGridSpec(
            num_scalar_prefetch=0,
            grid=grid,
            in_specs=[
                pl.BlockSpec((bb, IMG_DIM), lambda i, j: (i, 0)),
                pl.BlockSpec((bb, TXT_DIM), lambda i, j: (i, 0)),
                pl.BlockSpec((IMG_DIM, hid_block), lambda i, j: (0, j)),
                pl.BlockSpec((TXT_DIM, hid_block), lambda i, j: (0, j)),
                pl.BlockSpec((1, hid_block), lambda i, j: (0, j)),
                pl.BlockSpec((hid_block, n_ans_pad), lambda i, j: (j, 0)),
                pl.BlockSpec((1, n_ans_pad), lambda i, j: (0, 0)),
            ],
            out_specs=pl.BlockSpec((bb, n_ans_pad), lambda i, j: (i, 0)),
        ),
        compiler_params=pltpu.CompilerParams(
            dimension_semantics=("parallel", "arbitrary"),
            vmem_limit_bytes=32 << 20,
        ),
    )(img_feats, q_feats, w1i, w1q, b1_2d, w2_t, b2_2d)

    if pad_b or n_ans_pad != n_ans:
        out = out[:B, :n_ans]
    return out


def reference_f32(img_feats, q_feats, w1, b1, w2, b2):
    combined = jnp.concatenate([img_feats, q_feats], axis=1)
    h = jnp.maximum(combined @ w1.T + b1, 0.0)
    return h @ w2.T + b2


def reference_bf16_weights(img_feats, q_feats, w1, b1, w2, b2):
    """Same math with inputs/weights (and h before fc_out) rounded to bf16 —
    matches what the kernel computes."""
    r = lambda a: a.astype(jnp.bfloat16).astype(jnp.float32)
    combined = jnp.concatenate([r(img_feats), r(q_feats)], axis=1)
    h = jnp.maximum(combined @ r(w1).T + b1, 0.0)
    return r(h) @ r(w2).T + b2


if __name__ == "__main__":
    key = jax.random.PRNGKey(0)
    k_img, k_txt, k_w1, k_b1, k_w2, k_b2 = jax.random.split(key, 6)

    B = 2
    # Pre-extracted backbone features (backbones not translated; see TODOs).
    img_feats = jax.random.normal(k_img, (B, IMG_DIM), dtype=jnp.float32)
    q_feats = jax.random.normal(k_txt, (B, TXT_DIM), dtype=jnp.float32)

    # Deterministic parameter init matching nn.Linear shapes: W is (out, in),
    # uniform(-1/sqrt(in), 1/sqrt(in)).
    fan1 = IMG_DIM + TXT_DIM
    lim1 = 1.0 / jnp.sqrt(fan1)
    w1 = jax.random.uniform(k_w1, (HID_DIM, fan1), jnp.float32, -lim1, lim1)
    b1 = jax.random.uniform(k_b1, (HID_DIM,), jnp.float32, -lim1, lim1)
    lim2 = 1.0 / jnp.sqrt(HID_DIM)
    w2 = jax.random.uniform(k_w2, (NUM_ANSWERS, HID_DIM), jnp.float32, -lim2, lim2)
    b2 = jax.random.uniform(k_b2, (NUM_ANSWERS,), jnp.float32, -lim2, lim2)

    # One-time weight prep (model-load time), outside the per-call hot path.
    params = jax.block_until_ready(prepare_fusion_params(w1, b1, w2, b2))

    out = vqa_fusion_head(img_feats, q_feats, params)
    out = jax.block_until_ready(out)
    assert out.shape == (B, NUM_ANSWERS), out.shape

    # Tight check vs a reference using the same bf16-rounded weights/inputs/h.
    ref16 = reference_bf16_weights(img_feats, q_feats, w1, b1, w2, b2)
    assert jnp.allclose(out, ref16, atol=5e-3, rtol=5e-3), float(
        jnp.max(jnp.abs(out - ref16)))

    # Loose check vs the full-f32 reference (bf16 rounding only).
    ref32 = reference_f32(img_feats, q_feats, w1, b1, w2, b2)
    assert jnp.allclose(out, ref32, atol=5e-2, rtol=5e-2), float(
        jnp.max(jnp.abs(out - ref32)))

    print("KERNEL_OK")
</pallas_src>

<mosaic_0001>
module attributes {stable_mosaic.version = 11 : i64} {
  func.func @vqa_fusion_kernel(%arg0: i32, %arg1: i32, %arg2: memref<2x2048xf32, #tpu.memory_space<vmem>>, %arg3: memref<2x768xf32, #tpu.memory_space<vmem>>, %arg4: memref<2048x1024xbf16, #tpu.memory_space<vmem>>, %arg5: memref<768x1024xbf16, #tpu.memory_space<vmem>>, %arg6: memref<1x1024xf32, #tpu.memory_space<vmem>>, %arg7: memref<1024x128xbf16, #tpu.memory_space<vmem>>, %arg8: memref<1x128xf32, #tpu.memory_space<vmem>>, %arg9: memref<2x128xf32, #tpu.memory_space<vmem>>) attributes {dimension_semantics = [#tpu.dimension_semantics<parallel>, #tpu.dimension_semantics<arbitrary>], iteration_bounds = array<i64: 1, 1>, scalar_prefetch = 0 : i64, scratch_operands = 0 : i64, tpu.core_type = #tpu.core_type<tc>, window_params = [{transform_indices = @transform_0, window_bounds = array<i64: 2, 2048>}, {transform_indices = @transform_1, window_bounds = array<i64: 2, 768>}, {transform_indices = @transform_2, window_bounds = array<i64: 2048, 1024>}, {transform_indices = @transform_3, window_bounds = array<i64: 768, 1024>}, {transform_indices = @transform_4, window_bounds = array<i64: 1, 1024>}, {transform_indices = @transform_5, window_bounds = array<i64: 1024, 128>}, {pipeline_mode = #tpu.pipeline_mode<synchronous>, transform_indices = @transform_6, window_bounds = array<i64: 1, 128>}, {transform_indices = @transform_7, window_bounds = array<i64: 2, 128>}]} {
    %c0_i32 = arith.constant 0 : i32
    %0 = arith.cmpi eq, %arg1, %c0_i32 : i32
    %1 = arith.extui %0 : i1 to i32
    %c0_i32_0 = arith.constant 0 : i32
    %2 = arith.cmpi ne, %1, %c0_i32_0 : i32
    scf.if %2 {
      %cst_21 = arith.constant 0.000000e+00 : f32
      %26 = vector.broadcast %cst_21 : f32 to vector<2x128xf32>
      %c0_22 = arith.constant 0 : index
      %c0_23 = arith.constant 0 : index
      %27 = vector.load %arg9[%c0_22, %c0_23] : memref<2x128xf32, #tpu.memory_space<vmem>>, vector<2x128xf32>
      tpu.vector_store %arg9[%c0_22, %c0_23], %26 {strides = array<i32>} : memref<2x128xf32, #tpu.memory_space<vmem>>, vector<2x128xf32>,
    } else {
    }
    %c0 = arith.constant 0 : index
    %c0_1 = arith.constant 0 : index
    %3 = vector.load %arg2[%c0, %c0_1] : memref<2x2048xf32, #tpu.memory_space<vmem>>, vector<2x2048xf32>
    %4 = arith.truncf %3 : vector<2x2048xf32> to vector<2x2048xbf16>
    %c0_2 = arith.constant 0 : index
    %c0_3 = arith.constant 0 : index
    %5 = vector.load %arg3[%c0_2, %c0_3] : memref<2x768xf32, #tpu.memory_space<vmem>>, vector<2x768xf32>
    %6 = arith.truncf %5 : vector<2x768xf32> to vector<2x768xbf16>
    %c0_4 = arith.constant 0 : index
    %c0_5 = arith.constant 0 : index
    %7 = vector.load %arg4[%c0_4, %c0_5] : memref<2048x1024xbf16, #tpu.memory_space<vmem>>, vector<2048x1024xbf16>
    %cst = arith.constant dense<0.000000e+00> : vector<2x1024xf32>
    %8 = tpu.matmul %4, %7, %cst {dimension_numbers = #tpu.dot_dimension_numbers<[1], [0], [0], [1], [0, 0, 1, 1], [], []>} : vector<2x2048xbf16>, vector<2048x1024xbf16>, vector<2x1024xf32> -> vector<2x1024xf32>
    %c0_6 = arith.constant 0 : index
    %c0_7 = arith.constant 0 : index
    %9 = vector.load %arg5[%c0_6, %c0_7] : memref<768x1024xbf16, #tpu.memory_space<vmem>>, vector<768x1024xbf16>
    %cst_8 = arith.constant dense<0.000000e+00> : vector<2x1024xf32>
    %10 = tpu.matmul %6, %9, %cst_8 {dimension_numbers = #tpu.dot_dimension_numbers<[1], [0], [0], [1], [0, 0, 1, 1], [], []>} : vector<2x768xbf16>, vector<768x1024xbf16>, vector<2x1024xf32> -> vector<2x1024xf32>
    %11 = arith.addf %8, %10 : vector<2x1024xf32>
    %c0_9 = arith.constant 0 : index
    %c0_10 = arith.constant 0 : index
    %12 = vector.load %arg6[%c0_9, %c0_10] : memref<1x1024xf32, #tpu.memory_space<vmem>>, vector<1x1024xf32>
    %13 = vector.broadcast %12 : vector<1x1024xf32> to vector<2x1024xf32>
    %14 = arith.addf %11, %13 : vector<2x1024xf32>
    %cst_11 = arith.constant 0.000000e+00 : f32
    %15 = vector.broadcast %cst_11 : f32 to vector<2x1024xf32>
    %16 = arith.maximumf %14, %15 : vector<2x1024xf32>
    %c0_12 = arith.constant 0 : index
    %c0_13 = arith.constant 0 : index
    %17 = vector.load %arg9[%c0_12, %c0_13] : memref<2x128xf32, #tpu.memory_space<vmem>>, vector<2x128xf32>
    %18 = arith.truncf %16 : vector<2x1024xf32> to vector<2x1024xbf16>
    %c0_14 = arith.constant 0 : index
    %c0_15 = arith.constant 0 : index
    %19 = vector.load %arg7[%c0_14, %c0_15] : memref<1024x128xbf16, #tpu.memory_space<vmem>>, vector<1024x128xbf16>
    %cst_16 = arith.constant dense<0.000000e+00> : vector<2x128xf32>
    %20 = tpu.matmul %18, %19, %cst_16 {dimension_numbers = #tpu.dot_dimension_numbers<[1], [0], [0], [1], [0, 0, 1, 1], [], []>} : vector<2x1024xbf16>, vector<1024x128xbf16>, vector<2x128xf32> -> vector<2x128xf32>
    %21 = arith.addf %17, %20 : vector<2x128xf32>
    %c0_17 = arith.constant 0 : index
    %c0_18 = arith.constant 0 : index
    %22 = vector.load %arg9[%c0_17, %c0_18] : memref<2x128xf32, #tpu.memory_space<vmem>>, vector<2x128xf32>
    tpu.vector_store %arg9[%c0_17, %c0_18], %21 {strides = array<i32>} : memref<2x128xf32, #tpu.memory_space<vmem>>, vector<2x128xf32>,
    %c0_i32_19 = arith.constant 0 : i32
    %23 = arith.cmpi eq, %arg1, %c0_i32_19 : i32
    %24 = arith.extui %23 : i1 to i32
    %c0_i32_20 = arith.constant 0 : i32
    %25 = arith.cmpi ne, %24, %c0_i32_20 : i32
    scf.if %25 {
      %c0_21 = arith.constant 0 : index
      %c0_22 = arith.constant 0 : index
      %26 = vector.load %arg9[%c0_21, %c0_22] : memref<2x128xf32, #tpu.memory_space<vmem>>, vector<2x128xf32>
      %c0_23 = arith.constant 0 : index
      %c0_24 = arith.constant 0 : index
      %27 = vector.load %arg8[%c0_23, %c0_24] : memref<1x128xf32, #tpu.memory_space<vmem>>, vector<1x128xf32>
      %28 = vector.broadcast %27 : vector<1x128xf32> to vector<2x128xf32>
      %29 = arith.addf %26, %28 : vector<2x128xf32>
      %c0_25 = arith.constant 0 : index
      %c0_26 = arith.constant 0 : index
      %30 = vector.load %arg9[%c0_25, %c0_26] : memref<2x128xf32, #tpu.memory_space<vmem>>, vector<2x128xf32>
      tpu.vector_store %arg9[%c0_25, %c0_26], %29 {strides = array<i32>} : memref<2x128xf32, #tpu.memory_space<vmem>>, vector<2x128xf32>,
    } else {
    }
    return
  }
  func.func @transform_0(%arg0: i32, %arg1: i32) -> (i32, i32) {
    %c0_i32 = arith.constant 0 : i32
    %c0_i32_0 = arith.constant 0 : i32
    return %arg0, %c0_i32 : i32, i32
  }
  func.func @transform_1(%arg0: i32, %arg1: i32) -> (i32, i32) {
    %c0_i32 = arith.constant 0 : i32
    %c0_i32_0 = arith.constant 0 : i32
    return %arg0, %c0_i32 : i32, i32
  }
  func.func @transform_2(%arg0: i32, %arg1: i32) -> (i32, i32) {
    %c0_i32 = arith.constant 0 : i32
    %c0_i32_0 = arith.constant 0 : i32
    return %c0_i32, %arg1 : i32, i32
  }
  func.func @transform_3(%arg0: i32, %arg1: i32) -> (i32, i32) {
    %c0_i32 = arith.constant 0 : i32
    %c0_i32_0 = arith.constant 0 : i32
    return %c0_i32, %arg1 : i32, i32
  }
  func.func @transform_4(%arg0: i32, %arg1: i32) -> (i32, i32) {
    %c0_i32 = arith.constant 0 : i32
    %c0_i32_0 = arith.constant 0 : i32
    return %c0_i32, %arg1 : i32, i32
  }
  func.func @transform_5(%arg0: i32, %arg1: i32) -> (i32, i32) {
    %c0_i32 = arith.constant 0 : i32
    %c0_i32_0 = arith.constant 0 : i32
    return %arg1, %c0_i32 : i32, i32
  }
  func.func @transform_6(%arg0: i32, %arg1: i32) -> (i32, i32) {
    %c0_i32 = arith.constant 0 : i32
    %c0_i32_0 = arith.constant 0 : i32
    %c0_i32_1 = arith.constant 0 : i32
    return %c0_i32, %c0_i32_0 : i32, i32
  }
  func.func @transform_7(%arg0: i32, %arg1: i32) -> (i32, i32) {
    %c0_i32 = arith.constant 0 : i32
    %c0_i32_0 = arith.constant 0 : i32
    return %arg0, %c0_i32 : i32, i32
  }
}

</mosaic_0001>

<llo_original>
// kernel: tpu_custom_call.1
$region0: #{tpu_custom_call.1}
  #allocation0 [shape = 'u32[]', space=smem, size = 0x4, offset = 0x4, fixed_abs, tag = 'smem constant byte address 0x4 - core index']
  #allocation1 [shape = 'u32[144,128]{1,0:T(1,128)}', space=vmem, size = 0x12000, scoped, tag = 'internal scratch']
  %s0 = inlined_call_operand.hbm [shape: f32[2,2048], index: 0, kind: input, shape index: {}]
  %s1 = inlined_call_operand.hbm [shape: f32[2,768], index: 1, kind: input, shape index: {}]
  %s2 = inlined_call_operand.hbm [shape: bf16[2048,1024], index: 2, kind: input, shape index: {}]
  %s3 = inlined_call_operand.hbm [shape: bf16[768,1024], index: 3, kind: input, shape index: {}]
  %s4 = inlined_call_operand.hbm [shape: f32[1,1024], index: 4, kind: input, shape index: {}]
  %s5 = inlined_call_operand.hbm [shape: bf16[1024,128], index: 5, kind: input, shape index: {}]
  %s6 = inlined_call_operand.hbm [shape: f32[1,128], index: 6, kind: input, shape index: {}]
  %s7 = inlined_call_operand.hbm [shape: f32[2,128], index: 7, kind: output, shape index: {}]
  %s8 = sld [smem:[#allocation0]]
  $region74: #{tpu_custom_call.1} parent=0
    _
  %s10 = ssub.s32 1, %s8
  %s11 = scalar_select 0, %s10, %s8
  $region1: #{tpu_custom_call.1} parent=0
    #allocation2 [shape = 'u8[16384]{0}', space=vmem, size = 0x4000, scoped, tag = 'input window, operand 0, single buffered']
    #allocation3 [shape = 's32[1]{0}', space=sflag, size = 0x4, scoped, tag = 'scoped memory for tpu_custom_call.1']
    #allocation4 [shape = 's32[1]{0}', space=sflag, size = 0x4, scoped, tag = 'scoped memory for tpu_custom_call.1']
    #allocation5 [shape = 'u8[6144]{0}', space=vmem, size = 0x1800, scoped, tag = 'input window, operand 1, single buffered']
    #allocation6 [shape = 's32[1]{0}', space=sflag, size = 0x4, scoped, tag = 'scoped memory for tpu_custom_call.1']
    #allocation7 [shape = 'u8[4194304]{0}', space=vmem, size = 0x400000, scoped, tag = 'input window, operand 2, single buffered']
    #allocation8 [shape = 'u8[1572864]{0}', space=vmem, size = 0x180000, scoped, tag = 'input window, operand 3, single buffered']
    #allocation9 [shape = 's32[1]{0}', space=sflag, size = 0x4, scoped, tag = 'scoped memory for tpu_custom_call.1']
    #allocation10 [shape = 'u8[4096]{0}', space=vmem, size = 0x1000, scoped, tag = 'input window, operand 4, single buffered']
    #allocation11 [shape = 'u8[262144]{0}', space=vmem, size = 0x40000, scoped, tag = 'input window, operand 5, single buffered']
    #allocation12 [shape = 's32[1]{0}', space=sflag, size = 0x4, scoped, tag = 'scoped memory for tpu_custom_call.1']
    #allocation13 [shape = 'u8[512]{0}', space=vmem, size = 0x400, scoped, tag = 'input window, operand 6, single buffered']
    #allocation14 [shape = 'u8[1024]{0}', space=vmem, size = 0x400, scoped, tag = 'output window, operand 0, single buffered']
    %12 = vsyncpa [#allocation3], 0
    %13 = vsyncpa [#allocation6], 0
    %14 = vsyncpa [#allocation9], 0
    %15 = vsyncpa [#allocation12], 0
    %16 = vsyncpa [#allocation4], 0
    // Predicated region
    $region2: #{tpu_custom_call.1} parent=1 // pred_check
      _
    $region3: #{tpu_custom_call.1} parent=1 // pred_check_branch
      %18 = sbr.rel (0) target = $region5
    $region4: #{tpu_custom_call.1} parent=1 // pred_region
      %s20 = ssub.s32 512, 512
      %21 = vsyncadd [#allocation3], %s20
      %s23 = sshll.u32 [#allocation2], 4
      %s24 = int_to_ptr.vmem [resolvable:$true] %s23
      %26 = dma.hbm_to_vmem [thread:$0]  %s0, 512, %s24, [#allocation3]
    $region5: #{tpu_custom_call.1} parent=1 // pred_fallthru
      _
    // Predicated region
    $region6: #{tpu_custom_call.1} parent=1 // pred_check
      _
    $region7: #{tpu_custom_call.1} parent=1 // pred_check_branch
      %28 = sbr.rel (0) target = $region9
    $region8: #{tpu_custom_call.1} parent=1 // pred_region
      %s30 = ssub.s32 192, 192
      %31 = vsyncadd [#allocation6], %s30
      %s33 = sshll.u32 [#allocation5], 4
      %s34 = int_to_ptr.vmem [resolvable:$true] %s33
      %36 = dma.hbm_to_vmem [thread:$0]  %s1, 192, %s34, [#allocation6]
    $region9: #{tpu_custom_call.1} parent=1 // pred_fallthru
      _
    // Predicated region
    $region10: #{tpu_custom_call.1} parent=1 // pred_check
      _
    $region11: #{tpu_custom_call.1} parent=1 // pred_check_branch
      %38 = sbr.rel (0) target = $region13
    $region12: #{tpu_custom_call.1} parent=1 // pred_region
      %s40 = ssub.s32 131072, 131072
      %41 = vsyncadd [#allocation6], %s40
      %s42 = sshll.u32 [#allocation7], 4
      %s43 = int_to_ptr.vmem [resolvable:$true] %s42
      %48 = dma.hbm_to_vmem [thread:$0]  %s2, 131072, %s43, [#allocation6], 512, 512, 32
    $region13: #{tpu_custom_call.1} parent=1 // pred_fallthru
      _
    // Predicated region
    $region14: #{tpu_custom_call.1} parent=1 // pred_check
      _
    $region15: #{tpu_custom_call.1} parent=1 // pred_check_branch
      %50 = sbr.rel (0) target = $region17
    $region16: #{tpu_custom_call.1} parent=1 // pred_region
      %s52 = ssub.s32 49152, 49152
      %53 = vsyncadd [#allocation9], %s52
      %s54 = sshll.u32 [#allocation8], 4
      %s55 = int_to_ptr.vmem [resolvable:$true] %s54
      %60 = dma.hbm_to_vmem [thread:$0]  %s3, 49152, %s55, [#allocation9], 512, 512, 32
    $region17: #{tpu_custom_call.1} parent=1 // pred_fallthru
      _
    // Predicated region
    $region18: #{tpu_custom_call.1} parent=1 // pred_check
      _
    $region19: #{tpu_custom_call.1} parent=1 // pred_check_branch
      %62 = sbr.rel (0) target = $region21
    $region20: #{tpu_custom_call.1} parent=1 // pred_region
      %s64 = ssub.s32 128, 128
      %65 = vsyncadd [#allocation9], %s64
      %s67 = sshll.u32 [#allocation10], 4
      %s68 = int_to_ptr.vmem [resolvable:$true] %s67
      %70 = dma.hbm_to_vmem [thread:$0]  %s4, 128, %s68, [#allocation9]
    $region21: #{tpu_custom_call.1} parent=1 // pred_fallthru
      _
    // Predicated region
    $region22: #{tpu_custom_call.1} parent=1 // pred_check
      _
    $region23: #{tpu_custom_call.1} parent=1 // pred_check_branch
      %72 = sbr.rel (0) target = $region25
    $region24: #{tpu_custom_call.1} parent=1 // pred_region
      %s74 = ssub.s32 8192, 8192
      %75 = vsyncadd [#allocation12], %s74
      %s76 = sshll.u32 [#allocation11], 4
      %s77 = int_to_ptr.vmem [resolvable:$true] %s76
      %82 = dma.hbm_to_vmem [thread:$0]  %s5, 8192, %s77, [#allocation12], 64, 64, 4
    $region25: #{tpu_custom_call.1} parent=1 // pred_fallthru
      _
    // Predicated region
    $region26: #{tpu_custom_call.1} parent=1 // pred_check
      _
    $region27: #{tpu_custom_call.1} parent=1 // pred_check_branch
      %84 = sbr.rel (0) target = $region29
    $region28: #{tpu_custom_call.1} parent=1 // pred_region
      %s86 = ssub.s32 16, 16
      %87 = vsyncadd [#allocation12], %s86
      %s89 = sshll.u32 [#allocation13], 4
      %s90 = int_to_ptr.vmem [resolvable:$true] %s89
      %92 = dma.hbm_to_vmem [thread:$0]  %s6, 16, %s90, [#allocation12]
    $region29: #{tpu_custom_call.1} parent=1 // pred_fallthru
      _
    // Predicated region
    $region30: #{tpu_custom_call.1} parent=1 // pred_check
      _
    $region31: #{tpu_custom_call.1} parent=1 // pred_check_branch
      %94 = sbr.rel (0) target = $region33
    $region32: #{tpu_custom_call.1} parent=1 // pred_region
      %95 = dma.done [#allocation3], 512
    $region33: #{tpu_custom_call.1} parent=1 // pred_fallthru
      _
    // Predicated region
    $region34: #{tpu_custom_call.1} parent=1 // pred_check
      _
    $region35: #{tpu_custom_call.1} parent=1 // pred_check_branch
      %97 = sbr.rel (0) target = $region37
    $region36: #{tpu_custom_call.1} parent=1 // pred_region
      %98 = dma.done [#allocation6], 192
    $region37: #{tpu_custom_call.1} parent=1 // pred_fallthru
      _
    // Predicated region
    $region38: #{tpu_custom_call.1} parent=1 // pred_check
      _
    $region39: #{tpu_custom_call.1} parent=1 // pred_check_branch
      %100 = sbr.rel (0) target = $region41
    $region40: #{tpu_custom_call.1} parent=1 // pred_region
      %101 = dma.done [#allocation6], 131072
    $region41: #{tpu_custom_call.1} parent=1 // pred_fallthru
      _
    // Predicated region
    $region42: #{tpu_custom_call.1} parent=1 // pred_check
      _
    $region43: #{tpu_custom_call.1} parent=1 // pred_check_branch
      %103 = sbr.rel (0) target = $region45
    $region44: #{tpu_custom_call.1} parent=1 // pred_region
      %104 = dma.done [#allocation9], 49152
    $region45: #{tpu_custom_call.1} parent=1 // pred_fallthru
      _
    // Predicated region
    $region46: #{tpu_custom_call.1} parent=1 // pred_check
      _
    $region47: #{tpu_custom_call.1} parent=1 // pred_check_branch
      %106 = sbr.rel (0) target = $region49
    $region48: #{tpu_custom_call.1} parent=1 // pred_region
      %107 = dma.done [#allocation9], 128
    $region49: #{tpu_custom_call.1} parent=1 // pred_fallthru
      _
    // Predicated region
    $region50: #{tpu_custom_call.1} parent=1 // pred_check
      _
    $region51: #{tpu_custom_call.1} parent=1 // pred_check_branch
      %109 = sbr.rel (0) target = $region53
    $region52: #{tpu_custom_call.1} parent=1 // pred_region
      %110 = dma.done [#allocation12], 8192
    $region53: #{tpu_custom_call.1} parent=1 // pred_fallthru
      _
    // Predicated region
    $region54: #{tpu_custom_call.1} parent=1 // pred_check
      _
    $region55: #{tpu_custom_call.1} parent=1 // pred_check_branch
      %112 = sbr.rel (0) target = $region57
    $region56: #{tpu_custom_call.1} parent=1 // pred_region
      %113 = dma.done [#allocation12], 16
    $region57: #{tpu_custom_call.1} parent=1 // pred_fallthru
      _
    %p115 = scmp.eq.s32.totalorder 0, 0
    // Predicated region
    $region58: #{tpu_custom_call.1} parent=1 // pred_check
      %p116 = pneg %p115
    $region59: #{tpu_custom_call.1} parent=1 // pred_check_branch
      %118 = sbr.rel (%p116) target = $region61
    $region60: #{tpu_custom_call.1} parent=1 // pred_region
      %119 = vst [vmem:[#allocation14] sm:$0x3] 0.0
    $region61: #{tpu_custom_call.1} parent=1 // pred_fallthru
      _
    %v120 = vld [vmem:[#allocation2] sm:$0xff]
    %v121 = vld [vmem:[#allocation2 + $0x8] sm:$0xff]
    %v122 = vld [vmem:[#allocation2 + $0x10] sm:$0xff]
    %v123 = vld [vmem:[#allocation2 + $0x18] sm:$0xff]
    %v128 = vcombine.high %v120, %v120
    %v130 = vunpack.c.l.s4 1983009808
    %v131 = vunpack.c.0.s8 %v130
    %v132 = vlaneseq
    %v133 = vshrl.u32 %v132, 7
    %v134 = vsub.s32 %v131, %v133
    %v135 = vrot.slane %v120, %v134
    %v137 = vunpack.c.l.s4 1983009808
    %v138 = vunpack.c.0.s8 %v137
    %v139 = vlaneseq
    %v140 = vshrl.u32 %v139, 7
    %v141 = vsub.s32 %v138, %v140
    %v142 = vrot.slane %v128, %v141
    %v143 = vcombine.high %v135, %v135
    %v144 = vcombine.high %v142, %v142
    %v145 = vcombine.high %v121, %v121
    %v147 = vunpack.c.l.s4 1983009808
    %v148 = vunpack.c.0.s8 %v147
    %v149 = vlaneseq
    %v150 = vshrl.u32 %v149, 7
    %v151 = vsub.s32 %v148, %v150
    %v152 = vrot.slane %v121, %v151
    %v154 = vunpack.c.l.s4 1983009808
    %v155 = vunpack.c.0.s8 %v154
    %v156 = vlaneseq
    %v157 = vshrl.u32 %v156, 7
    %v158 = vsub.s32 %v155, %v157
    %v159 = vrot.slane %v145, %v158
    %v160 = vcombine.high %v152, %v152
    %v161 = vcombine.high %v159, %v159
    %v162 = vcombine.high %v122, %v122
    %v164 = vunpack.c.l.s4 1983009808
    %v165 = vunpack.c.0.s8 %v164
    %v166 = vlaneseq
    %v167 = vshrl.u32 %v166, 7
    %v168 = vsub.s32 %v165, %v167
    %v169 = vrot.slane %v122, %v168
    %v171 = vunpack.c.l.s4 1983009808
    %v172 = vunpack.c.0.s8 %v171
    %v173 = vlaneseq
    %v174 = vshrl.u32 %v173, 7
    %v175 = vsub.s32 %v172, %v174
    %v176 = vrot.slane %v162, %v175
    %v177 = vcombine.high %v169, %v169
    %v178 = vcombine.high %v176, %v176
    %v179 = vcombine.high %v123, %v123
    %v181 = vunpack.c.l.s4 1983009808
    %v182 = vunpack.c.0.s8 %v181
    %v183 = vlaneseq
    %v184 = vshrl.u32 %v183, 7
    %v185 = vsub.s32 %v182, %v184
    %v186 = vrot.slane %v123, %v185
    %v188 = vunpack.c.l.s4 1983009808
    %v189 = vunpack.c.0.s8 %v188
    %v190 = vlaneseq
    %v191 = vshrl.u32 %v190, 7
    %v192 = vsub.s32 %v189, %v191
    %v193 = vrot.slane %v179, %v192
    %v194 = vcombine.high %v186, %v186
    %v195 = vcombine.high %v193, %v193
    %v212 = vpack.c.bf16 %v135, %v135
    %v213 = vpack.c.bf16 %v143, %v143
    %v214 = vpack.c.bf16 %v142, %v142
    %v215 = vpack.c.bf16 %v144, %v144
    %v216 = vpack.c.bf16 %v152, %v152
    %v217 = vpack.c.bf16 %v160, %v160
    %v218 = vpack.c.bf16 %v159, %v159
    %v219 = vpack.c.bf16 %v161, %v161
    %v220 = vpack.c.bf16 %v169, %v169
    %v221 = vpack.c.bf16 %v177, %v177
    %v222 = vpack.c.bf16 %v176, %v176
    %v223 = vpack.c.bf16 %v178, %v178
    %v224 = vpack.c.bf16 %v186, %v186
    %v225 = vpack.c.bf16 %v194, %v194
    %v226 = vpack.c.bf16 %v193, %v193
    %v227 = vpack.c.bf16 %v195, %v195
    %v228 = vld [vmem:[#allocation5] sm:$0xff]
    %v229 = vld [vmem:[#allocation5 + $0x8] sm:$0xf]
    %v232 = vcombine.high %v228, %v228
    %v234 = vunpack.c.l.s4 1983009808
    %v235 = vunpack.c.0.s8 %v234
    %v236 = vlaneseq
    %v237 = vshrl.u32 %v236, 7
    %v238 = vsub.s32 %v235, %v237
    %v239 = vrot.slane %v228, %v238
    %v241 = vunpack.c.l.s4 1983009808
    %v242 = vunpack.c.0.s8 %v241
    %v243 = vlaneseq
    %v244 = vshrl.u32 %v243, 7
    %v245 = vsub.s32 %v242, %v244
    %v246 = vrot.slane %v232, %v245
    %v247 = vcombine.high %v239, %v239
    %v248 = vcombine.high %v246, %v246
    %v250 = vunpack.c.l.s4 1983009808
    %v251 = vunpack.c.0.s8 %v250
    %v252 = vlaneseq
    %v253 = vshrl.u32 %v252, 7
    %v254 = vsub.s32 %v251, %v253
    %v255 = vrot.slane %v229, %v254
    %v256 = vcombine.high %v255, %v255
    %v263 = vpack.c.bf16 %v239, %v239
    %v264 = vpack.c.bf16 %v247, %v247
    %v265 = vpack.c.bf16 %v246, %v246
    %v266 = vpack.c.bf16 %v248, %v248
    %v267 = vpack.c.bf16 %v255, %v255
    %v268 = vpack.c.bf16 %v256, %v256
    %v269 = vld [vmem:[#allocation7] sm:$0xff]
    %v270 = vld [vmem:[#allocation7 + $0x8] sm:$0xff]
    %v271 = vld [vmem:[#allocation7 + $0x10] sm:$0xff]
    %v272 = vld [vmem:[#allocation7 + $0x18] sm:$0xff]
    %v273 = vld [vmem:[#allocation7 + $0x20] sm:$0xff]
    %v274 = vld [vmem:[#allocation7 + $0x28] sm:$0xff]
    %v275 = vld [vmem:[#allocation7 + $0x30] sm:$0xff]
    %v276 = vld [vmem:[#allocation7 + $0x38] sm:$0xff]
    %v277 = vld [vmem:[#allocation7 + $0x40] sm:$0xff]
    %v278 = vld [vmem:[#allocation7 + $0x48] sm:$0xff]
    %v279 = vld [vmem:[#allocation7 + $0x50] sm:$0xff]
    %v280 = vld [vmem:[#allocation7 + $0x58] sm:$0xff]
    %v281 = vld [vmem:[#allocation7 + $0x60] sm:$0xff]
    %v282 = vld [vmem:[#allocation7 + $0x68] sm:$0xff]
    %v283 = vld [vmem:[#allocation7 + $0x70] sm:$0xff]
    %v284 = vld [vmem:[#allocation7 + $0x78] sm:$0xff]
    %v285 = vld [vmem:[#allocation7 + $0x80] sm:$0xff]
    %v286 = vld [vmem:[#allocation7 + $0x88] sm:$0xff]
    %v287 = vld [vmem:[#allocation7 + $0x90] sm:$0xff]
    %v288 = vld [vmem:[#allocation7 + $0x98] sm:$0xff]
    %v289 = vld [vmem:[#allocation7 + $0xa0] sm:$0xff]
    %v290 = vld [vmem:[#allocation7 + $0xa8] sm:$0xff]
    %v291 = vld [vmem:[#allocation7 + $0xb0] sm:$0xff]
    %v292 = vld [vmem:[#allocation7 + $0xb8] sm:$0xff]
    %v293 = vld [vmem:[#allocation7 + $0xc0] sm:$0xff]
    %v294 = vld [vmem:[#allocation7 + $0xc8] sm:$0xff]
    %v295 = vld [vmem:[#allocation7 + $0xd0] sm:$0xff]
    %v296 = vld [vmem:[#allocation7 + $0xd8] sm:$0xff]
    %v297 = vld [vmem:[#allocation7 + $0xe0] sm:$0xff]
    %v298 = vld [vmem:[#allocation7 + $0xe8] sm:$0xff]
    %v299 = vld [vmem:[#allocation7 + $0xf0] sm:$0xff]
    %v300 = vld [vmem:[#allocation7 + $0xf8] sm:$0xff]
    %v301 = vld [vmem:[#allocation7 + $0x100] sm:$0xff]
    %v302 = vld [vmem:[#allocation7 + $0x108] sm:$0xff]
    %v303 = vld [vmem:[#allocation7 + $0x110] sm:$0xff]
    %v304 = vld [vmem:[#allocation7 + $0x118] sm:$0xff]
    %v305 = vld [vmem:[#allocation7 + $0x120] sm:$0xff]
    %v306 = vld [vmem:[#allocation7 + $0x128] sm:$0xff]
    %v307 = vld [vmem:[#allocation7 + $0x130] sm:$0xff]
    %v308 = vld [vmem:[#allocation7 + $0x138] sm:$0xff]
    %v309 = vld [vmem:[#allocation7 + $0x140] sm:$0xff]
    %v310 = vld [vmem:[#allocation7 + $0x148] sm:$0xff]
    %v311 = vld [vmem:[#allocation7 + $0x150] sm:$0xff]
    %v312 = vld [vmem:[#allocation7 + $0x158] sm:$0xff]
    %v313 = vld [vmem:[#allocation7 + $0x160] sm:$0xff]
    %v314 = vld [vmem:[#allocation7 + $0x168] sm:$0xff]
    %v315 = vld [vmem:[#allocation7 + $0x170] sm:$0xff]
    %v316 = vld [vmem:[#allocation7 + $0x178] sm:$0xff]
    %v317 = vld [vmem:[#allocation7 + $0x180] sm:$0xff]
    %v318 = vld [vmem:[#allocation7 + $0x188] sm:$0xff]
    %v319 = vld [vmem:[#allocation7 + $0x190] sm:$0xff]
    %v320 = vld [vmem:[#allocation7 + $0x198] sm:$0xff]
    %v321 = vld [vmem:[#allocation7 + $0x1a0] sm:$0xff]
    %v322 = vld [vmem:[#allocation7 + $0x1a8] sm:$0xff]
    %v323 = vld [vmem:[#allocation7 + $0x1b0] sm:$0xff]
    %v324 = vld [vmem:[#allocation7 + $0x1b8] sm:$0xff]
    %v325 = vld [vmem:[#allocation7 + $0x1c0] sm:$0xff]
    %v326 = vld [vmem:[#allocation7 + $0x1c8] sm:$0xff]
    %v327 = vld [vmem:[#allocation7 + $0x1d0] sm:$0xff]
    %v328 = vld [vmem:[#allocation7 + $0x1d8] sm:$0xff]
    %v329 = vld [vmem:[#allocation7 + $0x1e0] sm:$0xff]
    %v330 = vld [vmem:[#allocation7 + $0x1e8] sm:$0xff]
    %v331 = vld [vmem:[#allocation7 + $0x1f0] sm:$0xff]
    %v332 = vld [vmem:[#allocation7 + $0x1f8] sm:$0xff]
    %v333 = vld [vmem:[#allocation7 + $0x200] sm:$0xff]
    %v334 = vld [vmem:[#allocation7 + $0x208] sm:$0xff]
    %v335 = vld [vmem:[#allocation7 + $0x210] sm:$0xff]
    %v336 = vld [vmem:[#allocation7 + $0x218] sm:$0xff]
    %v337 = vld [vmem:[#allocation7 + $0x220] sm:$0xff]
    %v338 = vld [vmem:[#allocation7 + $0x228] sm:$0xff]
    %v339 = vld [vmem:[#allocation7 + $0x230] sm:$0xff]
    %v340 = vld [vmem:[#allocation7 + $0x238] sm:$0xff]
    %v341 = vld [vmem:[#allocation7 + $0x240] sm:$0xff]
    %v342 = vld [vmem:[#allocation7 + $0x248] sm:$0xff]
    %v343 = vld [vmem:[#allocation7 + $0x250] sm:$0xff]
    %v344 = vld [vmem:[#allocation7 + $0x258] sm:$0xff]
    %v345 = vld [vmem:[#allocation7 + $0x260] sm:$0xff]
    %v346 = vld [vmem:[#allocation7 + $0x268] sm:$0xff]
    %v347 = vld [vmem:[#allocation7 + $0x270] sm:$0xff]
    %v348 = vld [vmem:[#allocation7 + $0x278] sm:$0xff]
    %v349 = vld [vmem:[#allocation7 + $0x280] sm:$0xff]
    %v350 = vld [vmem:[#allocation7 + $0x288] sm:$0xff]
    %v351 = vld [vmem:[#allocation7 + $0x290] sm:$0xff]
    %v352 = vld [vmem:[#allocation7 + $0x298] sm:$0xff]
    %v353 = vld [vmem:[#allocation7 + $0x2a0] sm:$0xff]
    %v354 = vld [vmem:[#allocation7 + $0x2a8] sm:$0xff]
    %v355 = vld [vmem:[#allocation7 + $0x2b0] sm:$0xff]
    %v356 = vld [vmem:[#allocation7 + $0x2b8] sm:$0xff]
    %v357 = vld [vmem:[#allocation7 + $0x2c0] sm:$0xff]
    %v358 = vld [vmem:[#allocation7 + $0x2c8] sm:$0xff]
    %v359 = vld [vmem:[#allocation7 + $0x2d0] sm:$0xff]
    %v360 = vld [vmem:[#allocation7 + $0x2d8] sm:$0xff]
    %v361 = vld [vmem:[#allocation7 + $0x2e0] sm:$0xff]
    %v362 = vld [vmem:[#allocation7 + $0x2e8] sm:$0xff]
    %v363 = vld [vmem:[#allocation7 + $0x2f0] sm:$0xff]
    %v364 = vld [vmem:[#allocation7 + $0x2f8] sm:$0xff]
    %v365 = vld [vmem:[#allocation7 + $0x300] sm:$0xff]
    %v366 = vld [vmem:[#allocation7 + $0x308] sm:$0xff]
    %v367 = vld [vmem:[#allocation7 + $0x310] sm:$0xff]
    %v368 = vld [vmem:[#allocation7 + $0x318] sm:$0xff]
    %v369 = vld [vmem:[#allocation7 + $0x320] sm:$0xff]
    %v370 = vld [vmem:[#allocation7 + $0x328] sm:$0xff]
    %v371 = vld [vmem:[#allocation7 + $0x330] sm:$0xff]
    %v372 = vld [vmem:[#allocation7 + $0x338] sm:$0xff]
    %v373 = vld [vmem:[#allocation7 + $0x340] sm:$0xff]
    %v374 = vld [vmem:[#allocation7 + $0x348] sm:$0xff]
    %v375 = vld [vmem:[#allocation7 + $0x350] sm:$0xff]
    %v376 = vld [vmem:[#allocation7 + $0x358] sm:$0xff]
    %v377 = vld [vmem:[#allocation7 + $0x360] sm:$0xff]
    %v378 = vld [vmem:[#allocation7 + $0x368] sm:$0xff]
    %v379 = vld [vmem:[#allocation7 + $0x370] sm:$0xff]
    %v380 = vld [vmem:[#allocation7 + $0x378] sm:$0xff]
    %v381 = vld [vmem:[#allocation7 + $0x380] sm:$0xff]
    %v382 = vld [vmem:[#allocation7 + $0x388] sm:$0xff]
    %v383 = vld [vmem:[#allocation7 + $0x390] sm:$0xff]
    %v384 = vld [vmem:[#allocation7 + $0x398] sm:$0xff]
    %v385 = vld [vmem:[#allocation7 + $0x3a0] sm:$0xff]
    %v386 = vld [vmem:[#allocation7 + $0x3a8] sm:$0xff]
    %v387 = vld [vmem:[#allocation7 + $0x3b0] sm:$0xff]
    %v388 = vld [vmem:[#allocation7 + $0x3b8] sm:$0xff]
    %v389 = vld [vmem:[#allocation7 + $0x3c0] sm:$0xff]
    %v390 = vld [vmem:[#allocation7 + $0x3c8] sm:$0xff]
    %v391 = vld [vmem:[#allocation7 + $0x3d0] sm:$0xff]
    %v392 = vld [vmem:[#allocation7 + $0x3d8] sm:$0xff]
    %v393 = vld [vmem:[#allocation7 + $0x3e0] sm:$0xff]
    %v394 = vld [vmem:[#allocation7 + $0x3e8] sm:$0xff]
    %v395 = vld [vmem:[#allocation7 + $0x3f0] sm:$0xff]
    %v396 = vld [vmem:[#allocation7 + $0x3f8] sm:$0xff]
    %v397 = vld [vmem:[#allocation7 + $0x400] sm:$0xff]
    %v398 = vld [vmem:[#allocation7 + $0x408] sm:$0xff]
    %v399 = vld [vmem:[#allocation7 + $0x410] sm:$0xff]
    %v400 = vld [vmem:[#allocation7 + $0x418] sm:$0xff]
    %v401 = vld [vmem:[#allocation7 + $0x420] sm:$0xff]
    %v402 = vld [vmem:[#allocation7 + $0x428] sm:$0xff]
    %v403 = vld [vmem:[#allocation7 + $0x430] sm:$0xff]
    %v404 = vld [vmem:[#allocation7 + $0x438] sm:$0xff]
    %v405 = vld [vmem:[#allocation7 + $0x440] sm:$0xff]
    %v406 = vld [vmem:[#allocation7 + $0x448] sm:$0xff]
    %v407 = vld [vmem:[#allocation7 + $0x450] sm:$0xff]
    %v408 = vld [vmem:[#allocation7 + $0x458] sm:$0xff]
    %v409 = vld [vmem:[#allocation7 + $0x460] sm:$0xff]
    %v410 = vld [vmem:[#allocation7 + $0x468] sm:$0xff]
    %v411 = vld [vmem:[#allocation7 + $0x470] sm:$0xff]
    %v412 = vld [vmem:[#allocation7 + $0x478] sm:$0xff]
    %v413 = vld [vmem:[#allocation7 + $0x480] sm:$0xff]
    %v414 = vld [vmem:[#allocation7 + $0x488] sm:$0xff]
    %v415 = vld [vmem:[#allocation7 + $0x490] sm:$0xff]
    %v416 = vld [vmem:[#allocation7 + $0x498] sm:$0xff]
    %v417 = vld [vmem:[#allocation7 + $0x4a0] sm:$0xff]
    %v418 = vld [vmem:[#allocation7 + $0x4a8] sm:$0xff]
    %v419 = vld [vmem:[#allocation7 + $0x4b0] sm:$0xff]
    %v420 = vld [vmem:[#allocation7 + $0x4b8] sm:$0xff]
    %v421 = vld [vmem:[#allocation7 + $0x4c0] sm:$0xff]
    %v422 = vld [vmem:[#allocation7 + $0x4c8] sm:$0xff]
    %v423 = vld [vmem:[#allocation7 + $0x4d0] sm:$0xff]
    %v424 = vld [vmem:[#allocation7 + $0x4d8] sm:$0xff]
    %v425 = vld [vmem:[#allocation7 + $0x4e0] sm:$0xff]
    %v426 = vld [vmem:[#allocation7 + $0x4e8] sm:$0xff]
    %v427 = vld [vmem:[#allocation7 + $0x4f0] sm:$0xff]
    %v428 = vld [vmem:[#allocation7 + $0x4f8] sm:$0xff]
    %v429 = vld [vmem:[#allocation7 + $0x500] sm:$0xff]
    %v430 = vld [vmem:[#allocation7 + $0x508] sm:$0xff]
    %v431 = vld [vmem:[#allocation7 + $0x510] sm:$0xff]
    %v432 = vld [vmem:[#allocation7 + $0x518] sm:$0xff]
    %v433 = vld [vmem:[#allocation7 + $0x520] sm:$0xff]
    %v434 = vld [vmem:[#allocation7 + $0x528] sm:$0xff]
    %v435 = vld [vmem:[#allocation7 + $0x530] sm:$0xff]
    %v436 = vld [vmem:[#allocation7 + $0x538] sm:$0xff]
    %v437 = vld [vmem:[#allocation7 + $0x540] sm:$0xff]
    %v438 = vld [vmem:[#allocation7 + $0x548] sm:$0xff]
    %v439 = vld [vmem:[#allocation7 + $0x550] sm:$0xff]
    %v440 = vld [vmem:[#allocation7 + $0x558] sm:$0xff]
    %v441 = vld [vmem:[#allocation7 + $0x560] sm:$0xff]
    %v442 = vld [vmem:[#allocation7 + $0x568] sm:$0xff]
    %v443 = vld [vmem:[#allocation7 + $0x570] sm:$0xff]
    %v444 = vld [vmem:[#allocation7 + $0x578] sm:$0xff]
    %v445 = vld [vmem:[#allocation7 + $0x580] sm:$0xff]
    %v446 = vld [vmem:[#allocation7 + $0x588] sm:$0xff]
    %v447 = vld [vmem:[#allocation7 + $0x590] sm:$0xff]
    %v448 = vld [vmem:[#allocation7 + $0x598] sm:$0xff]
    %v449 = vld [vmem:[#allocation7 + $0x5a0] sm:$0xff]
    %v450 = vld [vmem:[#allocation7 + $0x5a8] sm:$0xff]
    %v451 = vld [vmem:[#allocation7 + $0x5b0] sm:$0xff]
    %v452 = vld [vmem:[#allocation7 + $0x5b8] sm:$0xff]
    %v453 = vld [vmem:[#allocation7 + $0x5c0] sm:$0xff]
    %v454 = vld [vmem:[#allocation7 + $0x5c8] sm:$0xff]
    %v455 = vld [vmem:[#allocation7 + $0x5d0] sm:$0xff]
    %v456 = vld [vmem:[#allocation7 + $0x5d8] sm:$0xff]
    %v457 = vld [vmem:[#allocation7 + $0x5e0] sm:$0xff]
    %v458 = vld [vmem:[#allocation7 + $0x5e8] sm:$0xff]
    %v459 = vld [vmem:[#allocation7 + $0x5f0] sm:$0xff]
    %v460 = vld [vmem:[#allocation7 + $0x5f8] sm:$0xff]
    %v461 = vld [vmem:[#allocation7 + $0x600] sm:$0xff]
    %v462 = vld [vmem:[#allocation7 + $0x608] sm:$0xff]
    %v463 = vld [vmem:[#allocation7 + $0x610] sm:$0xff]
    %v464 = vld [vmem:[#allocation7 + $0x618] sm:$0xff]
    %v465 = vld [vmem:[#allocation7 + $0x620] sm:$0xff]
    %v466 = vld [vmem:[#allocation7 + $0x628] sm:$0xff]
    %v467 = vld [vmem:[#allocation7 + $0x630] sm:$0xff]
    %v468 = vld [vmem:[#allocation7 + $0x638] sm:$0xff]
    %v469 = vld [vmem:[#allocation7 + $0x640] sm:$0xff]
    %v470 = vld [vmem:[#allocation7 + $0x648] sm:$0xff]
    %v471 = vld [vmem:[#allocation7 + $0x650] sm:$0xff]
    %v472 = vld [vmem:[#allocation7 + $0x658] sm:$0xff]
    %v473 = vld [vmem:[#allocation7 + $0x660] sm:$0xff]
    %v474 = vld [vmem:[#allocation7 + $0x668] sm:$0xff]
    %v475 = vld [vmem:[#allocation7 + $0x670] sm:$0xff]
    %v476 = vld [vmem:[#allocation7 + $0x678] sm:$0xff]
    %v477 = vld [vmem:[#allocation7 + $0x680] sm:$0xff]
    %v478 = vld [vmem:[#allocation7 + $0x688] sm:$0xff]
    %v479 = vld [vmem:[#allocation7 + $0x690] sm:$0xff]
    %v480 = vld [vmem:[#allocation7 + $0x698] sm:$0xff]
    %v481 = vld [vmem:[#allocation7 + $0x6a0] sm:$0xff]
    %v482 = vld [vmem:[#allocation7 + $0x6a8] sm:$0xff]
    %v483 = vld [vmem:[#allocation7 + $0x6b0] sm:$0xff]
    %v484 = vld [vmem:[#allocation7 + $0x6b8] sm:$0xff]
    %v485 = vld [vmem:[#allocation7 + $0x6c0] sm:$0xff]
    %v486 = vld [vmem:[#allocation7 + $0x6c8] sm:$0xff]
    %v487 = vld [vmem:[#allocation7 + $0x6d0] sm:$0xff]
    %v488 = vld [vmem:[#allocation7 + $0x6d8] sm:$0xff]
    %v489 = vld [vmem:[#allocation7 + $0x6e0] sm:$0xff]
    %v490 = vld [vmem:[#allocation7 + $0x6e8] sm:$0xff]
    %v491 = vld [vmem:[#allocation7 + $0x6f0] sm:$0xff]
    %v492 = vld [vmem:[#allocation7 + $0x6f8] sm:$0xff]
    %v493 = vld [vmem:[#allocation7 + $0x700] sm:$0xff]
    %v494 = vld [vmem:[#allocation7 + $0x708] sm:$0xff]
    %v495 = vld [vmem:[#allocation7 + $0x710] sm:$0xff]
    %v496 = vld [vmem:[#allocation7 + $0x718] sm:$0xff]
    %v497 = vld [vmem:[#allocation7 + $0x720] sm:$0xff]
    %v498 = vld [vmem:[#allocation7 + $0x728] sm:$0xff]
    %v499 = vld [vmem:[#allocation7 + $0x730] sm:$0xff]
    %v500 = vld [vmem:[#allocation7 + $0x738] sm:$0xff]
    %v501 = vld [vmem:[#allocation7 + $0x740] sm:$0xff]
    %v502 = vld [vmem:[#allocation7 + $0x748] sm:$0xff]
    %v503 = vld [vmem:[#allocation7 + $0x750] sm:$0xff]
    %v504 = vld [vmem:[#allocation7 + $0x758] sm:$0xff]
    %v505 = vld [vmem:[#allocation7 + $0x760] sm:$0xff]
    %v506 = vld [vmem:[#allocation7 + $0x768] sm:$0xff]
    %v507 = vld [vmem:[#allocation7 + $0x770] sm:$0xff]
    %v508 = vld [vmem:[#allocation7 + $0x778] sm:$0xff]
    %v509 = vld [vmem:[#allocation7 + $0x780] sm:$0xff]
    %v510 = vld [vmem:[#allocation7 + $0x788] sm:$0xff]
    %v511 = vld [vmem:[#allocation7 + $0x790] sm:$0xff]
    %v512 = vld [vmem:[#allocation7 + $0x798] sm:$0xff]
    %v513 = vld [vmem:[#allocation7 + $0x7a0] sm:$0xff]
    %v514 = vld [vmem:[#allocation7 + $0x7a8] sm:$0xff]
    %v515 = vld [vmem:[#allocation7 + $0x7b0] sm:$0xff]
    %v516 = vld [vmem:[#allocation7 + $0x7b8] sm:$0xff]
    %v517 = vld [vmem:[#allocation7 + $0x7c0] sm:$0xff]
    %v518 = vld [vmem:[#allocation7 + $0x7c8] sm:$0xff]
    %v519 = vld [vmem:[#allocation7 + $0x7d0] sm:$0xff]
    %v520 = vld [vmem:[#allocation7 + $0x7d8] sm:$0xff]
    %v521 = vld [vmem:[#allocation7 + $0x7e0] sm:$0xff]
    %v522 = vld [vmem:[#allocation7 + $0x7e8] sm:$0xff]
    %v523 = vld [vmem:[#allocation7 + $0x7f0] sm:$0xff]
    %v524 = vld [vmem:[#allocation7 + $0x7f8] sm:$0xff]
    %v525 = vld [vmem:[#allocation7 + $0x800] sm:$0xff]
    %v526 = vld [vmem:[#allocation7 + $0x808] sm:$0xff]
    %v527 = vld [vmem:[#allocation7 + $0x810] sm:$0xff]
    %v528 = vld [vmem:[#allocation7 + $0x818] sm:$0xff]
    %v529 = vld [vmem:[#allocation7 + $0x820] sm:$0xff]
    %v530 = vld [vmem:[#allocation7 + $0x828] sm:$0xff]
    %v531 = vld [vmem:[#allocation7 + $0x830] sm:$0xff]
    %v532 = vld [vmem:[#allocation7 + $0x838] sm:$0xff]
    %v533 = vld [vmem:[#allocation7 + $0x840] sm:$0xff]
    %v534 = vld [vmem:[#allocation7 + $0x848] sm:$0xff]
    %v535 = vld [vmem:[#allocation7 + $0x850] sm:$0xff]
    %v536 = vld [vmem:[#allocation7 + $0x858] sm:$0xff]
    %v537 = vld [vmem:[#allocation7 + $0x860] sm:$0xff]
    %v538 = vld [vmem:[#allocation7 + $0x868] sm:$0xff]
    %v539 = vld [vmem:[#allocation7 + $0x870] sm:$0xff]
    %v540 = vld [vmem:[#allocation7 + $0x878] sm:$0xff]
    %v541 = vld [vmem:[#allocation7 + $0x880] sm:$0xff]
    %v542 = vld [vmem:[#allocation7 + $0x888] sm:$0xff]
    %v543 = vld [vmem:[#allocation7 + $0x890] sm:$0xff]
    %v544 = vld [vmem:[#allocation7 + $0x898] sm:$0xff]
    %v545 = vld [vmem:[#allocation7 + $0x8a0] sm:$0xff]
    %v546 = vld [vmem:[#allocation7 + $0x8a8] sm:$0xff]
    %v547 = vld [vmem:[#allocation7 + $0x8b0] sm:$0xff]
    %v548 = vld [vmem:[#allocation7 + $0x8b8] sm:$0xff]
    %v549 = vld [vmem:[#allocation7 + $0x8c0] sm:$0xff]
    %v550 = vld [vmem:[#allocation7 + $0x8c8] sm:$0xff]
    %v551 = vld [vmem:[#allocation7 + $0x8d0] sm:$0xff]
    %v552 = vld [vmem:[#allocation7 + $0x8d8] sm:$0xff]
    %v553 = vld [vmem:[#allocation7 + $0x8e0] sm:$0xff]
    %v554 = vld [vmem:[#allocation7 + $0x8e8] sm:$0xff]
    %v555 = vld [vmem:[#allocation7 + $0x8f0] sm:$0xff]
    %v556 = vld [vmem:[#allocation7 + $0x8f8] sm:$0xff]
    %v557 = vld [vmem:[#allocation7 + $0x900] sm:$0xff]
    %v558 = vld [vmem:[#allocation7 + $0x908] sm:$0xff]
    %v559 = vld [vmem:[#allocation7 + $0x910] sm:$0xff]
    %v560 = vld [vmem:[#allocation7 + $0x918] sm:$0xff]
    %v561 = vld [vmem:[#allocation7 + $0x920] sm:$0xff]
    %v562 = vld [vmem:[#allocation7 + $0x928] sm:$0xff]
    %v563 = vld [vmem:[#allocation7 + $0x930] sm:$0xff]
    %v564 = vld [vmem:[#allocation7 + $0x938] sm:$0xff]
    %v565 = vld [vmem:[#allocation7 + $0x940] sm:$0xff]
    %v566 = vld [vmem:[#allocation7 + $0x948] sm:$0xff]
    %v567 = vld [vmem:[#allocation7 + $0x950] sm:$0xff]
    %v568 = vld [vmem:[#allocation7 + $0x958] sm:$0xff]
    %v569 = vld [vmem:[#allocation7 + $0x960] sm:$0xff]
    %v570 = vld [vmem:[#allocation7 + $0x968] sm:$0xff]
    %v571 = vld [vmem:[#allocation7 + $0x970] sm:$0xff]
    %v572 = vld [vmem:[#allocation7 + $0x978] sm:$0xff]
    %v573 = vld [vmem:[#allocation7 + $0x980] sm:$0xff]
    %v574 = vld [vmem:[#allocation7 + $0x988] sm:$0xff]
    %v575 = vld [vmem:[#allocation7 + $0x990] sm:$0xff]
    %v576 = vld [vmem:[#allocation7 + $0x998] sm:$0xff]
    %v577 = vld [vmem:[#allocation7 + $0x9a0] sm:$0xff]
    %v578 = vld [vmem:[#allocation7 + $0x9a8] sm:$0xff]
    %v579 = vld [vmem:[#allocation7 + $0x9b0] sm:$0xff]
    %v580 = vld [vmem:[#allocation7 + $0x9b8] sm:$0xff]
    %v581 = vld [vmem:[#allocation7 + $0x9c0] sm:$0xff]
    %v582 = vld [vmem:[#allocation7 + $0x9c8] sm:$0xff]
    %v583 = vld [vmem:[#allocation7 + $0x9d0] sm:$0xff]
    %v584 = vld [vmem:[#allocation7 + $0x9d8] sm:$0xff]
    %v585 = vld [vmem:[#allocation7 + $0x9e0] sm:$0xff]
    %v586 = vld [vmem:[#allocation7 + $0x9e8] sm:$0xff]
    %v587 = vld [vmem:[#allocation7 + $0x9f0] sm:$0xff]
    %v588 = vld [vmem:[#allocation7 + $0x9f8] sm:$0xff]
    %v589 = vld [vmem:[#allocation7 + $0xa00] sm:$0xff]
    %v590 = vld [vmem:[#allocation7 + $0xa08] sm:$0xff]
    %v591 = vld [vmem:[#allocation7 + $0xa10] sm:$0xff]
    %v592 = vld [vmem:[#allocation7 + $0xa18] sm:$0xff]
    %v593 = vld [vmem:[#allocation7 + $0xa20] sm:$0xff]
    %v594 = vld [vmem:[#allocation7 + $0xa28] sm:$0xff]
    %v595 = vld [vmem:[#allocation7 + $0xa30] sm:$0xff]
    %v596 = vld [vmem:[#allocation7 + $0xa38] sm:$0xff]
    %v597 = vld [vmem:[#allocation7 + $0xa40] sm:$0xff]
    %v598 = vld [vmem:[#allocation7 + $0xa48] sm:$0xff]
    %v599 = vld [vmem:[#allocation7 + $0xa50] sm:$0xff]
    %v600 = vld [vmem:[#allocation7 + $0xa58] sm:$0xff]
    %v601 = vld [vmem:[#allocation7 + $0xa60] sm:$0xff]
    %v602 = vld [vmem:[#allocation7 + $0xa68] sm:$0xff]
    %v603 = vld [vmem:[#allocation7 + $0xa70] sm:$0xff]
    %v604 = vld [vmem:[#allocation7 + $0xa78] sm:$0xff]
    %v605 = vld [vmem:[#allocation7 + $0xa80] sm:$0xff]
    %v606 = vld [vmem:[#allocation7 + $0xa88] sm:$0xff]
    %v607 = vld [vmem:[#allocation7 + $0xa90] sm:$0xff]
    %v608 = vld [vmem:[#allocation7 + $0xa98] sm:$0xff]
    %v609 = vld [vmem:[#allocation7 + $0xaa0] sm:$0xff]
    %v610 = vld [vmem:[#allocation7 + $0xaa8] sm:$0xff]
    %v611 = vld [vmem:[#allocation7 + $0xab0] sm:$0xff]
    %v612 = vld [vmem:[#allocation7 + $0xab8] sm:$0xff]
    %v613 = vld [vmem:[#allocation7 + $0xac0] sm:$0xff]
    %v614 = vld [vmem:[#allocation7 + $0xac8] sm:$0xff]
    %v615 = vld [vmem:[#allocation7 + $0xad0] sm:$0xff]
    %v616 = vld [vmem:[#allocation7 + $0xad8] sm:$0xff]
    %v617 = vld [vmem:[#allocation7 + $0xae0] sm:$0xff]
    %v618 = vld [vmem:[#allocation7 + $0xae8] sm:$0xff]
    %v619 = vld [vmem:[#allocation7 + $0xaf0] sm:$0xff]
    %v620 = vld [vmem:[#allocation7 + $0xaf8] sm:$0xff]
    %v621 = vld [vmem:[#allocation7 + $0xb00] sm:$0xff]
    %v622 = vld [vmem:[#allocation7 + $0xb08] sm:$0xff]
    %v623 = vld [vmem:[#allocation7 + $0xb10] sm:$0xff]
    %v624 = vld [vmem:[#allocation7 + $0xb18] sm:$0xff]
    %v625 = vld [vmem:[#allocation7 + $0xb20] sm:$0xff]
    %v626 = vld [vmem:[#allocation7 + $0xb28] sm:$0xff]
    %v627 = vld [vmem:[#allocation7 + $0xb30] sm:$0xff]
    %v628 = vld [vmem:[#allocation7 + $0xb38] sm:$0xff]
    %v629 = vld [vmem:[#allocation7 + $0xb40] sm:$0xff]
    %v630 = vld [vmem:[#allocation7 + $0xb48] sm:$0xff]
    %v631 = vld [vmem:[#allocation7 + $0xb50] sm:$0xff]
    %v632 = vld [vmem:[#allocation7 + $0xb58] sm:$0xff]
    %v633 = vld [vmem:[#allocation7 + $0xb60] sm:$0xff]
    %v634 = vld [vmem:[#allocation7 + $0xb68] sm:$0xff]
    %v635 = vld [vmem:[#allocation7 + $0xb70] sm:$0xff]
    %v636 = vld [vmem:[#allocation7 + $0xb78] sm:$0xff]
    %v637 = vld [vmem:[#allocation7 + $0xb80] sm:$0xff]
    %v638 = vld [vmem:[#allocation7 + $0xb88] sm:$0xff]
    %v639 = vld [vmem:[#allocation7 + $0xb90] sm:$0xff]
    %v640 = vld [vmem:[#allocation7 + $0xb98] sm:$0xff]
    %v641 = vld [vmem:[#allocation7 + $0xba0] sm:$0xff]
    %v642 = vld [vmem:[#allocation7 + $0xba8] sm:$0xff]
    %v643 = vld [vmem:[#allocation7 + $0xbb0] sm:$0xff]
    %v644 = vld [vmem:[#allocation7 + $0xbb8] sm:$0xff]
    %v645 = vld [vmem:[#allocation7 + $0xbc0] sm:$0xff]
    %v646 = vld [vmem:[#allocation7 + $0xbc8] sm:$0xff]
    %v647 = vld [vmem:[#allocation7 + $0xbd0] sm:$0xff]
    %v648 = vld [vmem:[#allocation7 + $0xbd8] sm:$0xff]
    %v649 = vld [vmem:[#allocation7 + $0xbe0] sm:$0xff]
    %v650 = vld [vmem:[#allocation7 + $0xbe8] sm:$0xff]
    %v651 = vld [vmem:[#allocation7 + $0xbf0] sm:$0xff]
    %v652 = vld [vmem:[#allocation7 + $0xbf8] sm:$0xff]
    %v653 = vld [vmem:[#allocation7 + $0xc00] sm:$0xff]
    %v654 = vld [vmem:[#allocation7 + $0xc08] sm:$0xff]
    %v655 = vld [vmem:[#allocation7 + $0xc10] sm:$0xff]
    %v656 = vld [vmem:[#allocation7 + $0xc18] sm:$0xff]
    %v657 = vld [vmem:[#allocation7 + $0xc20] sm:$0xff]
    %v658 = vld [vmem:[#allocation7 + $0xc28] sm:$0xff]
    %v659 = vld [vmem:[#allocation7 + $0xc30] sm:$0xff]
    %v660 = vld [vmem:[#allocation7 + $0xc38] sm:$0xff]
    %v661 = vld [vmem:[#allocation7 + $0xc40] sm:$0xff]
    %v662 = vld [vmem:[#allocation7 + $0xc48] sm:$0xff]
    %v663 = vld [vmem:[#allocation7 + $0xc50] sm:$0xff]
    %v664 = vld [vmem:[#allocation7 + $0xc58] sm:$0xff]
    %v665 = vld [vmem:[#allocation7 + $0xc60] sm:$0xff]
    %v666 = vld [vmem:[#allocation7 + $0xc68] sm:$0xff]
    %v667 = vld [vmem:[#allocation7 + $0xc70] sm:$0xff]
    %v668 = vld [vmem:[#allocation7 + $0xc78] sm:$0xff]
    %v669 = vld [vmem:[#allocation7 + $0xc80] sm:$0xff]
    %v670 = vld [vmem:[#allocation7 + $0xc88] sm:$0xff]
    %v671 = vld [vmem:[#allocation7 + $0xc90] sm:$0xff]
    %v672 = vld [vmem:[#allocation7 + $0xc98] sm:$0xff]
    %v673 = vld [vmem:[#allocation7 + $0xca0] sm:$0xff]
    %v674 = vld [vmem:[#allocation7 + $0xca8] sm:$0xff]
    %v675 = vld [vmem:[#allocation7 + $0xcb0] sm:$0xff]
    %v676 = vld [vmem:[#allocation7 + $0xcb8] sm:$0xff]
    %v677 = vld [vmem:[#allocation7 + $0xcc0] sm:$0xff]
    %v678 = vld [vmem:[#allocation7 + $0xcc8] sm:$0xff]
    %v679 = vld [vmem:[#allocation7 + $0xcd0] sm:$0xff]
    %v680 = vld [vmem:[#allocation7 + $0xcd8] sm:$0xff]
    %v681 = vld [vmem:[#allocation7 + $0xce0] sm:$0xff]
    %v682 = vld [vmem:[#allocation7 + $0xce8] sm:$0xff]
    %v683 = vld [vmem:[#allocation7 + $0xcf0] sm:$0xff]
    %v684 = vld [vmem:[#allocation7 + $0xcf8] sm:$0xff]
    %v685 = vld [vmem:[#allocation7 + $0xd00] sm:$0xff]
    %v686 = vld [vmem:[#allocation7 + $0xd08] sm:$0xff]
    %v687 = vld [vmem:[#allocation7 + $0xd10] sm:$0xff]
    %v688 = vld [vmem:[#allocation7 + $0xd18] sm:$0xff]
    %v689 = vld [vmem:[#allocation7 + $0xd20] sm:$0xff]
    %v690 = vld [vmem:[#allocation7 + $0xd28] sm:$0xff]
    %v691 = vld [vmem:[#allocation7 + $0xd30] sm:$0xff]
    %v692 = vld [vmem:[#allocation7 + $0xd38] sm:$0xff]
    %v693 = vld [vmem:[#allocation7 + $0xd40] sm:$0xff]
    %v694 = vld [vmem:[#allocation7 + $0xd48] sm:$0xff]
    %v695 = vld [vmem:[#allocation7 + $0xd50] sm:$0xff]
    %v696 = vld [vmem:[#allocation7 + $0xd58] sm:$0xff]
    %v697 = vld [vmem:[#allocation7 + $0xd60] sm:$0xff]
    %v698 = vld [vmem:[#allocation7 + $0xd68] sm:$0xff]
    %v699 = vld [vmem:[#allocation7 + $0xd70] sm:$0xff]
    %v700 = vld [vmem:[#allocation7 + $0xd78] sm:$0xff]
    %v701 = vld [vmem:[#allocation7 + $0xd80] sm:$0xff]
    %v702 = vld [vmem:[#allocation7 + $0xd88] sm:$0xff]
    %v703 = vld [vmem:[#allocation7 + $0xd90] sm:$0xff]
    %v704 = vld [vmem:[#allocation7 + $0xd98] sm:$0xff]
    %v705 = vld [vmem:[#allocation7 + $0xda0] sm:$0xff]
    %v706 = vld [vmem:[#allocation7 + $0xda8] sm:$0xff]
    %v707 = vld [vmem:[#allocation7 + $0xdb0] sm:$0xff]
    %v708 = vld [vmem:[#allocation7 + $0xdb8] sm:$0xff]
    %v709 = vld [vmem:[#allocation7 + $0xdc0] sm:$0xff]
    %v710 = vld [vmem:[#allocation7 + $0xdc8] sm:$0xff]
    %v711 = vld [vmem:[#allocation7 + $0xdd0] sm:$0xff]
    %v712 = vld [vmem:[#allocation7 + $0xdd8] sm:$0xff]
    %v713 = vld [vmem:[#allocation7 + $0xde0] sm:$0xff]
    %v714 = vld [vmem:[#allocation7 + $0xde8] sm:$0xff]
    %v715 = vld [vmem:[#allocation7 + $0xdf0] sm:$0xff]
    %v716 = vld [vmem:[#allocation7 + $0xdf8] sm:$0xff]
    %v717 = vld [vmem:[#allocation7 + $0xe00] sm:$0xff]
    %v718 = vld [vmem:[#allocation7 + $0xe08] sm:$0xff]
    %v719 = vld [vmem:[#allocation7 + $0xe10] sm:$0xff]
    %v720 = vld [vmem:[#allocation7 + $0xe18] sm:$0xff]
    %v721 = vld [vmem:[#allocation7 + $0xe20] sm:$0xff]
    %v722 = vld [vmem:[#allocation7 + $0xe28] sm:$0xff]
    %v723 = vld [vmem:[#allocation7 + $0xe30] sm:$0xff]
    %v724 = vld [vmem:[#allocation7 + $0xe38] sm:$0xff]
    %v725 = vld [vmem:[#allocation7 + $0xe40] sm:$0xff]
    %v726 = vld [vmem:[#allocation7 + $0xe48] sm:$0xff]
    %v727 = vld [vmem:[#allocation7 + $0xe50] sm:$0xff]
    %v728 = vld [vmem:[#allocation7 + $0xe58] sm:$0xff]
    %v729 = vld [vmem:[#allocation7 + $0xe60] sm:$0xff]
    %v730 = vld [vmem:[#allocation7 + $0xe68] sm:$0xff]
    %v731 = vld [vmem:[#allocation7 + $0xe70] sm:$0xff]
    %v732 = vld [vmem:[#allocation7 + $0xe78] sm:$0xff]
    %v733 = vld [vmem:[#allocation7 + $0xe80] sm:$0xff]
    %v734 = vld [vmem:[#allocation7 + $0xe88] sm:$0xff]
    %v735 = vld [vmem:[#allocation7 + $0xe90] sm:$0xff]
    %v736 = vld [vmem:[#allocation7 + $0xe98] sm:$0xff]
    %v737 = vld [vmem:[#allocation7 + $0xea0] sm:$0xff]
    %v738 = vld [vmem:[#allocation7 + $0xea8] sm:$0xff]
    %v739 = vld [vmem:[#allocation7 + $0xeb0] sm:$0xff]
    %v740 = vld [vmem:[#allocation7 + $0xeb8] sm:$0xff]
    %v741 = vld [vmem:[#allocation7 + $0xec0] sm:$0xff]
    %v742 = vld [vmem:[#allocation7 + $0xec8] sm:$0xff]
    %v743 = vld [vmem:[#allocation7 + $0xed0] sm:$0xff]
    %v744 = vld [vmem:[#allocation7 + $0xed8] sm:$0xff]
    %v745 = vld [vmem:[#allocation7 + $0xee0] sm:$0xff]
    %v746 = vld [vmem:[#allocation7 + $0xee8] sm:$0xff]
    %v747 = vld [vmem:[#allocation7 + $0xef0] sm:$0xff]
    %v748 = vld [vmem:[#allocation7 + $0xef8] sm:$0xff]
    %v749 = vld [vmem:[#allocation7 + $0xf00] sm:$0xff]
    %v750 = vld [vmem:[#allocation7 + $0xf08] sm:$0xff]
    %v751 = vld [vmem:[#allocation7 + $0xf10] sm:$0xff]
    %v752 = vld [vmem:[#allocation7 + $0xf18] sm:$0xff]
    %v753 = vld [vmem:[#allocation7 + $0xf20] sm:$0xff]
    %v754 = vld [vmem:[#allocation7 + $0xf28] sm:$0xff]
    %v755 = vld [vmem:[#allocation7 + $0xf30] sm:$0xff]
    %v756 = vld [vmem:[#allocation7 + $0xf38] sm:$0xff]
    %v757 = vld [vmem:[#allocation7 + $0xf40] sm:$0xff]
    %v758 = vld [vmem:[#allocation7 + $0xf48] sm:$0xff]
    %v759 = vld [vmem:[#allocation7 + $0xf50] sm:$0xff]
    %v760 = vld [vmem:[#allocation7 + $0xf58] sm:$0xff]
    %v761 = vld [vmem:[#allocation7 + $0xf60] sm:$0xff]
    %v762 = vld [vmem:[#allocation7 + $0xf68] sm:$0xff]
    %v763 = vld [vmem:[#allocation7 + $0xf70] sm:$0xff]
    %v764 = vld [vmem:[#allocation7 + $0xf78] sm:$0xff]
    %v765 = vld [vmem:[#allocation7 + $0xf80] sm:$0xff]
    %v766 = vld [vmem:[#allocation7 + $0xf88] sm:$0xff]
    %v767 = vld [vmem:[#allocation7 + $0xf90] sm:$0xff]
    %v768 = vld [vmem:[#allocation7 + $0xf98] sm:$0xff]
    %v769 = vld [vmem:[#allocation7 + $0xfa0] sm:$0xff]
    %v770 = vld [vmem:[#allocation7 + $0xfa8] sm:$0xff]
    %v771 = vld [vmem:[#allocation7 + $0xfb0] sm:$0xff]
    %v772 = vld [vmem:[#allocation7 + $0xfb8] sm:$0xff]
    %v773 = vld [vmem:[#allocation7 + $0xfc0] sm:$0xff]
    %v774 = vld [vmem:[#allocation7 + $0xfc8] sm:$0xff]
    %v775 = vld [vmem:[#allocation7 + $0xfd0] sm:$0xff]
    %v776 = vld [vmem:[#allocation7 + $0xfd8] sm:$0xff]
    %v777 = vld [vmem:[#allocation7 + $0xfe0] sm:$0xff]
    %v778 = vld [vmem:[#allocation7 + $0xfe8] sm:$0xff]
    %v779 = vld [vmem:[#allocation7 + $0xff0] sm:$0xff]
    %v780 = vld [vmem:[#allocation7 + $0xff8] sm:$0xff]
    %v781 = vld [vmem:[#allocation7 + $0x1000] sm:$0xff]
    %v782 = vld [vmem:[#allocation7 + $0x1008] sm:$0xff]
    %v783 = vld [vmem:[#allocation7 + $0x1010] sm:$0xff]
    %v784 = vld [vmem:[#allocation7 + $0x1018] sm:$0xff]
    %v785 = vld [vmem:[#allocation7 + $0x1020] sm:$0xff]
    %v786 = vld [vmem:[#allocation7 + $0x1028] sm:$0xff]
    %v787 = vld [vmem:[#allocation7 + $0x1030] sm:$0xff]
    %v788 = vld [vmem:[#allocation7 + $0x1038] sm:$0xff]
    %v789 = vld [vmem:[#allocation7 + $0x1040] sm:$0xff]
    %v790 = vld [vmem:[#allocation7 + $0x1048] sm:$0xff]
    %v791 = vld [vmem:[#allocation7 + $0x1050] sm:$0xff]
    %v792 = vld [vmem:[#allocation7 + $0x1058] sm:$0xff]
    %v793 = vld [vmem:[#allocation7 + $0x1060] sm:$0xff]
    %v794 = vld [vmem:[#allocation7 + $0x1068] sm:$0xff]
    %v795 = vld [vmem:[#allocation7 + $0x1070] sm:$0xff]
    %v796 = vld [vmem:[#allocation7 + $0x1078] sm:$0xff]
    %v797 = vld [vmem:[#allocation7 + $0x1080] sm:$0xff]
    %v798 = vld [vmem:[#allocation7 + $0x1088] sm:$0xff]
    %v799 = vld [vmem:[#allocation7 + $0x1090] sm:$0xff]
    %v800 = vld [vmem:[#allocation7 + $0x1098] sm:$0xff]
    %v801 = vld [vmem:[#allocation7 + $0x10a0] sm:$0xff]
    %v802 = vld [vmem:[#allocation7 + $0x10a8] sm:$0xff]
    %v803 = vld [vmem:[#allocation7 + $0x10b0] sm:$0xff]
    %v804 = vld [vmem:[#allocation7 + $0x10b8] sm:$0xff]
    %v805 = vld [vmem:[#allocation7 + $0x10c0] sm:$0xff]
    %v806 = vld [vmem:[#allocation7 + $0x10c8] sm:$0xff]
    %v807 = vld [vmem:[#allocation7 + $0x10d0] sm:$0xff]
    %v808 = vld [vmem:[#allocation7 + $0x10d8] sm:$0xff]
    %v809 = vld [vmem:[#allocation7 + $0x10e0] sm:$0xff]
    %v810 = vld [vmem:[#allocation7 + $0x10e8] sm:$0xff]
    %v811 = vld [vmem:[#allocation7 + $0x10f0] sm:$0xff]
    %v812 = vld [vmem:[#allocation7 + $0x10f8] sm:$0xff]
    %v813 = vld [vmem:[#allocation7 + $0x1100] sm:$0xff]
    %v814 = vld [vmem:[#allocation7 + $0x1108] sm:$0xff]
    %v815 = vld [vmem:[#allocation7 + $0x1110] sm:$0xff]
    %v816 = vld [vmem:[#allocation7 + $0x1118] sm:$0xff]
    %v817 = vld [vmem:[#allocation7 + $0x1120] sm:$0xff]
    %v818 = vld [vmem:[#allocation7 + $0x1128] sm:$0xff]
    %v819 = vld [vmem:[#allocation7 + $0x1130] sm:$0xff]
    %v820 = vld [vmem:[#allocation7 + $0x1138] sm:$0xff]
    %v821 = vld [vmem:[#allocation7 + $0x1140] sm:$0xff]
    %v822 = vld [vmem:[#allocation7 + $0x1148] sm:$0xff]
    %v823 = vld [vmem:[#allocation7 + $0x1150] sm:$0xff]
    %v824 = vld [vmem:[#allocation7 + $0x1158] sm:$0xff]
    %v825 = vld [vmem:[#allocation7 + $0x1160] sm:$0xff]
    %v826 = vld [vmem:[#allocation7 + $0x1168] sm:$0xff]
    %v827 = vld [vmem:[#allocation7 + $0x1170] sm:$0xff]
    %v828 = vld [vmem:[#allocation7 + $0x1178] sm:$0xff]
    %v829 = vld [vmem:[#allocation7 + $0x1180] sm:$0xff]
    %v830 = vld [vmem:[#allocation7 + $0x1188] sm:$0xff]
    %v831 = vld [vmem:[#allocation7 + $0x1190] sm:$0xff]
    %v832 = vld [vmem:[#allocation7 + $0x1198] sm:$0xff]
    %v833 = vld [vmem:[#allocation7 + $0x11a0] sm:$0xff]
    %v834 = vld [vmem:[#allocation7 + $0x11a8] sm:$0xff]
    %v835 = vld [vmem:[#allocation7 + $0x11b0] sm:$0xff]
    %v836 = vld [vmem:[#allocation7 + $0x11b8] sm:$0xff]
    %v837 = vld [vmem:[#allocation7 + $0x11c0] sm:$0xff]
    %v838 = vld [vmem:[#allocation7 + $0x11c8] sm:$0xff]
    %v839 = vld [vmem:[#allocation7 + $0x11d0] sm:$0xff]
    %v840 = vld [vmem:[#allocation7 + $0x11d8] sm:$0xff]
    %v841 = vld [vmem:[#allocation7 + $0x11e0] sm:$0xff]
    %v842 = vld [vmem:[#allocation7 + $0x11e8] sm:$0xff]
    %v843 = vld [vmem:[#allocation7 + $0x11f0] sm:$0xff]
    %v844 = vld [vmem:[#allocation7 + $0x11f8] sm:$0xff]
    %v845 = vld [vmem:[#allocation7 + $0x1200] sm:$0xff]
    %v846 = vld [vmem:[#allocation7 + $0x1208] sm:$0xff]
    %v847 = vld [vmem:[#allocation7 + $0x1210] sm:$0xff]
    %v848 = vld [vmem:[#allocation7 + $0x1218] sm:$0xff]
    %v849 = vld [vmem:[#allocation7 + $0x1220] sm:$0xff]
    %v850 = vld [vmem:[#allocation7 + $0x1228] sm:$0xff]
    %v851 = vld [vmem:[#allocation7 + $0x1230] sm:$0xff]
    %v852 = vld [vmem:[#allocation7 + $0x1238] sm:$0xff]
    %v853 = vld [vmem:[#allocation7 + $0x1240] sm:$0xff]
    %v854 = vld [vmem:[#allocation7 + $0x1248] sm:$0xff]
    %v855 = vld [vmem:[#allocation7 + $0x1250] sm:$0xff]
    %v856 = vld [vmem:[#allocation7 + $0x1258] sm:$0xff]
    %v857 = vld [vmem:[#allocation7 + $0x1260] sm:$0xff]
    %v858 = vld [vmem:[#allocation7 + $0x1268] sm:$0xff]
    %v859 = vld [vmem:[#allocation7 + $0x1270] sm:$0xff]
    %v860 = vld [vmem:[#allocation7 + $0x1278] sm:$0xff]
    %v861 = vld [vmem:[#allocation7 + $0x1280] sm:$0xff]
    %v862 = vld [vmem:[#allocation7 + $0x1288] sm:$0xff]
    %v863 = vld [vmem:[#allocation7 + $0x1290] sm:$0xff]
    %v864 = vld [vmem:[#allocation7 + $0x1298] sm:$0xff]
    %v865 = vld [vmem:[#allocation7 + $0x12a0] sm:$0xff]
    %v866 = vld [vmem:[#allocation7 + $0x12a8] sm:$0xff]
    %v867 = vld [vmem:[#allocation7 + $0x12b0] sm:$0xff]
    %v868 = vld [vmem:[#allocation7 + $0x12b8] sm:$0xff]
    %v869 = vld [vmem:[#allocation7 + $0x12c0] sm:$0xff]
    %v870 = vld [vmem:[#allocation7 + $0x12c8] sm:$0xff]
    %v871 = vld [vmem:[#allocation7 + $0x12d0] sm:$0xff]
    %v872 = vld [vmem:[#allocation7 + $0x12d8] sm:$0xff]
    %v873 = vld [vmem:[#allocation7 + $0x12e0] sm:$0xff]
    %v874 = vld [vmem:[#allocation7 + $0x12e8] sm:$0xff]
    %v875 = vld [vmem:[#allocation7 + $0x12f0] sm:$0xff]
    %v876 = vld [vmem:[#allocation7 + $0x12f8] sm:$0xff]
    %v877 = vld [vmem:[#allocation7 + $0x1300] sm:$0xff]
    %v878 = vld [vmem:[#allocation7 + $0x1308] sm:$0xff]
    %v879 = vld [vmem:[#allocation7 + $0x1310] sm:$0xff]
    %v880 = vld [vmem:[#allocation7 + $0x1318] sm:$0xff]
    %v881 = vld [vmem:[#allocation7 + $0x1320] sm:$0xff]
    %v882 = vld [vmem:[#allocation7 + $0x1328] sm:$0xff]
    %v883 = vld [vmem:[#allocation7 + $0x1330] sm:$0xff]
    %v884 = vld [vmem:[#allocation7 + $0x1338] sm:$0xff]
    %v885 = vld [vmem:[#allocation7 + $0x1340] sm:$0xff]
    %v886 = vld [vmem:[#allocation7 + $0x1348] sm:$0xff]
    %v887 = vld [vmem:[#allocation7 + $0x1350] sm:$0xff]
    %v888 = vld [vmem:[#allocation7 + $0x1358] sm:$0xff]
    %v889 = vld [vmem:[#allocation7 + $0x1360] sm:$0xff]
    %v890 = vld [vmem:[#allocation7 + $0x1368] sm:$0xff]
    %v891 = vld [vmem:[#allocation7 + $0x1370] sm:$0xff]
    %v892 = vld [vmem:[#allocation7 + $0x1378] sm:$0xff]
    %v893 = vld [vmem:[#allocation7 + $0x1380] sm:$0xff]
    %v894 = vld [vmem:[#allocation7 + $0x1388] sm:$0xff]
    %v895 = vld [vmem:[#allocation7 + $0x1390] sm:$0xff]
    %v896 = vld [vmem:[#allocation7 + $0x1398] sm:$0xff]
    %v897 = vld [vmem:[#allocation7 + $0x13a0] sm:$0xff]
    %v898 = vld [vmem:[#allocation7 + $0x13a8] sm:$0xff]
    %v899 = vld [vmem:[#allocation7 + $0x13b0] sm:$0xff]
    %v900 = vld [vmem:[#allocation7 + $0x13b8] sm:$0xff]
    %v901 = vld [vmem:[#allocation7 + $0x13c0] sm:$0xff]
    %v902 = vld [vmem:[#allocation7 + $0x13c8] sm:$0xff]
    %v903 = vld [vmem:[#allocation7 + $0x13d0] sm:$0xff]
    %v904 = vld [vmem:[#allocation7 + $0x13d8] sm:$0xff]
    %v905 = vld [vmem:[#allocation7 + $0x13e0] sm:$0xff]
    %v906 = vld [vmem:[#allocation7 + $0x13e8] sm:$0xff]
    %v907 = vld [vmem:[#allocation7 + $0x13f0] sm:$0xff]
    %v908 = vld [vmem:[#allocation7 + $0x13f8] sm:$0xff]
    %v909 = vld [vmem:[#allocation7 + $0x1400] sm:$0xff]
    %v910 = vld [vmem:[#allocation7 + $0x1408] sm:$0xff]
    %v911 = vld [vmem:[#allocation7 + $0x1410] sm:$0xff]
    %v912 = vld [vmem:[#allocation7 + $0x1418] sm:$0xff]
    %v913 = vld [vmem:[#allocation7 + $0x1420] sm:$0xff]
    %v914 = vld [vmem:[#allocation7 + $0x1428] sm:$0xff]
    %v915 = vld [vmem:[#allocation7 + $0x1430] sm:$0xff]
    %v916 = vld [vmem:[#allocation7 + $0x1438] sm:$0xff]
    %v917 = vld [vmem:[#allocation7 + $0x1440] sm:$0xff]
    %v918 = vld [vmem:[#allocation7 + $0x1448] sm:$0xff]
    %v919 = vld [vmem:[#allocation7 + $0x1450] sm:$0xff]
    %v920 = vld [vmem:[#allocation7 + $0x1458] sm:$0xff]
    %v921 = vld [vmem:[#allocation7 + $0x1460] sm:$0xff]
    %v922 = vld [vmem:[#allocation7 + $0x1468] sm:$0xff]
    %v923 = vld [vmem:[#allocation7 + $0x1470] sm:$0xff]
    %v924 = vld [vmem:[#allocation7 + $0x1478] sm:$0xff]
    %v925 = vld [vmem:[#allocation7 + $0x1480] sm:$0xff]
    %v926 = vld [vmem:[#allocation7 + $0x1488] sm:$0xff]
    %v927 = vld [vmem:[#allocation7 + $0x1490] sm:$0xff]
    %v928 = vld [vmem:[#allocation7 + $0x1498] sm:$0xff]
    %v929 = vld [vmem:[#allocation7 + $0x14a0] sm:$0xff]
    %v930 = vld [vmem:[#allocation7 + $0x14a8] sm:$0xff]
    %v931 = vld [vmem:[#allocation7 + $0x14b0] sm:$0xff]
    %v932 = vld [vmem:[#allocation7 + $0x14b8] sm:$0xff]
    %v933 = vld [vmem:[#allocation7 + $0x14c0] sm:$0xff]
    %v934 = vld [vmem:[#allocation7 + $0x14c8] sm:$0xff]
    %v935 = vld [vmem:[#allocation7 + $0x14d0] sm:$0xff]
    %v936 = vld [vmem:[#allocation7 + $0x14d8] sm:$0xff]
    %v937 = vld [vmem:[#allocation7 + $0x14e0] sm:$0xff]
    %v938 = vld [vmem:[#allocation7 + $0x14e8] sm:$0xff]
    %v939 = vld [vmem:[#allocation7 + $0x14f0] sm:$0xff]
    %v940 = vld [vmem:[#allocation7 + $0x14f8] sm:$0xff]
    %v941 = vld [vmem:[#allocation7 + $0x1500] sm:$0xff]
    %v942 = vld [vmem:[#allocation7 + $0x1508] sm:$0xff]
    %v943 = vld [vmem:[#allocation7 + $0x1510] sm:$0xff]
    %v944 = vld [vmem:[#allocation7 + $0x1518] sm:$0xff]
    %v945 = vld [vmem:[#allocation7 + $0x1520] sm:$0xff]
    %v946 = vld [vmem:[#allocation7 + $0x1528] sm:$0xff]
    %v947 = vld [vmem:[#allocation7 + $0x1530] sm:$0xff]
    %v948 = vld [vmem:[#allocation7 + $0x1538] sm:$0xff]
    %v949 = vld [vmem:[#allocation7 + $0x1540] sm:$0xff]
    %v950 = vld [vmem:[#allocation7 + $0x1548] sm:$0xff]
    %v951 = vld [vmem:[#allocation7 + $0x1550] sm:$0xff]
    %v952 = vld [vmem:[#allocation7 + $0x1558] sm:$0xff]
    %v953 = vld [vmem:[#allocation7 + $0x1560] sm:$0xff]
    %v954 = vld [vmem:[#allocation7 + $0x1568] sm:$0xff]
    %v955 = vld [vmem:[#allocation7 + $0x1570] sm:$0xff]
    %v956 = vld [vmem:[#allocation7 + $0x1578] sm:$0xff]
    %v957 = vld [vmem:[#allocation7 + $0x1580] sm:$0xff]
    %v958 = vld [vmem:[#allocation7 + $0x1588] sm:$0xff]
    %v959 = vld [vmem:[#allocation7 + $0x1590] sm:$0xff]
    %v960 = vld [vmem:[#allocation7 + $0x1598] sm:$0xff]
    %v961 = vld [vmem:[#allocation7 + $0x15a0] sm:$0xff]
    %v962 = vld [vmem:[#allocation7 + $0x15a8] sm:$0xff]
    %v963 = vld [vmem:[#allocation7 + $0x15b0] sm:$0xff]
    %v964 = vld [vmem:[#allocation7 + $0x15b8] sm:$0xff]
    %v965 = vld [vmem:[#allocation7 + $0x15c0] sm:$0xff]
    %v966 = vld [vmem:[#allocation7 + $0x15c8] sm:$0xff]
    %v967 = vld [vmem:[#allocation7 + $0x15d0] sm:$0xff]
    %v968 = vld [vmem:[#allocation7 + $0x15d8] sm:$0xff]
    %v969 = vld [vmem:[#allocation7 + $0x15e0] sm:$0xff]
    %v970 = vld [vmem:[#allocation7 + $0x15e8] sm:$0xff]
    %v971 = vld [vmem:[#allocation7 + $0x15f0] sm:$0xff]
    %v972 = vld [vmem:[#allocation7 + $0x15f8] sm:$0xff]
    %v973 = vld [vmem:[#allocation7 + $0x1600] sm:$0xff]
    %v974 = vld [vmem:[#allocation7 + $0x1608] sm:$0xff]
    %v975 = vld [vmem:[#allocation7 + $0x1610] sm:$0xff]
    %v976 = vld [vmem:[#allocation7 + $0x1618] sm:$0xff]
    %v977 = vld [vmem:[#allocation7 + $0x1620] sm:$0xff]
    %v978 = vld [vmem:[#allocation7 + $0x1628] sm:$0xff]
    %v979 = vld [vmem:[#allocation7 + $0x1630] sm:$0xff]
    %v980 = vld [vmem:[#allocation7 + $0x1638] sm:$0xff]
    %v981 = vld [vmem:[#allocation7 + $0x1640] sm:$0xff]
    %v982 = vld [vmem:[#allocation7 + $0x1648] sm:$0xff]
    %v983 = vld [vmem:[#allocation7 + $0x1650] sm:$0xff]
    %v984 = vld [vmem:[#allocation7 + $0x1658] sm:$0xff]
    %v985 = vld [vmem:[#allocation7 + $0x1660] sm:$0xff]
    %v986 = vld [vmem:[#allocation7 + $0x1668] sm:$0xff]
    %v987 = vld [vmem:[#allocation7 + $0x1670] sm:$0xff]
    %v988 = vld [vmem:[#allocation7 + $0x1678] sm:$0xff]
    %v989 = vld [vmem:[#allocation7 + $0x1680] sm:$0xff]
    %v990 = vld [vmem:[#allocation7 + $0x1688] sm:$0xff]
    %v991 = vld [vmem:[#allocation7 + $0x1690] sm:$0xff]
    %v992 = vld [vmem:[#allocation7 + $0x1698] sm:$0xff]
    %v993 = vld [vmem:[#allocation7 + $0x16a0] sm:$0xff]
    %v994 = vld [vmem:[#allocation7 + $0x16a8] sm:$0xff]
    %v995 = vld [vmem:[#allocation7 + $0x16b0] sm:$0xff]
    %v996 = vld [vmem:[#allocation7 + $0x16b8] sm:$0xff]
    %v997 = vld [vmem:[#allocation7 + $0x16c0] sm:$0xff]
    %v998 = vld [vmem:[#allocation7 + $0x16c8] sm:$0xff]
    %v999 = vld [vmem:[#allocation7 + $0x16d0] sm:$0xff]
    %v1000 = vld [vmem:[#allocation7 + $0x16d8] sm:$0xff]
    %v1001 = vld [vmem:[#allocation7 + $0x16e0] sm:$0xff]
    %v1002 = vld [vmem:[#allocation7 + $0x16e8] sm:$0xff]
    %v1003 = vld [vmem:[#allocation7 + $0x16f0] sm:$0xff]
    %v1004 = vld [vmem:[#allocation7 + $0x16f8] sm:$0xff]
    %v1005 = vld [vmem:[#allocation7 + $0x1700] sm:$0xff]
    %v1006 = vld [vmem:[#allocation7 + $0x1708] sm:$0xff]
    %v1007 = vld [vmem:[#allocation7 + $0x1710] sm:$0xff]
    %v1008 = vld [vmem:[#allocation7 + $0x1718] sm:$0xff]
    %v1009 = vld [vmem:[#allocation7 + $0x1720] sm:$0xff]
    %v1010 = vld [vmem:[#allocation7 + $0x1728] sm:$0xff]
    %v1011 = vld [vmem:[#allocation7 + $0x1730] sm:$0xff]
    %v1012 = vld [vmem:[#allocation7 + $0x1738] sm:$0xff]
    %v1013 = vld [vmem:[#allocation7 + $0x1740] sm:$0xff]
    %v1014 = vld [vmem:[#allocation7 + $0x1748] sm:$0xff]
    %v1015 = vld [vmem:[#allocation7 + $0x1750] sm:$0xff]
    %v1016 = vld [vmem:[#allocation7 + $0x1758] sm:$0xff]
    %v1017 = vld [vmem:[#allocation7 + $0x1760] sm:$0xff]
    %v1018 = vld [vmem:[#allocation7 + $0x1768] sm:$0xff]
    %v1019 = vld [vmem:[#allocation7 + $0x1770] sm:$0xff]
    %v1020 = vld [vmem:[#allocation7 + $0x1778] sm:$0xff]
    %v1021 = vld [vmem:[#allocation7 + $0x1780] sm:$0xff]
    %v1022 = vld [vmem:[#allocation7 + $0x1788] sm:$0xff]
    %v1023 = vld [vmem:[#allocation7 + $0x1790] sm:$0xff]
    %v1024 = vld [vmem:[#allocation7 + $0x1798] sm:$0xff]
    %v1025 = vld [vmem:[#allocation7 + $0x17a0] sm:$0xff]
    %v1026 = vld [vmem:[#allocation7 + $0x17a8] sm:$0xff]
    %v1027 = vld [vmem:[#allocation7 + $0x17b0] sm:$0xff]
    %v1028 = vld [vmem:[#allocation7 + $0x17b8] sm:$0xff]
    %v1029 = vld [vmem:[#allocation7 + $0x17c0] sm:$0xff]
    %v1030 = vld [vmem:[#allocation7 + $0x17c8] sm:$0xff]
    %v1031 = vld [vmem:[#allocation7 + $0x17d0] sm:$0xff]
    %v1032 = vld [vmem:[#allocation7 + $0x17d8] sm:$0xff]
    %v1033 = vld [vmem:[#allocation7 + $0x17e0] sm:$0xff]
    %v1034 = vld [vmem:[#allocation7 + $0x17e8] sm:$0xff]
    %v1035 = vld [vmem:[#allocation7 + $0x17f0] sm:$0xff]
    %v1036 = vld [vmem:[#allocation7 + $0x17f8] sm:$0xff]
    %v1037 = vld [vmem:[#allocation7 + $0x1800] sm:$0xff]
    %v1038 = vld [vmem:[#allocation7 + $0x1808] sm:$0xff]
    %v1039 = vld [vmem:[#allocation7 + $0x1810] sm:$0xff]
    %v1040 = vld [vmem:[#allocation7 + $0x1818] sm:$0xff]
    %v1041 = vld [vmem:[#allocation7 + $0x1820] sm:$0xff]
    %v1042 = vld [vmem:[#allocation7 + $0x1828] sm:$0xff]
    %v1043 = vld [vmem:[#allocation7 + $0x1830] sm:$0xff]
    %v1044 = vld [vmem:[#allocation7 + $0x1838] sm:$0xff]
    %v1045 = vld [vmem:[#allocation7 + $0x1840] sm:$0xff]
    %v1046 = vld [vmem:[#allocation7 + $0x1848] sm:$0xff]
    %v1047 = vld [vmem:[#allocation7 + $0x1850] sm:$0xff]
    %v1048 = vld [vmem:[#allocation7 + $0x1858] sm:$0xff]
    %v1049 = vld [vmem:[#allocation7 + $0x1860] sm:$0xff]
    %v1050 = vld [vmem:[#allocation7 + $0x1868] sm:$0xff]
    %v1051 = vld [vmem:[#allocation7 + $0x1870] sm:$0xff]
    %v1052 = vld [vmem:[#allocation7 + $0x1878] sm:$0xff]
    %v1053 = vld [vmem:[#allocation7 + $0x1880] sm:$0xff]
    %v1054 = vld [vmem:[#allocation7 + $0x1888] sm:$0xff]
    %v1055 = vld [vmem:[#allocation7 + $0x1890] sm:$0xff]
    %v1056 = vld [vmem:[#allocation7 + $0x1898] sm:$0xff]
    %v1057 = vld [vmem:[#allocation7 + $0x18a0] sm:$0xff]
    %v1058 = vld [vmem:[#allocation7 + $0x18a8] sm:$0xff]
    %v1059 = vld [vmem:[#allocation7 + $0x18b0] sm:$0xff]
    %v1060 = vld [vmem:[#allocation7 + $0x18b8] sm:$0xff]
    %v1061 = vld [vmem:[#allocation7 + $0x18c0] sm:$0xff]
    %v1062 = vld [vmem:[#allocation7 + $0x18c8] sm:$0xff]
    %v1063 = vld [vmem:[#allocation7 + $0x18d0] sm:$0xff]
    %v1064 = vld [vmem:[#allocation7 + $0x18d8] sm:$0xff]
    %v1065 = vld [vmem:[#allocation7 + $0x18e0] sm:$0xff]
    %v1066 = vld [vmem:[#allocation7 + $0x18e8] sm:$0xff]
    %v1067 = vld [vmem:[#allocation7 + $0x18f0] sm:$0xff]
    %v1068 = vld [vmem:[#allocation7 + $0x18f8] sm:$0xff]
    %v1069 = vld [vmem:[#allocation7 + $0x1900] sm:$0xff]
    %v1070 = vld [vmem:[#allocation7 + $0x1908] sm:$0xff]
    %v1071 = vld [vmem:[#allocation7 + $0x1910] sm:$0xff]
    %v1072 = vld [vmem:[#allocation7 + $0x1918] sm:$0xff]
    %v1073 = vld [vmem:[#allocation7 + $0x1920] sm:$0xff]
    %v1074 = vld [vmem:[#allocation7 + $0x1928] sm:$0xff]
    %v1075 = vld [vmem:[#allocation7 + $0x1930] sm:$0xff]
    %v1076 = vld [vmem:[#allocation7 + $0x1938] sm:$0xff]
    %v1077 = vld [vmem:[#allocation7 + $0x1940] sm:$0xff]
    %v1078 = vld [vmem:[#allocation7 + $0x1948] sm:$0xff]
    %v1079 = vld [vmem:[#allocation7 + $0x1950] sm:$0xff]
    %v1080 = vld [vmem:[#allocation7 + $0x1958] sm:$0xff]
    %v1081 = vld [vmem:[#allocation7 + $0x1960] sm:$0xff]
    %v1082 = vld [vmem:[#allocation7 + $0x1968] sm:$0xff]
    %v1083 = vld [vmem:[#allocation7 + $0x1970] sm:$0xff]
    %v1084 = vld [vmem:[#allocation7 + $0x1978] sm:$0xff]
    %v1085 = vld [vmem:[#allocation7 + $0x1980] sm:$0xff]
    %v1086 = vld [vmem:[#allocation7 + $0x1988] sm:$0xff]
    %v1087 = vld [vmem:[#allocation7 + $0x1990] sm:$0xff]
    %v1088 = vld [vmem:[#allocation7 + $0x1998] sm:$0xff]
    %v1089 = vld [vmem:[#allocation7 + $0x19a0] sm:$0xff]
    %v1090 = vld [vmem:[#allocation7 + $0x19a8] sm:$0xff]
    %v1091 = vld [vmem:[#allocation7 + $0x19b0] sm:$0xff]
    %v1092 = vld [vmem:[#allocation7 + $0x19b8] sm:$0xff]
    %v1093 = vld [vmem:[#allocation7 + $0x19c0] sm:$0xff]
    %v1094 = vld [vmem:[#allocation7 + $0x19c8] sm:$0xff]
    %v1095 = vld [vmem:[#allocation7 + $0x19d0] sm:$0xff]
    %v1096 = vld [vmem:[#allocation7 + $0x19d8] sm:$0xff]
    %v1097 = vld [vmem:[#allocation7 + $0x19e0] sm:$0xff]
    %v1098 = vld [vmem:[#allocation7 + $0x19e8] sm:$0xff]
    %v1099 = vld [vmem:[#allocation7 + $0x19f0] sm:$0xff]
    %v1100 = vld [vmem:[#allocation7 + $0x19f8] sm:$0xff]
    %v1101 = vld [vmem:[#allocation7 + $0x1a00] sm:$0xff]
    %v1102 = vld [vmem:[#allocation7 + $0x1a08] sm:$0xff]
    %v1103 = vld [vmem:[#allocation7 + $0x1a10] sm:$0xff]
    %v1104 = vld [vmem:[#allocation7 + $0x1a18] sm:$0xff]
    %v1105 = vld [vmem:[#allocation7 + $0x1a20] sm:$0xff]
    %v1106 = vld [vmem:[#allocation7 + $0x1a28] sm:$0xff]
    %v1107 = vld [vmem:[#allocation7 + $0x1a30] sm:$0xff]
    %v1108 = vld [vmem:[#allocation7 + $0x1a38] sm:$0xff]
    %v1109 = vld [vmem:[#allocation7 + $0x1a40] sm:$0xff]
    %v1110 = vld [vmem:[#allocation7 + $0x1a48] sm:$0xff]
    %v1111 = vld [vmem:[#allocation7 + $0x1a50] sm:$0xff]
    %v1112 = vld [vmem:[#allocation7 + $0x1a58] sm:$0xff]
    %v1113 = vld [vmem:[#allocation7 + $0x1a60] sm:$0xff]
    %v1114 = vld [vmem:[#allocation7 + $0x1a68] sm:$0xff]
    %v1115 = vld [vmem:[#allocation7 + $0x1a70] sm:$0xff]
    %v1116 = vld [vmem:[#allocation7 + $0x1a78] sm:$0xff]
    %v1117 = vld [vmem:[#allocation7 + $0x1a80] sm:$0xff]
    %v1118 = vld [vmem:[#allocation7 + $0x1a88] sm:$0xff]
    %v1119 = vld [vmem:[#allocation7 + $0x1a90] sm:$0xff]
    %v1120 = vld [vmem:[#allocation7 + $0x1a98] sm:$0xff]
    %v1121 = vld [vmem:[#allocation7 + $0x1aa0] sm:$0xff]
    %v1122 = vld [vmem:[#allocation7 + $0x1aa8] sm:$0xff]
    %v1123 = vld [vmem:[#allocation7 + $0x1ab0] sm:$0xff]
    %v1124 = vld [vmem:[#allocation7 + $0x1ab8] sm:$0xff]
    %v1125 = vld [vmem:[#allocation7 + $0x1ac0] sm:$0xff]
    %v1126 = vld [vmem:[#allocation7 + $0x1ac8] sm:$0xff]
    %v1127 = vld [vmem:[#allocation7 + $0x1ad0] sm:$0xff]
    %v1128 = vld [vmem:[#allocation7 + $0x1ad8] sm:$0xff]
    %v1129 = vld [vmem:[#allocation7 + $0x1ae0] sm:$0xff]
    %v1130 = vld [vmem:[#allocation7 + $0x1ae8] sm:$0xff]
    %v1131 = vld [vmem:[#allocation7 + $0x1af0] sm:$0xff]
    %v1132 = vld [vmem:[#allocation7 + $0x1af8] sm:$0xff]
    %v1133 = vld [vmem:[#allocation7 + $0x1b00] sm:$0xff]
    %v1134 = vld [vmem:[#allocation7 + $0x1b08] sm:$0xff]
    %v1135 = vld [vmem:[#allocation7 + $0x1b10] sm:$0xff]
    %v1136 = vld [vmem:[#allocation7 + $0x1b18] sm:$0xff]
    %v1137 = vld [vmem:[#allocation7 + $0x1b20] sm:$0xff]
    %v1138 = vld [vmem:[#allocation7 + $0x1b28] sm:$0xff]
    %v1139 = vld [vmem:[#allocation7 + $0x1b30] sm:$0xff]
    %v1140 = vld [vmem:[#allocation7 + $0x1b38] sm:$0xff]
    %v1141 = vld [vmem:[#allocation7 + $0x1b40] sm:$0xff]
    %v1142 = vld [vmem:[#allocation7 + $0x1b48] sm:$0xff]
    %v1143 = vld [vmem:[#allocation7 + $0x1b50] sm:$0xff]
    %v1144 = vld [vmem:[#allocation7 + $0x1b58] sm:$0xff]
    %v1145 = vld [vmem:[#allocation7 + $0x1b60] sm:$0xff]
    %v1146 = vld [vmem:[#allocation7 + $0x1b68] sm:$0xff]
    %v1147 = vld [vmem:[#allocation7 + $0x1b70] sm:$0xff]
    %v1148 = vld [vmem:[#allocation7 + $0x1b78] sm:$0xff]
    %v1149 = vld [vmem:[#allocation7 + $0x1b80] sm:$0xff]
    %v1150 = vld [vmem:[#allocation7 + $0x1b88] sm:$0xff]
    %v1151 = vld [vmem:[#allocation7 + $0x1b90] sm:$0xff]
    %v1152 = vld [vmem:[#allocation7 + $0x1b98] sm:$0xff]
    %v1153 = vld [vmem:[#allocation7 + $0x1ba0] sm:$0xff]
    %v1154 = vld [vmem:[#allocation7 + $0x1ba8] sm:$0xff]
    %v1155 = vld [vmem:[#allocation7 + $0x1bb0] sm:$0xff]
    %v1156 = vld [vmem:[#allocation7 + $0x1bb8] sm:$0xff]
    %v1157 = vld [vmem:[#allocation7 + $0x1bc0] sm:$0xff]
    %v1158 = vld [vmem:[#allocation7 + $0x1bc8] sm:$0xff]
    %v1159 = vld [vmem:[#allocation7 + $0x1bd0] sm:$0xff]
    %v1160 = vld [vmem:[#allocation7 + $0x1bd8] sm:$0xff]
    %v1161 = vld [vmem:[#allocation7 + $0x1be0] sm:$0xff]
    %v1162 = vld [vmem:[#allocation7 + $0x1be8] sm:$0xff]
    %v1163 = vld [vmem:[#allocation7 + $0x1bf0] sm:$0xff]
    %v1164 = vld [vmem:[#allocation7 + $0x1bf8] sm:$0xff]
    %v1165 = vld [vmem:[#allocation7 + $0x1c00] sm:$0xff]
    %v1166 = vld [vmem:[#allocation7 + $0x1c08] sm:$0xff]
    %v1167 = vld [vmem:[#allocation7 + $0x1c10] sm:$0xff]
    %v1168 = vld [vmem:[#allocation7 + $0x1c18] sm:$0xff]
    %v1169 = vld [vmem:[#allocation7 + $0x1c20] sm:$0xff]
    %v1170 = vld [vmem:[#allocation7 + $0x1c28] sm:$0xff]
    %v1171 = vld [vmem:[#allocation7 + $0x1c30] sm:$0xff]
    %v1172 = vld [vmem:[#allocation7 + $0x1c38] sm:$0xff]
    %v1173 = vld [vmem:[#allocation7 + $0x1c40] sm:$0xff]
    %v1174 = vld [vmem:[#allocation7 + $0x1c48] sm:$0xff]
    %v1175 = vld [vmem:[#allocation7 + $0x1c50] sm:$0xff]
    %v1176 = vld [vmem:[#allocation7 + $0x1c58] sm:$0xff]
    %v1177 = vld [vmem:[#allocation7 + $0x1c60] sm:$0xff]
    %v1178 = vld [vmem:[#allocation7 + $0x1c68] sm:$0xff]
    %v1179 = vld [vmem:[#allocation7 + $0x1c70] sm:$0xff]
    %v1180 = vld [vmem:[#allocation7 + $0x1c78] sm:$0xff]
    %v1181 = vld [vmem:[#allocation7 + $0x1c80] sm:$0xff]
    %v1182 = vld [vmem:[#allocation7 + $0x1c88] sm:$0xff]
    %v1183 = vld [vmem:[#allocation7 + $0x1c90] sm:$0xff]
    %v1184 = vld [vmem:[#allocation7 + $0x1c98] sm:$0xff]
    %v1185 = vld [vmem:[#allocation7 + $0x1ca0] sm:$0xff]
    %v1186 = vld [vmem:[#allocation7 + $0x1ca8] sm:$0xff]
    %v1187 = vld [vmem:[#allocation7 + $0x1cb0] sm:$0xff]
    %v1188 = vld [vmem:[#allocation7 + $0x1cb8] sm:$0xff]
    %v1189 = vld [vmem:[#allocation7 + $0x1cc0] sm:$0xff]
    %v1190 = vld [vmem:[#allocation7 + $0x1cc8] sm:$0xff]
    %v1191 = vld [vmem:[#allocation7 + $0x1cd0] sm:$0xff]
    %v1192 = vld [vmem:[#allocation7 + $0x1cd8] sm:$0xff]
    %v1193 = vld [vmem:[#allocation7 + $0x1ce0] sm:$0xff]
    %v1194 = vld [vmem:[#allocation7 + $0x1ce8] sm:$0xff]
    %v1195 = vld [vmem:[#allocation7 + $0x1cf0] sm:$0xff]
    %v1196 = vld [vmem:[#allocation7 + $0x1cf8] sm:$0xff]
    %v1197 = vld [vmem:[#allocation7 + $0x1d00] sm:$0xff]
    %v1198 = vld [vmem:[#allocation7 + $0x1d08] sm:$0xff]
    %v1199 = vld [vmem:[#allocation7 + $0x1d10] sm:$0xff]
    %v1200 = vld [vmem:[#allocation7 + $0x1d18] sm:$0xff]
    %v1201 = vld [vmem:[#allocation7 + $0x1d20] sm:$0xff]
    %v1202 = vld [vmem:[#allocation7 + $0x1d28] sm:$0xff]
    %v1203 = vld [vmem:[#allocation7 + $0x1d30] sm:$0xff]
    %v1204 = vld [vmem:[#allocation7 + $0x1d38] sm:$0xff]
    %v1205 = vld [vmem:[#allocation7 + $0x1d40] sm:$0xff]
    %v1206 = vld [vmem:[#allocation7 + $0x1d48] sm:$0xff]
    %v1207 = vld [vmem:[#allocation7 + $0x1d50] sm:$0xff]
    %v1208 = vld [vmem:[#allocation7 + $0x1d58] sm:$0xff]
    %v1209 = vld [vmem:[#allocation7 + $0x1d60] sm:$0xff]
    %v1210 = vld [vmem:[#allocation7 + $0x1d68] sm:$0xff]
    %v1211 = vld [vmem:[#allocation7 + $0x1d70] sm:$0xff]
    %v1212 = vld [vmem:[#allocation7 + $0x1d78] sm:$0xff]
    %v1213 = vld [vmem:[#allocation7 + $0x1d80] sm:$0xff]
    %v1214 = vld [vmem:[#allocation7 + $0x1d88] sm:$0xff]
    %v1215 = vld [vmem:[#allocation7 + $0x1d90] sm:$0xff]
    %v1216 = vld [vmem:[#allocation7 + $0x1d98] sm:$0xff]
    %v1217 = vld [vmem:[#allocation7 + $0x1da0] sm:$0xff]
    %v1218 = vld [vmem:[#allocation7 + $0x1da8] sm:$0xff]
    %v1219 = vld [vmem:[#allocation7 + $0x1db0] sm:$0xff]
    %v1220 = vld [vmem:[#allocation7 + $0x1db8] sm:$0xff]
    %v1221 = vld [vmem:[#allocation7 + $0x1dc0] sm:$0xff]
    %v1222 = vld [vmem:[#allocation7 + $0x1dc8] sm:$0xff]
    %v1223 = vld [vmem:[#allocation7 + $0x1dd0] sm:$0xff]
    %v1224 = vld [vmem:[#allocation7 + $0x1dd8] sm:$0xff]
    %v1225 = vld [vmem:[#allocation7 + $0x1de0] sm:$0xff]
    %v1226 = vld [vmem:[#allocation7 + $0x1de8] sm:$0xff]
    %v1227 = vld [vmem:[#allocation7 + $0x1df0] sm:$0xff]
    %v1228 = vld [vmem:[#allocation7 + $0x1df8] sm:$0xff]
    %v1229 = vld [vmem:[#allocation7 + $0x1e00] sm:$0xff]
    %v1230 = vld [vmem:[#allocation7 + $0x1e08] sm:$0xff]
    %v1231 = vld [vmem:[#allocation7 + $0x1e10] sm:$0xff]
    %v1232 = vld [vmem:[#allocation7 + $0x1e18] sm:$0xff]
    %v1233 = vld [vmem:[#allocation7 + $0x1e20] sm:$0xff]
    %v1234 = vld [vmem:[#allocation7 + $0x1e28] sm:$0xff]
    %v1235 = vld [vmem:[#allocation7 + $0x1e30] sm:$0xff]
    %v1236 = vld [vmem:[#allocation7 + $0x1e38] sm:$0xff]
    %v1237 = vld [vmem:[#allocation7 + $0x1e40] sm:$0xff]
    %v1238 = vld [vmem:[#allocation7 + $0x1e48] sm:$0xff]
    %v1239 = vld [vmem:[#allocation7 + $0x1e50] sm:$0xff]
    %v1240 = vld [vmem:[#allocation7 + $0x1e58] sm:$0xff]
    %v1241 = vld [vmem:[#allocation7 + $0x1e60] sm:$0xff]
    %v1242 = vld [vmem:[#allocation7 + $0x1e68] sm:$0xff]
    %v1243 = vld [vmem:[#allocation7 + $0x1e70] sm:$0xff]
    %v1244 = vld [vmem:[#allocation7 + $0x1e78] sm:$0xff]
    %v1245 = vld [vmem:[#allocation7 + $0x1e80] sm:$0xff]
    %v1246 = vld [vmem:[#allocation7 + $0x1e88] sm:$0xff]
    %v1247 = vld [vmem:[#allocation7 + $0x1e90] sm:$0xff]
    %v1248 = vld [vmem:[#allocation7 + $0x1e98] sm:$0xff]
    %v1249 = vld [vmem:[#allocation7 + $0x1ea0] sm:$0xff]
    %v1250 = vld [vmem:[#allocation7 + $0x1ea8] sm:$0xff]
    %v1251 = vld [vmem:[#allocation7 + $0x1eb0] sm:$0xff]
    %v1252 = vld [vmem:[#allocation7 + $0x1eb8] sm:$0xff]
    %v1253 = vld [vmem:[#allocation7 + $0x1ec0] sm:$0xff]
    %v1254 = vld [vmem:[#allocation7 + $0x1ec8] sm:$0xff]
    %v1255 = vld [vmem:[#allocation7 + $0x1ed0] sm:$0xff]
    %v1256 = vld [vmem:[#allocation7 + $0x1ed8] sm:$0xff]
    %v1257 = vld [vmem:[#allocation7 + $0x1ee0] sm:$0xff]
    %v1258 = vld [vmem:[#allocation7 + $0x1ee8] sm:$0xff]
    %v1259 = vld [vmem:[#allocation7 + $0x1ef0] sm:$0xff]
    %v1260 = vld [vmem:[#allocation7 + $0x1ef8] sm:$0xff]
    %v1261 = vld [vmem:[#allocation7 + $0x1f00] sm:$0xff]
    %v1262 = vld [vmem:[#allocation7 + $0x1f08] sm:$0xff]
    %v1263 = vld [vmem:[#allocation7 + $0x1f10] sm:$0xff]
    %v1264 = vld [vmem:[#allocation7 + $0x1f18] sm:$0xff]
    %v1265 = vld [vmem:[#allocation7 + $0x1f20] sm:$0xff]
    %v1266 = vld [vmem:[#allocation7 + $0x1f28] sm:$0xff]
    %v1267 = vld [vmem:[#allocation7 + $0x1f30] sm:$0xff]
    %v1268 = vld [vmem:[#allocation7 + $0x1f38] sm:$0xff]
    %v1269 = vld [vmem:[#allocation7 + $0x1f40] sm:$0xff]
    %v1270 = vld [vmem:[#allocation7 + $0x1f48] sm:$0xff]
    %v1271 = vld [vmem:[#allocation7 + $0x1f50] sm:$0xff]
    %v1272 = vld [vmem:[#allocation7 + $0x1f58] sm:$0xff]
    %v1273 = vld [vmem:[#allocation7 + $0x1f60] sm:$0xff]
    %v1274 = vld [vmem:[#allocation7 + $0x1f68] sm:$0xff]
    %v1275 = vld [vmem:[#allocation7 + $0x1f70] sm:$0xff]
    %v1276 = vld [vmem:[#allocation7 + $0x1f78] sm:$0xff]
    %v1277 = vld [vmem:[#allocation7 + $0x1f80] sm:$0xff]
    %v1278 = vld [vmem:[#allocation7 + $0x1f88] sm:$0xff]
    %v1279 = vld [vmem:[#allocation7 + $0x1f90] sm:$0xff]
    %v1280 = vld [vmem:[#allocation7 + $0x1f98] sm:$0xff]
    %v1281 = vld [vmem:[#allocation7 + $0x1fa0] sm:$0xff]
    %v1282 = vld [vmem:[#allocation7 + $0x1fa8] sm:$0xff]
    %v1283 = vld [vmem:[#allocation7 + $0x1fb0] sm:$0xff]
    %v1284 = vld [vmem:[#allocation7 + $0x1fb8] sm:$0xff]
    %v1285 = vld [vmem:[#allocation7 + $0x1fc0] sm:$0xff]
    %v1286 = vld [vmem:[#allocation7 + $0x1fc8] sm:$0xff]
    %v1287 = vld [vmem:[#allocation7 + $0x1fd0] sm:$0xff]
    %v1288 = vld [vmem:[#allocation7 + $0x1fd8] sm:$0xff]
    %v1289 = vld [vmem:[#allocation7 + $0x1fe0] sm:$0xff]
    %v1290 = vld [vmem:[#allocation7 + $0x1fe8] sm:$0xff]
    %v1291 = vld [vmem:[#allocation7 + $0x1ff0] sm:$0xff]
    %v1292 = vld [vmem:[#allocation7 + $0x1ff8] sm:$0xff]
    %v1293 = vld [vmem:[#allocation8] sm:$0xff]
    %v1294 = vld [vmem:[#allocation8 + $0x8] sm:$0xff]
    %v1295 = vld [vmem:[#allocation8 + $0x10] sm:$0xff]
    %v1296 = vld [vmem:[#allocation8 + $0x18] sm:$0xff]
    %v1297 = vld [vmem:[#allocation8 + $0x20] sm:$0xff]
    %v1298 = vld [vmem:[#allocation8 + $0x28] sm:$0xff]
    %v1299 = vld [vmem:[#allocation8 + $0x30] sm:$0xff]
    %v1300 = vld [vmem:[#allocation8 + $0x38] sm:$0xff]
    %v1301 = vld [vmem:[#allocation8 + $0x40] sm:$0xff]
    %v1302 = vld [vmem:[#allocation8 + $0x48] sm:$0xff]
    %v1303 = vld [vmem:[#allocation8 + $0x50] sm:$0xff]
    %v1304 = vld [vmem:[#allocation8 + $0x58] sm:$0xff]
    %v1305 = vld [vmem:[#allocation8 + $0x60] sm:$0xff]
    %v1306 = vld [vmem:[#allocation8 + $0x68] sm:$0xff]
    %v1307 = vld [vmem:[#allocation8 + $0x70] sm:$0xff]
    %v1308 = vld [vmem:[#allocation8 + $0x78] sm:$0xff]
    %v1309 = vld [vmem:[#allocation8 + $0x80] sm:$0xff]
    %v1310 = vld [vmem:[#allocation8 + $0x88] sm:$0xff]
    %v1311 = vld [vmem:[#allocation8 + $0x90] sm:$0xff]
    %v1312 = vld [vmem:[#allocation8 + $0x98] sm:$0xff]
    %v1313 = vld [vmem:[#allocation8 + $0xa0] sm:$0xff]
    %v1314 = vld [vmem:[#allocation8 + $0xa8] sm:$0xff]
    %v1315 = vld [vmem:[#allocation8 + $0xb0] sm:$0xff]
    %v1316 = vld [vmem:[#allocation8 + $0xb8] sm:$0xff]
    %v1317 = vld [vmem:[#allocation8 + $0xc0] sm:$0xff]
    %v1318 = vld [vmem:[#allocation8 + $0xc8] sm:$0xff]
    %v1319 = vld [vmem:[#allocation8 + $0xd0] sm:$0xff]
    %v1320 = vld [vmem:[#allocation8 + $0xd8] sm:$0xff]
    %v1321 = vld [vmem:[#allocation8 + $0xe0] sm:$0xff]
    %v1322 = vld [vmem:[#allocation8 + $0xe8] sm:$0xff]
    %v1323 = vld [vmem:[#allocation8 + $0xf0] sm:$0xff]
    %v1324 = vld [vmem:[#allocation8 + $0xf8] sm:$0xff]
    %v1325 = vld [vmem:[#allocation8 + $0x100] sm:$0xff]
    %v1326 = vld [vmem:[#allocation8 + $0x108] sm:$0xff]
    %v1327 = vld [vmem:[#allocation8 + $0x110] sm:$0xff]
    %v1328 = vld [vmem:[#allocation8 + $0x118] sm:$0xff]
    %v1329 = vld [vmem:[#allocation8 + $0x120] sm:$0xff]
    %v1330 = vld [vmem:[#allocation8 + $0x128] sm:$0xff]
    %v1331 = vld [vmem:[#allocation8 + $0x130] sm:$0xff]
    %v1332 = vld [vmem:[#allocation8 + $0x138] sm:$0xff]
    %v1333 = vld [vmem:[#allocation8 + $0x140] sm:$0xff]
    %v1334 = vld [vmem:[#allocation8 + $0x148] sm:$0xff]
    %v1335 = vld [vmem:[#allocation8 + $0x150] sm:$0xff]
    %v1336 = vld [vmem:[#allocation8 + $0x158] sm:$0xff]
    %v1337 = vld [vmem:[#allocation8 + $0x160] sm:$0xff]
    %v1338 = vld [vmem:[#allocation8 + $0x168] sm:$0xff]
    %v1339 = vld [vmem:[#allocation8 + $0x170] sm:$0xff]
    %v1340 = vld [vmem:[#allocation8 + $0x178] sm:$0xff]
    %v1341 = vld [vmem:[#allocation8 + $0x180] sm:$0xff]
    %v1342 = vld [vmem:[#allocation8 + $0x188] sm:$0xff]
    %v1343 = vld [vmem:[#allocation8 + $0x190] sm:$0xff]
    %v1344 = vld [vmem:[#allocation8 + $0x198] sm:$0xff]
    %v1345 = vld [vmem:[#allocation8 + $0x1a0] sm:$0xff]
    %v1346 = vld [vmem:[#allocation8 + $0x1a8] sm:$0xff]
    %v1347 = vld [vmem:[#allocation8 + $0x1b0] sm:$0xff]
    %v1348 = vld [vmem:[#allocation8 + $0x1b8] sm:$0xff]
    %v1349 = vld [vmem:[#allocation8 + $0x1c0] sm:$0xff]
    %v1350 = vld [vmem:[#allocation8 + $0x1c8] sm:$0xff]
    %v1351 = vld [vmem:[#allocation8 + $0x1d0] sm:$0xff]
    %v1352 = vld [vmem:[#allocation8 + $0x1d8] sm:$0xff]
    %v1353 = vld [vmem:[#allocation8 + $0x1e0] sm:$0xff]
    %v1354 = vld [vmem:[#allocation8 + $0x1e8] sm:$0xff]
    %v1355 = vld [vmem:[#allocation8 + $0x1f0] sm:$0xff]
    %v1356 = vld [vmem:[#allocation8 + $0x1f8] sm:$0xff]
    %v1357 = vld [vmem:[#allocation8 + $0x200] sm:$0xff]
    %v1358 = vld [vmem:[#allocation8 + $0x208] sm:$0xff]
    %v1359 = vld [vmem:[#allocation8 + $0x210] sm:$0xff]
    %v1360 = vld [vmem:[#allocation8 + $0x218] sm:$0xff]
    %v1361 = vld [vmem:[#allocation8 + $0x220] sm:$0xff]
    %v1362 = vld [vmem:[#allocation8 + $0x228] sm:$0xff]
    %v1363 = vld [vmem:[#allocation8 + $0x230] sm:$0xff]
    %v1364 = vld [vmem:[#allocation8 + $0x238] sm:$0xff]
    %v1365 = vld [vmem:[#allocation8 + $0x240] sm:$0xff]
    %v1366 = vld [vmem:[#allocation8 + $0x248] sm:$0xff]
    %v1367 = vld [vmem:[#allocation8 + $0x250] sm:$0xff]
    %v1368 = vld [vmem:[#allocation8 + $0x258] sm:$0xff]
    %v1369 = vld [vmem:[#allocation8 + $0x260] sm:$0xff]
    %v1370 = vld [vmem:[#allocation8 + $0x268] sm:$0xff]
    %v1371 = vld [vmem:[#allocation8 + $0x270] sm:$0xff]
    %v1372 = vld [vmem:[#allocation8 + $0x278] sm:$0xff]
    %v1373 = vld [vmem:[#allocation8 + $0x280] sm:$0xff]
    %v1374 = vld [vmem:[#allocation8 + $0x288] sm:$0xff]
    %v1375 = vld [vmem:[#allocation8 + $0x290] sm:$0xff]
    %v1376 = vld [vmem:[#allocation8 + $0x298] sm:$0xff]
    %v1377 = vld [vmem:[#allocation8 + $0x2a0] sm:$0xff]
    %v1378 = vld [vmem:[#allocation8 + $0x2a8] sm:$0xff]
    %v1379 = vld [vmem:[#allocation8 + $0x2b0] sm:$0xff]
    %v1380 = vld [vmem:[#allocation8 + $0x2b8] sm:$0xff]
    %v1381 = vld [vmem:[#allocation8 + $0x2c0] sm:$0xff]
    %v1382 = vld [vmem:[#allocation8 + $0x2c8] sm:$0xff]
    %v1383 = vld [vmem:[#allocation8 + $0x2d0] sm:$0xff]
    %v1384 = vld [vmem:[#allocation8 + $0x2d8] sm:$0xff]
    %v1385 = vld [vmem:[#allocation8 + $0x2e0] sm:$0xff]
    %v1386 = vld [vmem:[#allocation8 + $0x2e8] sm:$0xff]
    %v1387 = vld [vmem:[#allocation8 + $0x2f0] sm:$0xff]
    %v1388 = vld [vmem:[#allocation8 + $0x2f8] sm:$0xff]
    %v1389 = vld [vmem:[#allocation8 + $0x300] sm:$0xff]
    %v1390 = vld [vmem:[#allocation8 + $0x308] sm:$0xff]
    %v1391 = vld [vmem:[#allocation8 + $0x310] sm:$0xff]
    %v1392 = vld [vmem:[#allocation8 + $0x318] sm:$0xff]
    %v1393 = vld [vmem:[#allocation8 + $0x320] sm:$0xff]
    %v1394 = vld [vmem:[#allocation8 + $0x328] sm:$0xff]
    %v1395 = vld [vmem:[#allocation8 + $0x330] sm:$0xff]
    %v1396 = vld [vmem:[#allocation8 + $0x338] sm:$0xff]
    %v1397 = vld [vmem:[#allocation8 + $0x340] sm:$0xff]
    %v1398 = vld [vmem:[#allocation8 + $0x348] sm:$0xff]
    %v1399 = vld [vmem:[#allocation8 + $0x350] sm:$0xff]
    %v1400 = vld [vmem:[#allocation8 + $0x358] sm:$0xff]
    %v1401 = vld [vmem:[#allocation8 + $0x360] sm:$0xff]
    %v1402 = vld [vmem:[#allocation8 + $0x368] sm:$0xff]
    %v1403 = vld [vmem:[#allocation8 + $0x370] sm:$0xff]
    %v1404 = vld [vmem:[#allocation8 + $0x378] sm:$0xff]
    %v1405 = vld [vmem:[#allocation8 + $0x380] sm:$0xff]
    %v1406 = vld [vmem:[#allocation8 + $0x388] sm:$0xff]
    %v1407 = vld [vmem:[#allocation8 + $0x390] sm:$0xff]
    %v1408 = vld [vmem:[#allocation8 + $0x398] sm:$0xff]
    %v1409 = vld [vmem:[#allocation8 + $0x3a0] sm:$0xff]
    %v1410 = vld [vmem:[#allocation8 + $0x3a8] sm:$0xff]
    %v1411 = vld [vmem:[#allocation8 + $0x3b0] sm:$0xff]
    %v1412 = vld [vmem:[#allocation8 + $0x3b8] sm:$0xff]
    %v1413 = vld [vmem:[#allocation8 + $0x3c0] sm:$0xff]
    %v1414 = vld [vmem:[#allocation8 + $0x3c8] sm:$0xff]
    %v1415 = vld [vmem:[#allocation8 + $0x3d0] sm:$0xff]
    %v1416 = vld [vmem:[#allocation8 + $0x3d8] sm:$0xff]
    %v1417 = vld [vmem:[#allocation8 + $0x3e0] sm:$0xff]
    %v1418 = vld [vmem:[#allocation8 + $0x3e8] sm:$0xff]
    %v1419 = vld [vmem:[#allocation8 + $0x3f0] sm:$0xff]
    %v1420 = vld [vmem:[#allocation8 + $0x3f8] sm:$0xff]
    %v1421 = vld [vmem:[#allocation8 + $0x400] sm:$0xff]
    %v1422 = vld [vmem:[#allocation8 + $0x408] sm:$0xff]
    %v1423 = vld [vmem:[#allocation8 + $0x410] sm:$0xff]
    %v1424 = vld [vmem:[#allocation8 + $0x418] sm:$0xff]
    %v1425 = vld [vmem:[#allocation8 + $0x420] sm:$0xff]
    %v1426 = vld [vmem:[#allocation8 + $0x428] sm:$0xff]
    %v1427 = vld [vmem:[#allocation8 + $0x430] sm:$0xff]
    %v1428 = vld [vmem:[#allocation8 + $0x438] sm:$0xff]
    %v1429 = vld [vmem:[#allocation8 + $0x440] sm:$0xff]
    %v1430 = vld [vmem:[#allocation8 + $0x448] sm:$0xff]
    %v1431 = vld [vmem:[#allocation8 + $0x450] sm:$0xff]
    %v1432 = vld [vmem:[#allocation8 + $0x458] sm:$0xff]
    %v1433 = vld [vmem:[#allocation8 + $0x460] sm:$0xff]
    %v1434 = vld [vmem:[#allocation8 + $0x468] sm:$0xff]
    %v1435 = vld [vmem:[#allocation8 + $0x470] sm:$0xff]
    %v1436 = vld [vmem:[#allocation8 + $0x478] sm:$0xff]
    %v1437 = vld [vmem:[#allocation8 + $0x480] sm:$0xff]
    %v1438 = vld [vmem:[#allocation8 + $0x488] sm:$0xff]
    %v1439 = vld [vmem:[#allocation8 + $0x490] sm:$0xff]
    %v1440 = vld [vmem:[#allocation8 + $0x498] sm:$0xff]
    %v1441 = vld [vmem:[#allocation8 + $0x4a0] sm:$0xff]
    %v1442 = vld [vmem:[#allocation8 + $0x4a8] sm:$0xff]
    %v1443 = vld [vmem:[#allocation8 + $0x4b0] sm:$0xff]
    %v1444 = vld [vmem:[#allocation8 + $0x4b8] sm:$0xff]
    %v1445 = vld [vmem:[#allocation8 + $0x4c0] sm:$0xff]
    %v1446 = vld [vmem:[#allocation8 + $0x4c8] sm:$0xff]
    %v1447 = vld [vmem:[#allocation8 + $0x4d0] sm:$0xff]
    %v1448 = vld [vmem:[#allocation8 + $0x4d8] sm:$0xff]
    %v1449 = vld [vmem:[#allocation8 + $0x4e0] sm:$0xff]
    %v1450 = vld [vmem:[#allocation8 + $0x4e8] sm:$0xff]
    %v1451 = vld [vmem:[#allocation8 + $0x4f0] sm:$0xff]
    %v1452 = vld [vmem:[#allocation8 + $0x4f8] sm:$0xff]
    %v1453 = vld [vmem:[#allocation8 + $0x500] sm:$0xff]
    %v1454 = vld [vmem:[#allocation8 + $0x508] sm:$0xff]
    %v1455 = vld [vmem:[#allocation8 + $0x510] sm:$0xff]
    %v1456 = vld [vmem:[#allocation8 + $0x518] sm:$0xff]
    %v1457 = vld [vmem:[#allocation8 + $0x520] sm:$0xff]
    %v1458 = vld [vmem:[#allocation8 + $0x528] sm:$0xff]
    %v1459 = vld [vmem:[#allocation8 + $0x530] sm:$0xff]
    %v1460 = vld [vmem:[#allocation8 + $0x538] sm:$0xff]
    %v1461 = vld [vmem:[#allocation8 + $0x540] sm:$0xff]
    %v1462 = vld [vmem:[#allocation8 + $0x548] sm:$0xff]
    %v1463 = vld [vmem:[#allocation8 + $0x550] sm:$0xff]
    %v1464 = vld [vmem:[#allocation8 + $0x558] sm:$0xff]
    %v1465 = vld [vmem:[#allocation8 + $0x560] sm:$0xff]
    %v1466 = vld [vmem:[#allocation8 + $0x568] sm:$0xff]
    %v1467 = vld [vmem:[#allocation8 + $0x570] sm:$0xff]
    %v1468 = vld [vmem:[#allocation8 + $0x578] sm:$0xff]
    %v1469 = vld [vmem:[#allocation8 + $0x580] sm:$0xff]
    %v1470 = vld [vmem:[#allocation8 + $0x588] sm:$0xff]
    %v1471 = vld [vmem:[#allocation8 + $0x590] sm:$0xff]
    %v1472 = vld [vmem:[#allocation8 + $0x598] sm:$0xff]
    %v1473 = vld [vmem:[#allocation8 + $0x5a0] sm:$0xff]
    %v1474 = vld [vmem:[#allocation8 + $0x5a8] sm:$0xff]
    %v1475 = vld [vmem:[#allocation8 + $0x5b0] sm:$0xff]
    %v1476 = vld [vmem:[#allocation8 + $0x5b8] sm:$0xff]
    %v1477 = vld [vmem:[#allocation8 + $0x5c0] sm:$0xff]
    %v1478 = vld [vmem:[#allocation8 + $0x5c8] sm:$0xff]
    %v1479 = vld [vmem:[#allocation8 + $0x5d0] sm:$0xff]
    %v1480 = vld [vmem:[#allocation8 + $0x5d8] sm:$0xff]
    %v1481 = vld [vmem:[#allocation8 + $0x5e0] sm:$0xff]
    %v1482 = vld [vmem:[#allocation8 + $0x5e8] sm:$0xff]
    %v1483 = vld [vmem:[#allocation8 + $0x5f0] sm:$0xff]
    %v1484 = vld [vmem:[#allocation8 + $0x5f8] sm:$0xff]
    %v1485 = vld [vmem:[#allocation8 + $0x600] sm:$0xff]
    %v1486 = vld [vmem:[#allocation8 + $0x608] sm:$0xff]
    %v1487 = vld [vmem:[#allocation8 + $0x610] sm:$0xff]
    %v1488 = vld [vmem:[#allocation8 + $0x618] sm:$0xff]
    %v1489 = vld [vmem:[#allocation8 + $0x620] sm:$0xff]
    %v1490 = vld [vmem:[#allocation8 + $0x628] sm:$0xff]
    %v1491 = vld [vmem:[#allocation8 + $0x630] sm:$0xff]
    %v1492 = vld [vmem:[#allocation8 + $0x638] sm:$0xff]
    %v1493 = vld [vmem:[#allocation8 + $0x640] sm:$0xff]
    %v1494 = vld [vmem:[#allocation8 + $0x648] sm:$0xff]
    %v1495 = vld [vmem:[#allocation8 + $0x650] sm:$0xff]
    %v1496 = vld [vmem:[#allocation8 + $0x658] sm:$0xff]
    %v1497 = vld [vmem:[#allocation8 + $0x660] sm:$0xff]
    %v1498 = vld [vmem:[#allocation8 + $0x668] sm:$0xff]
    %v1499 = vld [vmem:[#allocation8 + $0x670] sm:$0xff]
    %v1500 = vld [vmem:[#allocation8 + $0x678] sm:$0xff]
    %v1501 = vld [vmem:[#allocation8 + $0x680] sm:$0xff]
    %v1502 = vld [vmem:[#allocation8 + $0x688] sm:$0xff]
    %v1503 = vld [vmem:[#allocation8 + $0x690] sm:$0xff]
    %v1504 = vld [vmem:[#allocation8 + $0x698] sm:$0xff]
    %v1505 = vld [vmem:[#allocation8 + $0x6a0] sm:$0xff]
    %v1506 = vld [vmem:[#allocation8 + $0x6a8] sm:$0xff]
    %v1507 = vld [vmem:[#allocation8 + $0x6b0] sm:$0xff]
    %v1508 = vld [vmem:[#allocation8 + $0x6b8] sm:$0xff]
    %v1509 = vld [vmem:[#allocation8 + $0x6c0] sm:$0xff]
    %v1510 = vld [vmem:[#allocation8 + $0x6c8] sm:$0xff]
    %v1511 = vld [vmem:[#allocation8 + $0x6d0] sm:$0xff]
    %v1512 = vld [vmem:[#allocation8 + $0x6d8] sm:$0xff]
    %v1513 = vld [vmem:[#allocation8 + $0x6e0] sm:$0xff]
    %v1514 = vld [vmem:[#allocation8 + $0x6e8] sm:$0xff]
    %v1515 = vld [vmem:[#allocation8 + $0x6f0] sm:$0xff]
    %v1516 = vld [vmem:[#allocation8 + $0x6f8] sm:$0xff]
    %v1517 = vld [vmem:[#allocation8 + $0x700] sm:$0xff]
    %v1518 = vld [vmem:[#allocation8 + $0x708] sm:$0xff]
    %v1519 = vld [vmem:[#allocation8 + $0x710] sm:$0xff]
    %v1520 = vld [vmem:[#allocation8 + $0x718] sm:$0xff]
    %v1521 = vld [vmem:[#allocation8 + $0x720] sm:$0xff]
    %v1522 = vld [vmem:[#allocation8 + $0x728] sm:$0xff]
    %v1523 = vld [vmem:[#allocation8 + $0x730] sm:$0xff]
    %v1524 = vld [vmem:[#allocation8 + $0x738] sm:$0xff]
    %v1525 = vld [vmem:[#allocation8 + $0x740] sm:$0xff]
    %v1526 = vld [vmem:[#allocation8 + $0x748] sm:$0xff]
    %v1527 = vld [vmem:[#allocation8 + $0x750] sm:$0xff]
    %v1528 = vld [vmem:[#allocation8 + $0x758] sm:$0xff]
    %v1529 = vld [vmem:[#allocation8 + $0x760] sm:$0xff]
    %v1530 = vld [vmem:[#allocation8 + $0x768] sm:$0xff]
    %v1531 = vld [vmem:[#allocation8 + $0x770] sm:$0xff]
    %v1532 = vld [vmem:[#allocation8 + $0x778] sm:$0xff]
    %v1533 = vld [vmem:[#allocation8 + $0x780] sm:$0xff]
    %v1534 = vld [vmem:[#allocation8 + $0x788] sm:$0xff]
    %v1535 = vld [vmem:[#allocation8 + $0x790] sm:$0xff]
    %v1536 = vld [vmem:[#allocation8 + $0x798] sm:$0xff]
    %v1537 = vld [vmem:[#allocation8 + $0x7a0] sm:$0xff]
    %v1538 = vld [vmem:[#allocation8 + $0x7a8] sm:$0xff]
    %v1539 = vld [vmem:[#allocation8 + $0x7b0] sm:$0xff]
    %v1540 = vld [vmem:[#allocation8 + $0x7b8] sm:$0xff]
    %v1541 = vld [vmem:[#allocation8 + $0x7c0] sm:$0xff]
    %v1542 = vld [vmem:[#allocation8 + $0x7c8] sm:$0xff]
    %v1543 = vld [vmem:[#allocation8 + $0x7d0] sm:$0xff]
    %v1544 = vld [vmem:[#allocation8 + $0x7d8] sm:$0xff]
    %v1545 = vld [vmem:[#allocation8 + $0x7e0] sm:$0xff]
    %v1546 = vld [vmem:[#allocation8 + $0x7e8] sm:$0xff]
    %v1547 = vld [vmem:[#allocation8 + $0x7f0] sm:$0xff]
    %v1548 = vld [vmem:[#allocation8 + $0x7f8] sm:$0xff]
    %v1549 = vld [vmem:[#allocation8 + $0x800] sm:$0xff]
    %v1550 = vld [vmem:[#allocation8 + $0x808] sm:$0xff]
    %v1551 = vld [vmem:[#allocation8 + $0x810] sm:$0xff]
    %v1552 = vld [vmem:[#allocation8 + $0x818] sm:$0xff]
    %v1553 = vld [vmem:[#allocation8 + $0x820] sm:$0xff]
    %v1554 = vld [vmem:[#allocation8 + $0x828] sm:$0xff]
    %v1555 = vld [vmem:[#allocation8 + $0x830] sm:$0xff]
    %v1556 = vld [vmem:[#allocation8 + $0x838] sm:$0xff]
    %v1557 = vld [vmem:[#allocation8 + $0x840] sm:$0xff]
    %v1558 = vld [vmem:[#allocation8 + $0x848] sm:$0xff]
    %v1559 = vld [vmem:[#allocation8 + $0x850] sm:$0xff]
    %v1560 = vld [vmem:[#allocation8 + $0x858] sm:$0xff]
    %v1561 = vld [vmem:[#allocation8 + $0x860] sm:$0xff]
    %v1562 = vld [vmem:[#allocation8 + $0x868] sm:$0xff]
    %v1563 = vld [vmem:[#allocation8 + $0x870] sm:$0xff]
    %v1564 = vld [vmem:[#allocation8 + $0x878] sm:$0xff]
    %v1565 = vld [vmem:[#allocation8 + $0x880] sm:$0xff]
    %v1566 = vld [vmem:[#allocation8 + $0x888] sm:$0xff]
    %v1567 = vld [vmem:[#allocation8 + $0x890] sm:$0xff]
    %v1568 = vld [vmem:[#allocation8 + $0x898] sm:$0xff]
    %v1569 = vld [vmem:[#allocation8 + $0x8a0] sm:$0xff]
    %v1570 = vld [vmem:[#allocation8 + $0x8a8] sm:$0xff]
    %v1571 = vld [vmem:[#allocation8 + $0x8b0] sm:$0xff]
    %v1572 = vld [vmem:[#allocation8 + $0x8b8] sm:$0xff]
    %v1573 = vld [vmem:[#allocation8 + $0x8c0] sm:$0xff]
    %v1574 = vld [vmem:[#allocation8 + $0x8c8] sm:$0xff]
    %v1575 = vld [vmem:[#allocation8 + $0x8d0] sm:$0xff]
    %v1576 = vld [vmem:[#allocation8 + $0x8d8] sm:$0xff]
    %v1577 = vld [vmem:[#allocation8 + $0x8e0] sm:$0xff]
    %v1578 = vld [vmem:[#allocation8 + $0x8e8] sm:$0xff]
    %v1579 = vld [vmem:[#allocation8 + $0x8f0] sm:$0xff]
    %v1580 = vld [vmem:[#allocation8 + $0x8f8] sm:$0xff]
    %v1581 = vld [vmem:[#allocation8 + $0x900] sm:$0xff]
    %v1582 = vld [vmem:[#allocation8 + $0x908] sm:$0xff]
    %v1583 = vld [vmem:[#allocation8 + $0x910] sm:$0xff]
    %v1584 = vld [vmem:[#allocation8 + $0x918] sm:$0xff]
    %v1585 = vld [vmem:[#allocation8 + $0x920] sm:$0xff]
    %v1586 = vld [vmem:[#allocation8 + $0x928] sm:$0xff]
    %v1587 = vld [vmem:[#allocation8 + $0x930] sm:$0xff]
    %v1588 = vld [vmem:[#allocation8 + $0x938] sm:$0xff]
    %v1589 = vld [vmem:[#allocation8 + $0x940] sm:$0xff]
    %v1590 = vld [vmem:[#allocation8 + $0x948] sm:$0xff]
    %v1591 = vld [vmem:[#allocation8 + $0x950] sm:$0xff]
    %v1592 = vld [vmem:[#allocation8 + $0x958] sm:$0xff]
    %v1593 = vld [vmem:[#allocation8 + $0x960] sm:$0xff]
    %v1594 = vld [vmem:[#allocation8 + $0x968] sm:$0xff]
    %v1595 = vld [vmem:[#allocation8 + $0x970] sm:$0xff]
    %v1596 = vld [vmem:[#allocation8 + $0x978] sm:$0xff]
    %v1597 = vld [vmem:[#allocation8 + $0x980] sm:$0xff]
    %v1598 = vld [vmem:[#allocation8 + $0x988] sm:$0xff]
    %v1599 = vld [vmem:[#allocation8 + $0x990] sm:$0xff]
    %v1600 = vld [vmem:[#allocation8 + $0x998] sm:$0xff]
    %v1601 = vld [vmem:[#allocation8 + $0x9a0] sm:$0xff]
    %v1602 = vld [vmem:[#allocation8 + $0x9a8] sm:$0xff]
    %v1603 = vld [vmem:[#allocation8 + $0x9b0] sm:$0xff]
    %v1604 = vld [vmem:[#allocation8 + $0x9b8] sm:$0xff]
    %v1605 = vld [vmem:[#allocation8 + $0x9c0] sm:$0xff]
    %v1606 = vld [vmem:[#allocation8 + $0x9c8] sm:$0xff]
    %v1607 = vld [vmem:[#allocation8 + $0x9d0] sm:$0xff]
    %v1608 = vld [vmem:[#allocation8 + $0x9d8] sm:$0xff]
    %v1609 = vld [vmem:[#allocation8 + $0x9e0] sm:$0xff]
    %v1610 = vld [vmem:[#allocation8 + $0x9e8] sm:$0xff]
    %v1611 = vld [vmem:[#allocation8 + $0x9f0] sm:$0xff]
    %v1612 = vld [vmem:[#allocation8 + $0x9f8] sm:$0xff]
    %v1613 = vld [vmem:[#allocation8 + $0xa00] sm:$0xff]
    %v1614 = vld [vmem:[#allocation8 + $0xa08] sm:$0xff]
    %v1615 = vld [vmem:[#allocation8 + $0xa10] sm:$0xff]
    %v1616 = vld [vmem:[#allocation8 + $0xa18] sm:$0xff]
    %v1617 = vld [vmem:[#allocation8 + $0xa20] sm:$0xff]
    %v1618 = vld [vmem:[#allocation8 + $0xa28] sm:$0xff]
    %v1619 = vld [vmem:[#allocation8 + $0xa30] sm:$0xff]
    %v1620 = vld [vmem:[#allocation8 + $0xa38] sm:$0xff]
    %v1621 = vld [vmem:[#allocation8 + $0xa40] sm:$0xff]
    %v1622 = vld [vmem:[#allocation8 + $0xa48] sm:$0xff]
    %v1623 = vld [vmem:[#allocation8 + $0xa50] sm:$0xff]
    %v1624 = vld [vmem:[#allocation8 + $0xa58] sm:$0xff]
    %v1625 = vld [vmem:[#allocation8 + $0xa60] sm:$0xff]
    %v1626 = vld [vmem:[#allocation8 + $0xa68] sm:$0xff]
    %v1627 = vld [vmem:[#allocation8 + $0xa70] sm:$0xff]
    %v1628 = vld [vmem:[#allocation8 + $0xa78] sm:$0xff]
    %v1629 = vld [vmem:[#allocation8 + $0xa80] sm:$0xff]
    %v1630 = vld [vmem:[#allocation8 + $0xa88] sm:$0xff]
    %v1631 = vld [vmem:[#allocation8 + $0xa90] sm:$0xff]
    %v1632 = vld [vmem:[#allocation8 + $0xa98] sm:$0xff]
    %v1633 = vld [vmem:[#allocation8 + $0xaa0] sm:$0xff]
    %v1634 = vld [vmem:[#allocation8 + $0xaa8] sm:$0xff]
    %v1635 = vld [vmem:[#allocation8 + $0xab0] sm:$0xff]
    %v1636 = vld [vmem:[#allocation8 + $0xab8] sm:$0xff]
    %v1637 = vld [vmem:[#allocation8 + $0xac0] sm:$0xff]
    %v1638 = vld [vmem:[#allocation8 + $0xac8] sm:$0xff]
    %v1639 = vld [vmem:[#allocation8 + $0xad0] sm:$0xff]
    %v1640 = vld [vmem:[#allocation8 + $0xad8] sm:$0xff]
    %v1641 = vld [vmem:[#allocation8 + $0xae0] sm:$0xff]
    %v1642 = vld [vmem:[#allocation8 + $0xae8] sm:$0xff]
    %v1643 = vld [vmem:[#allocation8 + $0xaf0] sm:$0xff]
    %v1644 = vld [vmem:[#allocation8 + $0xaf8] sm:$0xff]
    %v1645 = vld [vmem:[#allocation8 + $0xb00] sm:$0xff]
    %v1646 = vld [vmem:[#allocation8 + $0xb08] sm:$0xff]
    %v1647 = vld [vmem:[#allocation8 + $0xb10] sm:$0xff]
    %v1648 = vld [vmem:[#allocation8 + $0xb18] sm:$0xff]
    %v1649 = vld [vmem:[#allocation8 + $0xb20] sm:$0xff]
    %v1650 = vld [vmem:[#allocation8 + $0xb28] sm:$0xff]
    %v1651 = vld [vmem:[#allocation8 + $0xb30] sm:$0xff]
    %v1652 = vld [vmem:[#allocation8 + $0xb38] sm:$0xff]
    %v1653 = vld [vmem:[#allocation8 + $0xb40] sm:$0xff]
    %v1654 = vld [vmem:[#allocation8 + $0xb48] sm:$0xff]
    %v1655 = vld [vmem:[#allocation8 + $0xb50] sm:$0xff]
    %v1656 = vld [vmem:[#allocation8 + $0xb58] sm:$0xff]
    %v1657 = vld [vmem:[#allocation8 + $0xb60] sm:$0xff]
    %v1658 = vld [vmem:[#allocation8 + $0xb68] sm:$0xff]
    %v1659 = vld [vmem:[#allocation8 + $0xb70] sm:$0xff]
    %v1660 = vld [vmem:[#allocation8 + $0xb78] sm:$0xff]
    %v1661 = vld [vmem:[#allocation8 + $0xb80] sm:$0xff]
    %v1662 = vld [vmem:[#allocation8 + $0xb88] sm:$0xff]
    %v1663 = vld [vmem:[#allocation8 + $0xb90] sm:$0xff]
    %v1664 = vld [vmem:[#allocation8 + $0xb98] sm:$0xff]
    %v1665 = vld [vmem:[#allocation8 + $0xba0] sm:$0xff]
    %v1666 = vld [vmem:[#allocation8 + $0xba8] sm:$0xff]
    %v1667 = vld [vmem:[#allocation8 + $0xbb0] sm:$0xff]
    %v1668 = vld [vmem:[#allocation8 + $0xbb8] sm:$0xff]
    %v1669 = vld [vmem:[#allocation8 + $0xbc0] sm:$0xff]
    %v1670 = vld [vmem:[#allocation8 + $0xbc8] sm:$0xff]
    %v1671 = vld [vmem:[#allocation8 + $0xbd0] sm:$0xff]
    %v1672 = vld [vmem:[#allocation8 + $0xbd8] sm:$0xff]
    %v1673 = vld [vmem:[#allocation8 + $0xbe0] sm:$0xff]
    %v1674 = vld [vmem:[#allocation8 + $0xbe8] sm:$0xff]
    %v1675 = vld [vmem:[#allocation8 + $0xbf0] sm:$0xff]
    %v1676 = vld [vmem:[#allocation8 + $0xbf8] sm:$0xff]
    %v2061 = vunpack.c.l.b16 %v1293
    %v2062 = vunpack.c.h.b16 %v1293
    %v2063 = vunpack.c.l.b16 %v1294
    %v2064 = vunpack.c.h.b16 %v1294
    %v2065 = vunpack.c.l.b16 %v1295
    %v2066 = vunpack.c.h.b16 %v1295
    %v2067 = vunpack.c.l.b16 %v1296
    %v2068 = vunpack.c.h.b16 %v1296
    %v2069 = vunpack.c.l.b16 %v1297
    %v2070 = vunpack.c.h.b16 %v1297
    %v2071 = vunpack.c.l.b16 %v1298
    %v2072 = vunpack.c.h.b16 %v1298
    %v2073 = vunpack.c.l.b16 %v1299
    %v2074 = vunpack.c.h.b16 %v1299
    %v2075 = vunpack.c.l.b16 %v1300
    %v2076 = vunpack.c.h.b16 %v1300
    %v2077 = vunpack.c.l.b16 %v1301
    %v2078 = vunpack.c.h.b16 %v1301
    %v2079 = vunpack.c.l.b16 %v1302
    %v2080 = vunpack.c.h.b16 %v1302
    %v2081 = vunpack.c.l.b16 %v1303
    %v2082 = vunpack.c.h.b16 %v1303
    %v2083 = vunpack.c.l.b16 %v1304
    %v2084 = vunpack.c.h.b16 %v1304
    %v2085 = vunpack.c.l.b16 %v1305
    %v2086 = vunpack.c.h.b16 %v1305
    %v2087 = vunpack.c.l.b16 %v1306
    %v2088 = vunpack.c.h.b16 %v1306
    %v2089 = vunpack.c.l.b16 %v1307
    %v2090 = vunpack.c.h.b16 %v1307
    %v2091 = vunpack.c.l.b16 %v1308
    %v2092 = vunpack.c.h.b16 %v1308
    %v2093 = vunpack.c.l.b16 %v1309
    %v2094 = vunpack.c.h.b16 %v1309
    %v2095 = vunpack.c.l.b16 %v1310
    %v2096 = vunpack.c.h.b16 %v1310
    %v2097 = vunpack.c.l.b16 %v1311
    %v2098 = vunpack.c.h.b16 %v1311
    %v2099 = vunpack.c.l.b16 %v1312
    %v2100 = vunpack.c.h.b16 %v1312
    %v2101 = vunpack.c.l.b16 %v1313
    %v2102 = vunpack.c.h.b16 %v1313
    %v2103 = vunpack.c.l.b16 %v1314
    %v2104 = vunpack.c.h.b16 %v1314
    %v2105 = vunpack.c.l.b16 %v1315
    %v2106 = vunpack.c.h.b16 %v1315
    %v2107 = vunpack.c.l.b16 %v1316
    %v2108 = vunpack.c.h.b16 %v1316
    %v2109 = vunpack.c.l.b16 %v1317
    %v2110 = vunpack.c.h.b16 %v1317
    %v2111 = vunpack.c.l.b16 %v1318
    %v2112 = vunpack.c.h.b16 %v1318
    %v2113 = vunpack.c.l.b16 %v1319
    %v2114 = vunpack.c.h.b16 %v1319
    %v2115 = vunpack.c.l.b16 %v1320
    %v2116 = vunpack.c.h.b16 %v1320
    %v2117 = vunpack.c.l.b16 %v1321
    %v2118 = vunpack.c.h.b16 %v1321
    %v2119 = vunpack.c.l.b16 %v1322
    %v2120 = vunpack.c.h.b16 %v1322
    %v2121 = vunpack.c.l.b16 %v1323
    %v2122 = vunpack.c.h.b16 %v1323
    %v2123 = vunpack.c.l.b16 %v1324
    %v2124 = vunpack.c.h.b16 %v1324
    %v2125 = vunpack.c.l.b16 %v1325
    %v2126 = vunpack.c.h.b16 %v1325
    %v2127 = vunpack.c.l.b16 %v1326
    %v2128 = vunpack.c.h.b16 %v1326
    %v2129 = vunpack.c.l.b16 %v1327
    %v2130 = vunpack.c.h.b16 %v1327
    %v2131 = vunpack.c.l.b16 %v1328
    %v2132 = vunpack.c.h.b16 %v1328
    %v2133 = vunpack.c.l.b16 %v1329
    %v2134 = vunpack.c.h.b16 %v1329
    %v2135 = vunpack.c.l.b16 %v1330
    %v2136 = vunpack.c.h.b16 %v1330
    %v2137 = vunpack.c.l.b16 %v1331
    %v2138 = vunpack.c.h.b16 %v1331
    %v2139 = vunpack.c.l.b16 %v1332
    %v2140 = vunpack.c.h.b16 %v1332
    %v2141 = vunpack.c.l.b16 %v1333
    %v2142 = vunpack.c.h.b16 %v1333
    %v2143 = vunpack.c.l.b16 %v1334
    %v2144 = vunpack.c.h.b16 %v1334
    %v2145 = vunpack.c.l.b16 %v1335
    %v2146 = vunpack.c.h.b16 %v1335
    %v2147 = vunpack.c.l.b16 %v1336
    %v2148 = vunpack.c.h.b16 %v1336
    %v2149 = vunpack.c.l.b16 %v1337
    %v2150 = vunpack.c.h.b16 %v1337
    %v2151 = vunpack.c.l.b16 %v1338
    %v2152 = vunpack.c.h.b16 %v1338
    %v2153 = vunpack.c.l.b16 %v1339
    %v2154 = vunpack.c.h.b16 %v1339
    %v2155 = vunpack.c.l.b16 %v1340
    %v2156 = vunpack.c.h.b16 %v1340
    %v2157 = vunpack.c.l.b16 %v1341
    %v2158 = vunpack.c.h.b16 %v1341
    %v2159 = vunpack.c.l.b16 %v1342
    %v2160 = vunpack.c.h.b16 %v1342
    %v2161 = vunpack.c.l.b16 %v1343
    %v2162 = vunpack.c.h.b16 %v1343
    %v2163 = vunpack.c.l.b16 %v1344
    %v2164 = vunpack.c.h.b16 %v1344
    %v2165 = vunpack.c.l.b16 %v1345
    %v2166 = vunpack.c.h.b16 %v1345
    %v2167 = vunpack.c.l.b16 %v1346
    %v2168 = vunpack.c.h.b16 %v1346
    %v2169 = vunpack.c.l.b16 %v1347
    %v2170 = vunpack.c.h.b16 %v1347
    %v2171 = vunpack.c.l.b16 %v1348
    %v2172 = vunpack.c.h.b16 %v1348
    %v2173 = vunpack.c.l.b16 %v1349
    %v2174 = vunpack.c.h.b16 %v1349
    %v2175 = vunpack.c.l.b16 %v1350
    %v2176 = vunpack.c.h.b16 %v1350
    %v2177 = vunpack.c.l.b16 %v1351
    %v2178 = vunpack.c.h.b16 %v1351
    %v2179 = vunpack.c.l.b16 %v1352
    %v2180 = vunpack.c.h.b16 %v1352
    %v2181 = vunpack.c.l.b16 %v1353
    %v2182 = vunpack.c.h.b16 %v1353
    %v2183 = vunpack.c.l.b16 %v1354
    %v2184 = vunpack.c.h.b16 %v1354
    %v2185 = vunpack.c.l.b16 %v1355
    %v2186 = vunpack.c.h.b16 %v1355
    %v2187 = vunpack.c.l.b16 %v1356
    %v2188 = vunpack.c.h.b16 %v1356
    %v2189 = vunpack.c.l.b16 %v1357
    %v2190 = vunpack.c.h.b16 %v1357
    %v2191 = vunpack.c.l.b16 %v1358
    %v2192 = vunpack.c.h.b16 %v1358
    %v2193 = vunpack.c.l.b16 %v1359
    %v2194 = vunpack.c.h.b16 %v1359
    %v2195 = vunpack.c.l.b16 %v1360
    %v2196 = vunpack.c.h.b16 %v1360
    %v2197 = vunpack.c.l.b16 %v1361
    %v2198 = vunpack.c.h.b16 %v1361
    %v2199 = vunpack.c.l.b16 %v1362
    %v2200 = vunpack.c.h.b16 %v1362
    %v2201 = vunpack.c.l.b16 %v1363
    %v2202 = vunpack.c.h.b16 %v1363
    %v2203 = vunpack.c.l.b16 %v1364
    %v2204 = vunpack.c.h.b16 %v1364
    %v2205 = vunpack.c.l.b16 %v1365
    %v2206 = vunpack.c.h.b16 %v1365
    %v2207 = vunpack.c.l.b16 %v1366
    %v2208 = vunpack.c.h.b16 %v1366
    %v2209 = vunpack.c.l.b16 %v1367
    %v2210 = vunpack.c.h.b16 %v1367
    %v2211 = vunpack.c.l.b16 %v1368
    %v2212 = vunpack.c.h.b16 %v1368
    %v2213 = vunpack.c.l.b16 %v1369
    %v2214 = vunpack.c.h.b16 %v1369
    %v2215 = vunpack.c.l.b16 %v1370
    %v2216 = vunpack.c.h.b16 %v1370
    %v2217 = vunpack.c.l.b16 %v1371
    %v2218 = vunpack.c.h.b16 %v1371
    %v2219 = vunpack.c.l.b16 %v1372
    %v2220 = vunpack.c.h.b16 %v1372
    %v2221 = vunpack.c.l.b16 %v1373
    %v2222 = vunpack.c.h.b16 %v1373
    %v2223 = vunpack.c.l.b16 %v1374
    %v2224 = vunpack.c.h.b16 %v1374
    %v2225 = vunpack.c.l.b16 %v1375
    %v2226 = vunpack.c.h.b16 %v1375
    %v2227 = vunpack.c.l.b16 %v1376
    %v2228 = vunpack.c.h.b16 %v1376
    %v2229 = vunpack.c.l.b16 %v1377
    %v2230 = vunpack.c.h.b16 %v1377
    %v2231 = vunpack.c.l.b16 %v1378
    %v2232 = vunpack.c.h.b16 %v1378
    %v2233 = vunpack.c.l.b16 %v1379
    %v2234 = vunpack.c.h.b16 %v1379
    %v2235 = vunpack.c.l.b16 %v1380
    %v2236 = vunpack.c.h.b16 %v1380
    %v2237 = vunpack.c.l.b16 %v1381
    %v2238 = vunpack.c.h.b16 %v1381
    %v2239 = vunpack.c.l.b16 %v1382
    %v2240 = vunpack.c.h.b16 %v1382
    %v2241 = vunpack.c.l.b16 %v1383
    %v2242 = vunpack.c.h.b16 %v1383
    %v2243 = vunpack.c.l.b16 %v1384
    %v2244 = vunpack.c.h.b16 %v1384
    %v2245 = vunpack.c.l.b16 %v1385
    %v2246 = vunpack.c.h.b16 %v1385
    %v2247 = vunpack.c.l.b16 %v1386
    %v2248 = vunpack.c.h.b16 %v1386
    %v2249 = vunpack.c.l.b16 %v1387
    %v2250 = vunpack.c.h.b16 %v1387
    %v2251 = vunpack.c.l.b16 %v1388
    %v2252 = vunpack.c.h.b16 %v1388
    %v2253 = vunpack.c.l.b16 %v1389
    %v2254 = vunpack.c.h.b16 %v1389
    %v2255 = vunpack.c.l.b16 %v1390
    %v2256 = vunpack.c.h.b16 %v1390
    %v2257 = vunpack.c.l.b16 %v1391
    %v2258 = vunpack.c.h.b16 %v1391
    %v2259 = vunpack.c.l.b16 %v1392
    %v2260 = vunpack.c.h.b16 %v1392
    %v2261 = vunpack.c.l.b16 %v1393
    %v2262 = vunpack.c.h.b16 %v1393
    %v2263 = vunpack.c.l.b16 %v1394
    %v2264 = vunpack.c.h.b16 %v1394
    %v2265 = vunpack.c.l.b16 %v1395
    %v2266 = vunpack.c.h.b16 %v1395
    %v2267 = vunpack.c.l.b16 %v1396
    %v2268 = vunpack.c.h.b16 %v1396
    %v2269 = vunpack.c.l.b16 %v1397
    %v2270 = vunpack.c.h.b16 %v1397
    %v2271 = vunpack.c.l.b16 %v1398
    %v2272 = vunpack.c.h.b16 %v1398
    %v2273 = vunpack.c.l.b16 %v1399
    %v2274 = vunpack.c.h.b16 %v1399
    %v2275 = vunpack.c.l.b16 %v1400
    %v2276 = vunpack.c.h.b16 %v1400
    %v2277 = vunpack.c.l.b16 %v1401
    %v2278 = vunpack.c.h.b16 %v1401
    %v2279 = vunpack.c.l.b16 %v1402
    %v2280 = vunpack.c.h.b16 %v1402
    %v2281 = vunpack.c.l.b16 %v1403
    %v2282 = vunpack.c.h.b16 %v1403
    %v2283 = vunpack.c.l.b16 %v1404
    %v2284 = vunpack.c.h.b16 %v1404
    %v2285 = vunpack.c.l.b16 %v1405
    %v2286 = vunpack.c.h.b16 %v1405
    %v2287 = vunpack.c.l.b16 %v1406
    %v2288 = vunpack.c.h.b16 %v1406
    %v2289 = vunpack.c.l.b16 %v1407
    %v2290 = vunpack.c.h.b16 %v1407
    %v2291 = vunpack.c.l.b16 %v1408
    %v2292 = vunpack.c.h.b16 %v1408
    %v2293 = vunpack.c.l.b16 %v1409
    %v2294 = vunpack.c.h.b16 %v1409
    %v2295 = vunpack.c.l.b16 %v1410
    %v2296 = vunpack.c.h.b16 %v1410
    %v2297 = vunpack.c.l.b16 %v1411
    %v2298 = vunpack.c.h.b16 %v1411
    %v2299 = vunpack.c.l.b16 %v1412
    %v2300 = vunpack.c.h.b16 %v1412
    %v2301 = vunpack.c.l.b16 %v1413
    %v2302 = vunpack.c.h.b16 %v1413
    %v2303 = vunpack.c.l.b16 %v1414
    %v2304 = vunpack.c.h.b16 %v1414
    %v2305 = vunpack.c.l.b16 %v1415
    %v2306 = vunpack.c.h.b16 %v1415
    %v2307 = vunpack.c.l.b16 %v1416
    %v2308 = vunpack.c.h.b16 %v1416
    %v2309 = vunpack.c.l.b16 %v1417
    %v2310 = vunpack.c.h.b16 %v1417
    %v2311 = vunpack.c.l.b16 %v1418
    %v2312 = vunpack.c.h.b16 %v1418
    %v2313 = vunpack.c.l.b16 %v1419
    %v2314 = vunpack.c.h.b16 %v1419
    %v2315 = vunpack.c.l.b16 %v1420
    %v2316 = vunpack.c.h.b16 %v1420
    %v2317 = vunpack.c.l.b16 %v1421
    %v2318 = vunpack.c.h.b16 %v1421
    %v2319 = vunpack.c.l.b16 %v1422
    %v2320 = vunpack.c.h.b16 %v1422
    %v2321 = vunpack.c.l.b16 %v1423
    %v2322 = vunpack.c.h.b16 %v1423
    %v2323 = vunpack.c.l.b16 %v1424
    %v2324 = vunpack.c.h.b16 %v1424
    %v2325 = vunpack.c.l.b16 %v1425
    %v2326 = vunpack.c.h.b16 %v1425
    %v2327 = vunpack.c.l.b16 %v1426
    %v2328 = vunpack.c.h.b16 %v1426
    %v2329 = vunpack.c.l.b16 %v1427
    %v2330 = vunpack.c.h.b16 %v1427
    %v2331 = vunpack.c.l.b16 %v1428
    %v2332 = vunpack.c.h.b16 %v1428
    %v2333 = vunpack.c.l.b16 %v1429
    %v2334 = vunpack.c.h.b16 %v1429
    %v2335 = vunpack.c.l.b16 %v1430
    %v2336 = vunpack.c.h.b16 %v1430
    %v2337 = vunpack.c.l.b16 %v1431
    %v2338 = vunpack.c.h.b16 %v1431
    %v2339 = vunpack.c.l.b16 %v1432
    %v2340 = vunpack.c.h.b16 %v1432
    %v2341 = vunpack.c.l.b16 %v1433
    %v2342 = vunpack.c.h.b16 %v1433
    %v2343 = vunpack.c.l.b16 %v1434
    %v2344 = vunpack.c.h.b16 %v1434
    %v2345 = vunpack.c.l.b16 %v1435
    %v2346 = vunpack.c.h.b16 %v1435
    %v2347 = vunpack.c.l.b16 %v1436
    %v2348 = vunpack.c.h.b16 %v1436
    %v2349 = vunpack.c.l.b16 %v1437
    %v2350 = vunpack.c.h.b16 %v1437
    %v2351 = vunpack.c.l.b16 %v1438
    %v2352 = vunpack.c.h.b16 %v1438
    %v2353 = vunpack.c.l.b16 %v1439
    %v2354 = vunpack.c.h.b16 %v1439
    %v2355 = vunpack.c.l.b16 %v1440
    %v2356 = vunpack.c.h.b16 %v1440
    %v2357 = vunpack.c.l.b16 %v1441
    %v2358 = vunpack.c.h.b16 %v1441
    %v2359 = vunpack.c.l.b16 %v1442
    %v2360 = vunpack.c.h.b16 %v1442
    %v2361 = vunpack.c.l.b16 %v1443
    %v2362 = vunpack.c.h.b16 %v1443
    %v2363 = vunpack.c.l.b16 %v1444
    %v2364 = vunpack.c.h.b16 %v1444
    %v2365 = vunpack.c.l.b16 %v1445
    %v2366 = vunpack.c.h.b16 %v1445
    %v2367 = vunpack.c.l.b16 %v1446
    %v2368 = vunpack.c.h.b16 %v1446
    %v2369 = vunpack.c.l.b16 %v1447
    %v2370 = vunpack.c.h.b16 %v1447
    %v2371 = vunpack.c.l.b16 %v1448
    %v2372 = vunpack.c.h.b16 %v1448
    %v2373 = vunpack.c.l.b16 %v1449
    %v2374 = vunpack.c.h.b16 %v1449
    %v2375 = vunpack.c.l.b16 %v1450
    %v2376 = vunpack.c.h.b16 %v1450
    %v2377 = vunpack.c.l.b16 %v1451
    %v2378 = vunpack.c.h.b16 %v1451
    %v2379 = vunpack.c.l.b16 %v1452
    %v2380 = vunpack.c.h.b16 %v1452
    %v2381 = vunpack.c.l.b16 %v1453
    %v2382 = vunpack.c.h.b16 %v1453
    %v2383 = vunpack.c.l.b16 %v1454
    %v2384 = vunpack.c.h.b16 %v1454
    %v2385 = vunpack.c.l.b16 %v1455
    %v2386 = vunpack.c.h.b16 %v1455
    %v2387 = vunpack.c.l.b16 %v1456
    %v2388 = vunpack.c.h.b16 %v1456
    %v2389 = vunpack.c.l.b16 %v1457
    %v2390 = vunpack.c.h.b16 %v1457
    %v2391 = vunpack.c.l.b16 %v1458
    %v2392 = vunpack.c.h.b16 %v1458
    %v2393 = vunpack.c.l.b16 %v1459
    %v2394 = vunpack.c.h.b16 %v1459
    %v2395 = vunpack.c.l.b16 %v1460
    %v2396 = vunpack.c.h.b16 %v1460
    %v2397 = vunpack.c.l.b16 %v1461
    %v2398 = vunpack.c.h.b16 %v1461
    %v2399 = vunpack.c.l.b16 %v1462
    %v2400 = vunpack.c.h.b16 %v1462
    %v2401 = vunpack.c.l.b16 %v1463
    %v2402 = vunpack.c.h.b16 %v1463
    %v2403 = vunpack.c.l.b16 %v1464
    %v2404 = vunpack.c.h.b16 %v1464
    %v2405 = vunpack.c.l.b16 %v1465
    %v2406 = vunpack.c.h.b16 %v1465
    %v2407 = vunpack.c.l.b16 %v1466
    %v2408 = vunpack.c.h.b16 %v1466
    %v2409 = vunpack.c.l.b16 %v1467
    %v2410 = vunpack.c.h.b16 %v1467
    %v2411 = vunpack.c.l.b16 %v1468
    %v2412 = vunpack.c.h.b16 %v1468
    %v2413 = vunpack.c.l.b16 %v1469
    %v2414 = vunpack.c.h.b16 %v1469
    %v2415 = vunpack.c.l.b16 %v1470
    %v2416 = vunpack.c.h.b16 %v1470
    %v2417 = vunpack.c.l.b16 %v1471
    %v2418 = vunpack.c.h.b16 %v1471
    %v2419 = vunpack.c.l.b16 %v1472
    %v2420 = vunpack.c.h.b16 %v1472
    %v2421 = vunpack.c.l.b16 %v1473
    %v2422 = vunpack.c.h.b16 %v1473
    %v2423 = vunpack.c.l.b16 %v1474
    %v2424 = vunpack.c.h.b16 %v1474
    %v2425 = vunpack.c.l.b16 %v1475
    %v2426 = vunpack.c.h.b16 %v1475
    %v2427 = vunpack.c.l.b16 %v1476
    %v2428 = vunpack.c.h.b16 %v1476
    %v2429 = vunpack.c.l.b16 %v1477
    %v2430 = vunpack.c.h.b16 %v1477
    %v2431 = vunpack.c.l.b16 %v1478
    %v2432 = vunpack.c.h.b16 %v1478
    %v2433 = vunpack.c.l.b16 %v1479
    %v2434 = vunpack.c.h.b16 %v1479
    %v2435 = vunpack.c.l.b16 %v1480
    %v2436 = vunpack.c.h.b16 %v1480
    %v2437 = vunpack.c.l.b16 %v1481
    %v2438 = vunpack.c.h.b16 %v1481
    %v2439 = vunpack.c.l.b16 %v1482
    %v2440 = vunpack.c.h.b16 %v1482
    %v2441 = vunpack.c.l.b16 %v1483
    %v2442 = vunpack.c.h.b16 %v1483
    %v2443 = vunpack.c.l.b16 %v1484
    %v2444 = vunpack.c.h.b16 %v1484
    %v2445 = vunpack.c.l.b16 %v1485
    %v2446 = vunpack.c.h.b16 %v1485
    %v2447 = vunpack.c.l.b16 %v1486
    %v2448 = vunpack.c.h.b16 %v1486
    %v2449 = vunpack.c.l.b16 %v1487
    %v2450 = vunpack.c.h.b16 %v1487
    %v2451 = vunpack.c.l.b16 %v1488
    %v2452 = vunpack.c.h.b16 %v1488
    %v2453 = vunpack.c.l.b16 %v1489
    %v2454 = vunpack.c.h.b16 %v1489
    %v2455 = vunpack.c.l.b16 %v1490
    %v2456 = vunpack.c.h.b16 %v1490
    %v2457 = vunpack.c.l.b16 %v1491
    %v2458 = vunpack.c.h.b16 %v1491
    %v2459 = vunpack.c.l.b16 %v1492
    %v2460 = vunpack.c.h.b16 %v1492
    %v2461 = vunpack.c.l.b16 %v1493
    %v2462 = vunpack.c.h.b16 %v1493
    %v2463 = vunpack.c.l.b16 %v1494
    %v2464 = vunpack.c.h.b16 %v1494
    %v2465 = vunpack.c.l.b16 %v1495
    %v2466 = vunpack.c.h.b16 %v1495
    %v2467 = vunpack.c.l.b16 %v1496
    %v2468 = vunpack.c.h.b16 %v1496
    %v2469 = vunpack.c.l.b16 %v1497
    %v2470 = vunpack.c.h.b16 %v1497
    %v2471 = vunpack.c.l.b16 %v1498
    %v2472 = vunpack.c.h.b16 %v1498
    %v2473 = vunpack.c.l.b16 %v1499
    %v2474 = vunpack.c.h.b16 %v1499
    %v2475 = vunpack.c.l.b16 %v1500
    %v2476 = vunpack.c.h.b16 %v1500
    %v2477 = vunpack.c.l.b16 %v1501
    %v2478 = vunpack.c.h.b16 %v1501
    %v2479 = vunpack.c.l.b16 %v1502
    %v2480 = vunpack.c.h.b16 %v1502
    %v2481 = vunpack.c.l.b16 %v1503
    %v2482 = vunpack.c.h.b16 %v1503
    %v2483 = vunpack.c.l.b16 %v1504
    %v2484 = vunpack.c.h.b16 %v1504
    %v2485 = vunpack.c.l.b16 %v1505
    %v2486 = vunpack.c.h.b16 %v1505
    %v2487 = vunpack.c.l.b16 %v1506
    %v2488 = vunpack.c.h.b16 %v1506
    %v2489 = vunpack.c.l.b16 %v1507
    %v2490 = vunpack.c.h.b16 %v1507
    %v2491 = vunpack.c.l.b16 %v1508
    %v2492 = vunpack.c.h.b16 %v1508
    %v2493 = vunpack.c.l.b16 %v1509
    %v2494 = vunpack.c.h.b16 %v1509
    %v2495 = vunpack.c.l.b16 %v1510
    %v2496 = vunpack.c.h.b16 %v1510
    %v2497 = vunpack.c.l.b16 %v1511
    %v2498 = vunpack.c.h.b16 %v1511
    %v2499 = vunpack.c.l.b16 %v1512
    %v2500 = vunpack.c.h.b16 %v1512
    %v2501 = vunpack.c.l.b16 %v1513
    %v2502 = vunpack.c.h.b16 %v1513
    %v2503 = vunpack.c.l.b16 %v1514
    %v2504 = vunpack.c.h.b16 %v1514
    %v2505 = vunpack.c.l.b16 %v1515
    %v2506 = vunpack.c.h.b16 %v1515
    %v2507 = vunpack.c.l.b16 %v1516
    %v2508 = vunpack.c.h.b16 %v1516
    %v2509 = vunpack.c.l.b16 %v1517
    %v2510 = vunpack.c.h.b16 %v1517
    %v2511 = vunpack.c.l.b16 %v1518
    %v2512 = vunpack.c.h.b16 %v1518
    %v2513 = vunpack.c.l.b16 %v1519
    %v2514 = vunpack.c.h.b16 %v1519
    %v2515 = vunpack.c.l.b16 %v1520
    %v2516 = vunpack.c.h.b16 %v1520
    %v2517 = vunpack.c.l.b16 %v1521
    %v2518 = vunpack.c.h.b16 %v1521
    %v2519 = vunpack.c.l.b16 %v1522
    %v2520 = vunpack.c.h.b16 %v1522
    %v2521 = vunpack.c.l.b16 %v1523
    %v2522 = vunpack.c.h.b16 %v1523
    %v2523 = vunpack.c.l.b16 %v1524
    %v2524 = vunpack.c.h.b16 %v1524
    %v2525 = vunpack.c.l.b16 %v1525
    %v2526 = vunpack.c.h.b16 %v1525
    %v2527 = vunpack.c.l.b16 %v1526
    %v2528 = vunpack.c.h.b16 %v1526
    %v2529 = vunpack.c.l.b16 %v1527
    %v2530 = vunpack.c.h.b16 %v1527
    %v2531 = vunpack.c.l.b16 %v1528
    %v2532 = vunpack.c.h.b16 %v1528
    %v2533 = vunpack.c.l.b16 %v1529
    %v2534 = vunpack.c.h.b16 %v1529
    %v2535 = vunpack.c.l.b16 %v1530
    %v2536 = vunpack.c.h.b16 %v1530
    %v2537 = vunpack.c.l.b16 %v1531
    %v2538 = vunpack.c.h.b16 %v1531
    %v2539 = vunpack.c.l.b16 %v1532
    %v2540 = vunpack.c.h.b16 %v1532
    %v2541 = vunpack.c.l.b16 %v1533
    %v2542 = vunpack.c.h.b16 %v1533
    %v2543 = vunpack.c.l.b16 %v1534
    %v2544 = vunpack.c.h.b16 %v1534
    %v2545 = vunpack.c.l.b16 %v1535
    %v2546 = vunpack.c.h.b16 %v1535
    %v2547 = vunpack.c.l.b16 %v1536
    %v2548 = vunpack.c.h.b16 %v1536
    %v2549 = vunpack.c.l.b16 %v1537
    %v2550 = vunpack.c.h.b16 %v1537
    %v2551 = vunpack.c.l.b16 %v1538
    %v2552 = vunpack.c.h.b16 %v1538
    %v2553 = vunpack.c.l.b16 %v1539
    %v2554 = vunpack.c.h.b16 %v1539
    %v2555 = vunpack.c.l.b16 %v1540
    %v2556 = vunpack.c.h.b16 %v1540
    %v2557 = vunpack.c.l.b16 %v1541
    %v2558 = vunpack.c.h.b16 %v1541
    %v2559 = vunpack.c.l.b16 %v1542
    %v2560 = vunpack.c.h.b16 %v1542
    %v2561 = vunpack.c.l.b16 %v1543
    %v2562 = vunpack.c.h.b16 %v1543
    %v2563 = vunpack.c.l.b16 %v1544
    %v2564 = vunpack.c.h.b16 %v1544
    %v2565 = vunpack.c.l.b16 %v1545
    %v2566 = vunpack.c.h.b16 %v1545
    %v2567 = vunpack.c.l.b16 %v1546
    %v2568 = vunpack.c.h.b16 %v1546
    %v2569 = vunpack.c.l.b16 %v1547
    %v2570 = vunpack.c.h.b16 %v1547
    %v2571 = vunpack.c.l.b16 %v1548
    %v2572 = vunpack.c.h.b16 %v1548
    %v2573 = vunpack.c.l.b16 %v1549
    %v2574 = vunpack.c.h.b16 %v1549
    %v2575 = vunpack.c.l.b16 %v1550
    %v2576 = vunpack.c.h.b16 %v1550
    %v2577 = vunpack.c.l.b16 %v1551
    %v2578 = vunpack.c.h.b16 %v1551
    %v2579 = vunpack.c.l.b16 %v1552
    %v2580 = vunpack.c.h.b16 %v1552
    %v2581 = vunpack.c.l.b16 %v1553
    %v2582 = vunpack.c.h.b16 %v1553
    %v2583 = vunpack.c.l.b16 %v1554
    %v2584 = vunpack.c.h.b16 %v1554
    %v2585 = vunpack.c.l.b16 %v1555
    %v2586 = vunpack.c.h.b16 %v1555
    %v2587 = vunpack.c.l.b16 %v1556
    %v2588 = vunpack.c.h.b16 %v1556
    %v2589 = vunpack.c.l.b16 %v1557
    %v2590 = vunpack.c.h.b16 %v1557
    %v2591 = vunpack.c.l.b16 %v1558
    %v2592 = vunpack.c.h.b16 %v1558
    %v2593 = vunpack.c.l.b16 %v1559
    %v2594 = vunpack.c.h.b16 %v1559
    %v2595 = vunpack.c.l.b16 %v1560
    %v2596 = vunpack.c.h.b16 %v1560
    %v2597 = vunpack.c.l.b16 %v1561
    %v2598 = vunpack.c.h.b16 %v1561
    %v2599 = vunpack.c.l.b16 %v1562
    %v2600 = vunpack.c.h.b16 %v1562
    %v2601 = vunpack.c.l.b16 %v1563
    %v2602 = vunpack.c.h.b16 %v1563
    %v2603 = vunpack.c.l.b16 %v1564
    %v2604 = vunpack.c.h.b16 %v1564
    %v2605 = vunpack.c.l.b16 %v1565
    %v2606 = vunpack.c.h.b16 %v1565
    %v2607 = vunpack.c.l.b16 %v1566
    %v2608 = vunpack.c.h.b16 %v1566
    %v2609 = vunpack.c.l.b16 %v1567
    %v2610 = vunpack.c.h.b16 %v1567
    %v2611 = vunpack.c.l.b16 %v1568
    %v2612 = vunpack.c.h.b16 %v1568
    %v2613 = vunpack.c.l.b16 %v1569
    %v2614 = vunpack.c.h.b16 %v1569
    %v2615 = vunpack.c.l.b16 %v1570
    %v2616 = vunpack.c.h.b16 %v1570
    %v2617 = vunpack.c.l.b16 %v1571
    %v2618 = vunpack.c.h.b16 %v1571
    %v2619 = vunpack.c.l.b16 %v1572
    %v2620 = vunpack.c.h.b16 %v1572
    %v2621 = vunpack.c.l.b16 %v1573
    %v2622 = vunpack.c.h.b16 %v1573
    %v2623 = vunpack.c.l.b16 %v1574
    %v2624 = vunpack.c.h.b16 %v1574
    %v2625 = vunpack.c.l.b16 %v1575
    %v2626 = vunpack.c.h.b16 %v1575
    %v2627 = vunpack.c.l.b16 %v1576
    %v2628 = vunpack.c.h.b16 %v1576
    %v2629 = vunpack.c.l.b16 %v1577
    %v2630 = vunpack.c.h.b16 %v1577
    %v2631 = vunpack.c.l.b16 %v1578
    %v2632 = vunpack.c.h.b16 %v1578
    %v2633 = vunpack.c.l.b16 %v1579
    %v2634 = vunpack.c.h.b16 %v1579
    %v2635 = vunpack.c.l.b16 %v1580
    %v2636 = vunpack.c.h.b16 %v1580
    %v2637 = vunpack.c.l.b16 %v1581
    %v2638 = vunpack.c.h.b16 %v1581
    %v2639 = vunpack.c.l.b16 %v1582
    %v2640 = vunpack.c.h.b16 %v1582
    %v2641 = vunpack.c.l.b16 %v1583
    %v2642 = vunpack.c.h.b16 %v1583
    %v2643 = vunpack.c.l.b16 %v1584
    %v2644 = vunpack.c.h.b16 %v1584
    %v2645 = vunpack.c.l.b16 %v1585
    %v2646 = vunpack.c.h.b16 %v1585
    %v2647 = vunpack.c.l.b16 %v1586
    %v2648 = vunpack.c.h.b16 %v1586
    %v2649 = vunpack.c.l.b16 %v1587
    %v2650 = vunpack.c.h.b16 %v1587
    %v2651 = vunpack.c.l.b16 %v1588
    %v2652 = vunpack.c.h.b16 %v1588
    %v2653 = vunpack.c.l.b16 %v1589
    %v2654 = vunpack.c.h.b16 %v1589
    %v2655 = vunpack.c.l.b16 %v1590
    %v2656 = vunpack.c.h.b16 %v1590
    %v2657 = vunpack.c.l.b16 %v1591
    %v2658 = vunpack.c.h.b16 %v1591
    %v2659 = vunpack.c.l.b16 %v1592
    %v2660 = vunpack.c.h.b16 %v1592
    %v2661 = vunpack.c.l.b16 %v1593
    %v2662 = vunpack.c.h.b16 %v1593
    %v2663 = vunpack.c.l.b16 %v1594
    %v2664 = vunpack.c.h.b16 %v1594
    %v2665 = vunpack.c.l.b16 %v1595
    %v2666 = vunpack.c.h.b16 %v1595
    %v2667 = vunpack.c.l.b16 %v1596
    %v2668 = vunpack.c.h.b16 %v1596
    %v2669 = vunpack.c.l.b16 %v1597
    %v2670 = vunpack.c.h.b16 %v1597
    %v2671 = vunpack.c.l.b16 %v1598
    %v2672 = vunpack.c.h.b16 %v1598
    %v2673 = vunpack.c.l.b16 %v1599
    %v2674 = vunpack.c.h.b16 %v1599
    %v2675 = vunpack.c.l.b16 %v1600
    %v2676 = vunpack.c.h.b16 %v1600
    %v2677 = vunpack.c.l.b16 %v1601
    %v2678 = vunpack.c.h.b16 %v1601
    %v2679 = vunpack.c.l.b16 %v1602
    %v2680 = vunpack.c.h.b16 %v1602
    %v2681 = vunpack.c.l.b16 %v1603
    %v2682 = vunpack.c.h.b16 %v1603
    %v2683 = vunpack.c.l.b16 %v1604
    %v2684 = vunpack.c.h.b16 %v1604
    %v2685 = vunpack.c.l.b16 %v1605
    %v2686 = vunpack.c.h.b16 %v1605
    %v2687 = vunpack.c.l.b16 %v1606
    %v2688 = vunpack.c.h.b16 %v1606
    %v2689 = vunpack.c.l.b16 %v1607
    %v2690 = vunpack.c.h.b16 %v1607
    %v2691 = vunpack.c.l.b16 %v1608
    %v2692 = vunpack.c.h.b16 %v1608
    %v2693 = vunpack.c.l.b16 %v1609
    %v2694 = vunpack.c.h.b16 %v1609
    %v2695 = vunpack.c.l.b16 %v1610
    %v2696 = vunpack.c.h.b16 %v1610
    %v2697 = vunpack.c.l.b16 %v1611
    %v2698 = vunpack.c.h.b16 %v1611
    %v2699 = vunpack.c.l.b16 %v1612
    %v2700 = vunpack.c.h.b16 %v1612
    %v2701 = vunpack.c.l.b16 %v1613
    %v2702 = vunpack.c.h.b16 %v1613
    %v2703 = vunpack.c.l.b16 %v1614
    %v2704 = vunpack.c.h.b16 %v1614
    %v2705 = vunpack.c.l.b16 %v1615
    %v2706 = vunpack.c.h.b16 %v1615
    %v2707 = vunpack.c.l.b16 %v1616
    %v2708 = vunpack.c.h.b16 %v1616
    %v2709 = vunpack.c.l.b16 %v1617
    %v2710 = vunpack.c.h.b16 %v1617
    %v2711 = vunpack.c.l.b16 %v1618
    %v2712 = vunpack.c.h.b16 %v1618
    %v2713 = vunpack.c.l.b16 %v1619
    %v2714 = vunpack.c.h.b16 %v1619
    %v2715 = vunpack.c.l.b16 %v1620
    %v2716 = vunpack.c.h.b16 %v1620
    %v2717 = vunpack.c.l.b16 %v1621
    %v2718 = vunpack.c.h.b16 %v1621
    %v2719 = vunpack.c.l.b16 %v1622
    %v2720 = vunpack.c.h.b16 %v1622
    %v2721 = vunpack.c.l.b16 %v1623
    %v2722 = vunpack.c.h.b16 %v1623
    %v2723 = vunpack.c.l.b16 %v1624
    %v2724 = vunpack.c.h.b16 %v1624
    %v2725 = vunpack.c.l.b16 %v1625
    %v2726 = vunpack.c.h.b16 %v1625
    %v2727 = vunpack.c.l.b16 %v1626
    %v2728 = vunpack.c.h.b16 %v1626
    %v2729 = vunpack.c.l.b16 %v1627
    %v2730 = vunpack.c.h.b16 %v1627
    %v2731 = vunpack.c.l.b16 %v1628
    %v2732 = vunpack.c.h.b16 %v1628
    %v2733 = vunpack.c.l.b16 %v1629
    %v2734 = vunpack.c.h.b16 %v1629
    %v2735 = vunpack.c.l.b16 %v1630
    %v2736 = vunpack.c.h.b16 %v1630
    %v2737 = vunpack.c.l.b16 %v1631
    %v2738 = vunpack.c.h.b16 %v1631
    %v2739 = vunpack.c.l.b16 %v1632
    %v2740 = vunpack.c.h.b16 %v1632
    %v2741 = vunpack.c.l.b16 %v1633
    %v2742 = vunpack.c.h.b16 %v1633
    %v2743 = vunpack.c.l.b16 %v1634
    %v2744 = vunpack.c.h.b16 %v1634
    %v2745 = vunpack.c.l.b16 %v1635
    %v2746 = vunpack.c.h.b16 %v1635
    %v2747 = vunpack.c.l.b16 %v1636
    %v2748 = vunpack.c.h.b16 %v1636
    %v2749 = vunpack.c.l.b16 %v1637
    %v2750 = vunpack.c.h.b16 %v1637
    %v2751 = vunpack.c.l.b16 %v1638
    %v2752 = vunpack.c.h.b16 %v1638
    %v2753 = vunpack.c.l.b16 %v1639
    %v2754 = vunpack.c.h.b16 %v1639
    %v2755 = vunpack.c.l.b16 %v1640
    %v2756 = vunpack.c.h.b16 %v1640
    %v2757 = vunpack.c.l.b16 %v1641
    %v2758 = vunpack.c.h.b16 %v1641
    %v2759 = vunpack.c.l.b16 %v1642
    %v2760 = vunpack.c.h.b16 %v1642
    %v2761 = vunpack.c.l.b16 %v1643
    %v2762 = vunpack.c.h.b16 %v1643
    %v2763 = vunpack.c.l.b16 %v1644
    %v2764 = vunpack.c.h.b16 %v1644
    %v2765 = vunpack.c.l.b16 %v1645
    %v2766 = vunpack.c.h.b16 %v1645
    %v2767 = vunpack.c.l.b16 %v1646
    %v2768 = vunpack.c.h.b16 %v1646
    %v2769 = vunpack.c.l.b16 %v1647
    %v2770 = vunpack.c.h.b16 %v1647
    %v2771 = vunpack.c.l.b16 %v1648
    %v2772 = vunpack.c.h.b16 %v1648
    %v2773 = vunpack.c.l.b16 %v1649
    %v2774 = vunpack.c.h.b16 %v1649
    %v2775 = vunpack.c.l.b16 %v1650
    %v2776 = vunpack.c.h.b16 %v1650
    %v2777 = vunpack.c.l.b16 %v1651
    %v2778 = vunpack.c.h.b16 %v1651
    %v2779 = vunpack.c.l.b16 %v1652
    %v2780 = vunpack.c.h.b16 %v1652
    %v2781 = vunpack.c.l.b16 %v1653
    %v2782 = vunpack.c.h.b16 %v1653
    %v2783 = vunpack.c.l.b16 %v1654
    %v2784 = vunpack.c.h.b16 %v1654
    %v2785 = vunpack.c.l.b16 %v1655
    %v2786 = vunpack.c.h.b16 %v1655
    %v2787 = vunpack.c.l.b16 %v1656
    %v2788 = vunpack.c.h.b16 %v1656
    %v2789 = vunpack.c.l.b16 %v1657
    %v2790 = vunpack.c.h.b16 %v1657
    %v2791 = vunpack.c.l.b16 %v1658
    %v2792 = vunpack.c.h.b16 %v1658
    %v2793 = vunpack.c.l.b16 %v1659
    %v2794 = vunpack.c.h.b16 %v1659
    %v2795 = vunpack.c.l.b16 %v1660
    %v2796 = vunpack.c.h.b16 %v1660
    %v2797 = vunpack.c.l.b16 %v1661
    %v2798 = vunpack.c.h.b16 %v1661
    %v2799 = vunpack.c.l.b16 %v1662
    %v2800 = vunpack.c.h.b16 %v1662
    %v2801 = vunpack.c.l.b16 %v1663
    %v2802 = vunpack.c.h.b16 %v1663
    %v2803 = vunpack.c.l.b16 %v1664
    %v2804 = vunpack.c.h.b16 %v1664
    %v2805 = vunpack.c.l.b16 %v1665
    %v2806 = vunpack.c.h.b16 %v1665
    %v2807 = vunpack.c.l.b16 %v1666
    %v2808 = vunpack.c.h.b16 %v1666
    %v2809 = vunpack.c.l.b16 %v1667
    %v2810 = vunpack.c.h.b16 %v1667
    %v2811 = vunpack.c.l.b16 %v1668
    %v2812 = vunpack.c.h.b16 %v1668
    %v2813 = vunpack.c.l.b16 %v1669
    %v2814 = vunpack.c.h.b16 %v1669
    %v2815 = vunpack.c.l.b16 %v1670
    %v2816 = vunpack.c.h.b16 %v1670
    %v2817 = vunpack.c.l.b16 %v1671
    %v2818 = vunpack.c.h.b16 %v1671
    %v2819 = vunpack.c.l.b16 %v1672
    %v2820 = vunpack.c.h.b16 %v1672
    %v2821 = vunpack.c.l.b16 %v1673
    %v2822 = vunpack.c.h.b16 %v1673
    %v2823 = vunpack.c.l.b16 %v1674
    %v2824 = vunpack.c.h.b16 %v1674
    %v2825 = vunpack.c.l.b16 %v1675
    %v2826 = vunpack.c.h.b16 %v1675
    %v2827 = vunpack.c.l.b16 %v1676
    %v2828 = vunpack.c.h.b16 %v1676
    %v2829 = vpack.c.b16 %v2069, %v2061
    %v2830 = vpack.c.b16 %v2070, %v2062
    %v2831 = vpack.c.b16 %v2071, %v2063
    %v2832 = vpack.c.b16 %v2072, %v2064
    %v2833 = vpack.c.b16 %v2073, %v2065
    %v2834 = vpack.c.b16 %v2074, %v2066
    %v2835 = vpack.c.b16 %v2075, %v2067
    %v2836 = vpack.c.b16 %v2076, %v2068
    %v2837 = vpack.c.b16 %v2085, %v2077
    %v2838 = vpack.c.b16 %v2086, %v2078
    %v2839 = vpack.c.b16 %v2087, %v2079
    %v2840 = vpack.c.b16 %v2088, %v2080
    %v2841 = vpack.c.b16 %v2089, %v2081
    %v2842 = vpack.c.b16 %v2090, %v2082
    %v2843 = vpack.c.b16 %v2091, %v2083
    %v2844 = vpack.c.b16 %v2092, %v2084
    %v2845 = vpack.c.b16 %v2101, %v2093
    %v2846 = vpack.c.b16 %v2102, %v2094
    %v2847 = vpack.c.b16 %v2103, %v2095
    %v2848 = vpack.c.b16 %v2104, %v2096
    %v2849 = vpack.c.b16 %v2105, %v2097
    %v2850 = vpack.c.b16 %v2106, %v2098
    %v2851 = vpack.c.b16 %v2107, %v2099
    %v2852 = vpack.c.b16 %v2108, %v2100
    %v2853 = vpack.c.b16 %v2117, %v2109
    %v2854 = vpack.c.b16 %v2118, %v2110
    %v2855 = vpack.c.b16 %v2119, %v2111
    %v2856 = vpack.c.b16 %v2120, %v2112
    %v2857 = vpack.c.b16 %v2121, %v2113
    %v2858 = vpack.c.b16 %v2122, %v2114
    %v2859 = vpack.c.b16 %v2123, %v2115
    %v2860 = vpack.c.b16 %v2124, %v2116
    %v2861 = vpack.c.b16 %v2133, %v2125
    %v2862 = vpack.c.b16 %v2134, %v2126
    %v2863 = vpack.c.b16 %v2135, %v2127
    %v2864 = vpack.c.b16 %v2136, %v2128
    %v2865 = vpack.c.b16 %v2137, %v2129
    %v2866 = vpack.c.b16 %v2138, %v2130
    %v2867 = vpack.c.b16 %v2139, %v2131
    %v2868 = vpack.c.b16 %v2140, %v2132
    %v2869 = vpack.c.b16 %v2149, %v2141
    %v2870 = vpack.c.b16 %v2150, %v2142
    %v2871 = vpack.c.b16 %v2151, %v2143
    %v2872 = vpack.c.b16 %v2152, %v2144
    %v2873 = vpack.c.b16 %v2153, %v2145
    %v2874 = vpack.c.b16 %v2154, %v2146
    %v2875 = vpack.c.b16 %v2155, %v2147
    %v2876 = vpack.c.b16 %v2156, %v2148
    %v2877 = vpack.c.b16 %v2165, %v2157
    %v2878 = vpack.c.b16 %v2166, %v2158
    %v2879 = vpack.c.b16 %v2167, %v2159
    %v2880 = vpack.c.b16 %v2168, %v2160
    %v2881 = vpack.c.b16 %v2169, %v2161
    %v2882 = vpack.c.b16 %v2170, %v2162
    %v2883 = vpack.c.b16 %v2171, %v2163
    %v2884 = vpack.c.b16 %v2172, %v2164
    %v2885 = vpack.c.b16 %v2181, %v2173
    %v2886 = vpack.c.b16 %v2182, %v2174
    %v2887 = vpack.c.b16 %v2183, %v2175
    %v2888 = vpack.c.b16 %v2184, %v2176
    %v2889 = vpack.c.b16 %v2185, %v2177
    %v2890 = vpack.c.b16 %v2186, %v2178
    %v2891 = vpack.c.b16 %v2187, %v2179
    %v2892 = vpack.c.b16 %v2188, %v2180
    %v2893 = vpack.c.b16 %v2197, %v2189
    %v2894 = vpack.c.b16 %v2198, %v2190
    %v2895 = vpack.c.b16 %v2199, %v2191
    %v2896 = vpack.c.b16 %v2200, %v2192
    %v2897 = vpack.c.b16 %v2201, %v2193
    %v2898 = vpack.c.b16 %v2202, %v2194
    %v2899 = vpack.c.b16 %v2203, %v2195
    %v2900 = vpack.c.b16 %v2204, %v2196
    %v2901 = vpack.c.b16 %v2213, %v2205
    %v2902 = vpack.c.b16 %v2214, %v2206
    %v2903 = vpack.c.b16 %v2215, %v2207
    %v2904 = vpack.c.b16 %v2216, %v2208
    %v2905 = vpack.c.b16 %v2217, %v2209
    %v2906 = vpack.c.b16 %v2218, %v2210
    %v2907 = vpack.c.b16 %v2219, %v2211
    %v2908 = vpack.c.b16 %v2220, %v2212
    %v2909 = vpack.c.b16 %v2229, %v2221
    %v2910 = vpack.c.b16 %v2230, %v2222
    %v2911 = vpack.c.b16 %v2231, %v2223
    %v2912 = vpack.c.b16 %v2232, %v2224
    %v2913 = vpack.c.b16 %v2233, %v2225
    %v2914 = vpack.c.b16 %v2234, %v2226
    %v2915 = vpack.c.b16 %v2235, %v2227
    %v2916 = vpack.c.b16 %v2236, %v2228
    %v2917 = vpack.c.b16 %v2245, %v2237
    %v2918 = vpack.c.b16 %v2246, %v2238
    %v2919 = vpack.c.b16 %v2247, %v2239
    %v2920 = vpack.c.b16 %v2248, %v2240
    %v2921 = vpack.c.b16 %v2249, %v2241
    %v2922 = vpack.c.b16 %v2250, %v2242
    %v2923 = vpack.c.b16 %v2251, %v2243
    %v2924 = vpack.c.b16 %v2252, %v2244
    %v2925 = vpack.c.b16 %v2261, %v2253
    %v2926 = vpack.c.b16 %v2262, %v2254
    %v2927 = vpack.c.b16 %v2263, %v2255
    %v2928 = vpack.c.b16 %v2264, %v2256
    %v2929 = vpack.c.b16 %v2265, %v2257
    %v2930 = vpack.c.b16 %v2266, %v2258
    %v2931 = vpack.c.b16 %v2267, %v2259
    %v2932 = vpack.c.b16 %v2268, %v2260
    %v2933 = vpack.c.b16 %v2277, %v2269
    %v2934 = vpack.c.b16 %v2278, %v2270
    %v2935 = vpack.c.b16 %v2279, %v2271
    %v2936 = vpack.c.b16 %v2280, %v2272
    %v2937 = vpack.c.b16 %v2281, %v2273
    %v2938 = vpack.c.b16 %v2282, %v2274
    %v2939 = vpack.c.b16 %v2283, %v2275
    %v2940 = vpack.c.b16 %v2284, %v2276
    %v2941 = vpack.c.b16 %v2293, %v2285
    %v2942 = vpack.c.b16 %v2294, %v2286
    %v2943 = vpack.c.b16 %v2295, %v2287
    %v2944 = vpack.c.b16 %v2296, %v2288
    %v2945 = vpack.c.b16 %v2297, %v2289
    %v2946 = vpack.c.b16 %v2298, %v2290
    %v2947 = vpack.c.b16 %v2299, %v2291
    %v2948 = vpack.c.b16 %v2300, %v2292
    %v2949 = vpack.c.b16 %v2309, %v2301
    %v2950 = vpack.c.b16 %v2310, %v2302
    %v2951 = vpack.c.b16 %v2311, %v2303
    %v2952 = vpack.c.b16 %v2312, %v2304
    %v2953 = vpack.c.b16 %v2313, %v2305
    %v2954 = vpack.c.b16 %v2314, %v2306
    %v2955 = vpack.c.b16 %v2315, %v2307
    %v2956 = vpack.c.b16 %v2316, %v2308
    %v2957 = vpack.c.b16 %v2325, %v2317
    %v2958 = vpack.c.b16 %v2326, %v2318
    %v2959 = vpack.c.b16 %v2327, %v2319
    %v2960 = vpack.c.b16 %v2328, %v2320
    %v2961 = vpack.c.b16 %v2329, %v2321
    %v2962 = vpack.c.b16 %v2330, %v2322
    %v2963 = vpack.c.b16 %v2331, %v2323
    %v2964 = vpack.c.b16 %v2332, %v2324
    %v2965 = vpack.c.b16 %v2341, %v2333
    %v2966 = vpack.c.b16 %v2342, %v2334
    %v2967 = vpack.c.b16 %v2343, %v2335
    %v2968 = vpack.c.b16 %v2344, %v2336
    %v2969 = vpack.c.b16 %v2345, %v2337
    %v2970 = vpack.c.b16 %v2346, %v2338
    %v2971 = vpack.c.b16 %v2347, %v2339
    %v2972 = vpack.c.b16 %v2348, %v2340
    %v2973 = vpack.c.b16 %v2357, %v2349
    %v2974 = vpack.c.b16 %v2358, %v2350
    %v2975 = vpack.c.b16 %v2359, %v2351
    %v2976 = vpack.c.b16 %v2360, %v2352
    %v2977 = vpack.c.b16 %v2361, %v2353
    %v2978 = vpack.c.b16 %v2362, %v2354
    %v2979 = vpack.c.b16 %v2363, %v2355
    %v2980 = vpack.c.b16 %v2364, %v2356
    %v2981 = vpack.c.b16 %v2373, %v2365
    %v2982 = vpack.c.b16 %v2374, %v2366
    %v2983 = vpack.c.b16 %v2375, %v2367
    %v2984 = vpack.c.b16 %v2376, %v2368
    %v2985 = vpack.c.b16 %v2377, %v2369
    %v2986 = vpack.c.b16 %v2378, %v2370
    %v2987 = vpack.c.b16 %v2379, %v2371
    %v2988 = vpack.c.b16 %v2380, %v2372
    %v2989 = vpack.c.b16 %v2389, %v2381
    %v2990 = vpack.c.b16 %v2390, %v2382
    %v2991 = vpack.c.b16 %v2391, %v2383
    %v2992 = vpack.c.b16 %v2392, %v2384
    %v2993 = vpack.c.b16 %v2393, %v2385
    %v2994 = vpack.c.b16 %v2394, %v2386
    %v2995 = vpack.c.b16 %v2395, %v2387
    %v2996 = vpack.c.b16 %v2396, %v2388
    %v2997 = vpack.c.b16 %v2405, %v2397
    %v2998 = vpack.c.b16 %v2406, %v2398
    %v2999 = vpack.c.b16 %v2407, %v2399
    %v3000 = vpack.c.b16 %v2408, %v2400
    %v3001 = vpack.c.b16 %v2409, %v2401
    %v3002 = vpack.c.b16 %v2410, %v2402
    %v3003 = vpack.c.b16 %v2411, %v2403
    %v3004 = vpack.c.b16 %v2412, %v2404
    %v3005 = vpack.c.b16 %v2421, %v2413
    %v3006 = vpack.c.b16 %v2422, %v2414
    %v3007 = vpack.c.b16 %v2423, %v2415
    %v3008 = vpack.c.b16 %v2424, %v2416
    %v3009 = vpack.c.b16 %v2425, %v2417
    %v3010 = vpack.c.b16 %v2426, %v2418
    %v3011 = vpack.c.b16 %v2427, %v2419
    %v3012 = vpack.c.b16 %v2428, %v2420
    %v3013 = vpack.c.b16 %v2437, %v2429
    %v3014 = vpack.c.b16 %v2438, %v2430
    %v3015 = vpack.c.b16 %v2439, %v2431
    %v3016 = vpack.c.b16 %v2440, %v2432
    %v3017 = vpack.c.b16 %v2441, %v2433
    %v3018 = vpack.c.b16 %v2442, %v2434
    %v3019 = vpack.c.b16 %v2443, %v2435
    %v3020 = vpack.c.b16 %v2444, %v2436
    %v3021 = vpack.c.b16 %v2453, %v2445
    %v3022 = vpack.c.b16 %v2454, %v2446
    %v3023 = vpack.c.b16 %v2455, %v2447
    %v3024 = vpack.c.b16 %v2456, %v2448
    %v3025 = vpack.c.b16 %v2457, %v2449
    %v3026 = vpack.c.b16 %v2458, %v2450
    %v3027 = vpack.c.b16 %v2459, %v2451
    %v3028 = vpack.c.b16 %v2460, %v2452
    %v3029 = vpack.c.b16 %v2469, %v2461
    %v3030 = vpack.c.b16 %v2470, %v2462
    %v3031 = vpack.c.b16 %v2471, %v2463
    %v3032 = vpack.c.b16 %v2472, %v2464
    %v3033 = vpack.c.b16 %v2473, %v2465
    %v3034 = vpack.c.b16 %v2474, %v2466
    %v3035 = vpack.c.b16 %v2475, %v2467
    %v3036 = vpack.c.b16 %v2476, %v2468
    %v3037 = vpack.c.b16 %v2485, %v2477
    %v3038 = vpack.c.b16 %v2486, %v2478
    %v3039 = vpack.c.b16 %v2487, %v2479
    %v3040 = vpack.c.b16 %v2488, %v2480
    %v3041 = vpack.c.b16 %v2489, %v2481
    %v3042 = vpack.c.b16 %v2490, %v2482
    %v3043 = vpack.c.b16 %v2491, %v2483
    %v3044 = vpack.c.b16 %v2492, %v2484
    %v3045 = vpack.c.b16 %v2501, %v2493
    %v3046 = vpack.c.b16 %v2502, %v2494
    %v3047 = vpack.c.b16 %v2503, %v2495
    %v3048 = vpack.c.b16 %v2504, %v2496
    %v3049 = vpack.c.b16 %v2505, %v2497
    %v3050 = vpack.c.b16 %v2506, %v2498
    %v3051 = vpack.c.b16 %v2507, %v2499
    %v3052 = vpack.c.b16 %v2508, %v2500
    %v3053 = vpack.c.b16 %v2517, %v2509
    %v3054 = vpack.c.b16 %v2518, %v2510
    %v3055 = vpack.c.b16 %v2519, %v2511
    %v3056 = vpack.c.b16 %v2520, %v2512
    %v3057 = vpack.c.b16 %v2521, %v2513
    %v3058 = vpack.c.b16 %v2522, %v2514
    %v3059 = vpack.c.b16 %v2523, %v2515
    %v3060 = vpack.c.b16 %v2524, %v2516
    %v3061 = vpack.c.b16 %v2533, %v2525
    %v3062 = vpack.c.b16 %v2534, %v2526
    %v3063 = vpack.c.b16 %v2535, %v2527
    %v3064 = vpack.c.b16 %v2536, %v2528
    %v3065 = vpack.c.b16 %v2537, %v2529
    %v3066 = vpack.c.b16 %v2538, %v2530
    %v3067 = vpack.c.b16 %v2539, %v2531
    %v3068 = vpack.c.b16 %v2540, %v2532
    %v3069 = vpack.c.b16 %v2549, %v2541
    %v3070 = vpack.c.b16 %v2550, %v2542
    %v3071 = vpack.c.b16 %v2551, %v2543
    %v3072 = vpack.c.b16 %v2552, %v2544
    %v3073 = vpack.c.b16 %v2553, %v2545
    %v3074 = vpack.c.b16 %v2554, %v2546
    %v3075 = vpack.c.b16 %v2555, %v2547
    %v3076 = vpack.c.b16 %v2556, %v2548
    %v3077 = vpack.c.b16 %v2565, %v2557
    %v3078 = vpack.c.b16 %v2566, %v2558
    %v3079 = vpack.c.b16 %v2567, %v2559
    %v3080 = vpack.c.b16 %v2568, %v2560
    %v3081 = vpack.c.b16 %v2569, %v2561
    %v3082 = vpack.c.b16 %v2570, %v2562
    %v3083 = vpack.c.b16 %v2571, %v2563
    %v3084 = vpack.c.b16 %v2572, %v2564
    %v3085 = vpack.c.b16 %v2581, %v2573
    %v3086 = vpack.c.b16 %v2582, %v2574
    %v3087 = vpack.c.b16 %v2583, %v2575
    %v3088 = vpack.c.b16 %v2584, %v2576
    %v3089 = vpack.c.b16 %v2585, %v2577
    %v3090 = vpack.c.b16 %v2586, %v2578
    %v3091 = vpack.c.b16 %v2587, %v2579
    %v3092 = vpack.c.b16 %v2588, %v2580
    %v3093 = vpack.c.b16 %v2597, %v2589
    %v3094 = vpack.c.b16 %v2598, %v2590
    %v3095 = vpack.c.b16 %v2599, %v2591
    %v3096 = vpack.c.b16 %v2600, %v2592
    %v3097 = vpack.c.b16 %v2601, %v2593
    %v3098 = vpack.c.b16 %v2602, %v2594
    %v3099 = vpack.c.b16 %v2603, %v2595
    %v3100 = vpack.c.b16 %v2604, %v2596
    %v3101 = vpack.c.b16 %v2613, %v2605
    %v3102 = vpack.c.b16 %v2614, %v2606
    %v3103 = vpack.c.b16 %v2615, %v2607
    %v3104 = vpack.c.b16 %v2616, %v2608
    %v3105 = vpack.c.b16 %v2617, %v2609
    %v3106 = vpack.c.b16 %v2618, %v2610
    %v3107 = vpack.c.b16 %v2619, %v2611
    %v3108 = vpack.c.b16 %v2620, %v2612
    %v3109 = vpack.c.b16 %v2629, %v2621
    %v3110 = vpack.c.b16 %v2630, %v2622
    %v3111 = vpack.c.b16 %v2631, %v2623
    %v3112 = vpack.c.b16 %v2632, %v2624
    %v3113 = vpack.c.b16 %v2633, %v2625
    %v3114 = vpack.c.b16 %v2634, %v2626
    %v3115 = vpack.c.b16 %v2635, %v2627
    %v3116 = vpack.c.b16 %v2636, %v2628
    %v3117 = vpack.c.b16 %v2645, %v2637
    %v3118 = vpack.c.b16 %v2646, %v2638
    %v3119 = vpack.c.b16 %v2647, %v2639
    %v3120 = vpack.c.b16 %v2648, %v2640
    %v3121 = vpack.c.b16 %v2649, %v2641
    %v3122 = vpack.c.b16 %v2650, %v2642
    %v3123 = vpack.c.b16 %v2651, %v2643
    %v3124 = vpack.c.b16 %v2652, %v2644
    %v3125 = vpack.c.b16 %v2661, %v2653
    %v3126 = vpack.c.b16 %v2662, %v2654
    %v3127 = vpack.c.b16 %v2663, %v2655
    %v3128 = vpack.c.b16 %v2664, %v2656
    %v3129 = vpack.c.b16 %v2665, %v2657
    %v3130 = vpack.c.b16 %v2666, %v2658
    %v3131 = vpack.c.b16 %v2667, %v2659
    %v3132 = vpack.c.b16 %v2668, %v2660
    %v3133 = vpack.c.b16 %v2677, %v2669
    %v3134 = vpack.c.b16 %v2678, %v2670
    %v3135 = vpack.c.b16 %v2679, %v2671
    %v3136 = vpack.c.b16 %v2680, %v2672
    %v3137 = vpack.c.b16 %v2681, %v2673
    %v3138 = vpack.c.b16 %v2682, %v2674
    %v3139 = vpack.c.b16 %v2683, %v2675
    %v3140 = vpack.c.b16 %v2684, %v2676
    %v3141 = vpack.c.b16 %v2693, %v2685
    %v3142 = vpack.c.b16 %v2694, %v2686
    %v3143 = vpack.c.b16 %v2695, %v2687
    %v3144 = vpack.c.b16 %v2696, %v2688
    %v3145 = vpack.c.b16 %v2697, %v2689
    %v3146 = vpack.c.b16 %v2698, %v2690
    %v3147 = vpack.c.b16 %v2699, %v2691
    %v3148 = vpack.c.b16 %v2700, %v2692
    %v3149 = vpack.c.b16 %v2709, %v2701
    %v3150 = vpack.c.b16 %v2710, %v2702
    %v3151 = vpack.c.b16 %v2711, %v2703
    %v3152 = vpack.c.b16 %v2712, %v2704
    %v3153 = vpack.c.b16 %v2713, %v2705
    %v3154 = vpack.c.b16 %v2714, %v2706
    %v3155 = vpack.c.b16 %v2715, %v2707
    %v3156 = vpack.c.b16 %v2716, %v2708
    %v3157 = vpack.c.b16 %v2725, %v2717
    %v3158 = vpack.c.b16 %v2726, %v2718
    %v3159 = vpack.c.b16 %v2727, %v2719
    %v3160 = vpack.c.b16 %v2728, %v2720
    %v3161 = vpack.c.b16 %v2729, %v2721
    %v3162 = vpack.c.b16 %v2730, %v2722
    %v3163 = vpack.c.b16 %v2731, %v2723
    %v3164 = vpack.c.b16 %v2732, %v2724
    %v3165 = vpack.c.b16 %v2741, %v2733
    %v3166 = vpack.c.b16 %v2742, %v2734
    %v3167 = vpack.c.b16 %v2743, %v2735
    %v3168 = vpack.c.b16 %v2744, %v2736
    %v3169 = vpack.c.b16 %v2745, %v2737
    %v3170 = vpack.c.b16 %v2746, %v2738
    %v3171 = vpack.c.b16 %v2747, %v2739
    %v3172 = vpack.c.b16 %v2748, %v2740
    %v3173 = vpack.c.b16 %v2757, %v2749
    %v3174 = vpack.c.b16 %v2758, %v2750
    %v3175 = vpack.c.b16 %v2759, %v2751
    %v3176 = vpack.c.b16 %v2760, %v2752
    %v3177 = vpack.c.b16 %v2761, %v2753
    %v3178 = vpack.c.b16 %v2762, %v2754
    %v3179 = vpack.c.b16 %v2763, %v2755
    %v3180 = vpack.c.b16 %v2764, %v2756
    %v3181 = vpack.c.b16 %v2773, %v2765
    %v3182 = vpack.c.b16 %v2774, %v2766
    %v3183 = vpack.c.b16 %v2775, %v2767
    %v3184 = vpack.c.b16 %v2776, %v2768
    %v3185 = vpack.c.b16 %v2777, %v2769
    %v3186 = vpack.c.b16 %v2778, %v2770
    %v3187 = vpack.c.b16 %v2779, %v2771
    %v3188 = vpack.c.b16 %v2780, %v2772
    %v3189 = vpack.c.b16 %v2789, %v2781
    %v3190 = vpack.c.b16 %v2790, %v2782
    %v3191 = vpack.c.b16 %v2791, %v2783
    %v3192 = vpack.c.b16 %v2792, %v2784
    %v3193 = vpack.c.b16 %v2793, %v2785
    %v3194 = vpack.c.b16 %v2794, %v2786
    %v3195 = vpack.c.b16 %v2795, %v2787
    %v3196 = vpack.c.b16 %v2796, %v2788
    %v3197 = vpack.c.b16 %v2805, %v2797
    %v3198 = vpack.c.b16 %v2806, %v2798
    %v3199 = vpack.c.b16 %v2807, %v2799
    %v3200 = vpack.c.b16 %v2808, %v2800
    %v3201 = vpack.c.b16 %v2809, %v2801
    %v3202 = vpack.c.b16 %v2810, %v2802
    %v3203 = vpack.c.b16 %v2811, %v2803
    %v3204 = vpack.c.b16 %v2812, %v2804
    %v3205 = vpack.c.b16 %v2821, %v2813
    %v3206 = vpack.c.b16 %v2822, %v2814
    %v3207 = vpack.c.b16 %v2823, %v2815
    %v3208 = vpack.c.b16 %v2824, %v2816
    %v3209 = vpack.c.b16 %v2825, %v2817
    %v3210 = vpack.c.b16 %v2826, %v2818
    %v3211 = vpack.c.b16 %v2827, %v2819
    %v3212 = vpack.c.b16 %v2828, %v2820
    %3597 = vmatprep.subr.bf16.mxu0 %v2886
    %3598 = vmatpush1.bf16.msra.mxu0 %v2885
    %3599 = vmatprep.subr.bf16.mxu0 %v2878
    %3600 = vmatpush1.bf16.msra.mxu0 %v2877
    %3601 = vmatprep.subr.bf16.mxu0 %v2870
    %3602 = vmatpush1.bf16.msra.mxu0 %v2869
    %3603 = vmatprep.subr.bf16.mxu0 %v2862
    %3604 = vmatpush1.bf16.msra.mxu0 %v2861
    %3605 = vmatprep.subr.bf16.mxu0 %v2854
    %3606 = vmatpush1.bf16.msra.mxu0 %v2853
    %3607 = vmatprep.subr.bf16.mxu0 %v2846
    %3608 = vmatpush1.bf16.msra.mxu0 %v2845
    %3609 = vmatprep.subr.bf16.mxu0 %v2838
    %3610 = vmatpush1.bf16.msra.mxu0 %v2837
    %3611 = vmatprep.subr.bf16.mxu0 %v2830
    %3612 = vmatpush1.bf16.msra.mxu0 %v2829
    %3613 = vmatprep.subr.bf16.mxu0 %v2950
    %3614 = vmatpush2.bf16.msra.mxu0 %v2949
    %3615 = vmatprep.subr.bf16.mxu0 %v2942
    %3616 = vmatpush2.bf16.msra.mxu0 %v2941
    %3617 = vmatprep.subr.bf16.mxu0 %v2934
    %3618 = vmatpush2.bf16.msra.mxu0 %v2933
    %3619 = vmatprep.subr.bf16.mxu0 %v2926
    %3620 = vmatpush2.bf16.msra.mxu0 %v2925
    %3621 = vmatprep.subr.bf16.mxu0 %v2918
    %3622 = vmatpush2.bf16.msra.mxu0 %v2917
    %3623 = vmatprep.subr.bf16.mxu0 %v2910
    %3624 = vmatpush2.bf16.msra.mxu0 %v2909
    %3625 = vmatprep.subr.bf16.mxu0 %v2902
    %3626 = vmatpush2.bf16.msra.mxu0 %v2901
    %3627 = vmatprep.subr.bf16.mxu0 %v2894
    %3628 = vmatpush2.bf16.msra.mxu0 %v2893
    %3629 = vmatprep.mubr.bf16.mxu0 %v264
    %3630 = vmatmul.mubr.bf16.gmra.mxu0 %v263
    %v3631 = vpop.f32.mrf.mxu0
    %v3632 = vadd.f32 0.0, %v3631
    %v3633 = vpop.f32.mrf.mxu0
    %v3634 = vadd.f32 0.0, %v3633
    %v3635 = vpop.f32.mrf.mxu0
    %v3636 = vpop.f32.mrf.mxu0
    %3637 = vdwg.mxu0
    %3638 = vmatprep.subr.bf16.mxu0 %v3014
    %3639 = vmatpush1.bf16.msra.mxu0 %v3013
    %3640 = vmatprep.subr.bf16.mxu0 %v3006
    %3641 = vmatpush1.bf16.msra.mxu0 %v3005
    %3642 = vmatprep.subr.bf16.mxu0 %v2998
    %3643 = vmatpush1.bf16.msra.mxu0 %v2997
    %3644 = vmatprep.subr.bf16.mxu0 %v2990
    %3645 = vmatpush1.bf16.msra.mxu0 %v2989
    %3646 = vmatprep.subr.bf16.mxu0 %v2982
    %3647 = vmatpush1.bf16.msra.mxu0 %v2981
    %3648 = vmatprep.subr.bf16.mxu0 %v2974
    %3649 = vmatpush1.bf16.msra.mxu0 %v2973
    %3650 = vmatprep.subr.bf16.mxu0 %v2966
    %3651 = vmatpush1.bf16.msra.mxu0 %v2965
    %3652 = vmatprep.subr.bf16.mxu0 %v2958
    %3653 = vmatpush1.bf16.msra.mxu0 %v2957
    %3654 = vmatprep.subr.bf16.mxu0 %v3078
    %3655 = vmatpush2.bf16.msra.mxu0 %v3077
    %3656 = vmatprep.subr.bf16.mxu0 %v3070
    %3657 = vmatpush2.bf16.msra.mxu0 %v3069
    %3658 = vmatprep.subr.bf16.mxu0 %v3062
    %3659 = vmatpush2.bf16.msra.mxu0 %v3061
    %3660 = vmatprep.subr.bf16.mxu0 %v3054
    %3661 = vmatpush2.bf16.msra.mxu0 %v3053
    %3662 = vmatprep.subr.bf16.mxu0 %v3046
    %3663 = vmatpush2.bf16.msra.mxu0 %v3045
    %3664 = vmatprep.subr.bf16.mxu0 %v3038
    %3665 = vmatpush2.bf16.msra.mxu0 %v3037
    %3666 = vmatprep.subr.bf16.mxu0 %v3030
    %3667 = vmatpush2.bf16.msra.mxu0 %v3029
    %3668 = vmatprep.subr.bf16.mxu0 %v3022
    %3669 = vmatpush2.bf16.msra.mxu0 %v3021
    %3670 = vmatprep.mubr.bf16.mxu0 %v266
    %3671 = vmatmul.mubr.bf16.gmra.mxu0 %v265
    %v3672 = vpop.f32.mrf.mxu0
    %v3673 = vadd.f32 %v3632, %v3672
    %v3674 = vpop.f32.mrf.mxu0
    %v3675 = vadd.f32 %v3634, %v3674
    %v3676 = vpop.f32.mrf.mxu0
    %v3677 = vpop.f32.mrf.mxu0
    %3678 = vdwg.mxu0
    %3679 = vmatprep.subr.bf16.mxu0 %v3142
    %3680 = vmatpush1.bf16.msra.mxu0 %v3141
    %3681 = vmatprep.subr.bf16.mxu0 %v3134
    %3682 = vmatpush1.bf16.msra.mxu0 %v3133
    %3683 = vmatprep.subr.bf16.mxu0 %v3126
    %3684 = vmatpush1.bf16.msra.mxu0 %v3125
    %3685 = vmatprep.subr.bf16.mxu0 %v3118
    %3686 = vmatpush1.bf16.msra.mxu0 %v3117
    %3687 = vmatprep.subr.bf16.mxu0 %v3110
    %3688 = vmatpush1.bf16.msra.mxu0 %v3109
    %3689 = vmatprep.subr.bf16.mxu0 %v3102
    %3690 = vmatpush1.bf16.msra.mxu0 %v3101
    %3691 = vmatprep.subr.bf16.mxu0 %v3094
    %3692 = vmatpush1.bf16.msra.mxu0 %v3093
    %3693 = vmatprep.subr.bf16.mxu0 %v3086
    %3694 = vmatpush1.bf16.msra.mxu0 %v3085
    %3695 = vmatprep.subr.bf16.mxu0 %v3206
    %3696 = vmatpush2.bf16.msra.mxu0 %v3205
    %3697 = vmatprep.subr.bf16.mxu0 %v3198
    %3698 = vmatpush2.bf16.msra.mxu0 %v3197
    %3699 = vmatprep.subr.bf16.mxu0 %v3190
    %3700 = vmatpush2.bf16.msra.mxu0 %v3189
    %3701 = vmatprep.subr.bf16.mxu0 %v3182
    %3702 = vmatpush2.bf16.msra.mxu0 %v3181
    %3703 = vmatprep.subr.bf16.mxu0 %v3174
    %3704 = vmatpush2.bf16.msra.mxu0 %v3173
    %3705 = vmatprep.subr.bf16.mxu0 %v3166
    %3706 = vmatpush2.bf16.msra.mxu0 %v3165
    %3707 = vmatprep.subr.bf16.mxu0 %v3158
    %3708 = vmatpush2.bf16.msra.mxu0 %v3157
    %3709 = vmatprep.subr.bf16.mxu0 %v3150
    %3710 = vmatpush2.bf16.msra.mxu0 %v3149
    %3711 = vmatprep.mubr.bf16.mxu0 %v268
    %3712 = vmatmul.mubr.bf16.gmra.mxu0 %v267
    %v3713 = vpop.f32.mrf.mxu0
    %v3714 = vadd.f32 %v3673, %v3713
    %v3715 = vpop.f32.mrf.mxu0
    %v3716 = vadd.f32 %v3675, %v3715
    %v3717 = vpop.f32.mrf.mxu0
    %v3718 = vpop.f32.mrf.mxu0
    %3719 = vdwg.mxu0
    %3720 = vmatprep.subr.bf16.mxu0 %v2888
    %3721 = vmatpush1.bf16.msra.mxu0 %v2887
    %3722 = vmatprep.subr.bf16.mxu0 %v2880
    %3723 = vmatpush1.bf16.msra.mxu0 %v2879
    %3724 = vmatprep.subr.bf16.mxu0 %v2872
    %3725 = vmatpush1.bf16.msra.mxu0 %v2871
    %3726 = vmatprep.subr.bf16.mxu0 %v2864
    %3727 = vmatpush1.bf16.msra.mxu0 %v2863
    %3728 = vmatprep.subr.bf16.mxu0 %v2856
    %3729 = vmatpush1.bf16.msra.mxu0 %v2855
    %3730 = vmatprep.subr.bf16.mxu0 %v2848
    %3731 = vmatpush1.bf16.msra.mxu0 %v2847
    %3732 = vmatprep.subr.bf16.mxu0 %v2840
    %3733 = vmatpush1.bf16.msra.mxu0 %v2839
    %3734 = vmatprep.subr.bf16.mxu0 %v2832
    %3735 = vmatpush1.bf16.msra.mxu0 %v2831
    %3736 = vmatprep.subr.bf16.mxu0 %v2952
    %3737 = vmatpush2.bf16.msra.mxu0 %v2951
    %3738 = vmatprep.subr.bf16.mxu0 %v2944
    %3739 = vmatpush2.bf16.msra.mxu0 %v2943
    %3740 = vmatprep.subr.bf16.mxu0 %v2936
    %3741 = vmatpush2.bf16.msra.mxu0 %v2935
    %3742 = vmatprep.subr.bf16.mxu0 %v2928
    %3743 = vmatpush2.bf16.msra.mxu0 %v2927
    %3744 = vmatprep.subr.bf16.mxu0 %v2920
    %3745 = vmatpush2.bf16.msra.mxu0 %v2919
    %3746 = vmatprep.subr.bf16.mxu0 %v2912
    %3747 = vmatpush2.bf16.msra.mxu0 %v2911
    %3748 = vmatprep.subr.bf16.mxu0 %v2904
    %3749 = vmatpush2.bf16.msra.mxu0 %v2903
    %3750 = vmatprep.subr.bf16.mxu0 %v2896
    %3751 = vmatpush2.bf16.msra.mxu0 %v2895
    %3752 = vmatprep.mubr.bf16.mxu0 %v264
    %3753 = vmatmul.mubr.bf16.gmra.mxu0 %v263
    %v3754 = vpop.f32.mrf.mxu0
    %v3755 = vadd.f32 0.0, %v3754
    %v3756 = vpop.f32.mrf.mxu0
    %v3757 = vadd.f32 0.0, %v3756
    %v3758 = vpop.f32.mrf.mxu0
    %v3759 = vpop.f32.mrf.mxu0
    %3760 = vdwg.mxu0
    %3761 = vmatprep.subr.bf16.mxu0 %v3016
    %3762 = vmatpush1.bf16.msra.mxu0 %v3015
    %3763 = vmatprep.subr.bf16.mxu0 %v3008
    %3764 = vmatpush1.bf16.msra.mxu0 %v3007
    %3765 = vmatprep.subr.bf16.mxu0 %v3000
    %3766 = vmatpush1.bf16.msra.mxu0 %v2999
    %3767 = vmatprep.subr.bf16.mxu0 %v2992
    %3768 = vmatpush1.bf16.msra.mxu0 %v2991
    %3769 = vmatprep.subr.bf16.mxu0 %v2984
    %3770 = vmatpush1.bf16.msra.mxu0 %v2983
    %3771 = vmatprep.subr.bf16.mxu0 %v2976
    %3772 = vmatpush1.bf16.msra.mxu0 %v2975
    %3773 = vmatprep.subr.bf16.mxu0 %v2968
    %3774 = vmatpush1.bf16.msra.mxu0 %v2967
    %3775 = vmatprep.subr.bf16.mxu0 %v2960
    %3776 = vmatpush1.bf16.msra.mxu0 %v2959
    %3777 = vmatprep.subr.bf16.mxu0 %v3080
    %3778 = vmatpush2.bf16.msra.mxu0 %v3079
    %3779 = vmatprep.subr.bf16.mxu0 %v3072
    %3780 = vmatpush2.bf16.msra.mxu0 %v3071
    %3781 = vmatprep.subr.bf16.mxu0 %v3064
    %3782 = vmatpush2.bf16.msra.mxu0 %v3063
    %3783 = vmatprep.subr.bf16.mxu0 %v3056
    %3784 = vmatpush2.bf16.msra.mxu0 %v3055
    %3785 = vmatprep.subr.bf16.mxu0 %v3048
    %3786 = vmatpush2.bf16.msra.mxu0 %v3047
    %3787 = vmatprep.subr.bf16.mxu0 %v3040
    %3788 = vmatpush2.bf16.msra.mxu0 %v3039
    %3789 = vmatprep.subr.bf16.mxu0 %v3032
    %3790 = vmatpush2.bf16.msra.mxu0 %v3031
    %3791 = vmatprep.subr.bf16.mxu0 %v3024
    %3792 = vmatpush2.bf16.msra.mxu0 %v3023
    %3793 = vmatprep.mubr.bf16.mxu0 %v266
    %3794 = vmatmul.mubr.bf16.gmra.mxu0 %v265
    %v3795 = vpop.f32.mrf.mxu0
    %v3796 = vadd.f32 %v3755, %v3795
    %v3797 = vpop.f32.mrf.mxu0
    %v3798 = vadd.f32 %v3757, %v3797
    %v3799 = vpop.f32.mrf.mxu0
    %v3800 = vpop.f32.mrf.mxu0
    %3801 = vdwg.mxu0
    %3802 = vmatprep.subr.bf16.mxu0 %v3144
    %3803 = vmatpush1.bf16.msra.mxu0 %v3143
    %3804 = vmatprep.subr.bf16.mxu0 %v3136
    %3805 = vmatpush1.bf16.msra.mxu0 %v3135
    %3806 = vmatprep.subr.bf16.mxu0 %v3128
    %3807 = vmatpush1.bf16.msra.mxu0 %v3127
    %3808 = vmatprep.subr.bf16.mxu0 %v3120
    %3809 = vmatpush1.bf16.msra.mxu0 %v3119
    %3810 = vmatprep.subr.bf16.mxu0 %v3112
    %3811 = vmatpush1.bf16.msra.mxu0 %v3111
    %3812 = vmatprep.subr.bf16.mxu0 %v3104
    %3813 = vmatpush1.bf16.msra.mxu0 %v3103
    %3814 = vmatprep.subr.bf16.mxu0 %v3096
    %3815 = vmatpush1.bf16.msra.mxu0 %v3095
    %3816 = vmatprep.subr.bf16.mxu0 %v3088
    %3817 = vmatpush1.bf16.msra.mxu0 %v3087
    %3818 = vmatprep.subr.bf16.mxu0 %v3208
    %3819 = vmatpush2.bf16.msra.mxu0 %v3207
    %3820 = vmatprep.subr.bf16.mxu0 %v3200
    %3821 = vmatpush2.bf16.msra.mxu0 %v3199
    %3822 = vmatprep.subr.bf16.mxu0 %v3192
    %3823 = vmatpush2.bf16.msra.mxu0 %v3191
    %3824 = vmatprep.subr.bf16.mxu0 %v3184
    %3825 = vmatpush2.bf16.msra.mxu0 %v3183
    %3826 = vmatprep.subr.bf16.mxu0 %v3176
    %3827 = vmatpush2.bf16.msra.mxu0 %v3175
    %3828 = vmatprep.subr.bf16.mxu0 %v3168
    %3829 = vmatpush2.bf16.msra.mxu0 %v3167
    %3830 = vmatprep.subr.bf16.mxu0 %v3160
    %3831 = vmatpush2.bf16.msra.mxu0 %v3159
    %3832 = vmatprep.subr.bf16.mxu0 %v3152
    %3833 = vmatpush2.bf16.msra.mxu0 %v3151
    %3834 = vmatprep.mubr.bf16.mxu0 %v268
    %3835 = vmatmul.mubr.bf16.gmra.mxu0 %v267
    %v3836 = vpop.f32.mrf.mxu0
    %v3837 = vadd.f32 %v3796, %v3836
    %v3838 = vpop.f32.mrf.mxu0
    %v3839 = vadd.f32 %v3798, %v3838
    %v3840 = vpop.f32.mrf.mxu0
    %v3841 = vpop.f32.mrf.mxu0
    %3842 = vdwg.mxu0
    %3843 = vmatprep.subr.bf16.mxu0 %v2890
    %3844 = vmatpush1.bf16.msra.mxu0 %v2889
    %3845 = vmatprep.subr.bf16.mxu0 %v2882
    %3846 = vmatpush1.bf16.msra.mxu0 %v2881
    %3847 = vmatprep.subr.bf16.mxu0 %v2874
    %3848 = vmatpush1.bf16.msra.mxu0 %v2873
    %3849 = vmatprep.subr.bf16.mxu0 %v2866
    %3850 = vmatpush1.bf16.msra.mxu0 %v2865
    %3851 = vmatprep.subr.bf16.mxu0 %v2858
    %3852 = vmatpush1.bf16.msra.mxu0 %v2857
    %3853 = vmatprep.subr.bf16.mxu0 %v2850
    %3854 = vmatpush1.bf16.msra.mxu0 %v2849
    %3855 = vmatprep.subr.bf16.mxu0 %v2842
    %3856 = vmatpush1.bf16.msra.mxu0 %v2841
    %3857 = vmatprep.subr.bf16.mxu0 %v2834
    %3858 = vmatpush1.bf16.msra.mxu0 %v2833
    %3859 = vmatprep.subr.bf16.mxu0 %v2954
    %3860 = vmatpush2.bf16.msra.mxu0 %v2953
    %3861 = vmatprep.subr.bf16.mxu0 %v2946
    %3862 = vmatpush2.bf16.msra.mxu0 %v2945
    %3863 = vmatprep.subr.bf16.mxu0 %v2938
    %3864 = vmatpush2.bf16.msra.mxu0 %v2937
    %3865 = vmatprep.subr.bf16.mxu0 %v2930
    %3866 = vmatpush2.bf16.msra.mxu0 %v2929
    %3867 = vmatprep.subr.bf16.mxu0 %v2922
    %3868 = vmatpush2.bf16.msra.mxu0 %v2921
    %3869 = vmatprep.subr.bf16.mxu0 %v2914
    %3870 = vmatpush2.bf16.msra.mxu0 %v2913
    %3871 = vmatprep.subr.bf16.mxu0 %v2906
    %3872 = vmatpush2.bf16.msra.mxu0 %v2905
    %3873 = vmatprep.subr.bf16.mxu0 %v2898
    %3874 = vmatpush2.bf16.msra.mxu0 %v2897
    %3875 = vmatprep.mubr.bf16.mxu0 %v264
    %3876 = vmatmul.mubr.bf16.gmra.mxu0 %v263
    %v3877 = vpop.f32.mrf.mxu0
    %v3878 = vadd.f32 0.0, %v3877
    %v3879 = vpop.f32.mrf.mxu0
    %v3880 = vadd.f32 0.0, %v3879
    %v3881 = vpop.f32.mrf.mxu0
    %v3882 = vpop.f32.mrf.mxu0
    %3883 = vdwg.mxu0
    %3884 = vmatprep.subr.bf16.mxu0 %v3018
    %3885 = vmatpush1.bf16.msra.mxu0 %v3017
    %3886 = vmatprep.subr.bf16.mxu0 %v3010
    %3887 = vmatpush1.bf16.msra.mxu0 %v3009
    %3888 = vmatprep.subr.bf16.mxu0 %v3002
    %3889 = vmatpush1.bf16.msra.mxu0 %v3001
    %3890 = vmatprep.subr.bf16.mxu0 %v2994
    %3891 = vmatpush1.bf16.msra.mxu0 %v2993
    %3892 = vmatprep.subr.bf16.mxu0 %v2986
    %3893 = vmatpush1.bf16.msra.mxu0 %v2985
    %3894 = vmatprep.subr.bf16.mxu0 %v2978
    %3895 = vmatpush1.bf16.msra.mxu0 %v2977
    %3896 = vmatprep.subr.bf16.mxu0 %v2970
    %3897 = vmatpush1.bf16.msra.mxu0 %v2969
    %3898 = vmatprep.subr.bf16.mxu0 %v2962
    %3899 = vmatpush1.bf16.msra.mxu0 %v2961
    %3900 = vmatprep.subr.bf16.mxu0 %v3082
    %3901 = vmatpush2.bf16.msra.mxu0 %v3081
    %3902 = vmatprep.subr.bf16.mxu0 %v3074
    %3903 = vmatpush2.bf16.msra.mxu0 %v3073
    %3904 = vmatprep.subr.bf16.mxu0 %v3066
    %3905 = vmatpush2.bf16.msra.mxu0 %v3065
    %3906 = vmatprep.subr.bf16.mxu0 %v3058
    %3907 = vmatpush2.bf16.msra.mxu0 %v3057
    %3908 = vmatprep.subr.bf16.mxu0 %v3050
    %3909 = vmatpush2.bf16.msra.mxu0 %v3049
    %3910 = vmatprep.subr.bf16.mxu0 %v3042
    %3911 = vmatpush2.bf16.msra.mxu0 %v3041
    %3912 = vmatprep.subr.bf16.mxu0 %v3034
    %3913 = vmatpush2.bf16.msra.mxu0 %v3033
    %3914 = vmatprep.subr.bf16.mxu0 %v3026
    %3915 = vmatpush2.bf16.msra.mxu0 %v3025
    %3916 = vmatprep.mubr.bf16.mxu0 %v266
    %3917 = vmatmul.mubr.bf16.gmra.mxu0 %v265
    %v3918 = vpop.f32.mrf.mxu0
    %v3919 = vadd.f32 %v3878, %v3918
    %v3920 = vpop.f32.mrf.mxu0
    %v3921 = vadd.f32 %v3880, %v3920
    %v3922 = vpop.f32.mrf.mxu0
    %v3923 = vpop.f32.mrf.mxu0
    %3924 = vdwg.mxu0
    %3925 = vmatprep.subr.bf16.mxu0 %v3146
    %3926 = vmatpush1.bf16.msra.mxu0 %v3145
    %3927 = vmatprep.subr.bf16.mxu0 %v3138
    %3928 = vmatpush1.bf16.msra.mxu0 %v3137
    %3929 = vmatprep.subr.bf16.mxu0 %v3130
    %3930 = vmatpush1.bf16.msra.mxu0 %v3129
    %3931 = vmatprep.subr.bf16.mxu0 %v3122
    %3932 = vmatpush1.bf16.msra.mxu0 %v3121
    %3933 = vmatprep.subr.bf16.mxu0 %v3114
    %3934 = vmatpush1.bf16.msra.mxu0 %v3113
    %3935 = vmatprep.subr.bf16.mxu0 %v3106
    %3936 = vmatpush1.bf16.msra.mxu0 %v3105
    %3937 = vmatprep.subr.bf16.mxu0 %v3098
    %3938 = vmatpush1.bf16.msra.mxu0 %v3097
    %3939 = vmatprep.subr.bf16.mxu0 %v3090
    %3940 = vmatpush1.bf16.msra.mxu0 %v3089
    %3941 = vmatprep.subr.bf16.mxu0 %v3210
    %3942 = vmatpush2.bf16.msra.mxu0 %v3209
    %3943 = vmatprep.subr.bf16.mxu0 %v3202
    %3944 = vmatpush2.bf16.msra.mxu0 %v3201
    %3945 = vmatprep.subr.bf16.mxu0 %v3194
    %3946 = vmatpush2.bf16.msra.mxu0 %v3193
    %3947 = vmatprep.subr.bf16.mxu0 %v3186
    %3948 = vmatpush2.bf16.msra.mxu0 %v3185
    %3949 = vmatprep.subr.bf16.mxu0 %v3178
    %3950 = vmatpush2.bf16.msra.mxu0 %v3177
    %3951 = vmatprep.subr.bf16.mxu0 %v3170
    %3952 = vmatpush2.bf16.msra.mxu0 %v3169
    %3953 = vmatprep.subr.bf16.mxu0 %v3162
    %3954 = vmatpush2.bf16.msra.mxu0 %v3161
    %3955 = vmatprep.subr.bf16.mxu0 %v3154
    %3956 = vmatpush2.bf16.msra.mxu0 %v3153
    %3957 = vmatprep.mubr.bf16.mxu0 %v268
    %3958 = vmatmul.mubr.bf16.gmra.mxu0 %v267
    %v3959 = vpop.f32.mrf.mxu0
    %v3960 = vadd.f32 %v3919, %v3959
    %v3961 = vpop.f32.mrf.mxu0
    %v3962 = vadd.f32 %v3921, %v3961
    %v3963 = vpop.f32.mrf.mxu0
    %v3964 = vpop.f32.mrf.mxu0
    %3965 = vdwg.mxu0
    %3966 = vmatprep.subr.bf16.mxu0 %v2892
    %3967 = vmatpush1.bf16.msra.mxu0 %v2891
    %3968 = vmatprep.subr.bf16.mxu0 %v2884
    %3969 = vmatpush1.bf16.msra.mxu0 %v2883
    %3970 = vmatprep.subr.bf16.mxu0 %v2876
    %3971 = vmatpush1.bf16.msra.mxu0 %v2875
    %3972 = vmatprep.subr.bf16.mxu0 %v2868
    %3973 = vmatpush1.bf16.msra.mxu0 %v2867
    %3974 = vmatprep.subr.bf16.mxu0 %v2860
    %3975 = vmatpush1.bf16.msra.mxu0 %v2859
    %3976 = vmatprep.subr.bf16.mxu0 %v2852
    %3977 = vmatpush1.bf16.msra.mxu0 %v2851
    %3978 = vmatprep.subr.bf16.mxu0 %v2844
    %3979 = vmatpush1.bf16.msra.mxu0 %v2843
    %3980 = vmatprep.subr.bf16.mxu0 %v2836
    %3981 = vmatpush1.bf16.msra.mxu0 %v2835
    %3982 = vmatprep.subr.bf16.mxu0 %v2956
    %3983 = vmatpush2.bf16.msra.mxu0 %v2955
    %3984 = vmatprep.subr.bf16.mxu0 %v2948
    %3985 = vmatpush2.bf16.msra.mxu0 %v2947
    %3986 = vmatprep.subr.bf16.mxu0 %v2940
    %3987 = vmatpush2.bf16.msra.mxu0 %v2939
    %3988 = vmatprep.subr.bf16.mxu0 %v2932
    %3989 = vmatpush2.bf16.msra.mxu0 %v2931
    %3990 = vmatprep.subr.bf16.mxu0 %v2924
    %3991 = vmatpush2.bf16.msra.mxu0 %v2923
    %3992 = vmatprep.subr.bf16.mxu0 %v2916
    %3993 = vmatpush2.bf16.msra.mxu0 %v2915
    %3994 = vmatprep.subr.bf16.mxu0 %v2908
    %3995 = vmatpush2.bf16.msra.mxu0 %v2907
    %3996 = vmatprep.subr.bf16.mxu0 %v2900
    %3997 = vmatpush2.bf16.msra.mxu0 %v2899
    %3998 = vmatprep.mubr.bf16.mxu0 %v264
    %3999 = vmatmul.mubr.bf16.gmra.mxu0 %v263
    %v4000 = vpop.f32.mrf.mxu0
    %v4001 = vadd.f32 0.0, %v4000
    %v4002 = vpop.f32.mrf.mxu0
    %v4003 = vadd.f32 0.0, %v4002
    %v4004 = vpop.f32.mrf.mxu0
    %v4005 = vpop.f32.mrf.mxu0
    %4006 = vdwg.mxu0
    %4007 = vmatprep.subr.bf16.mxu0 %v3020
    %4008 = vmatpush1.bf16.msra.mxu0 %v3019
    %4009 = vmatprep.subr.bf16.mxu0 %v3012
    %4010 = vmatpush1.bf16.msra.mxu0 %v3011
    %4011 = vmatprep.subr.bf16.mxu0 %v3004
    %4012 = vmatpush1.bf16.msra.mxu0 %v3003
    %4013 = vmatprep.subr.bf16.mxu0 %v2996
    %4014 = vmatpush1.bf16.msra.mxu0 %v2995
    %4015 = vmatprep.subr.bf16.mxu0 %v2988
    %4016 = vmatpush1.bf16.msra.mxu0 %v2987
    %4017 = vmatprep.subr.bf16.mxu0 %v2980
    %4018 = vmatpush1.bf16.msra.mxu0 %v2979
    %4019 = vmatprep.subr.bf16.mxu0 %v2972
    %4020 = vmatpush1.bf16.msra.mxu0 %v2971
    %4021 = vmatprep.subr.bf16.mxu0 %v2964
    %4022 = vmatpush1.bf16.msra.mxu0 %v2963
    %4023 = vmatprep.subr.bf16.mxu0 %v3084
    %4024 = vmatpush2.bf16.msra.mxu0 %v3083
    %4025 = vmatprep.subr.bf16.mxu0 %v3076
    %4026 = vmatpush2.bf16.msra.mxu0 %v3075
    %4027 = vmatprep.subr.bf16.mxu0 %v3068
    %4028 = vmatpush2.bf16.msra.mxu0 %v3067
    %4029 = vmatprep.subr.bf16.mxu0 %v3060
    %4030 = vmatpush2.bf16.msra.mxu0 %v3059
    %4031 = vmatprep.subr.bf16.mxu0 %v3052
    %4032 = vmatpush2.bf16.msra.mxu0 %v3051
    %4033 = vmatprep.subr.bf16.mxu0 %v3044
    %4034 = vmatpush2.bf16.msra.mxu0 %v3043
    %4035 = vmatprep.subr.bf16.mxu0 %v3036
    %4036 = vmatpush2.bf16.msra.mxu0 %v3035
    %4037 = vmatprep.subr.bf16.mxu0 %v3028
    %4038 = vmatpush2.bf16.msra.mxu0 %v3027
    %4039 = vmatprep.mubr.bf16.mxu0 %v266
    %4040 = vmatmul.mubr.bf16.gmra.mxu0 %v265
    %v4041 = vpop.f32.mrf.mxu0
    %v4042 = vadd.f32 %v4001, %v4041
    %v4043 = vpop.f32.mrf.mxu0
    %v4044 = vadd.f32 %v4003, %v4043
    %v4045 = vpop.f32.mrf.mxu0
    %v4046 = vpop.f32.mrf.mxu0
    %4047 = vdwg.mxu0
    %4048 = vmatprep.subr.bf16.mxu0 %v3148
    %4049 = vmatpush1.bf16.msra.mxu0 %v3147
    %4050 = vmatprep.subr.bf16.mxu0 %v3140
    %4051 = vmatpush1.bf16.msra.mxu0 %v3139
    %4052 = vmatprep.subr.bf16.mxu0 %v3132
    %4053 = vmatpush1.bf16.msra.mxu0 %v3131
    %4054 = vmatprep.subr.bf16.mxu0 %v3124
    %4055 = vmatpush1.bf16.msra.mxu0 %v3123
    %4056 = vmatprep.subr.bf16.mxu0 %v3116
    %4057 = vmatpush1.bf16.msra.mxu0 %v3115
    %4058 = vmatprep.subr.bf16.mxu0 %v3108
    %4059 = vmatpush1.bf16.msra.mxu0 %v3107
    %4060 = vmatprep.subr.bf16.mxu0 %v3100
    %4061 = vmatpush1.bf16.msra.mxu0 %v3099
    %4062 = vmatprep.subr.bf16.mxu0 %v3092
    %4063 = vmatpush1.bf16.msra.mxu0 %v3091
    %4064 = vmatprep.subr.bf16.mxu0 %v3212
    %4065 = vmatpush2.bf16.msra.mxu0 %v3211
    %4066 = vmatprep.subr.bf16.mxu0 %v3204
    %4067 = vmatpush2.bf16.msra.mxu0 %v3203
    %4068 = vmatprep.subr.bf16.mxu0 %v3196
    %4069 = vmatpush2.bf16.msra.mxu0 %v3195
    %4070 = vmatprep.subr.bf16.mxu0 %v3188
    %4071 = vmatpush2.bf16.msra.mxu0 %v3187
    %4072 = vmatprep.subr.bf16.mxu0 %v3180
    %4073 = vmatpush2.bf16.msra.mxu0 %v3179
    %4074 = vmatprep.subr.bf16.mxu0 %v3172
    %4075 = vmatpush2.bf16.msra.mxu0 %v3171
    %4076 = vmatprep.subr.bf16.mxu0 %v3164
    %4077 = vmatpush2.bf16.msra.mxu0 %v3163
    %4078 = vmatprep.subr.bf16.mxu0 %v3156
    %4079 = vmatpush2.bf16.msra.mxu0 %v3155
    %4080 = vmatprep.mubr.bf16.mxu0 %v268
    %4081 = vmatmul.mubr.bf16.gmra.mxu0 %v267
    %v4082 = vpop.f32.mrf.mxu0
    %v4083 = vadd.f32 %v4042, %v4082
    %v4084 = vpop.f32.mrf.mxu0
    %v4085 = vadd.f32 %v4044, %v4084
    %v4086 = vpop.f32.mrf.mxu0
    %v4087 = vpop.f32.mrf.mxu0
    %4088 = vdwg.mxu0
    %v5113 = vunpack.c.l.b16 %v269
    %v5114 = vunpack.c.h.b16 %v269
    %v5115 = vunpack.c.l.b16 %v270
    %v5116 = vunpack.c.h.b16 %v270
    %v5117 = vunpack.c.l.b16 %v271
    %v5118 = vunpack.c.h.b16 %v271
    %v5119 = vunpack.c.l.b16 %v272
    %v5120 = vunpack.c.h.b16 %v272
    %v5121 = vunpack.c.l.b16 %v273
    %v5122 = vunpack.c.h.b16 %v273
    %v5123 = vunpack.c.l.b16 %v274
    %v5124 = vunpack.c.h.b16 %v274
    %v5125 = vunpack.c.l.b16 %v275
    %v5126 = vunpack.c.h.b16 %v275
    %v5127 = vunpack.c.l.b16 %v276
    %v5128 = vunpack.c.h.b16 %v276
    %v5129 = vunpack.c.l.b16 %v277
    %v5130 = vunpack.c.h.b16 %v277
    %v5131 = vunpack.c.l.b16 %v278
    %v5132 = vunpack.c.h.b16 %v278
    %v5133 = vunpack.c.l.b16 %v279
    %v5134 = vunpack.c.h.b16 %v279
    %v5135 = vunpack.c.l.b16 %v280
    %v5136 = vunpack.c.h.b16 %v280
    %v5137 = vunpack.c.l.b16 %v281
    %v5138 = vunpack.c.h.b16 %v281
    %v5139 = vunpack.c.l.b16 %v282
    %v5140 = vunpack.c.h.b16 %v282
    %v5141 = vunpack.c.l.b16 %v283
    %v5142 = vunpack.c.h.b16 %v283
    %v5143 = vunpack.c.l.b16 %v284
    %v5144 = vunpack.c.h.b16 %v284
    %v5145 = vunpack.c.l.b16 %v285
    %v5146 = vunpack.c.h.b16 %v285
    %v5147 = vunpack.c.l.b16 %v286
    %v5148 = vunpack.c.h.b16 %v286
    %v5149 = vunpack.c.l.b16 %v287
    %v5150 = vunpack.c.h.b16 %v287
    %v5151 = vunpack.c.l.b16 %v288
    %v5152 = vunpack.c.h.b16 %v288
    %v5153 = vunpack.c.l.b16 %v289
    %v5154 = vunpack.c.h.b16 %v289
    %v5155 = vunpack.c.l.b16 %v290
    %v5156 = vunpack.c.h.b16 %v290
    %v5157 = vunpack.c.l.b16 %v291
    %v5158 = vunpack.c.h.b16 %v291
    %v5159 = vunpack.c.l.b16 %v292
    %v5160 = vunpack.c.h.b16 %v292
    %v5161 = vunpack.c.l.b16 %v293
    %v5162 = vunpack.c.h.b16 %v293
    %v5163 = vunpack.c.l.b16 %v294
    %v5164 = vunpack.c.h.b16 %v294
    %v5165 = vunpack.c.l.b16 %v295
    %v5166 = vunpack.c.h.b16 %v295
    %v5167 = vunpack.c.l.b16 %v296
    %v5168 = vunpack.c.h.b16 %v296
    %v5169 = vunpack.c.l.b16 %v297
    %v5170 = vunpack.c.h.b16 %v297
    %v5171 = vunpack.c.l.b16 %v298
    %v5172 = vunpack.c.h.b16 %v298
    %v5173 = vunpack.c.l.b16 %v299
    %v5174 = vunpack.c.h.b16 %v299
    %v5175 = vunpack.c.l.b16 %v300
    %v5176 = vunpack.c.h.b16 %v300
    %v5177 = vunpack.c.l.b16 %v301
    %v5178 = vunpack.c.h.b16 %v301
    %v5179 = vunpack.c.l.b16 %v302
    %v5180 = vunpack.c.h.b16 %v302
    %v5181 = vunpack.c.l.b16 %v303
    %v5182 = vunpack.c.h.b16 %v303
    %v5183 = vunpack.c.l.b16 %v304
    %v5184 = vunpack.c.h.b16 %v304
    %v5185 = vunpack.c.l.b16 %v305
    %v5186 = vunpack.c.h.b16 %v305
    %v5187 = vunpack.c.l.b16 %v306
    %v5188 = vunpack.c.h.b16 %v306
    %v5189 = vunpack.c.l.b16 %v307
    %v5190 = vunpack.c.h.b16 %v307
    %v5191 = vunpack.c.l.b16 %v308
    %v5192 = vunpack.c.h.b16 %v308
    %v5193 = vunpack.c.l.b16 %v309
    %v5194 = vunpack.c.h.b16 %v309
    %v5195 = vunpack.c.l.b16 %v310
    %v5196 = vunpack.c.h.b16 %v310
    %v5197 = vunpack.c.l.b16 %v311
    %v5198 = vunpack.c.h.b16 %v311
    %v5199 = vunpack.c.l.b16 %v312
    %v5200 = vunpack.c.h.b16 %v312
    %v5201 = vunpack.c.l.b16 %v313
    %v5202 = vunpack.c.h.b16 %v313
    %v5203 = vunpack.c.l.b16 %v314
    %v5204 = vunpack.c.h.b16 %v314
    %v5205 = vunpack.c.l.b16 %v315
    %v5206 = vunpack.c.h.b16 %v315
    %v5207 = vunpack.c.l.b16 %v316
    %v5208 = vunpack.c.h.b16 %v316
    %v5209 = vunpack.c.l.b16 %v317
    %v5210 = vunpack.c.h.b16 %v317
    %v5211 = vunpack.c.l.b16 %v318
    %v5212 = vunpack.c.h.b16 %v318
    %v5213 = vunpack.c.l.b16 %v319
    %v5214 = vunpack.c.h.b16 %v319
    %v5215 = vunpack.c.l.b16 %v320
    %v5216 = vunpack.c.h.b16 %v320
    %v5217 = vunpack.c.l.b16 %v321
    %v5218 = vunpack.c.h.b16 %v321
    %v5219 = vunpack.c.l.b16 %v322
    %v5220 = vunpack.c.h.b16 %v322
    %v5221 = vunpack.c.l.b16 %v323
    %v5222 = vunpack.c.h.b16 %v323
    %v5223 = vunpack.c.l.b16 %v324
    %v5224 = vunpack.c.h.b16 %v324
    %v5225 = vunpack.c.l.b16 %v325
    %v5226 = vunpack.c.h.b16 %v325
    %v5227 = vunpack.c.l.b16 %v326
    %v5228 = vunpack.c.h.b16 %v326
    %v5229 = vunpack.c.l.b16 %v327
    %v5230 = vunpack.c.h.b16 %v327
    %v5231 = vunpack.c.l.b16 %v328
    %v5232 = vunpack.c.h.b16 %v328
    %v5233 = vunpack.c.l.b16 %v329
    %v5234 = vunpack.c.h.b16 %v329
    %v5235 = vunpack.c.l.b16 %v330
    %v5236 = vunpack.c.h.b16 %v330
    %v5237 = vunpack.c.l.b16 %v331
    %v5238 = vunpack.c.h.b16 %v331
    %v5239 = vunpack.c.l.b16 %v332
    %v5240 = vunpack.c.h.b16 %v332
    %v5241 = vunpack.c.l.b16 %v333
    %v5242 = vunpack.c.h.b16 %v333
    %v5243 = vunpack.c.l.b16 %v334
    %v5244 = vunpack.c.h.b16 %v334
    %v5245 = vunpack.c.l.b16 %v335
    %v5246 = vunpack.c.h.b16 %v335
    %v5247 = vunpack.c.l.b16 %v336
    %v5248 = vunpack.c.h.b16 %v336
    %v5249 = vunpack.c.l.b16 %v337
    %v5250 = vunpack.c.h.b16 %v337
    %v5251 = vunpack.c.l.b16 %v338
    %v5252 = vunpack.c.h.b16 %v338
    %v5253 = vunpack.c.l.b16 %v339
    %v5254 = vunpack.c.h.b16 %v339
    %v5255 = vunpack.c.l.b16 %v340
    %v5256 = vunpack.c.h.b16 %v340
    %v5257 = vunpack.c.l.b16 %v341
    %v5258 = vunpack.c.h.b16 %v341
    %v5259 = vunpack.c.l.b16 %v342
    %v5260 = vunpack.c.h.b16 %v342
    %v5261 = vunpack.c.l.b16 %v343
    %v5262 = vunpack.c.h.b16 %v343
    %v5263 = vunpack.c.l.b16 %v344
    %v5264 = vunpack.c.h.b16 %v344
    %v5265 = vunpack.c.l.b16 %v345
    %v5266 = vunpack.c.h.b16 %v345
    %v5267 = vunpack.c.l.b16 %v346
    %v5268 = vunpack.c.h.b16 %v346
    %v5269 = vunpack.c.l.b16 %v347
    %v5270 = vunpack.c.h.b16 %v347
    %v5271 = vunpack.c.l.b16 %v348
    %v5272 = vunpack.c.h.b16 %v348
    %v5273 = vunpack.c.l.b16 %v349
    %v5274 = vunpack.c.h.b16 %v349
    %v5275 = vunpack.c.l.b16 %v350
    %v5276 = vunpack.c.h.b16 %v350
    %v5277 = vunpack.c.l.b16 %v351
    %v5278 = vunpack.c.h.b16 %v351
    %v5279 = vunpack.c.l.b16 %v352
    %v5280 = vunpack.c.h.b16 %v352
    %v5281 = vunpack.c.l.b16 %v353
    %v5282 = vunpack.c.h.b16 %v353
    %v5283 = vunpack.c.l.b16 %v354
    %v5284 = vunpack.c.h.b16 %v354
    %v5285 = vunpack.c.l.b16 %v355
    %v5286 = vunpack.c.h.b16 %v355
    %v5287 = vunpack.c.l.b16 %v356
    %v5288 = vunpack.c.h.b16 %v356
    %v5289 = vunpack.c.l.b16 %v357
    %v5290 = vunpack.c.h.b16 %v357
    %v5291 = vunpack.c.l.b16 %v358
    %v5292 = vunpack.c.h.b16 %v358
    %v5293 = vunpack.c.l.b16 %v359
    %v5294 = vunpack.c.h.b16 %v359
    %v5295 = vunpack.c.l.b16 %v360
    %v5296 = vunpack.c.h.b16 %v360
    %v5297 = vunpack.c.l.b16 %v361
    %v5298 = vunpack.c.h.b16 %v361
    %v5299 = vunpack.c.l.b16 %v362
    %v5300 = vunpack.c.h.b16 %v362
    %v5301 = vunpack.c.l.b16 %v363
    %v5302 = vunpack.c.h.b16 %v363
    %v5303 = vunpack.c.l.b16 %v364
    %v5304 = vunpack.c.h.b16 %v364
    %v5305 = vunpack.c.l.b16 %v365
    %v5306 = vunpack.c.h.b16 %v365
    %v5307 = vunpack.c.l.b16 %v366
    %v5308 = vunpack.c.h.b16 %v366
    %v5309 = vunpack.c.l.b16 %v367
    %v5310 = vunpack.c.h.b16 %v367
    %v5311 = vunpack.c.l.b16 %v368
    %v5312 = vunpack.c.h.b16 %v368
    %v5313 = vunpack.c.l.b16 %v369
    %v5314 = vunpack.c.h.b16 %v369
    %v5315 = vunpack.c.l.b16 %v370
    %v5316 = vunpack.c.h.b16 %v370
    %v5317 = vunpack.c.l.b16 %v371
    %v5318 = vunpack.c.h.b16 %v371
    %v5319 = vunpack.c.l.b16 %v372
    %v5320 = vunpack.c.h.b16 %v372
    %v5321 = vunpack.c.l.b16 %v373
    %v5322 = vunpack.c.h.b16 %v373
    %v5323 = vunpack.c.l.b16 %v374
    %v5324 = vunpack.c.h.b16 %v374
    %v5325 = vunpack.c.l.b16 %v375
    %v5326 = vunpack.c.h.b16 %v375
    %v5327 = vunpack.c.l.b16 %v376
    %v5328 = vunpack.c.h.b16 %v376
    %v5329 = vunpack.c.l.b16 %v377
    %v5330 = vunpack.c.h.b16 %v377
    %v5331 = vunpack.c.l.b16 %v378
    %v5332 = vunpack.c.h.b16 %v378
    %v5333 = vunpack.c.l.b16 %v379
    %v5334 = vunpack.c.h.b16 %v379
    %v5335 = vunpack.c.l.b16 %v380
    %v5336 = vunpack.c.h.b16 %v380
    %v5337 = vunpack.c.l.b16 %v381
    %v5338 = vunpack.c.h.b16 %v381
    %v5339 = vunpack.c.l.b16 %v382
    %v5340 = vunpack.c.h.b16 %v382
    %v5341 = vunpack.c.l.b16 %v383
    %v5342 = vunpack.c.h.b16 %v383
    %v5343 = vunpack.c.l.b16 %v384
    %v5344 = vunpack.c.h.b16 %v384
    %v5345 = vunpack.c.l.b16 %v385
    %v5346 = vunpack.c.h.b16 %v385
    %v5347 = vunpack.c.l.b16 %v386
    %v5348 = vunpack.c.h.b16 %v386
    %v5349 = vunpack.c.l.b16 %v387
    %v5350 = vunpack.c.h.b16 %v387
    %v5351 = vunpack.c.l.b16 %v388
    %v5352 = vunpack.c.h.b16 %v388
    %v5353 = vunpack.c.l.b16 %v389
    %v5354 = vunpack.c.h.b16 %v389
    %v5355 = vunpack.c.l.b16 %v390
    %v5356 = vunpack.c.h.b16 %v390
    %v5357 = vunpack.c.l.b16 %v391
    %v5358 = vunpack.c.h.b16 %v391
    %v5359 = vunpack.c.l.b16 %v392
    %v5360 = vunpack.c.h.b16 %v392
    %v5361 = vunpack.c.l.b16 %v393
    %v5362 = vunpack.c.h.b16 %v393
    %v5363 = vunpack.c.l.b16 %v394
    %v5364 = vunpack.c.h.b16 %v394
    %v5365 = vunpack.c.l.b16 %v395
    %v5366 = vunpack.c.h.b16 %v395
    %v5367 = vunpack.c.l.b16 %v396
    %v5368 = vunpack.c.h.b16 %v396
    %v5369 = vunpack.c.l.b16 %v397
    %v5370 = vunpack.c.h.b16 %v397
    %v5371 = vunpack.c.l.b16 %v398
    %v5372 = vunpack.c.h.b16 %v398
    %v5373 = vunpack.c.l.b16 %v399
    %v5374 = vunpack.c.h.b16 %v399
    %v5375 = vunpack.c.l.b16 %v400
    %v5376 = vunpack.c.h.b16 %v400
    %v5377 = vunpack.c.l.b16 %v401
    %v5378 = vunpack.c.h.b16 %v401
    %v5379 = vunpack.c.l.b16 %v402
    %v5380 = vunpack.c.h.b16 %v402
    %v5381 = vunpack.c.l.b16 %v403
    %v5382 = vunpack.c.h.b16 %v403
    %v5383 = vunpack.c.l.b16 %v404
    %v5384 = vunpack.c.h.b16 %v404
    %v5385 = vunpack.c.l.b16 %v405
    %v5386 = vunpack.c.h.b16 %v405
    %v5387 = vunpack.c.l.b16 %v406
    %v5388 = vunpack.c.h.b16 %v406
    %v5389 = vunpack.c.l.b16 %v407
    %v5390 = vunpack.c.h.b16 %v407
    %v5391 = vunpack.c.l.b16 %v408
    %v5392 = vunpack.c.h.b16 %v408
    %v5393 = vunpack.c.l.b16 %v409
    %v5394 = vunpack.c.h.b16 %v409
    %v5395 = vunpack.c.l.b16 %v410
    %v5396 = vunpack.c.h.b16 %v410
    %v5397 = vunpack.c.l.b16 %v411
    %v5398 = vunpack.c.h.b16 %v411
    %v5399 = vunpack.c.l.b16 %v412
    %v5400 = vunpack.c.h.b16 %v412
    %v5401 = vunpack.c.l.b16 %v413
    %v5402 = vunpack.c.h.b16 %v413
    %v5403 = vunpack.c.l.b16 %v414
    %v5404 = vunpack.c.h.b16 %v414
    %v5405 = vunpack.c.l.b16 %v415
    %v5406 = vunpack.c.h.b16 %v415
    %v5407 = vunpack.c.l.b16 %v416
    %v5408 = vunpack.c.h.b16 %v416
    %v5409 = vunpack.c.l.b16 %v417
    %v5410 = vunpack.c.h.b16 %v417
    %v5411 = vunpack.c.l.b16 %v418
    %v5412 = vunpack.c.h.b16 %v418
    %v5413 = vunpack.c.l.b16 %v419
    %v5414 = vunpack.c.h.b16 %v419
    %v5415 = vunpack.c.l.b16 %v420
    %v5416 = vunpack.c.h.b16 %v420
    %v5417 = vunpack.c.l.b16 %v421
    %v5418 = vunpack.c.h.b16 %v421
    %v5419 = vunpack.c.l.b16 %v422
    %v5420 = vunpack.c.h.b16 %v422
    %v5421 = vunpack.c.l.b16 %v423
    %v5422 = vunpack.c.h.b16 %v423
    %v5423 = vunpack.c.l.b16 %v424
    %v5424 = vunpack.c.h.b16 %v424
    %v5425 = vunpack.c.l.b16 %v425
    %v5426 = vunpack.c.h.b16 %v425
    %v5427 = vunpack.c.l.b16 %v426
    %v5428 = vunpack.c.h.b16 %v426
    %v5429 = vunpack.c.l.b16 %v427
    %v5430 = vunpack.c.h.b16 %v427
    %v5431 = vunpack.c.l.b16 %v428
    %v5432 = vunpack.c.h.b16 %v428
    %v5433 = vunpack.c.l.b16 %v429
    %v5434 = vunpack.c.h.b16 %v429
    %v5435 = vunpack.c.l.b16 %v430
    %v5436 = vunpack.c.h.b16 %v430
    %v5437 = vunpack.c.l.b16 %v431
    %v5438 = vunpack.c.h.b16 %v431
    %v5439 = vunpack.c.l.b16 %v432
    %v5440 = vunpack.c.h.b16 %v432
    %v5441 = vunpack.c.l.b16 %v433
    %v5442 = vunpack.c.h.b16 %v433
    %v5443 = vunpack.c.l.b16 %v434
    %v5444 = vunpack.c.h.b16 %v434
    %v5445 = vunpack.c.l.b16 %v435
    %v5446 = vunpack.c.h.b16 %v435
    %v5447 = vunpack.c.l.b16 %v436
    %v5448 = vunpack.c.h.b16 %v436
    %v5449 = vunpack.c.l.b16 %v437
    %v5450 = vunpack.c.h.b16 %v437
    %v5451 = vunpack.c.l.b16 %v438
    %v5452 = vunpack.c.h.b16 %v438
    %v5453 = vunpack.c.l.b16 %v439
    %v5454 = vunpack.c.h.b16 %v439
    %v5455 = vunpack.c.l.b16 %v440
    %v5456 = vunpack.c.h.b16 %v440
    %v5457 = vunpack.c.l.b16 %v441
    %v5458 = vunpack.c.h.b16 %v441
    %v5459 = vunpack.c.l.b16 %v442
    %v5460 = vunpack.c.h.b16 %v442
    %v5461 = vunpack.c.l.b16 %v443
    %v5462 = vunpack.c.h.b16 %v443
    %v5463 = vunpack.c.l.b16 %v444
    %v5464 = vunpack.c.h.b16 %v444
    %v5465 = vunpack.c.l.b16 %v445
    %v5466 = vunpack.c.h.b16 %v445
    %v5467 = vunpack.c.l.b16 %v446
    %v5468 = vunpack.c.h.b16 %v446
    %v5469 = vunpack.c.l.b16 %v447
    %v5470 = vunpack.c.h.b16 %v447
    %v5471 = vunpack.c.l.b16 %v448
    %v5472 = vunpack.c.h.b16 %v448
    %v5473 = vunpack.c.l.b16 %v449
    %v5474 = vunpack.c.h.b16 %v449
    %v5475 = vunpack.c.l.b16 %v450
    %v5476 = vunpack.c.h.b16 %v450
    %v5477 = vunpack.c.l.b16 %v451
    %v5478 = vunpack.c.h.b16 %v451
    %v5479 = vunpack.c.l.b16 %v452
    %v5480 = vunpack.c.h.b16 %v452
    %v5481 = vunpack.c.l.b16 %v453
    %v5482 = vunpack.c.h.b16 %v453
    %v5483 = vunpack.c.l.b16 %v454
    %v5484 = vunpack.c.h.b16 %v454
    %v5485 = vunpack.c.l.b16 %v455
    %v5486 = vunpack.c.h.b16 %v455
    %v5487 = vunpack.c.l.b16 %v456
    %v5488 = vunpack.c.h.b16 %v456
    %v5489 = vunpack.c.l.b16 %v457
    %v5490 = vunpack.c.h.b16 %v457
    %v5491 = vunpack.c.l.b16 %v458
    %v5492 = vunpack.c.h.b16 %v458
    %v5493 = vunpack.c.l.b16 %v459
    %v5494 = vunpack.c.h.b16 %v459
    %v5495 = vunpack.c.l.b16 %v460
    %v5496 = vunpack.c.h.b16 %v460
    %v5497 = vunpack.c.l.b16 %v461
    %v5498 = vunpack.c.h.b16 %v461
    %v5499 = vunpack.c.l.b16 %v462
    %v5500 = vunpack.c.h.b16 %v462
    %v5501 = vunpack.c.l.b16 %v463
    %v5502 = vunpack.c.h.b16 %v463
    %v5503 = vunpack.c.l.b16 %v464
    %v5504 = vunpack.c.h.b16 %v464
    %v5505 = vunpack.c.l.b16 %v465
    %v5506 = vunpack.c.h.b16 %v465
    %v5507 = vunpack.c.l.b16 %v466
    %v5508 = vunpack.c.h.b16 %v466
    %v5509 = vunpack.c.l.b16 %v467
    %v5510 = vunpack.c.h.b16 %v467
    %v5511 = vunpack.c.l.b16 %v468
    %v5512 = vunpack.c.h.b16 %v468
    %v5513 = vunpack.c.l.b16 %v469
    %v5514 = vunpack.c.h.b16 %v469
    %v5515 = vunpack.c.l.b16 %v470
    %v5516 = vunpack.c.h.b16 %v470
    %v5517 = vunpack.c.l.b16 %v471
    %v5518 = vunpack.c.h.b16 %v471
    %v5519 = vunpack.c.l.b16 %v472
    %v5520 = vunpack.c.h.b16 %v472
    %v5521 = vunpack.c.l.b16 %v473
    %v5522 = vunpack.c.h.b16 %v473
    %v5523 = vunpack.c.l.b16 %v474
    %v5524 = vunpack.c.h.b16 %v474
    %v5525 = vunpack.c.l.b16 %v475
    %v5526 = vunpack.c.h.b16 %v475
    %v5527 = vunpack.c.l.b16 %v476
    %v5528 = vunpack.c.h.b16 %v476
    %v5529 = vunpack.c.l.b16 %v477
    %v5530 = vunpack.c.h.b16 %v477
    %v5531 = vunpack.c.l.b16 %v478
    %v5532 = vunpack.c.h.b16 %v478
    %v5533 = vunpack.c.l.b16 %v479
    %v5534 = vunpack.c.h.b16 %v479
    %v5535 = vunpack.c.l.b16 %v480
    %v5536 = vunpack.c.h.b16 %v480
    %v5537 = vunpack.c.l.b16 %v481
    %v5538 = vunpack.c.h.b16 %v481
    %v5539 = vunpack.c.l.b16 %v482
    %v5540 = vunpack.c.h.b16 %v482
    %v5541 = vunpack.c.l.b16 %v483
    %v5542 = vunpack.c.h.b16 %v483
    %v5543 = vunpack.c.l.b16 %v484
    %v5544 = vunpack.c.h.b16 %v484
    %v5545 = vunpack.c.l.b16 %v485
    %v5546 = vunpack.c.h.b16 %v485
    %v5547 = vunpack.c.l.b16 %v486
    %v5548 = vunpack.c.h.b16 %v486
    %v5549 = vunpack.c.l.b16 %v487
    %v5550 = vunpack.c.h.b16 %v487
    %v5551 = vunpack.c.l.b16 %v488
    %v5552 = vunpack.c.h.b16 %v488
    %v5553 = vunpack.c.l.b16 %v489
    %v5554 = vunpack.c.h.b16 %v489
    %v5555 = vunpack.c.l.b16 %v490
    %v5556 = vunpack.c.h.b16 %v490
    %v5557 = vunpack.c.l.b16 %v491
    %v5558 = vunpack.c.h.b16 %v491
    %v5559 = vunpack.c.l.b16 %v492
    %v5560 = vunpack.c.h.b16 %v492
    %v5561 = vunpack.c.l.b16 %v493
    %v5562 = vunpack.c.h.b16 %v493
    %v5563 = vunpack.c.l.b16 %v494
    %v5564 = vunpack.c.h.b16 %v494
    %v5565 = vunpack.c.l.b16 %v495
    %v5566 = vunpack.c.h.b16 %v495
    %v5567 = vunpack.c.l.b16 %v496
    %v5568 = vunpack.c.h.b16 %v496
    %v5569 = vunpack.c.l.b16 %v497
    %v5570 = vunpack.c.h.b16 %v497
    %v5571 = vunpack.c.l.b16 %v498
    %v5572 = vunpack.c.h.b16 %v498
    %v5573 = vunpack.c.l.b16 %v499
    %v5574 = vunpack.c.h.b16 %v499
    %v5575 = vunpack.c.l.b16 %v500
    %v5576 = vunpack.c.h.b16 %v500
    %v5577 = vunpack.c.l.b16 %v501
    %v5578 = vunpack.c.h.b16 %v501
    %v5579 = vunpack.c.l.b16 %v502
    %v5580 = vunpack.c.h.b16 %v502
    %v5581 = vunpack.c.l.b16 %v503
    %v5582 = vunpack.c.h.b16 %v503
    %v5583 = vunpack.c.l.b16 %v504
    %v5584 = vunpack.c.h.b16 %v504
    %v5585 = vunpack.c.l.b16 %v505
    %v5586 = vunpack.c.h.b16 %v505
    %v5587 = vunpack.c.l.b16 %v506
    %v5588 = vunpack.c.h.b16 %v506
    %v5589 = vunpack.c.l.b16 %v507
    %v5590 = vunpack.c.h.b16 %v507
    %v5591 = vunpack.c.l.b16 %v508
    %v5592 = vunpack.c.h.b16 %v508
    %v5593 = vunpack.c.l.b16 %v509
    %v5594 = vunpack.c.h.b16 %v509
    %v5595 = vunpack.c.l.b16 %v510
    %v5596 = vunpack.c.h.b16 %v510
    %v5597 = vunpack.c.l.b16 %v511
    %v5598 = vunpack.c.h.b16 %v511
    %v5599 = vunpack.c.l.b16 %v512
    %v5600 = vunpack.c.h.b16 %v512
    %v5601 = vunpack.c.l.b16 %v513
    %v5602 = vunpack.c.h.b16 %v513
    %v5603 = vunpack.c.l.b16 %v514
    %v5604 = vunpack.c.h.b16 %v514
    %v5605 = vunpack.c.l.b16 %v515
    %v5606 = vunpack.c.h.b16 %v515
    %v5607 = vunpack.c.l.b16 %v516
    %v5608 = vunpack.c.h.b16 %v516
    %v5609 = vunpack.c.l.b16 %v517
    %v5610 = vunpack.c.h.b16 %v517
    %v5611 = vunpack.c.l.b16 %v518
    %v5612 = vunpack.c.h.b16 %v518
    %v5613 = vunpack.c.l.b16 %v519
    %v5614 = vunpack.c.h.b16 %v519
    %v5615 = vunpack.c.l.b16 %v520
    %v5616 = vunpack.c.h.b16 %v520
    %v5617 = vunpack.c.l.b16 %v521
    %v5618 = vunpack.c.h.b16 %v521
    %v5619 = vunpack.c.l.b16 %v522
    %v5620 = vunpack.c.h.b16 %v522
    %v5621 = vunpack.c.l.b16 %v523
    %v5622 = vunpack.c.h.b16 %v523
    %v5623 = vunpack.c.l.b16 %v524
    %v5624 = vunpack.c.h.b16 %v524
    %v5625 = vunpack.c.l.b16 %v525
    %v5626 = vunpack.c.h.b16 %v525
    %v5627 = vunpack.c.l.b16 %v526
    %v5628 = vunpack.c.h.b16 %v526
    %v5629 = vunpack.c.l.b16 %v527
    %v5630 = vunpack.c.h.b16 %v527
    %v5631 = vunpack.c.l.b16 %v528
    %v5632 = vunpack.c.h.b16 %v528
    %v5633 = vunpack.c.l.b16 %v529
    %v5634 = vunpack.c.h.b16 %v529
    %v5635 = vunpack.c.l.b16 %v530
    %v5636 = vunpack.c.h.b16 %v530
    %v5637 = vunpack.c.l.b16 %v531
    %v5638 = vunpack.c.h.b16 %v531
    %v5639 = vunpack.c.l.b16 %v532
    %v5640 = vunpack.c.h.b16 %v532
    %v5641 = vunpack.c.l.b16 %v533
    %v5642 = vunpack.c.h.b16 %v533
    %v5643 = vunpack.c.l.b16 %v534
    %v5644 = vunpack.c.h.b16 %v534
    %v5645 = vunpack.c.l.b16 %v535
    %v5646 = vunpack.c.h.b16 %v535
    %v5647 = vunpack.c.l.b16 %v536
    %v5648 = vunpack.c.h.b16 %v536
    %v5649 = vunpack.c.l.b16 %v537
    %v5650 = vunpack.c.h.b16 %v537
    %v5651 = vunpack.c.l.b16 %v538
    %v5652 = vunpack.c.h.b16 %v538
    %v5653 = vunpack.c.l.b16 %v539
    %v5654 = vunpack.c.h.b16 %v539
    %v5655 = vunpack.c.l.b16 %v540
    %v5656 = vunpack.c.h.b16 %v540
    %v5657 = vunpack.c.l.b16 %v541
    %v5658 = vunpack.c.h.b16 %v541
    %v5659 = vunpack.c.l.b16 %v542
    %v5660 = vunpack.c.h.b16 %v542
    %v5661 = vunpack.c.l.b16 %v543
    %v5662 = vunpack.c.h.b16 %v543
    %v5663 = vunpack.c.l.b16 %v544
    %v5664 = vunpack.c.h.b16 %v544
    %v5665 = vunpack.c.l.b16 %v545
    %v5666 = vunpack.c.h.b16 %v545
    %v5667 = vunpack.c.l.b16 %v546
    %v5668 = vunpack.c.h.b16 %v546
    %v5669 = vunpack.c.l.b16 %v547
    %v5670 = vunpack.c.h.b16 %v547
    %v5671 = vunpack.c.l.b16 %v548
    %v5672 = vunpack.c.h.b16 %v548
    %v5673 = vunpack.c.l.b16 %v549
    %v5674 = vunpack.c.h.b16 %v549
    %v5675 = vunpack.c.l.b16 %v550
    %v5676 = vunpack.c.h.b16 %v550
    %v5677 = vunpack.c.l.b16 %v551
    %v5678 = vunpack.c.h.b16 %v551
    %v5679 = vunpack.c.l.b16 %v552
    %v5680 = vunpack.c.h.b16 %v552
    %v5681 = vunpack.c.l.b16 %v553
    %v5682 = vunpack.c.h.b16 %v553
    %v5683 = vunpack.c.l.b16 %v554
    %v5684 = vunpack.c.h.b16 %v554
    %v5685 = vunpack.c.l.b16 %v555
    %v5686 = vunpack.c.h.b16 %v555
    %v5687 = vunpack.c.l.b16 %v556
    %v5688 = vunpack.c.h.b16 %v556
    %v5689 = vunpack.c.l.b16 %v557
    %v5690 = vunpack.c.h.b16 %v557
    %v5691 = vunpack.c.l.b16 %v558
    %v5692 = vunpack.c.h.b16 %v558
    %v5693 = vunpack.c.l.b16 %v559
    %v5694 = vunpack.c.h.b16 %v559
    %v5695 = vunpack.c.l.b16 %v560
    %v5696 = vunpack.c.h.b16 %v560
    %v5697 = vunpack.c.l.b16 %v561
    %v5698 = vunpack.c.h.b16 %v561
    %v5699 = vunpack.c.l.b16 %v562
    %v5700 = vunpack.c.h.b16 %v562
    %v5701 = vunpack.c.l.b16 %v563
    %v5702 = vunpack.c.h.b16 %v563
    %v5703 = vunpack.c.l.b16 %v564
    %v5704 = vunpack.c.h.b16 %v564
    %v5705 = vunpack.c.l.b16 %v565
    %v5706 = vunpack.c.h.b16 %v565
    %v5707 = vunpack.c.l.b16 %v566
    %v5708 = vunpack.c.h.b16 %v566
    %v5709 = vunpack.c.l.b16 %v567
    %v5710 = vunpack.c.h.b16 %v567
    %v5711 = vunpack.c.l.b16 %v568
    %v5712 = vunpack.c.h.b16 %v568
    %v5713 = vunpack.c.l.b16 %v569
    %v5714 = vunpack.c.h.b16 %v569
    %v5715 = vunpack.c.l.b16 %v570
    %v5716 = vunpack.c.h.b16 %v570
    %v5717 = vunpack.c.l.b16 %v571
    %v5718 = vunpack.c.h.b16 %v571
    %v5719 = vunpack.c.l.b16 %v572
    %v5720 = vunpack.c.h.b16 %v572
    %v5721 = vunpack.c.l.b16 %v573
    %v5722 = vunpack.c.h.b16 %v573
    %v5723 = vunpack.c.l.b16 %v574
    %v5724 = vunpack.c.h.b16 %v574
    %v5725 = vunpack.c.l.b16 %v575
    %v5726 = vunpack.c.h.b16 %v575
    %v5727 = vunpack.c.l.b16 %v576
    %v5728 = vunpack.c.h.b16 %v576
    %v5729 = vunpack.c.l.b16 %v577
    %v5730 = vunpack.c.h.b16 %v577
    %v5731 = vunpack.c.l.b16 %v578
    %v5732 = vunpack.c.h.b16 %v578
    %v5733 = vunpack.c.l.b16 %v579
    %v5734 = vunpack.c.h.b16 %v579
    %v5735 = vunpack.c.l.b16 %v580
    %v5736 = vunpack.c.h.b16 %v580
    %v5737 = vunpack.c.l.b16 %v581
    %v5738 = vunpack.c.h.b16 %v581
    %v5739 = vunpack.c.l.b16 %v582
    %v5740 = vunpack.c.h.b16 %v582
    %v5741 = vunpack.c.l.b16 %v583
    %v5742 = vunpack.c.h.b16 %v583
    %v5743 = vunpack.c.l.b16 %v584
    %v5744 = vunpack.c.h.b16 %v584
    %v5745 = vunpack.c.l.b16 %v585
    %v5746 = vunpack.c.h.b16 %v585
    %v5747 = vunpack.c.l.b16 %v586
    %v5748 = vunpack.c.h.b16 %v586
    %v5749 = vunpack.c.l.b16 %v587
    %v5750 = vunpack.c.h.b16 %v587
    %v5751 = vunpack.c.l.b16 %v588
    %v5752 = vunpack.c.h.b16 %v588
    %v5753 = vunpack.c.l.b16 %v589
    %v5754 = vunpack.c.h.b16 %v589
    %v5755 = vunpack.c.l.b16 %v590
    %v5756 = vunpack.c.h.b16 %v590
    %v5757 = vunpack.c.l.b16 %v591
    %v5758 = vunpack.c.h.b16 %v591
    %v5759 = vunpack.c.l.b16 %v592
    %v5760 = vunpack.c.h.b16 %v592
    %v5761 = vunpack.c.l.b16 %v593
    %v5762 = vunpack.c.h.b16 %v593
    %v5763 = vunpack.c.l.b16 %v594
    %v5764 = vunpack.c.h.b16 %v594
    %v5765 = vunpack.c.l.b16 %v595
    %v5766 = vunpack.c.h.b16 %v595
    %v5767 = vunpack.c.l.b16 %v596
    %v5768 = vunpack.c.h.b16 %v596
    %v5769 = vunpack.c.l.b16 %v597
    %v5770 = vunpack.c.h.b16 %v597
    %v5771 = vunpack.c.l.b16 %v598
    %v5772 = vunpack.c.h.b16 %v598
    %v5773 = vunpack.c.l.b16 %v599
    %v5774 = vunpack.c.h.b16 %v599
    %v5775 = vunpack.c.l.b16 %v600
    %v5776 = vunpack.c.h.b16 %v600
    %v5777 = vunpack.c.l.b16 %v601
    %v5778 = vunpack.c.h.b16 %v601
    %v5779 = vunpack.c.l.b16 %v602
    %v5780 = vunpack.c.h.b16 %v602
    %v5781 = vunpack.c.l.b16 %v603
    %v5782 = vunpack.c.h.b16 %v603
    %v5783 = vunpack.c.l.b16 %v604
    %v5784 = vunpack.c.h.b16 %v604
    %v5785 = vunpack.c.l.b16 %v605
    %v5786 = vunpack.c.h.b16 %v605
    %v5787 = vunpack.c.l.b16 %v606
    %v5788 = vunpack.c.h.b16 %v606
    %v5789 = vunpack.c.l.b16 %v607
    %v5790 = vunpack.c.h.b16 %v607
    %v5791 = vunpack.c.l.b16 %v608
    %v5792 = vunpack.c.h.b16 %v608
    %v5793 = vunpack.c.l.b16 %v609
    %v5794 = vunpack.c.h.b16 %v609
    %v5795 = vunpack.c.l.b16 %v610
    %v5796 = vunpack.c.h.b16 %v610
    %v5797 = vunpack.c.l.b16 %v611
    %v5798 = vunpack.c.h.b16 %v611
    %v5799 = vunpack.c.l.b16 %v612
    %v5800 = vunpack.c.h.b16 %v612
    %v5801 = vunpack.c.l.b16 %v613
    %v5802 = vunpack.c.h.b16 %v613
    %v5803 = vunpack.c.l.b16 %v614
    %v5804 = vunpack.c.h.b16 %v614
    %v5805 = vunpack.c.l.b16 %v615
    %v5806 = vunpack.c.h.b16 %v615
    %v5807 = vunpack.c.l.b16 %v616
    %v5808 = vunpack.c.h.b16 %v616
    %v5809 = vunpack.c.l.b16 %v617
    %v5810 = vunpack.c.h.b16 %v617
    %v5811 = vunpack.c.l.b16 %v618
    %v5812 = vunpack.c.h.b16 %v618
    %v5813 = vunpack.c.l.b16 %v619
    %v5814 = vunpack.c.h.b16 %v619
    %v5815 = vunpack.c.l.b16 %v620
    %v5816 = vunpack.c.h.b16 %v620
    %v5817 = vunpack.c.l.b16 %v621
    %v5818 = vunpack.c.h.b16 %v621
    %v5819 = vunpack.c.l.b16 %v622
    %v5820 = vunpack.c.h.b16 %v622
    %v5821 = vunpack.c.l.b16 %v623
    %v5822 = vunpack.c.h.b16 %v623
    %v5823 = vunpack.c.l.b16 %v624
    %v5824 = vunpack.c.h.b16 %v624
    %v5825 = vunpack.c.l.b16 %v625
    %v5826 = vunpack.c.h.b16 %v625
    %v5827 = vunpack.c.l.b16 %v626
    %v5828 = vunpack.c.h.b16 %v626
    %v5829 = vunpack.c.l.b16 %v627
    %v5830 = vunpack.c.h.b16 %v627
    %v5831 = vunpack.c.l.b16 %v628
    %v5832 = vunpack.c.h.b16 %v628
    %v5833 = vunpack.c.l.b16 %v629
    %v5834 = vunpack.c.h.b16 %v629
    %v5835 = vunpack.c.l.b16 %v630
    %v5836 = vunpack.c.h.b16 %v630
    %v5837 = vunpack.c.l.b16 %v631
    %v5838 = vunpack.c.h.b16 %v631
    %v5839 = vunpack.c.l.b16 %v632
    %v5840 = vunpack.c.h.b16 %v632
    %v5841 = vunpack.c.l.b16 %v633
    %v5842 = vunpack.c.h.b16 %v633
    %v5843 = vunpack.c.l.b16 %v634
    %v5844 = vunpack.c.h.b16 %v634
    %v5845 = vunpack.c.l.b16 %v635
    %v5846 = vunpack.c.h.b16 %v635
    %v5847 = vunpack.c.l.b16 %v636
    %v5848 = vunpack.c.h.b16 %v636
    %v5849 = vunpack.c.l.b16 %v637
    %v5850 = vunpack.c.h.b16 %v637
    %v5851 = vunpack.c.l.b16 %v638
    %v5852 = vunpack.c.h.b16 %v638
    %v5853 = vunpack.c.l.b16 %v639
    %v5854 = vunpack.c.h.b16 %v639
    %v5855 = vunpack.c.l.b16 %v640
    %v5856 = vunpack.c.h.b16 %v640
    %v5857 = vunpack.c.l.b16 %v641
    %v5858 = vunpack.c.h.b16 %v641
    %v5859 = vunpack.c.l.b16 %v642
    %v5860 = vunpack.c.h.b16 %v642
    %v5861 = vunpack.c.l.b16 %v643
    %v5862 = vunpack.c.h.b16 %v643
    %v5863 = vunpack.c.l.b16 %v644
    %v5864 = vunpack.c.h.b16 %v644
    %v5865 = vunpack.c.l.b16 %v645
    %v5866 = vunpack.c.h.b16 %v645
    %v5867 = vunpack.c.l.b16 %v646
    %v5868 = vunpack.c.h.b16 %v646
    %v5869 = vunpack.c.l.b16 %v647
    %v5870 = vunpack.c.h.b16 %v647
    %v5871 = vunpack.c.l.b16 %v648
    %v5872 = vunpack.c.h.b16 %v648
    %v5873 = vunpack.c.l.b16 %v649
    %v5874 = vunpack.c.h.b16 %v649
    %v5875 = vunpack.c.l.b16 %v650
    %v5876 = vunpack.c.h.b16 %v650
    %v5877 = vunpack.c.l.b16 %v651
    %v5878 = vunpack.c.h.b16 %v651
    %v5879 = vunpack.c.l.b16 %v652
    %v5880 = vunpack.c.h.b16 %v652
    %v5881 = vunpack.c.l.b16 %v653
    %v5882 = vunpack.c.h.b16 %v653
    %v5883 = vunpack.c.l.b16 %v654
    %v5884 = vunpack.c.h.b16 %v654
    %v5885 = vunpack.c.l.b16 %v655
    %v5886 = vunpack.c.h.b16 %v655
    %v5887 = vunpack.c.l.b16 %v656
    %v5888 = vunpack.c.h.b16 %v656
    %v5889 = vunpack.c.l.b16 %v657
    %v5890 = vunpack.c.h.b16 %v657
    %v5891 = vunpack.c.l.b16 %v658
    %v5892 = vunpack.c.h.b16 %v658
    %v5893 = vunpack.c.l.b16 %v659
    %v5894 = vunpack.c.h.b16 %v659
    %v5895 = vunpack.c.l.b16 %v660
    %v5896 = vunpack.c.h.b16 %v660
    %v5897 = vunpack.c.l.b16 %v661
    %v5898 = vunpack.c.h.b16 %v661
    %v5899 = vunpack.c.l.b16 %v662
    %v5900 = vunpack.c.h.b16 %v662
    %v5901 = vunpack.c.l.b16 %v663
    %v5902 = vunpack.c.h.b16 %v663
    %v5903 = vunpack.c.l.b16 %v664
    %v5904 = vunpack.c.h.b16 %v664
    %v5905 = vunpack.c.l.b16 %v665
    %v5906 = vunpack.c.h.b16 %v665
    %v5907 = vunpack.c.l.b16 %v666
    %v5908 = vunpack.c.h.b16 %v666
    %v5909 = vunpack.c.l.b16 %v667
    %v5910 = vunpack.c.h.b16 %v667
    %v5911 = vunpack.c.l.b16 %v668
    %v5912 = vunpack.c.h.b16 %v668
    %v5913 = vunpack.c.l.b16 %v669
    %v5914 = vunpack.c.h.b16 %v669
    %v5915 = vunpack.c.l.b16 %v670
    %v5916 = vunpack.c.h.b16 %v670
    %v5917 = vunpack.c.l.b16 %v671
    %v5918 = vunpack.c.h.b16 %v671
    %v5919 = vunpack.c.l.b16 %v672
    %v5920 = vunpack.c.h.b16 %v672
    %v5921 = vunpack.c.l.b16 %v673
    %v5922 = vunpack.c.h.b16 %v673
    %v5923 = vunpack.c.l.b16 %v674
    %v5924 = vunpack.c.h.b16 %v674
    %v5925 = vunpack.c.l.b16 %v675
    %v5926 = vunpack.c.h.b16 %v675
    %v5927 = vunpack.c.l.b16 %v676
    %v5928 = vunpack.c.h.b16 %v676
    %v5929 = vunpack.c.l.b16 %v677
    %v5930 = vunpack.c.h.b16 %v677
    %v5931 = vunpack.c.l.b16 %v678
    %v5932 = vunpack.c.h.b16 %v678
    %v5933 = vunpack.c.l.b16 %v679
    %v5934 = vunpack.c.h.b16 %v679
    %v5935 = vunpack.c.l.b16 %v680
    %v5936 = vunpack.c.h.b16 %v680
    %v5937 = vunpack.c.l.b16 %v681
    %v5938 = vunpack.c.h.b16 %v681
    %v5939 = vunpack.c.l.b16 %v682
    %v5940 = vunpack.c.h.b16 %v682
    %v5941 = vunpack.c.l.b16 %v683
    %v5942 = vunpack.c.h.b16 %v683
    %v5943 = vunpack.c.l.b16 %v684
    %v5944 = vunpack.c.h.b16 %v684
    %v5945 = vunpack.c.l.b16 %v685
    %v5946 = vunpack.c.h.b16 %v685
    %v5947 = vunpack.c.l.b16 %v686
    %v5948 = vunpack.c.h.b16 %v686
    %v5949 = vunpack.c.l.b16 %v687
    %v5950 = vunpack.c.h.b16 %v687
    %v5951 = vunpack.c.l.b16 %v688
    %v5952 = vunpack.c.h.b16 %v688
    %v5953 = vunpack.c.l.b16 %v689
    %v5954 = vunpack.c.h.b16 %v689
    %v5955 = vunpack.c.l.b16 %v690
    %v5956 = vunpack.c.h.b16 %v690
    %v5957 = vunpack.c.l.b16 %v691
    %v5958 = vunpack.c.h.b16 %v691
    %v5959 = vunpack.c.l.b16 %v692
    %v5960 = vunpack.c.h.b16 %v692
    %v5961 = vunpack.c.l.b16 %v693
    %v5962 = vunpack.c.h.b16 %v693
    %v5963 = vunpack.c.l.b16 %v694
    %v5964 = vunpack.c.h.b16 %v694
    %v5965 = vunpack.c.l.b16 %v695
    %v5966 = vunpack.c.h.b16 %v695
    %v5967 = vunpack.c.l.b16 %v696
    %v5968 = vunpack.c.h.b16 %v696
    %v5969 = vunpack.c.l.b16 %v697
    %v5970 = vunpack.c.h.b16 %v697
    %v5971 = vunpack.c.l.b16 %v698
    %v5972 = vunpack.c.h.b16 %v698
    %v5973 = vunpack.c.l.b16 %v699
    %v5974 = vunpack.c.h.b16 %v699
    %v5975 = vunpack.c.l.b16 %v700
    %v5976 = vunpack.c.h.b16 %v700
    %v5977 = vunpack.c.l.b16 %v701
    %v5978 = vunpack.c.h.b16 %v701
    %v5979 = vunpack.c.l.b16 %v702
    %v5980 = vunpack.c.h.b16 %v702
    %v5981 = vunpack.c.l.b16 %v703
    %v5982 = vunpack.c.h.b16 %v703
    %v5983 = vunpack.c.l.b16 %v704
    %v5984 = vunpack.c.h.b16 %v704
    %v5985 = vunpack.c.l.b16 %v705
    %v5986 = vunpack.c.h.b16 %v705
    %v5987 = vunpack.c.l.b16 %v706
    %v5988 = vunpack.c.h.b16 %v706
    %v5989 = vunpack.c.l.b16 %v707
    %v5990 = vunpack.c.h.b16 %v707
    %v5991 = vunpack.c.l.b16 %v708
    %v5992 = vunpack.c.h.b16 %v708
    %v5993 = vunpack.c.l.b16 %v709
    %v5994 = vunpack.c.h.b16 %v709
    %v5995 = vunpack.c.l.b16 %v710
    %v5996 = vunpack.c.h.b16 %v710
    %v5997 = vunpack.c.l.b16 %v711
    %v5998 = vunpack.c.h.b16 %v711
    %v5999 = vunpack.c.l.b16 %v712
    %v6000 = vunpack.c.h.b16 %v712
    %v6001 = vunpack.c.l.b16 %v713
    %v6002 = vunpack.c.h.b16 %v713
    %v6003 = vunpack.c.l.b16 %v714
    %v6004 = vunpack.c.h.b16 %v714
    %v6005 = vunpack.c.l.b16 %v715
    %v6006 = vunpack.c.h.b16 %v715
    %v6007 = vunpack.c.l.b16 %v716
    %v6008 = vunpack.c.h.b16 %v716
    %v6009 = vunpack.c.l.b16 %v717
    %v6010 = vunpack.c.h.b16 %v717
    %v6011 = vunpack.c.l.b16 %v718
    %v6012 = vunpack.c.h.b16 %v718
    %v6013 = vunpack.c.l.b16 %v719
    %v6014 = vunpack.c.h.b16 %v719
    %v6015 = vunpack.c.l.b16 %v720
    %v6016 = vunpack.c.h.b16 %v720
    %v6017 = vunpack.c.l.b16 %v721
    %v6018 = vunpack.c.h.b16 %v721
    %v6019 = vunpack.c.l.b16 %v722
    %v6020 = vunpack.c.h.b16 %v722
    %v6021 = vunpack.c.l.b16 %v723
    %v6022 = vunpack.c.h.b16 %v723
    %v6023 = vunpack.c.l.b16 %v724
    %v6024 = vunpack.c.h.b16 %v724
    %v6025 = vunpack.c.l.b16 %v725
    %v6026 = vunpack.c.h.b16 %v725
    %v6027 = vunpack.c.l.b16 %v726
    %v6028 = vunpack.c.h.b16 %v726
    %v6029 = vunpack.c.l.b16 %v727
    %v6030 = vunpack.c.h.b16 %v727
    %v6031 = vunpack.c.l.b16 %v728
    %v6032 = vunpack.c.h.b16 %v728
    %v6033 = vunpack.c.l.b16 %v729
    %v6034 = vunpack.c.h.b16 %v729
    %v6035 = vunpack.c.l.b16 %v730
    %v6036 = vunpack.c.h.b16 %v730
    %v6037 = vunpack.c.l.b16 %v731
    %v6038 = vunpack.c.h.b16 %v731
    %v6039 = vunpack.c.l.b16 %v732
    %v6040 = vunpack.c.h.b16 %v732
    %v6041 = vunpack.c.l.b16 %v733
    %v6042 = vunpack.c.h.b16 %v733
    %v6043 = vunpack.c.l.b16 %v734
    %v6044 = vunpack.c.h.b16 %v734
    %v6045 = vunpack.c.l.b16 %v735
    %v6046 = vunpack.c.h.b16 %v735
    %v6047 = vunpack.c.l.b16 %v736
    %v6048 = vunpack.c.h.b16 %v736
    %v6049 = vunpack.c.l.b16 %v737
    %v6050 = vunpack.c.h.b16 %v737
    %v6051 = vunpack.c.l.b16 %v738
    %v6052 = vunpack.c.h.b16 %v738
    %v6053 = vunpack.c.l.b16 %v739
    %v6054 = vunpack.c.h.b16 %v739
    %v6055 = vunpack.c.l.b16 %v740
    %v6056 = vunpack.c.h.b16 %v740
    %v6057 = vunpack.c.l.b16 %v741
    %v6058 = vunpack.c.h.b16 %v741
    %v6059 = vunpack.c.l.b16 %v742
    %v6060 = vunpack.c.h.b16 %v742
    %v6061 = vunpack.c.l.b16 %v743
    %v6062 = vunpack.c.h.b16 %v743
    %v6063 = vunpack.c.l.b16 %v744
    %v6064 = vunpack.c.h.b16 %v744
    %v6065 = vunpack.c.l.b16 %v745
    %v6066 = vunpack.c.h.b16 %v745
    %v6067 = vunpack.c.l.b16 %v746
    %v6068 = vunpack.c.h.b16 %v746
    %v6069 = vunpack.c.l.b16 %v747
    %v6070 = vunpack.c.h.b16 %v747
    %v6071 = vunpack.c.l.b16 %v748
    %v6072 = vunpack.c.h.b16 %v748
    %v6073 = vunpack.c.l.b16 %v749
    %v6074 = vunpack.c.h.b16 %v749
    %v6075 = vunpack.c.l.b16 %v750
    %v6076 = vunpack.c.h.b16 %v750
    %v6077 = vunpack.c.l.b16 %v751
    %v6078 = vunpack.c.h.b16 %v751
    %v6079 = vunpack.c.l.b16 %v752
    %v6080 = vunpack.c.h.b16 %v752
    %v6081 = vunpack.c.l.b16 %v753
    %v6082 = vunpack.c.h.b16 %v753
    %v6083 = vunpack.c.l.b16 %v754
    %v6084 = vunpack.c.h.b16 %v754
    %v6085 = vunpack.c.l.b16 %v755
    %v6086 = vunpack.c.h.b16 %v755
    %v6087 = vunpack.c.l.b16 %v756
    %v6088 = vunpack.c.h.b16 %v756
    %v6089 = vunpack.c.l.b16 %v757
    %v6090 = vunpack.c.h.b16 %v757
    %v6091 = vunpack.c.l.b16 %v758
    %v6092 = vunpack.c.h.b16 %v758
    %v6093 = vunpack.c.l.b16 %v759
    %v6094 = vunpack.c.h.b16 %v759
    %v6095 = vunpack.c.l.b16 %v760
    %v6096 = vunpack.c.h.b16 %v760
    %v6097 = vunpack.c.l.b16 %v761
    %v6098 = vunpack.c.h.b16 %v761
    %v6099 = vunpack.c.l.b16 %v762
    %v6100 = vunpack.c.h.b16 %v762
    %v6101 = vunpack.c.l.b16 %v763
    %v6102 = vunpack.c.h.b16 %v763
    %v6103 = vunpack.c.l.b16 %v764
    %v6104 = vunpack.c.h.b16 %v764
    %v6105 = vunpack.c.l.b16 %v765
    %v6106 = vunpack.c.h.b16 %v765
    %v6107 = vunpack.c.l.b16 %v766
    %v6108 = vunpack.c.h.b16 %v766
    %v6109 = vunpack.c.l.b16 %v767
    %v6110 = vunpack.c.h.b16 %v767
    %v6111 = vunpack.c.l.b16 %v768
    %v6112 = vunpack.c.h.b16 %v768
    %v6113 = vunpack.c.l.b16 %v769
    %v6114 = vunpack.c.h.b16 %v769
    %v6115 = vunpack.c.l.b16 %v770
    %v6116 = vunpack.c.h.b16 %v770
    %v6117 = vunpack.c.l.b16 %v771
    %v6118 = vunpack.c.h.b16 %v771
    %v6119 = vunpack.c.l.b16 %v772
    %v6120 = vunpack.c.h.b16 %v772
    %v6121 = vunpack.c.l.b16 %v773
    %v6122 = vunpack.c.h.b16 %v773
    %v6123 = vunpack.c.l.b16 %v774
    %v6124 = vunpack.c.h.b16 %v774
    %v6125 = vunpack.c.l.b16 %v775
    %v6126 = vunpack.c.h.b16 %v775
    %v6127 = vunpack.c.l.b16 %v776
    %v6128 = vunpack.c.h.b16 %v776
    %v6129 = vunpack.c.l.b16 %v777
    %v6130 = vunpack.c.h.b16 %v777
    %v6131 = vunpack.c.l.b16 %v778
    %v6132 = vunpack.c.h.b16 %v778
    %v6133 = vunpack.c.l.b16 %v779
    %v6134 = vunpack.c.h.b16 %v779
    %v6135 = vunpack.c.l.b16 %v780
    %v6136 = vunpack.c.h.b16 %v780
    %v6137 = vunpack.c.l.b16 %v781
    %v6138 = vunpack.c.h.b16 %v781
    %v6139 = vunpack.c.l.b16 %v782
    %v6140 = vunpack.c.h.b16 %v782
    %v6141 = vunpack.c.l.b16 %v783
    %v6142 = vunpack.c.h.b16 %v783
    %v6143 = vunpack.c.l.b16 %v784
    %v6144 = vunpack.c.h.b16 %v784
    %v6145 = vunpack.c.l.b16 %v785
    %v6146 = vunpack.c.h.b16 %v785
    %v6147 = vunpack.c.l.b16 %v786
    %v6148 = vunpack.c.h.b16 %v786
    %v6149 = vunpack.c.l.b16 %v787
    %v6150 = vunpack.c.h.b16 %v787
    %v6151 = vunpack.c.l.b16 %v788
    %v6152 = vunpack.c.h.b16 %v788
    %v6153 = vunpack.c.l.b16 %v789
    %v6154 = vunpack.c.h.b16 %v789
    %v6155 = vunpack.c.l.b16 %v790
    %v6156 = vunpack.c.h.b16 %v790
    %v6157 = vunpack.c.l.b16 %v791
    %v6158 = vunpack.c.h.b16 %v791
    %v6159 = vunpack.c.l.b16 %v792
    %v6160 = vunpack.c.h.b16 %v792
    %v6161 = vunpack.c.l.b16 %v793
    %v6162 = vunpack.c.h.b16 %v793
    %v6163 = vunpack.c.l.b16 %v794
    %v6164 = vunpack.c.h.b16 %v794
    %v6165 = vunpack.c.l.b16 %v795
    %v6166 = vunpack.c.h.b16 %v795
    %v6167 = vunpack.c.l.b16 %v796
    %v6168 = vunpack.c.h.b16 %v796
    %v6169 = vunpack.c.l.b16 %v797
    %v6170 = vunpack.c.h.b16 %v797
    %v6171 = vunpack.c.l.b16 %v798
    %v6172 = vunpack.c.h.b16 %v798
    %v6173 = vunpack.c.l.b16 %v799
    %v6174 = vunpack.c.h.b16 %v799
    %v6175 = vunpack.c.l.b16 %v800
    %v6176 = vunpack.c.h.b16 %v800
    %v6177 = vunpack.c.l.b16 %v801
    %v6178 = vunpack.c.h.b16 %v801
    %v6179 = vunpack.c.l.b16 %v802
    %v6180 = vunpack.c.h.b16 %v802
    %v6181 = vunpack.c.l.b16 %v803
    %v6182 = vunpack.c.h.b16 %v803
    %v6183 = vunpack.c.l.b16 %v804
    %v6184 = vunpack.c.h.b16 %v804
    %v6185 = vunpack.c.l.b16 %v805
    %v6186 = vunpack.c.h.b16 %v805
    %v6187 = vunpack.c.l.b16 %v806
    %v6188 = vunpack.c.h.b16 %v806
    %v6189 = vunpack.c.l.b16 %v807
    %v6190 = vunpack.c.h.b16 %v807
    %v6191 = vunpack.c.l.b16 %v808
    %v6192 = vunpack.c.h.b16 %v808
    %v6193 = vunpack.c.l.b16 %v809
    %v6194 = vunpack.c.h.b16 %v809
    %v6195 = vunpack.c.l.b16 %v810
    %v6196 = vunpack.c.h.b16 %v810
    %v6197 = vunpack.c.l.b16 %v811
    %v6198 = vunpack.c.h.b16 %v811
    %v6199 = vunpack.c.l.b16 %v812
    %v6200 = vunpack.c.h.b16 %v812
    %v6201 = vunpack.c.l.b16 %v813
    %v6202 = vunpack.c.h.b16 %v813
    %v6203 = vunpack.c.l.b16 %v814
    %v6204 = vunpack.c.h.b16 %v814
    %v6205 = vunpack.c.l.b16 %v815
    %v6206 = vunpack.c.h.b16 %v815
    %v6207 = vunpack.c.l.b16 %v816
    %v6208 = vunpack.c.h.b16 %v816
    %v6209 = vunpack.c.l.b16 %v817
    %v6210 = vunpack.c.h.b16 %v817
    %v6211 = vunpack.c.l.b16 %v818
    %v6212 = vunpack.c.h.b16 %v818
    %v6213 = vunpack.c.l.b16 %v819
    %v6214 = vunpack.c.h.b16 %v819
    %v6215 = vunpack.c.l.b16 %v820
    %v6216 = vunpack.c.h.b16 %v820
    %v6217 = vunpack.c.l.b16 %v821
    %v6218 = vunpack.c.h.b16 %v821
    %v6219 = vunpack.c.l.b16 %v822
    %v6220 = vunpack.c.h.b16 %v822
    %v6221 = vunpack.c.l.b16 %v823
    %v6222 = vunpack.c.h.b16 %v823
    %v6223 = vunpack.c.l.b16 %v824
    %v6224 = vunpack.c.h.b16 %v824
    %v6225 = vunpack.c.l.b16 %v825
    %v6226 = vunpack.c.h.b16 %v825
    %v6227 = vunpack.c.l.b16 %v826
    %v6228 = vunpack.c.h.b16 %v826
    %v6229 = vunpack.c.l.b16 %v827
    %v6230 = vunpack.c.h.b16 %v827
    %v6231 = vunpack.c.l.b16 %v828
    %v6232 = vunpack.c.h.b16 %v828
    %v6233 = vunpack.c.l.b16 %v829
    %v6234 = vunpack.c.h.b16 %v829
    %v6235 = vunpack.c.l.b16 %v830
    %v6236 = vunpack.c.h.b16 %v830
    %v6237 = vunpack.c.l.b16 %v831
    %v6238 = vunpack.c.h.b16 %v831
    %v6239 = vunpack.c.l.b16 %v832
    %v6240 = vunpack.c.h.b16 %v832
    %v6241 = vunpack.c.l.b16 %v833
    %v6242 = vunpack.c.h.b16 %v833
    %v6243 = vunpack.c.l.b16 %v834
    %v6244 = vunpack.c.h.b16 %v834
    %v6245 = vunpack.c.l.b16 %v835
    %v6246 = vunpack.c.h.b16 %v835
    %v6247 = vunpack.c.l.b16 %v836
    %v6248 = vunpack.c.h.b16 %v836
    %v6249 = vunpack.c.l.b16 %v837
    %v6250 = vunpack.c.h.b16 %v837
    %v6251 = vunpack.c.l.b16 %v838
    %v6252 = vunpack.c.h.b16 %v838
    %v6253 = vunpack.c.l.b16 %v839
    %v6254 = vunpack.c.h.b16 %v839
    %v6255 = vunpack.c.l.b16 %v840
    %v6256 = vunpack.c.h.b16 %v840
    %v6257 = vunpack.c.l.b16 %v841
    %v6258 = vunpack.c.h.b16 %v841
    %v6259 = vunpack.c.l.b16 %v842
    %v6260 = vunpack.c.h.b16 %v842
    %v6261 = vunpack.c.l.b16 %v843
    %v6262 = vunpack.c.h.b16 %v843
    %v6263 = vunpack.c.l.b16 %v844
    %v6264 = vunpack.c.h.b16 %v844
    %v6265 = vunpack.c.l.b16 %v845
    %v6266 = vunpack.c.h.b16 %v845
    %v6267 = vunpack.c.l.b16 %v846
    %v6268 = vunpack.c.h.b16 %v846
    %v6269 = vunpack.c.l.b16 %v847
    %v6270 = vunpack.c.h.b16 %v847
    %v6271 = vunpack.c.l.b16 %v848
    %v6272 = vunpack.c.h.b16 %v848
    %v6273 = vunpack.c.l.b16 %v849
    %v6274 = vunpack.c.h.b16 %v849
    %v6275 = vunpack.c.l.b16 %v850
    %v6276 = vunpack.c.h.b16 %v850
    %v6277 = vunpack.c.l.b16 %v851
    %v6278 = vunpack.c.h.b16 %v851
    %v6279 = vunpack.c.l.b16 %v852
    %v6280 = vunpack.c.h.b16 %v852
    %v6281 = vunpack.c.l.b16 %v853
    %v6282 = vunpack.c.h.b16 %v853
    %v6283 = vunpack.c.l.b16 %v854
    %v6284 = vunpack.c.h.b16 %v854
    %v6285 = vunpack.c.l.b16 %v855
    %v6286 = vunpack.c.h.b16 %v855
    %v6287 = vunpack.c.l.b16 %v856
    %v6288 = vunpack.c.h.b16 %v856
    %v6289 = vunpack.c.l.b16 %v857
    %v6290 = vunpack.c.h.b16 %v857
    %v6291 = vunpack.c.l.b16 %v858
    %v6292 = vunpack.c.h.b16 %v858
    %v6293 = vunpack.c.l.b16 %v859
    %v6294 = vunpack.c.h.b16 %v859
    %v6295 = vunpack.c.l.b16 %v860
    %v6296 = vunpack.c.h.b16 %v860
    %v6297 = vunpack.c.l.b16 %v861
    %v6298 = vunpack.c.h.b16 %v861
    %v6299 = vunpack.c.l.b16 %v862
    %v6300 = vunpack.c.h.b16 %v862
    %v6301 = vunpack.c.l.b16 %v863
    %v6302 = vunpack.c.h.b16 %v863
    %v6303 = vunpack.c.l.b16 %v864
    %v6304 = vunpack.c.h.b16 %v864
    %v6305 = vunpack.c.l.b16 %v865
    %v6306 = vunpack.c.h.b16 %v865
    %v6307 = vunpack.c.l.b16 %v866
    %v6308 = vunpack.c.h.b16 %v866
    %v6309 = vunpack.c.l.b16 %v867
    %v6310 = vunpack.c.h.b16 %v867
    %v6311 = vunpack.c.l.b16 %v868
    %v6312 = vunpack.c.h.b16 %v868
    %v6313 = vunpack.c.l.b16 %v869
    %v6314 = vunpack.c.h.b16 %v869
    %v6315 = vunpack.c.l.b16 %v870
    %v6316 = vunpack.c.h.b16 %v870
    %v6317 = vunpack.c.l.b16 %v871
    %v6318 = vunpack.c.h.b16 %v871
    %v6319 = vunpack.c.l.b16 %v872
    %v6320 = vunpack.c.h.b16 %v872
    %v6321 = vunpack.c.l.b16 %v873
    %v6322 = vunpack.c.h.b16 %v873
    %v6323 = vunpack.c.l.b16 %v874
    %v6324 = vunpack.c.h.b16 %v874
    %v6325 = vunpack.c.l.b16 %v875
    %v6326 = vunpack.c.h.b16 %v875
    %v6327 = vunpack.c.l.b16 %v876
    %v6328 = vunpack.c.h.b16 %v876
    %v6329 = vunpack.c.l.b16 %v877
    %v6330 = vunpack.c.h.b16 %v877
    %v6331 = vunpack.c.l.b16 %v878
    %v6332 = vunpack.c.h.b16 %v878
    %v6333 = vunpack.c.l.b16 %v879
    %v6334 = vunpack.c.h.b16 %v879
    %v6335 = vunpack.c.l.b16 %v880
    %v6336 = vunpack.c.h.b16 %v880
    %v6337 = vunpack.c.l.b16 %v881
    %v6338 = vunpack.c.h.b16 %v881
    %v6339 = vunpack.c.l.b16 %v882
    %v6340 = vunpack.c.h.b16 %v882
    %v6341 = vunpack.c.l.b16 %v883
    %v6342 = vunpack.c.h.b16 %v883
    %v6343 = vunpack.c.l.b16 %v884
    %v6344 = vunpack.c.h.b16 %v884
    %v6345 = vunpack.c.l.b16 %v885
    %v6346 = vunpack.c.h.b16 %v885
    %v6347 = vunpack.c.l.b16 %v886
    %v6348 = vunpack.c.h.b16 %v886
    %v6349 = vunpack.c.l.b16 %v887
    %v6350 = vunpack.c.h.b16 %v887
    %v6351 = vunpack.c.l.b16 %v888
    %v6352 = vunpack.c.h.b16 %v888
    %v6353 = vunpack.c.l.b16 %v889
    %v6354 = vunpack.c.h.b16 %v889
    %v6355 = vunpack.c.l.b16 %v890
    %v6356 = vunpack.c.h.b16 %v890
    %v6357 = vunpack.c.l.b16 %v891
    %v6358 = vunpack.c.h.b16 %v891
    %v6359 = vunpack.c.l.b16 %v892
    %v6360 = vunpack.c.h.b16 %v892
    %v6361 = vunpack.c.l.b16 %v893
    %v6362 = vunpack.c.h.b16 %v893
    %v6363 = vunpack.c.l.b16 %v894
    %v6364 = vunpack.c.h.b16 %v894
    %v6365 = vunpack.c.l.b16 %v895
    %v6366 = vunpack.c.h.b16 %v895
    %v6367 = vunpack.c.l.b16 %v896
    %v6368 = vunpack.c.h.b16 %v896
    %v6369 = vunpack.c.l.b16 %v897
    %v6370 = vunpack.c.h.b16 %v897
    %v6371 = vunpack.c.l.b16 %v898
    %v6372 = vunpack.c.h.b16 %v898
    %v6373 = vunpack.c.l.b16 %v899
    %v6374 = vunpack.c.h.b16 %v899
    %v6375 = vunpack.c.l.b16 %v900
    %v6376 = vunpack.c.h.b16 %v900
    %v6377 = vunpack.c.l.b16 %v901
    %v6378 = vunpack.c.h.b16 %v901
    %v6379 = vunpack.c.l.b16 %v902
    %v6380 = vunpack.c.h.b16 %v902
    %v6381 = vunpack.c.l.b16 %v903
    %v6382 = vunpack.c.h.b16 %v903
    %v6383 = vunpack.c.l.b16 %v904
    %v6384 = vunpack.c.h.b16 %v904
    %v6385 = vunpack.c.l.b16 %v905
    %v6386 = vunpack.c.h.b16 %v905
    %v6387 = vunpack.c.l.b16 %v906
    %v6388 = vunpack.c.h.b16 %v906
    %v6389 = vunpack.c.l.b16 %v907
    %v6390 = vunpack.c.h.b16 %v907
    %v6391 = vunpack.c.l.b16 %v908
    %v6392 = vunpack.c.h.b16 %v908
    %v6393 = vunpack.c.l.b16 %v909
    %v6394 = vunpack.c.h.b16 %v909
    %v6395 = vunpack.c.l.b16 %v910
    %v6396 = vunpack.c.h.b16 %v910
    %v6397 = vunpack.c.l.b16 %v911
    %v6398 = vunpack.c.h.b16 %v911
    %v6399 = vunpack.c.l.b16 %v912
    %v6400 = vunpack.c.h.b16 %v912
    %v6401 = vunpack.c.l.b16 %v913
    %v6402 = vunpack.c.h.b16 %v913
    %v6403 = vunpack.c.l.b16 %v914
    %v6404 = vunpack.c.h.b16 %v914
    %v6405 = vunpack.c.l.b16 %v915
    %v6406 = vunpack.c.h.b16 %v915
    %v6407 = vunpack.c.l.b16 %v916
    %v6408 = vunpack.c.h.b16 %v916
    %v6409 = vunpack.c.l.b16 %v917
    %v6410 = vunpack.c.h.b16 %v917
    %v6411 = vunpack.c.l.b16 %v918
    %v6412 = vunpack.c.h.b16 %v918
    %v6413 = vunpack.c.l.b16 %v919
    %v6414 = vunpack.c.h.b16 %v919
    %v6415 = vunpack.c.l.b16 %v920
    %v6416 = vunpack.c.h.b16 %v920
    %v6417 = vunpack.c.l.b16 %v921
    %v6418 = vunpack.c.h.b16 %v921
    %v6419 = vunpack.c.l.b16 %v922
    %v6420 = vunpack.c.h.b16 %v922
    %v6421 = vunpack.c.l.b16 %v923
    %v6422 = vunpack.c.h.b16 %v923
    %v6423 = vunpack.c.l.b16 %v924
    %v6424 = vunpack.c.h.b16 %v924
    %v6425 = vunpack.c.l.b16 %v925
    %v6426 = vunpack.c.h.b16 %v925
    %v6427 = vunpack.c.l.b16 %v926
    %v6428 = vunpack.c.h.b16 %v926
    %v6429 = vunpack.c.l.b16 %v927
    %v6430 = vunpack.c.h.b16 %v927
    %v6431 = vunpack.c.l.b16 %v928
    %v6432 = vunpack.c.h.b16 %v928
    %v6433 = vunpack.c.l.b16 %v929
    %v6434 = vunpack.c.h.b16 %v929
    %v6435 = vunpack.c.l.b16 %v930
    %v6436 = vunpack.c.h.b16 %v930
    %v6437 = vunpack.c.l.b16 %v931
    %v6438 = vunpack.c.h.b16 %v931
    %v6439 = vunpack.c.l.b16 %v932
    %v6440 = vunpack.c.h.b16 %v932
    %v6441 = vunpack.c.l.b16 %v933
    %v6442 = vunpack.c.h.b16 %v933
    %v6443 = vunpack.c.l.b16 %v934
    %v6444 = vunpack.c.h.b16 %v934
    %v6445 = vunpack.c.l.b16 %v935
    %v6446 = vunpack.c.h.b16 %v935
    %v6447 = vunpack.c.l.b16 %v936
    %v6448 = vunpack.c.h.b16 %v936
    %v6449 = vunpack.c.l.b16 %v937
    %v6450 = vunpack.c.h.b16 %v937
    %v6451 = vunpack.c.l.b16 %v938
    %v6452 = vunpack.c.h.b16 %v938
    %v6453 = vunpack.c.l.b16 %v939
    %v6454 = vunpack.c.h.b16 %v939
    %v6455 = vunpack.c.l.b16 %v940
    %v6456 = vunpack.c.h.b16 %v940
    %v6457 = vunpack.c.l.b16 %v941
    %v6458 = vunpack.c.h.b16 %v941
    %v6459 = vunpack.c.l.b16 %v942
    %v6460 = vunpack.c.h.b16 %v942
    %v6461 = vunpack.c.l.b16 %v943
    %v6462 = vunpack.c.h.b16 %v943
    %v6463 = vunpack.c.l.b16 %v944
    %v6464 = vunpack.c.h.b16 %v944
    %v6465 = vunpack.c.l.b16 %v945
    %v6466 = vunpack.c.h.b16 %v945
    %v6467 = vunpack.c.l.b16 %v946
    %v6468 = vunpack.c.h.b16 %v946
    %v6469 = vunpack.c.l.b16 %v947
    %v6470 = vunpack.c.h.b16 %v947
    %v6471 = vunpack.c.l.b16 %v948
    %v6472 = vunpack.c.h.b16 %v948
    %v6473 = vunpack.c.l.b16 %v949
    %v6474 = vunpack.c.h.b16 %v949
    %v6475 = vunpack.c.l.b16 %v950
    %v6476 = vunpack.c.h.b16 %v950
    %v6477 = vunpack.c.l.b16 %v951
    %v6478 = vunpack.c.h.b16 %v951
    %v6479 = vunpack.c.l.b16 %v952
    %v6480 = vunpack.c.h.b16 %v952
    %v6481 = vunpack.c.l.b16 %v953
    %v6482 = vunpack.c.h.b16 %v953
    %v6483 = vunpack.c.l.b16 %v954
    %v6484 = vunpack.c.h.b16 %v954
    %v6485 = vunpack.c.l.b16 %v955
    %v6486 = vunpack.c.h.b16 %v955
    %v6487 = vunpack.c.l.b16 %v956
    %v6488 = vunpack.c.h.b16 %v956
    %v6489 = vunpack.c.l.b16 %v957
    %v6490 = vunpack.c.h.b16 %v957
    %v6491 = vunpack.c.l.b16 %v958
    %v6492 = vunpack.c.h.b16 %v958
    %v6493 = vunpack.c.l.b16 %v959
    %v6494 = vunpack.c.h.b16 %v959
    %v6495 = vunpack.c.l.b16 %v960
    %v6496 = vunpack.c.h.b16 %v960
    %v6497 = vunpack.c.l.b16 %v961
    %v6498 = vunpack.c.h.b16 %v961
    %v6499 = vunpack.c.l.b16 %v962
    %v6500 = vunpack.c.h.b16 %v962
    %v6501 = vunpack.c.l.b16 %v963
    %v6502 = vunpack.c.h.b16 %v963
    %v6503 = vunpack.c.l.b16 %v964
    %v6504 = vunpack.c.h.b16 %v964
    %v6505 = vunpack.c.l.b16 %v965
    %v6506 = vunpack.c.h.b16 %v965
    %v6507 = vunpack.c.l.b16 %v966
    %v6508 = vunpack.c.h.b16 %v966
    %v6509 = vunpack.c.l.b16 %v967
    %v6510 = vunpack.c.h.b16 %v967
    %v6511 = vunpack.c.l.b16 %v968
    %v6512 = vunpack.c.h.b16 %v968
    %v6513 = vunpack.c.l.b16 %v969
    %v6514 = vunpack.c.h.b16 %v969
    %v6515 = vunpack.c.l.b16 %v970
    %v6516 = vunpack.c.h.b16 %v970
    %v6517 = vunpack.c.l.b16 %v971
    %v6518 = vunpack.c.h.b16 %v971
    %v6519 = vunpack.c.l.b16 %v972
    %v6520 = vunpack.c.h.b16 %v972
    %v6521 = vunpack.c.l.b16 %v973
    %v6522 = vunpack.c.h.b16 %v973
    %v6523 = vunpack.c.l.b16 %v974
    %v6524 = vunpack.c.h.b16 %v974
    %v6525 = vunpack.c.l.b16 %v975
    %v6526 = vunpack.c.h.b16 %v975
    %v6527 = vunpack.c.l.b16 %v976
    %v6528 = vunpack.c.h.b16 %v976
    %v6529 = vunpack.c.l.b16 %v977
    %v6530 = vunpack.c.h.b16 %v977
    %v6531 = vunpack.c.l.b16 %v978
    %v6532 = vunpack.c.h.b16 %v978
    %v6533 = vunpack.c.l.b16 %v979
    %v6534 = vunpack.c.h.b16 %v979
    %v6535 = vunpack.c.l.b16 %v980
    %v6536 = vunpack.c.h.b16 %v980
    %v6537 = vunpack.c.l.b16 %v981
    %v6538 = vunpack.c.h.b16 %v981
    %v6539 = vunpack.c.l.b16 %v982
    %v6540 = vunpack.c.h.b16 %v982
    %v6541 = vunpack.c.l.b16 %v983
    %v6542 = vunpack.c.h.b16 %v983
    %v6543 = vunpack.c.l.b16 %v984
    %v6544 = vunpack.c.h.b16 %v984
    %v6545 = vunpack.c.l.b16 %v985
    %v6546 = vunpack.c.h.b16 %v985
    %v6547 = vunpack.c.l.b16 %v986
    %v6548 = vunpack.c.h.b16 %v986
    %v6549 = vunpack.c.l.b16 %v987
    %v6550 = vunpack.c.h.b16 %v987
    %v6551 = vunpack.c.l.b16 %v988
    %v6552 = vunpack.c.h.b16 %v988
    %v6553 = vunpack.c.l.b16 %v989
    %v6554 = vunpack.c.h.b16 %v989
    %v6555 = vunpack.c.l.b16 %v990
    %v6556 = vunpack.c.h.b16 %v990
    %v6557 = vunpack.c.l.b16 %v991
    %v6558 = vunpack.c.h.b16 %v991
    %v6559 = vunpack.c.l.b16 %v992
    %v6560 = vunpack.c.h.b16 %v992
    %v6561 = vunpack.c.l.b16 %v993
    %v6562 = vunpack.c.h.b16 %v993
    %v6563 = vunpack.c.l.b16 %v994
    %v6564 = vunpack.c.h.b16 %v994
    %v6565 = vunpack.c.l.b16 %v995
    %v6566 = vunpack.c.h.b16 %v995
    %v6567 = vunpack.c.l.b16 %v996
    %v6568 = vunpack.c.h.b16 %v996
    %v6569 = vunpack.c.l.b16 %v997
    %v6570 = vunpack.c.h.b16 %v997
    %v6571 = vunpack.c.l.b16 %v998
    %v6572 = vunpack.c.h.b16 %v998
    %v6573 = vunpack.c.l.b16 %v999
    %v6574 = vunpack.c.h.b16 %v999
    %v6575 = vunpack.c.l.b16 %v1000
    %v6576 = vunpack.c.h.b16 %v1000
    %v6577 = vunpack.c.l.b16 %v1001
    %v6578 = vunpack.c.h.b16 %v1001
    %v6579 = vunpack.c.l.b16 %v1002
    %v6580 = vunpack.c.h.b16 %v1002
    %v6581 = vunpack.c.l.b16 %v1003
    %v6582 = vunpack.c.h.b16 %v1003
    %v6583 = vunpack.c.l.b16 %v1004
    %v6584 = vunpack.c.h.b16 %v1004
    %v6585 = vunpack.c.l.b16 %v1005
    %v6586 = vunpack.c.h.b16 %v1005
    %v6587 = vunpack.c.l.b16 %v1006
    %v6588 = vunpack.c.h.b16 %v1006
    %v6589 = vunpack.c.l.b16 %v1007
    %v6590 = vunpack.c.h.b16 %v1007
    %v6591 = vunpack.c.l.b16 %v1008
    %v6592 = vunpack.c.h.b16 %v1008
    %v6593 = vunpack.c.l.b16 %v1009
    %v6594 = vunpack.c.h.b16 %v1009
    %v6595 = vunpack.c.l.b16 %v1010
    %v6596 = vunpack.c.h.b16 %v1010
    %v6597 = vunpack.c.l.b16 %v1011
    %v6598 = vunpack.c.h.b16 %v1011
    %v6599 = vunpack.c.l.b16 %v1012
    %v6600 = vunpack.c.h.b16 %v1012
    %v6601 = vunpack.c.l.b16 %v1013
    %v6602 = vunpack.c.h.b16 %v1013
    %v6603 = vunpack.c.l.b16 %v1014
    %v6604 = vunpack.c.h.b16 %v1014
    %v6605 = vunpack.c.l.b16 %v1015
    %v6606 = vunpack.c.h.b16 %v1015
    %v6607 = vunpack.c.l.b16 %v1016
    %v6608 = vunpack.c.h.b16 %v1016
    %v6609 = vunpack.c.l.b16 %v1017
    %v6610 = vunpack.c.h.b16 %v1017
    %v6611 = vunpack.c.l.b16 %v1018
    %v6612 = vunpack.c.h.b16 %v1018
    %v6613 = vunpack.c.l.b16 %v1019
    %v6614 = vunpack.c.h.b16 %v1019
    %v6615 = vunpack.c.l.b16 %v1020
    %v6616 = vunpack.c.h.b16 %v1020
    %v6617 = vunpack.c.l.b16 %v1021
    %v6618 = vunpack.c.h.b16 %v1021
    %v6619 = vunpack.c.l.b16 %v1022
    %v6620 = vunpack.c.h.b16 %v1022
    %v6621 = vunpack.c.l.b16 %v1023
    %v6622 = vunpack.c.h.b16 %v1023
    %v6623 = vunpack.c.l.b16 %v1024
    %v6624 = vunpack.c.h.b16 %v1024
    %v6625 = vunpack.c.l.b16 %v1025
    %v6626 = vunpack.c.h.b16 %v1025
    %v6627 = vunpack.c.l.b16 %v1026
    %v6628 = vunpack.c.h.b16 %v1026
    %v6629 = vunpack.c.l.b16 %v1027
    %v6630 = vunpack.c.h.b16 %v1027
    %v6631 = vunpack.c.l.b16 %v1028
    %v6632 = vunpack.c.h.b16 %v1028
    %v6633 = vunpack.c.l.b16 %v1029
    %v6634 = vunpack.c.h.b16 %v1029
    %v6635 = vunpack.c.l.b16 %v1030
    %v6636 = vunpack.c.h.b16 %v1030
    %v6637 = vunpack.c.l.b16 %v1031
    %v6638 = vunpack.c.h.b16 %v1031
    %v6639 = vunpack.c.l.b16 %v1032
    %v6640 = vunpack.c.h.b16 %v1032
    %v6641 = vunpack.c.l.b16 %v1033
    %v6642 = vunpack.c.h.b16 %v1033
    %v6643 = vunpack.c.l.b16 %v1034
    %v6644 = vunpack.c.h.b16 %v1034
    %v6645 = vunpack.c.l.b16 %v1035
    %v6646 = vunpack.c.h.b16 %v1035
    %v6647 = vunpack.c.l.b16 %v1036
    %v6648 = vunpack.c.h.b16 %v1036
    %v6649 = vunpack.c.l.b16 %v1037
    %v6650 = vunpack.c.h.b16 %v1037
    %v6651 = vunpack.c.l.b16 %v1038
    %v6652 = vunpack.c.h.b16 %v1038
    %v6653 = vunpack.c.l.b16 %v1039
    %v6654 = vunpack.c.h.b16 %v1039
    %v6655 = vunpack.c.l.b16 %v1040
    %v6656 = vunpack.c.h.b16 %v1040
    %v6657 = vunpack.c.l.b16 %v1041
    %v6658 = vunpack.c.h.b16 %v1041
    %v6659 = vunpack.c.l.b16 %v1042
    %v6660 = vunpack.c.h.b16 %v1042
    %v6661 = vunpack.c.l.b16 %v1043
    %v6662 = vunpack.c.h.b16 %v1043
    %v6663 = vunpack.c.l.b16 %v1044
    %v6664 = vunpack.c.h.b16 %v1044
    %v6665 = vunpack.c.l.b16 %v1045
    %v6666 = vunpack.c.h.b16 %v1045
    %v6667 = vunpack.c.l.b16 %v1046
    %v6668 = vunpack.c.h.b16 %v1046
    %v6669 = vunpack.c.l.b16 %v1047
    %v6670 = vunpack.c.h.b16 %v1047
    %v6671 = vunpack.c.l.b16 %v1048
    %v6672 = vunpack.c.h.b16 %v1048
    %v6673 = vunpack.c.l.b16 %v1049
    %v6674 = vunpack.c.h.b16 %v1049
    %v6675 = vunpack.c.l.b16 %v1050
    %v6676 = vunpack.c.h.b16 %v1050
    %v6677 = vunpack.c.l.b16 %v1051
    %v6678 = vunpack.c.h.b16 %v1051
    %v6679 = vunpack.c.l.b16 %v1052
    %v6680 = vunpack.c.h.b16 %v1052
    %v6681 = vunpack.c.l.b16 %v1053
    %v6682 = vunpack.c.h.b16 %v1053
    %v6683 = vunpack.c.l.b16 %v1054
    %v6684 = vunpack.c.h.b16 %v1054
    %v6685 = vunpack.c.l.b16 %v1055
    %v6686 = vunpack.c.h.b16 %v1055
    %v6687 = vunpack.c.l.b16 %v1056
    %v6688 = vunpack.c.h.b16 %v1056
    %v6689 = vunpack.c.l.b16 %v1057
    %v6690 = vunpack.c.h.b16 %v1057
    %v6691 = vunpack.c.l.b16 %v1058
    %v6692 = vunpack.c.h.b16 %v1058
    %v6693 = vunpack.c.l.b16 %v1059
    %v6694 = vunpack.c.h.b16 %v1059
    %v6695 = vunpack.c.l.b16 %v1060
    %v6696 = vunpack.c.h.b16 %v1060
    %v6697 = vunpack.c.l.b16 %v1061
    %v6698 = vunpack.c.h.b16 %v1061
    %v6699 = vunpack.c.l.b16 %v1062
    %v6700 = vunpack.c.h.b16 %v1062
    %v6701 = vunpack.c.l.b16 %v1063
    %v6702 = vunpack.c.h.b16 %v1063
    %v6703 = vunpack.c.l.b16 %v1064
    %v6704 = vunpack.c.h.b16 %v1064
    %v6705 = vunpack.c.l.b16 %v1065
    %v6706 = vunpack.c.h.b16 %v1065
    %v6707 = vunpack.c.l.b16 %v1066
    %v6708 = vunpack.c.h.b16 %v1066
    %v6709 = vunpack.c.l.b16 %v1067
    %v6710 = vunpack.c.h.b16 %v1067
    %v6711 = vunpack.c.l.b16 %v1068
    %v6712 = vunpack.c.h.b16 %v1068
    %v6713 = vunpack.c.l.b16 %v1069
    %v6714 = vunpack.c.h.b16 %v1069
    %v6715 = vunpack.c.l.b16 %v1070
    %v6716 = vunpack.c.h.b16 %v1070
    %v6717 = vunpack.c.l.b16 %v1071
    %v6718 = vunpack.c.h.b16 %v1071
    %v6719 = vunpack.c.l.b16 %v1072
    %v6720 = vunpack.c.h.b16 %v1072
    %v6721 = vunpack.c.l.b16 %v1073
    %v6722 = vunpack.c.h.b16 %v1073
    %v6723 = vunpack.c.l.b16 %v1074
    %v6724 = vunpack.c.h.b16 %v1074
    %v6725 = vunpack.c.l.b16 %v1075
    %v6726 = vunpack.c.h.b16 %v1075
    %v6727 = vunpack.c.l.b16 %v1076
    %v6728 = vunpack.c.h.b16 %v1076
    %v6729 = vunpack.c.l.b16 %v1077
    %v6730 = vunpack.c.h.b16 %v1077
    %v6731 = vunpack.c.l.b16 %v1078
    %v6732 = vunpack.c.h.b16 %v1078
    %v6733 = vunpack.c.l.b16 %v1079
    %v6734 = vunpack.c.h.b16 %v1079
    %v6735 = vunpack.c.l.b16 %v1080
    %v6736 = vunpack.c.h.b16 %v1080
    %v6737 = vunpack.c.l.b16 %v1081
    %v6738 = vunpack.c.h.b16 %v1081
    %v6739 = vunpack.c.l.b16 %v1082
    %v6740 = vunpack.c.h.b16 %v1082
    %v6741 = vunpack.c.l.b16 %v1083
    %v6742 = vunpack.c.h.b16 %v1083
    %v6743 = vunpack.c.l.b16 %v1084
    %v6744 = vunpack.c.h.b16 %v1084
    %v6745 = vunpack.c.l.b16 %v1085
    %v6746 = vunpack.c.h.b16 %v1085
    %v6747 = vunpack.c.l.b16 %v1086
    %v6748 = vunpack.c.h.b16 %v1086
    %v6749 = vunpack.c.l.b16 %v1087
    %v6750 = vunpack.c.h.b16 %v1087
    %v6751 = vunpack.c.l.b16 %v1088
    %v6752 = vunpack.c.h.b16 %v1088
    %v6753 = vunpack.c.l.b16 %v1089
    %v6754 = vunpack.c.h.b16 %v1089
    %v6755 = vunpack.c.l.b16 %v1090
    %v6756 = vunpack.c.h.b16 %v1090
    %v6757 = vunpack.c.l.b16 %v1091
    %v6758 = vunpack.c.h.b16 %v1091
    %v6759 = vunpack.c.l.b16 %v1092
    %v6760 = vunpack.c.h.b16 %v1092
    %v6761 = vunpack.c.l.b16 %v1093
    %v6762 = vunpack.c.h.b16 %v1093
    %v6763 = vunpack.c.l.b16 %v1094
    %v6764 = vunpack.c.h.b16 %v1094
    %v6765 = vunpack.c.l.b16 %v1095
    %v6766 = vunpack.c.h.b16 %v1095
    %v6767 = vunpack.c.l.b16 %v1096
    %v6768 = vunpack.c.h.b16 %v1096
    %v6769 = vunpack.c.l.b16 %v1097
    %v6770 = vunpack.c.h.b16 %v1097
    %v6771 = vunpack.c.l.b16 %v1098
    %v6772 = vunpack.c.h.b16 %v1098
    %v6773 = vunpack.c.l.b16 %v1099
    %v6774 = vunpack.c.h.b16 %v1099
    %v6775 = vunpack.c.l.b16 %v1100
    %v6776 = vunpack.c.h.b16 %v1100
    %v6777 = vunpack.c.l.b16 %v1101
    %v6778 = vunpack.c.h.b16 %v1101
    %v6779 = vunpack.c.l.b16 %v1102
    %v6780 = vunpack.c.h.b16 %v1102
    %v6781 = vunpack.c.l.b16 %v1103
    %v6782 = vunpack.c.h.b16 %v1103
    %v6783 = vunpack.c.l.b16 %v1104
    %v6784 = vunpack.c.h.b16 %v1104
    %v6785 = vunpack.c.l.b16 %v1105
    %v6786 = vunpack.c.h.b16 %v1105
    %v6787 = vunpack.c.l.b16 %v1106
    %v6788 = vunpack.c.h.b16 %v1106
    %v6789 = vunpack.c.l.b16 %v1107
    %v6790 = vunpack.c.h.b16 %v1107
    %v6791 = vunpack.c.l.b16 %v1108
    %v6792 = vunpack.c.h.b16 %v1108
    %v6793 = vunpack.c.l.b16 %v1109
    %v6794 = vunpack.c.h.b16 %v1109
    %v6795 = vunpack.c.l.b16 %v1110
    %v6796 = vunpack.c.h.b16 %v1110
    %v6797 = vunpack.c.l.b16 %v1111
    %v6798 = vunpack.c.h.b16 %v1111
    %v6799 = vunpack.c.l.b16 %v1112
    %v6800 = vunpack.c.h.b16 %v1112
    %v6801 = vunpack.c.l.b16 %v1113
    %v6802 = vunpack.c.h.b16 %v1113
    %v6803 = vunpack.c.l.b16 %v1114
    %v6804 = vunpack.c.h.b16 %v1114
    %v6805 = vunpack.c.l.b16 %v1115
    %v6806 = vunpack.c.h.b16 %v1115
    %v6807 = vunpack.c.l.b16 %v1116
    %v6808 = vunpack.c.h.b16 %v1116
    %v6809 = vunpack.c.l.b16 %v1117
    %v6810 = vunpack.c.h.b16 %v1117
    %v6811 = vunpack.c.l.b16 %v1118
    %v6812 = vunpack.c.h.b16 %v1118
    %v6813 = vunpack.c.l.b16 %v1119
    %v6814 = vunpack.c.h.b16 %v1119
    %v6815 = vunpack.c.l.b16 %v1120
    %v6816 = vunpack.c.h.b16 %v1120
    %v6817 = vunpack.c.l.b16 %v1121
    %v6818 = vunpack.c.h.b16 %v1121
    %v6819 = vunpack.c.l.b16 %v1122
    %v6820 = vunpack.c.h.b16 %v1122
    %v6821 = vunpack.c.l.b16 %v1123
    %v6822 = vunpack.c.h.b16 %v1123
    %v6823 = vunpack.c.l.b16 %v1124
    %v6824 = vunpack.c.h.b16 %v1124
    %v6825 = vunpack.c.l.b16 %v1125
    %v6826 = vunpack.c.h.b16 %v1125
    %v6827 = vunpack.c.l.b16 %v1126
    %v6828 = vunpack.c.h.b16 %v1126
    %v6829 = vunpack.c.l.b16 %v1127
    %v6830 = vunpack.c.h.b16 %v1127
    %v6831 = vunpack.c.l.b16 %v1128
    %v6832 = vunpack.c.h.b16 %v1128
    %v6833 = vunpack.c.l.b16 %v1129
    %v6834 = vunpack.c.h.b16 %v1129
    %v6835 = vunpack.c.l.b16 %v1130
    %v6836 = vunpack.c.h.b16 %v1130
    %v6837 = vunpack.c.l.b16 %v1131
    %v6838 = vunpack.c.h.b16 %v1131
    %v6839 = vunpack.c.l.b16 %v1132
    %v6840 = vunpack.c.h.b16 %v1132
    %v6841 = vunpack.c.l.b16 %v1133
    %v6842 = vunpack.c.h.b16 %v1133
    %v6843 = vunpack.c.l.b16 %v1134
    %v6844 = vunpack.c.h.b16 %v1134
    %v6845 = vunpack.c.l.b16 %v1135
    %v6846 = vunpack.c.h.b16 %v1135
    %v6847 = vunpack.c.l.b16 %v1136
    %v6848 = vunpack.c.h.b16 %v1136
    %v6849 = vunpack.c.l.b16 %v1137
    %v6850 = vunpack.c.h.b16 %v1137
    %v6851 = vunpack.c.l.b16 %v1138
    %v6852 = vunpack.c.h.b16 %v1138
    %v6853 = vunpack.c.l.b16 %v1139
    %v6854 = vunpack.c.h.b16 %v1139
    %v6855 = vunpack.c.l.b16 %v1140
    %v6856 = vunpack.c.h.b16 %v1140
    %v6857 = vunpack.c.l.b16 %v1141
    %v6858 = vunpack.c.h.b16 %v1141
    %v6859 = vunpack.c.l.b16 %v1142
    %v6860 = vunpack.c.h.b16 %v1142
    %v6861 = vunpack.c.l.b16 %v1143
    %v6862 = vunpack.c.h.b16 %v1143
    %v6863 = vunpack.c.l.b16 %v1144
    %v6864 = vunpack.c.h.b16 %v1144
    %v6865 = vunpack.c.l.b16 %v1145
    %v6866 = vunpack.c.h.b16 %v1145
    %v6867 = vunpack.c.l.b16 %v1146
    %v6868 = vunpack.c.h.b16 %v1146
    %v6869 = vunpack.c.l.b16 %v1147
    %v6870 = vunpack.c.h.b16 %v1147
    %v6871 = vunpack.c.l.b16 %v1148
    %v6872 = vunpack.c.h.b16 %v1148
    %v6873 = vunpack.c.l.b16 %v1149
    %v6874 = vunpack.c.h.b16 %v1149
    %v6875 = vunpack.c.l.b16 %v1150
    %v6876 = vunpack.c.h.b16 %v1150
    %v6877 = vunpack.c.l.b16 %v1151
    %v6878 = vunpack.c.h.b16 %v1151
    %v6879 = vunpack.c.l.b16 %v1152
    %v6880 = vunpack.c.h.b16 %v1152
    %v6881 = vunpack.c.l.b16 %v1153
    %v6882 = vunpack.c.h.b16 %v1153
    %v6883 = vunpack.c.l.b16 %v1154
    %v6884 = vunpack.c.h.b16 %v1154
    %v6885 = vunpack.c.l.b16 %v1155
    %v6886 = vunpack.c.h.b16 %v1155
    %v6887 = vunpack.c.l.b16 %v1156
    %v6888 = vunpack.c.h.b16 %v1156
    %v6889 = vunpack.c.l.b16 %v1157
    %v6890 = vunpack.c.h.b16 %v1157
    %v6891 = vunpack.c.l.b16 %v1158
    %v6892 = vunpack.c.h.b16 %v1158
    %v6893 = vunpack.c.l.b16 %v1159
    %v6894 = vunpack.c.h.b16 %v1159
    %v6895 = vunpack.c.l.b16 %v1160
    %v6896 = vunpack.c.h.b16 %v1160
    %v6897 = vunpack.c.l.b16 %v1161
    %v6898 = vunpack.c.h.b16 %v1161
    %v6899 = vunpack.c.l.b16 %v1162
    %v6900 = vunpack.c.h.b16 %v1162
    %v6901 = vunpack.c.l.b16 %v1163
    %v6902 = vunpack.c.h.b16 %v1163
    %v6903 = vunpack.c.l.b16 %v1164
    %v6904 = vunpack.c.h.b16 %v1164
    %v6905 = vunpack.c.l.b16 %v1165
    %v6906 = vunpack.c.h.b16 %v1165
    %v6907 = vunpack.c.l.b16 %v1166
    %v6908 = vunpack.c.h.b16 %v1166
    %v6909 = vunpack.c.l.b16 %v1167
    %v6910 = vunpack.c.h.b16 %v1167
    %v6911 = vunpack.c.l.b16 %v1168
    %v6912 = vunpack.c.h.b16 %v1168
    %v6913 = vunpack.c.l.b16 %v1169
    %v6914 = vunpack.c.h.b16 %v1169
    %v6915 = vunpack.c.l.b16 %v1170
    %v6916 = vunpack.c.h.b16 %v1170
    %v6917 = vunpack.c.l.b16 %v1171
    %v6918 = vunpack.c.h.b16 %v1171
    %v6919 = vunpack.c.l.b16 %v1172
    %v6920 = vunpack.c.h.b16 %v1172
    %v6921 = vunpack.c.l.b16 %v1173
    %v6922 = vunpack.c.h.b16 %v1173
    %v6923 = vunpack.c.l.b16 %v1174
    %v6924 = vunpack.c.h.b16 %v1174
    %v6925 = vunpack.c.l.b16 %v1175
    %v6926 = vunpack.c.h.b16 %v1175
    %v6927 = vunpack.c.l.b16 %v1176
    %v6928 = vunpack.c.h.b16 %v1176
    %v6929 = vunpack.c.l.b16 %v1177
    %v6930 = vunpack.c.h.b16 %v1177
    %v6931 = vunpack.c.l.b16 %v1178
    %v6932 = vunpack.c.h.b16 %v1178
    %v6933 = vunpack.c.l.b16 %v1179
    %v6934 = vunpack.c.h.b16 %v1179
    %v6935 = vunpack.c.l.b16 %v1180
    %v6936 = vunpack.c.h.b16 %v1180
    %v6937 = vunpack.c.l.b16 %v1181
    %v6938 = vunpack.c.h.b16 %v1181
    %v6939 = vunpack.c.l.b16 %v1182
    %v6940 = vunpack.c.h.b16 %v1182
    %v6941 = vunpack.c.l.b16 %v1183
    %v6942 = vunpack.c.h.b16 %v1183
    %v6943 = vunpack.c.l.b16 %v1184
    %v6944 = vunpack.c.h.b16 %v1184
    %v6945 = vunpack.c.l.b16 %v1185
    %v6946 = vunpack.c.h.b16 %v1185
    %v6947 = vunpack.c.l.b16 %v1186
    %v6948 = vunpack.c.h.b16 %v1186
    %v6949 = vunpack.c.l.b16 %v1187
    %v6950 = vunpack.c.h.b16 %v1187
    %v6951 = vunpack.c.l.b16 %v1188
    %v6952 = vunpack.c.h.b16 %v1188
    %v6953 = vunpack.c.l.b16 %v1189
    %v6954 = vunpack.c.h.b16 %v1189
    %v6955 = vunpack.c.l.b16 %v1190
    %v6956 = vunpack.c.h.b16 %v1190
    %v6957 = vunpack.c.l.b16 %v1191
    %v6958 = vunpack.c.h.b16 %v1191
    %v6959 = vunpack.c.l.b16 %v1192
    %v6960 = vunpack.c.h.b16 %v1192
    %v6961 = vunpack.c.l.b16 %v1193
    %v6962 = vunpack.c.h.b16 %v1193
    %v6963 = vunpack.c.l.b16 %v1194
    %v6964 = vunpack.c.h.b16 %v1194
    %v6965 = vunpack.c.l.b16 %v1195
    %v6966 = vunpack.c.h.b16 %v1195
    %v6967 = vunpack.c.l.b16 %v1196
    %v6968 = vunpack.c.h.b16 %v1196
    %v6969 = vunpack.c.l.b16 %v1197
    %v6970 = vunpack.c.h.b16 %v1197
    %v6971 = vunpack.c.l.b16 %v1198
    %v6972 = vunpack.c.h.b16 %v1198
    %v6973 = vunpack.c.l.b16 %v1199
    %v6974 = vunpack.c.h.b16 %v1199
    %v6975 = vunpack.c.l.b16 %v1200
    %v6976 = vunpack.c.h.b16 %v1200
    %v6977 = vunpack.c.l.b16 %v1201
    %v6978 = vunpack.c.h.b16 %v1201
    %v6979 = vunpack.c.l.b16 %v1202
    %v6980 = vunpack.c.h.b16 %v1202
    %v6981 = vunpack.c.l.b16 %v1203
    %v6982 = vunpack.c.h.b16 %v1203
    %v6983 = vunpack.c.l.b16 %v1204
    %v6984 = vunpack.c.h.b16 %v1204
    %v6985 = vunpack.c.l.b16 %v1205
    %v6986 = vunpack.c.h.b16 %v1205
    %v6987 = vunpack.c.l.b16 %v1206
    %v6988 = vunpack.c.h.b16 %v1206
    %v6989 = vunpack.c.l.b16 %v1207
    %v6990 = vunpack.c.h.b16 %v1207
    %v6991 = vunpack.c.l.b16 %v1208
    %v6992 = vunpack.c.h.b16 %v1208
    %v6993 = vunpack.c.l.b16 %v1209
    %v6994 = vunpack.c.h.b16 %v1209
    %v6995 = vunpack.c.l.b16 %v1210
    %v6996 = vunpack.c.h.b16 %v1210
    %v6997 = vunpack.c.l.b16 %v1211
    %v6998 = vunpack.c.h.b16 %v1211
    %v6999 = vunpack.c.l.b16 %v1212
    %v7000 = vunpack.c.h.b16 %v1212
    %v7001 = vunpack.c.l.b16 %v1213
    %v7002 = vunpack.c.h.b16 %v1213
    %v7003 = vunpack.c.l.b16 %v1214
    %v7004 = vunpack.c.h.b16 %v1214
    %v7005 = vunpack.c.l.b16 %v1215
    %v7006 = vunpack.c.h.b16 %v1215
    %v7007 = vunpack.c.l.b16 %v1216
    %v7008 = vunpack.c.h.b16 %v1216
    %v7009 = vunpack.c.l.b16 %v1217
    %v7010 = vunpack.c.h.b16 %v1217
    %v7011 = vunpack.c.l.b16 %v1218
    %v7012 = vunpack.c.h.b16 %v1218
    %v7013 = vunpack.c.l.b16 %v1219
    %v7014 = vunpack.c.h.b16 %v1219
    %v7015 = vunpack.c.l.b16 %v1220
    %v7016 = vunpack.c.h.b16 %v1220
    %v7017 = vunpack.c.l.b16 %v1221
    %v7018 = vunpack.c.h.b16 %v1221
    %v7019 = vunpack.c.l.b16 %v1222
    %v7020 = vunpack.c.h.b16 %v1222
    %v7021 = vunpack.c.l.b16 %v1223
    %v7022 = vunpack.c.h.b16 %v1223
    %v7023 = vunpack.c.l.b16 %v1224
    %v7024 = vunpack.c.h.b16 %v1224
    %v7025 = vunpack.c.l.b16 %v1225
    %v7026 = vunpack.c.h.b16 %v1225
    %v7027 = vunpack.c.l.b16 %v1226
    %v7028 = vunpack.c.h.b16 %v1226
    %v7029 = vunpack.c.l.b16 %v1227
    %v7030 = vunpack.c.h.b16 %v1227
    %v7031 = vunpack.c.l.b16 %v1228
    %v7032 = vunpack.c.h.b16 %v1228
    %v7033 = vunpack.c.l.b16 %v1229
    %v7034 = vunpack.c.h.b16 %v1229
    %v7035 = vunpack.c.l.b16 %v1230
    %v7036 = vunpack.c.h.b16 %v1230
    %v7037 = vunpack.c.l.b16 %v1231
    %v7038 = vunpack.c.h.b16 %v1231
    %v7039 = vunpack.c.l.b16 %v1232
    %v7040 = vunpack.c.h.b16 %v1232
    %v7041 = vunpack.c.l.b16 %v1233
    %v7042 = vunpack.c.h.b16 %v1233
    %v7043 = vunpack.c.l.b16 %v1234
    %v7044 = vunpack.c.h.b16 %v1234
    %v7045 = vunpack.c.l.b16 %v1235
    %v7046 = vunpack.c.h.b16 %v1235
    %v7047 = vunpack.c.l.b16 %v1236
    %v7048 = vunpack.c.h.b16 %v1236
    %v7049 = vunpack.c.l.b16 %v1237
    %v7050 = vunpack.c.h.b16 %v1237
    %v7051 = vunpack.c.l.b16 %v1238
    %v7052 = vunpack.c.h.b16 %v1238
    %v7053 = vunpack.c.l.b16 %v1239
    %v7054 = vunpack.c.h.b16 %v1239
    %v7055 = vunpack.c.l.b16 %v1240
    %v7056 = vunpack.c.h.b16 %v1240
    %v7057 = vunpack.c.l.b16 %v1241
    %v7058 = vunpack.c.h.b16 %v1241
    %v7059 = vunpack.c.l.b16 %v1242
    %v7060 = vunpack.c.h.b16 %v1242
    %v7061 = vunpack.c.l.b16 %v1243
    %v7062 = vunpack.c.h.b16 %v1243
    %v7063 = vunpack.c.l.b16 %v1244
    %v7064 = vunpack.c.h.b16 %v1244
    %v7065 = vunpack.c.l.b16 %v1245
    %v7066 = vunpack.c.h.b16 %v1245
    %v7067 = vunpack.c.l.b16 %v1246
    %v7068 = vunpack.c.h.b16 %v1246
    %v7069 = vunpack.c.l.b16 %v1247
    %v7070 = vunpack.c.h.b16 %v1247
    %v7071 = vunpack.c.l.b16 %v1248
    %v7072 = vunpack.c.h.b16 %v1248
    %v7073 = vunpack.c.l.b16 %v1249
    %v7074 = vunpack.c.h.b16 %v1249
    %v7075 = vunpack.c.l.b16 %v1250
    %v7076 = vunpack.c.h.b16 %v1250
    %v7077 = vunpack.c.l.b16 %v1251
    %v7078 = vunpack.c.h.b16 %v1251
    %v7079 = vunpack.c.l.b16 %v1252
    %v7080 = vunpack.c.h.b16 %v1252
    %v7081 = vunpack.c.l.b16 %v1253
    %v7082 = vunpack.c.h.b16 %v1253
    %v7083 = vunpack.c.l.b16 %v1254
    %v7084 = vunpack.c.h.b16 %v1254
    %v7085 = vunpack.c.l.b16 %v1255
    %v7086 = vunpack.c.h.b16 %v1255
    %v7087 = vunpack.c.l.b16 %v1256
    %v7088 = vunpack.c.h.b16 %v1256
    %v7089 = vunpack.c.l.b16 %v1257
    %v7090 = vunpack.c.h.b16 %v1257
    %v7091 = vunpack.c.l.b16 %v1258
    %v7092 = vunpack.c.h.b16 %v1258
    %v7093 = vunpack.c.l.b16 %v1259
    %v7094 = vunpack.c.h.b16 %v1259
    %v7095 = vunpack.c.l.b16 %v1260
    %v7096 = vunpack.c.h.b16 %v1260
    %v7097 = vunpack.c.l.b16 %v1261
    %v7098 = vunpack.c.h.b16 %v1261
    %v7099 = vunpack.c.l.b16 %v1262
    %v7100 = vunpack.c.h.b16 %v1262
    %v7101 = vunpack.c.l.b16 %v1263
    %v7102 = vunpack.c.h.b16 %v1263
    %v7103 = vunpack.c.l.b16 %v1264
    %v7104 = vunpack.c.h.b16 %v1264
    %v7105 = vunpack.c.l.b16 %v1265
    %v7106 = vunpack.c.h.b16 %v1265
    %v7107 = vunpack.c.l.b16 %v1266
    %v7108 = vunpack.c.h.b16 %v1266
    %v7109 = vunpack.c.l.b16 %v1267
    %v7110 = vunpack.c.h.b16 %v1267
    %v7111 = vunpack.c.l.b16 %v1268
    %v7112 = vunpack.c.h.b16 %v1268
    %v7113 = vunpack.c.l.b16 %v1269
    %v7114 = vunpack.c.h.b16 %v1269
    %v7115 = vunpack.c.l.b16 %v1270
    %v7116 = vunpack.c.h.b16 %v1270
    %v7117 = vunpack.c.l.b16 %v1271
    %v7118 = vunpack.c.h.b16 %v1271
    %v7119 = vunpack.c.l.b16 %v1272
    %v7120 = vunpack.c.h.b16 %v1272
    %v7121 = vunpack.c.l.b16 %v1273
    %v7122 = vunpack.c.h.b16 %v1273
    %v7123 = vunpack.c.l.b16 %v1274
    %v7124 = vunpack.c.h.b16 %v1274
    %v7125 = vunpack.c.l.b16 %v1275
    %v7126 = vunpack.c.h.b16 %v1275
    %v7127 = vunpack.c.l.b16 %v1276
    %v7128 = vunpack.c.h.b16 %v1276
    %v7129 = vunpack.c.l.b16 %v1277
    %v7130 = vunpack.c.h.b16 %v1277
    %v7131 = vunpack.c.l.b16 %v1278
    %v7132 = vunpack.c.h.b16 %v1278
    %v7133 = vunpack.c.l.b16 %v1279
    %v7134 = vunpack.c.h.b16 %v1279
    %v7135 = vunpack.c.l.b16 %v1280
    %v7136 = vunpack.c.h.b16 %v1280
    %v7137 = vunpack.c.l.b16 %v1281
    %v7138 = vunpack.c.h.b16 %v1281
    %v7139 = vunpack.c.l.b16 %v1282
    %v7140 = vunpack.c.h.b16 %v1282
    %v7141 = vunpack.c.l.b16 %v1283
    %v7142 = vunpack.c.h.b16 %v1283
    %v7143 = vunpack.c.l.b16 %v1284
    %v7144 = vunpack.c.h.b16 %v1284
    %v7145 = vunpack.c.l.b16 %v1285
    %v7146 = vunpack.c.h.b16 %v1285
    %v7147 = vunpack.c.l.b16 %v1286
    %v7148 = vunpack.c.h.b16 %v1286
    %v7149 = vunpack.c.l.b16 %v1287
    %v7150 = vunpack.c.h.b16 %v1287
    %v7151 = vunpack.c.l.b16 %v1288
    %v7152 = vunpack.c.h.b16 %v1288
    %v7153 = vunpack.c.l.b16 %v1289
    %v7154 = vunpack.c.h.b16 %v1289
    %v7155 = vunpack.c.l.b16 %v1290
    %v7156 = vunpack.c.h.b16 %v1290
    %v7157 = vunpack.c.l.b16 %v1291
    %v7158 = vunpack.c.h.b16 %v1291
    %v7159 = vunpack.c.l.b16 %v1292
    %v7160 = vunpack.c.h.b16 %v1292
    %v7161 = vpack.c.b16 %v5121, %v5113
    %v7162 = vpack.c.b16 %v5122, %v5114
    %v7163 = vpack.c.b16 %v5123, %v5115
    %v7164 = vpack.c.b16 %v5124, %v5116
    %v7165 = vpack.c.b16 %v5125, %v5117
    %v7166 = vpack.c.b16 %v5126, %v5118
    %v7167 = vpack.c.b16 %v5127, %v5119
    %v7168 = vpack.c.b16 %v5128, %v5120
    %v7169 = vpack.c.b16 %v5137, %v5129
    %v7170 = vpack.c.b16 %v5138, %v5130
    %v7171 = vpack.c.b16 %v5139, %v5131
    %v7172 = vpack.c.b16 %v5140, %v5132
    %v7173 = vpack.c.b16 %v5141, %v5133
    %v7174 = vpack.c.b16 %v5142, %v5134
    %v7175 = vpack.c.b16 %v5143, %v5135
    %v7176 = vpack.c.b16 %v5144, %v5136
    %v7177 = vpack.c.b16 %v5153, %v5145
    %v7178 = vpack.c.b16 %v5154, %v5146
    %v7179 = vpack.c.b16 %v5155, %v5147
    %v7180 = vpack.c.b16 %v5156, %v5148
    %v7181 = vpack.c.b16 %v5157, %v5149
    %v7182 = vpack.c.b16 %v5158, %v5150
    %v7183 = vpack.c.b16 %v5159, %v5151
    %v7184 = vpack.c.b16 %v5160, %v5152
    %v7185 = vpack.c.b16 %v5169, %v5161
    %v7186 = vpack.c.b16 %v5170, %v5162
    %v7187 = vpack.c.b16 %v5171, %v5163
    %v7188 = vpack.c.b16 %v5172, %v5164
    %v7189 = vpack.c.b16 %v5173, %v5165
    %v7190 = vpack.c.b16 %v5174, %v5166
    %v7191 = vpack.c.b16 %v5175, %v5167
    %v7192 = vpack.c.b16 %v5176, %v5168
    %v7193 = vpack.c.b16 %v5185, %v5177
    %v7194 = vpack.c.b16 %v5186, %v5178
    %v7195 = vpack.c.b16 %v5187, %v5179
    %v7196 = vpack.c.b16 %v5188, %v5180
    %v7197 = vpack.c.b16 %v5189, %v5181
    %v7198 = vpack.c.b16 %v5190, %v5182
    %v7199 = vpack.c.b16 %v5191, %v5183
    %v7200 = vpack.c.b16 %v5192, %v5184
    %v7201 = vpack.c.b16 %v5201, %v5193
    %v7202 = vpack.c.b16 %v5202, %v5194
    %v7203 = vpack.c.b16 %v5203, %v5195
    %v7204 = vpack.c.b16 %v5204, %v5196
    %v7205 = vpack.c.b16 %v5205, %v5197
    %v7206 = vpack.c.b16 %v5206, %v5198
    %v7207 = vpack.c.b16 %v5207, %v5199
    %v7208 = vpack.c.b16 %v5208, %v5200
    %v7209 = vpack.c.b16 %v5217, %v5209
    %v7210 = vpack.c.b16 %v5218, %v5210
    %v7211 = vpack.c.b16 %v5219, %v5211
    %v7212 = vpack.c.b16 %v5220, %v5212
    %v7213 = vpack.c.b16 %v5221, %v5213
    %v7214 = vpack.c.b16 %v5222, %v5214
    %v7215 = vpack.c.b16 %v5223, %v5215
    %v7216 = vpack.c.b16 %v5224, %v5216
    %v7217 = vpack.c.b16 %v5233, %v5225
    %v7218 = vpack.c.b16 %v5234, %v5226
    %v7219 = vpack.c.b16 %v5235, %v5227
    %v7220 = vpack.c.b16 %v5236, %v5228
    %v7221 = vpack.c.b16 %v5237, %v5229
    %v7222 = vpack.c.b16 %v5238, %v5230
    %v7223 = vpack.c.b16 %v5239, %v5231
    %v7224 = vpack.c.b16 %v5240, %v5232
    %v7225 = vpack.c.b16 %v5249, %v5241
    %v7226 = vpack.c.b16 %v5250, %v5242
    %v7227 = vpack.c.b16 %v5251, %v5243
    %v7228 = vpack.c.b16 %v5252, %v5244
    %v7229 = vpack.c.b16 %v5253, %v5245
    %v7230 = vpack.c.b16 %v5254, %v5246
    %v7231 = vpack.c.b16 %v5255, %v5247
    %v7232 = vpack.c.b16 %v5256, %v5248
    %v7233 = vpack.c.b16 %v5265, %v5257
    %v7234 = vpack.c.b16 %v5266, %v5258
    %v7235 = vpack.c.b16 %v5267, %v5259
    %v7236 = vpack.c.b16 %v5268, %v5260
    %v7237 = vpack.c.b16 %v5269, %v5261
    %v7238 = vpack.c.b16 %v5270, %v5262
    %v7239 = vpack.c.b16 %v5271, %v5263
    %v7240 = vpack.c.b16 %v5272, %v5264
    %v7241 = vpack.c.b16 %v5281, %v5273
    %v7242 = vpack.c.b16 %v5282, %v5274
    %v7243 = vpack.c.b16 %v5283, %v5275
    %v7244 = vpack.c.b16 %v5284, %v5276
    %v7245 = vpack.c.b16 %v5285, %v5277
    %v7246 = vpack.c.b16 %v5286, %v5278
    %v7247 = vpack.c.b16 %v5287, %v5279
    %v7248 = vpack.c.b16 %v5288, %v5280
    %v7249 = vpack.c.b16 %v5297, %v5289
    %v7250 = vpack.c.b16 %v5298, %v5290
    %v7251 = vpack.c.b16 %v5299, %v5291
    %v7252 = vpack.c.b16 %v5300, %v5292
    %v7253 = vpack.c.b16 %v5301, %v5293
    %v7254 = vpack.c.b16 %v5302, %v5294
    %v7255 = vpack.c.b16 %v5303, %v5295
    %v7256 = vpack.c.b16 %v5304, %v5296
    %v7257 = vpack.c.b16 %v5313, %v5305
    %v7258 = vpack.c.b16 %v5314, %v5306
    %v7259 = vpack.c.b16 %v5315, %v5307
    %v7260 = vpack.c.b16 %v5316, %v5308
    %v7261 = vpack.c.b16 %v5317, %v5309
    %v7262 = vpack.c.b16 %v5318, %v5310
    %v7263 = vpack.c.b16 %v5319, %v5311
    %v7264 = vpack.c.b16 %v5320, %v5312
    %v7265 = vpack.c.b16 %v5329, %v5321
    %v7266 = vpack.c.b16 %v5330, %v5322
    %v7267 = vpack.c.b16 %v5331, %v5323
    %v7268 = vpack.c.b16 %v5332, %v5324
    %v7269 = vpack.c.b16 %v5333, %v5325
    %v7270 = vpack.c.b16 %v5334, %v5326
    %v7271 = vpack.c.b16 %v5335, %v5327
    %v7272 = vpack.c.b16 %v5336, %v5328
    %v7273 = vpack.c.b16 %v5345, %v5337
    %v7274 = vpack.c.b16 %v5346, %v5338
    %v7275 = vpack.c.b16 %v5347, %v5339
    %v7276 = vpack.c.b16 %v5348, %v5340
    %v7277 = vpack.c.b16 %v5349, %v5341
    %v7278 = vpack.c.b16 %v5350, %v5342
    %v7279 = vpack.c.b16 %v5351, %v5343
    %v7280 = vpack.c.b16 %v5352, %v5344
    %v7281 = vpack.c.b16 %v5361, %v5353
    %v7282 = vpack.c.b16 %v5362, %v5354
    %v7283 = vpack.c.b16 %v5363, %v5355
    %v7284 = vpack.c.b16 %v5364, %v5356
    %v7285 = vpack.c.b16 %v5365, %v5357
    %v7286 = vpack.c.b16 %v5366, %v5358
    %v7287 = vpack.c.b16 %v5367, %v5359
    %v7288 = vpack.c.b16 %v5368, %v5360
    %v7289 = vpack.c.b16 %v5377, %v5369
    %v7290 = vpack.c.b16 %v5378, %v5370
    %v7291 = vpack.c.b16 %v5379, %v5371
    %v7292 = vpack.c.b16 %v5380, %v5372
    %v7293 = vpack.c.b16 %v5381, %v5373
    %v7294 = vpack.c.b16 %v5382, %v5374
    %v7295 = vpack.c.b16 %v5383, %v5375
    %v7296 = vpack.c.b16 %v5384, %v5376
    %v7297 = vpack.c.b16 %v5393, %v5385
    %v7298 = vpack.c.b16 %v5394, %v5386
    %v7299 = vpack.c.b16 %v5395, %v5387
    %v7300 = vpack.c.b16 %v5396, %v5388
    %v7301 = vpack.c.b16 %v5397, %v5389
    %v7302 = vpack.c.b16 %v5398, %v5390
    %v7303 = vpack.c.b16 %v5399, %v5391
    %v7304 = vpack.c.b16 %v5400, %v5392
    %v7305 = vpack.c.b16 %v5409, %v5401
    %v7306 = vpack.c.b16 %v5410, %v5402
    %v7307 = vpack.c.b16 %v5411, %v5403
    %v7308 = vpack.c.b16 %v5412, %v5404
    %v7309 = vpack.c.b16 %v5413, %v5405
    %v7310 = vpack.c.b16 %v5414, %v5406
    %v7311 = vpack.c.b16 %v5415, %v5407
    %v7312 = vpack.c.b16 %v5416, %v5408
    %v7313 = vpack.c.b16 %v5425, %v5417
    %v7314 = vpack.c.b16 %v5426, %v5418
    %v7315 = vpack.c.b16 %v5427, %v5419
    %v7316 = vpack.c.b16 %v5428, %v5420
    %v7317 = vpack.c.b16 %v5429, %v5421
    %v7318 = vpack.c.b16 %v5430, %v5422
    %v7319 = vpack.c.b16 %v5431, %v5423
    %v7320 = vpack.c.b16 %v5432, %v5424
    %v7321 = vpack.c.b16 %v5441, %v5433
    %v7322 = vpack.c.b16 %v5442, %v5434
    %v7323 = vpack.c.b16 %v5443, %v5435
    %v7324 = vpack.c.b16 %v5444, %v5436
    %v7325 = vpack.c.b16 %v5445, %v5437
    %v7326 = vpack.c.b16 %v5446, %v5438
    %v7327 = vpack.c.b16 %v5447, %v5439
    %v7328 = vpack.c.b16 %v5448, %v5440
    %v7329 = vpack.c.b16 %v5457, %v5449
    %v7330 = vpack.c.b16 %v5458, %v5450
    %v7331 = vpack.c.b16 %v5459, %v5451
    %v7332 = vpack.c.b16 %v5460, %v5452
    %v7333 = vpack.c.b16 %v5461, %v5453
    %v7334 = vpack.c.b16 %v5462, %v5454
    %v7335 = vpack.c.b16 %v5463, %v5455
    %v7336 = vpack.c.b16 %v5464, %v5456
    %v7337 = vpack.c.b16 %v5473, %v5465
    %v7338 = vpack.c.b16 %v5474, %v5466
    %v7339 = vpack.c.b16 %v5475, %v5467
    %v7340 = vpack.c.b16 %v5476, %v5468
    %v7341 = vpack.c.b16 %v5477, %v5469
    %v7342 = vpack.c.b16 %v5478, %v5470
    %v7343 = vpack.c.b16 %v5479, %v5471
    %v7344 = vpack.c.b16 %v5480, %v5472
    %v7345 = vpack.c.b16 %v5489, %v5481
    %v7346 = vpack.c.b16 %v5490, %v5482
    %v7347 = vpack.c.b16 %v5491, %v5483
    %v7348 = vpack.c.b16 %v5492, %v5484
    %v7349 = vpack.c.b16 %v5493, %v5485
    %v7350 = vpack.c.b16 %v5494, %v5486
    %v7351 = vpack.c.b16 %v5495, %v5487
    %v7352 = vpack.c.b16 %v5496, %v5488
    %v7353 = vpack.c.b16 %v5505, %v5497
    %v7354 = vpack.c.b16 %v5506, %v5498
    %v7355 = vpack.c.b16 %v5507, %v5499
    %v7356 = vpack.c.b16 %v5508, %v5500
    %v7357 = vpack.c.b16 %v5509, %v5501
    %v7358 = vpack.c.b16 %v5510, %v5502
    %v7359 = vpack.c.b16 %v5511, %v5503
    %v7360 = vpack.c.b16 %v5512, %v5504
    %v7361 = vpack.c.b16 %v5521, %v5513
    %v7362 = vpack.c.b16 %v5522, %v5514
    %v7363 = vpack.c.b16 %v5523, %v5515
    %v7364 = vpack.c.b16 %v5524, %v5516
    %v7365 = vpack.c.b16 %v5525, %v5517
    %v7366 = vpack.c.b16 %v5526, %v5518
    %v7367 = vpack.c.b16 %v5527, %v5519
    %v7368 = vpack.c.b16 %v5528, %v5520
    %v7369 = vpack.c.b16 %v5537, %v5529
    %v7370 = vpack.c.b16 %v5538, %v5530
    %v7371 = vpack.c.b16 %v5539, %v5531
    %v7372 = vpack.c.b16 %v5540, %v5532
    %v7373 = vpack.c.b16 %v5541, %v5533
    %v7374 = vpack.c.b16 %v5542, %v5534
    %v7375 = vpack.c.b16 %v5543, %v5535
    %v7376 = vpack.c.b16 %v5544, %v5536
    %v7377 = vpack.c.b16 %v5553, %v5545
    %v7378 = vpack.c.b16 %v5554, %v5546
    %v7379 = vpack.c.b16 %v5555, %v5547
    %v7380 = vpack.c.b16 %v5556, %v5548
    %v7381 = vpack.c.b16 %v5557, %v5549
    %v7382 = vpack.c.b16 %v5558, %v5550
    %v7383 = vpack.c.b16 %v5559, %v5551
    %v7384 = vpack.c.b16 %v5560, %v5552
    %v7385 = vpack.c.b16 %v5569, %v5561
    %v7386 = vpack.c.b16 %v5570, %v5562
    %v7387 = vpack.c.b16 %v5571, %v5563
    %v7388 = vpack.c.b16 %v5572, %v5564
    %v7389 = vpack.c.b16 %v5573, %v5565
    %v7390 = vpack.c.b16 %v5574, %v5566
    %v7391 = vpack.c.b16 %v5575, %v5567
    %v7392 = vpack.c.b16 %v5576, %v5568
    %v7393 = vpack.c.b16 %v5585, %v5577
    %v7394 = vpack.c.b16 %v5586, %v5578
    %v7395 = vpack.c.b16 %v5587, %v5579
    %v7396 = vpack.c.b16 %v5588, %v5580
    %v7397 = vpack.c.b16 %v5589, %v5581
    %v7398 = vpack.c.b16 %v5590, %v5582
    %v7399 = vpack.c.b16 %v5591, %v5583
    %v7400 = vpack.c.b16 %v5592, %v5584
    %v7401 = vpack.c.b16 %v5601, %v5593
    %v7402 = vpack.c.b16 %v5602, %v5594
    %v7403 = vpack.c.b16 %v5603, %v5595
    %v7404 = vpack.c.b16 %v5604, %v5596
    %v7405 = vpack.c.b16 %v5605, %v5597
    %v7406 = vpack.c.b16 %v5606, %v5598
    %v7407 = vpack.c.b16 %v5607, %v5599
    %v7408 = vpack.c.b16 %v5608, %v5600
    %v7409 = vpack.c.b16 %v5617, %v5609
    %v7410 = vpack.c.b16 %v5618, %v5610
    %v7411 = vpack.c.b16 %v5619, %v5611
    %v7412 = vpack.c.b16 %v5620, %v5612
    %v7413 = vpack.c.b16 %v5621, %v5613
    %v7414 = vpack.c.b16 %v5622, %v5614
    %v7415 = vpack.c.b16 %v5623, %v5615
    %v7416 = vpack.c.b16 %v5624, %v5616
    %v7417 = vpack.c.b16 %v5633, %v5625
    %v7418 = vpack.c.b16 %v5634, %v5626
    %v7419 = vpack.c.b16 %v5635, %v5627
    %v7420 = vpack.c.b16 %v5636, %v5628
    %v7421 = vpack.c.b16 %v5637, %v5629
    %v7422 = vpack.c.b16 %v5638, %v5630
    %v7423 = vpack.c.b16 %v5639, %v5631
    %v7424 = vpack.c.b16 %v5640, %v5632
    %v7425 = vpack.c.b16 %v5649, %v5641
    %v7426 = vpack.c.b16 %v5650, %v5642
    %v7427 = vpack.c.b16 %v5651, %v5643
    %v7428 = vpack.c.b16 %v5652, %v5644
    %v7429 = vpack.c.b16 %v5653, %v5645
    %v7430 = vpack.c.b16 %v5654, %v5646
    %v7431 = vpack.c.b16 %v5655, %v5647
    %v7432 = vpack.c.b16 %v5656, %v5648
    %v7433 = vpack.c.b16 %v5665, %v5657
    %v7434 = vpack.c.b16 %v5666, %v5658
    %v7435 = vpack.c.b16 %v5667, %v5659
    %v7436 = vpack.c.b16 %v5668, %v5660
    %v7437 = vpack.c.b16 %v5669, %v5661
    %v7438 = vpack.c.b16 %v5670, %v5662
    %v7439 = vpack.c.b16 %v5671, %v5663
    %v7440 = vpack.c.b16 %v5672, %v5664
    %v7441 = vpack.c.b16 %v5681, %v5673
    %v7442 = vpack.c.b16 %v5682, %v5674
    %v7443 = vpack.c.b16 %v5683, %v5675
    %v7444 = vpack.c.b16 %v5684, %v5676
    %v7445 = vpack.c.b16 %v5685, %v5677
    %v7446 = vpack.c.b16 %v5686, %v5678
    %v7447 = vpack.c.b16 %v5687, %v5679
    %v7448 = vpack.c.b16 %v5688, %v5680
    %v7449 = vpack.c.b16 %v5697, %v5689
    %v7450 = vpack.c.b16 %v5698, %v5690
    %v7451 = vpack.c.b16 %v5699, %v5691
    %v7452 = vpack.c.b16 %v5700, %v5692
    %v7453 = vpack.c.b16 %v5701, %v5693
    %v7454 = vpack.c.b16 %v5702, %v5694
    %v7455 = vpack.c.b16 %v5703, %v5695
    %v7456 = vpack.c.b16 %v5704, %v5696
    %v7457 = vpack.c.b16 %v5713, %v5705
    %v7458 = vpack.c.b16 %v5714, %v5706
    %v7459 = vpack.c.b16 %v5715, %v5707
    %v7460 = vpack.c.b16 %v5716, %v5708
    %v7461 = vpack.c.b16 %v5717, %v5709
    %v7462 = vpack.c.b16 %v5718, %v5710
    %v7463 = vpack.c.b16 %v5719, %v5711
    %v7464 = vpack.c.b16 %v5720, %v5712
    %v7465 = vpack.c.b16 %v5729, %v5721
    %v7466 = vpack.c.b16 %v5730, %v5722
    %v7467 = vpack.c.b16 %v5731, %v5723
    %v7468 = vpack.c.b16 %v5732, %v5724
    %v7469 = vpack.c.b16 %v5733, %v5725
    %v7470 = vpack.c.b16 %v5734, %v5726
    %v7471 = vpack.c.b16 %v5735, %v5727
    %v7472 = vpack.c.b16 %v5736, %v5728
    %v7473 = vpack.c.b16 %v5745, %v5737
    %v7474 = vpack.c.b16 %v5746, %v5738
    %v7475 = vpack.c.b16 %v5747, %v5739
    %v7476 = vpack.c.b16 %v5748, %v5740
    %v7477 = vpack.c.b16 %v5749, %v5741
    %v7478 = vpack.c.b16 %v5750, %v5742
    %v7479 = vpack.c.b16 %v5751, %v5743
    %v7480 = vpack.c.b16 %v5752, %v5744
    %v7481 = vpack.c.b16 %v5761, %v5753
    %v7482 = vpack.c.b16 %v5762, %v5754
    %v7483 = vpack.c.b16 %v5763, %v5755
    %v7484 = vpack.c.b16 %v5764, %v5756
    %v7485 = vpack.c.b16 %v5765, %v5757
    %v7486 = vpack.c.b16 %v5766, %v5758
    %v7487 = vpack.c.b16 %v5767, %v5759
    %v7488 = vpack.c.b16 %v5768, %v5760
    %v7489 = vpack.c.b16 %v5777, %v5769
    %v7490 = vpack.c.b16 %v5778, %v5770
    %v7491 = vpack.c.b16 %v5779, %v5771
    %v7492 = vpack.c.b16 %v5780, %v5772
    %v7493 = vpack.c.b16 %v5781, %v5773
    %v7494 = vpack.c.b16 %v5782, %v5774
    %v7495 = vpack.c.b16 %v5783, %v5775
    %v7496 = vpack.c.b16 %v5784, %v5776
    %v7497 = vpack.c.b16 %v5793, %v5785
    %v7498 = vpack.c.b16 %v5794, %v5786
    %v7499 = vpack.c.b16 %v5795, %v5787
    %v7500 = vpack.c.b16 %v5796, %v5788
    %v7501 = vpack.c.b16 %v5797, %v5789
    %v7502 = vpack.c.b16 %v5798, %v5790
    %v7503 = vpack.c.b16 %v5799, %v5791
    %v7504 = vpack.c.b16 %v5800, %v5792
    %v7505 = vpack.c.b16 %v5809, %v5801
    %v7506 = vpack.c.b16 %v5810, %v5802
    %v7507 = vpack.c.b16 %v5811, %v5803
    %v7508 = vpack.c.b16 %v5812, %v5804
    %v7509 = vpack.c.b16 %v5813, %v5805
    %v7510 = vpack.c.b16 %v5814, %v5806
    %v7511 = vpack.c.b16 %v5815, %v5807
    %v7512 = vpack.c.b16 %v5816, %v5808
    %v7513 = vpack.c.b16 %v5825, %v5817
    %v7514 = vpack.c.b16 %v5826, %v5818
    %v7515 = vpack.c.b16 %v5827, %v5819
    %v7516 = vpack.c.b16 %v5828, %v5820
    %v7517 = vpack.c.b16 %v5829, %v5821
    %v7518 = vpack.c.b16 %v5830, %v5822
    %v7519 = vpack.c.b16 %v5831, %v5823
    %v7520 = vpack.c.b16 %v5832, %v5824
    %v7521 = vpack.c.b16 %v5841, %v5833
    %v7522 = vpack.c.b16 %v5842, %v5834
    %v7523 = vpack.c.b16 %v5843, %v5835
    %v7524 = vpack.c.b16 %v5844, %v5836
    %v7525 = vpack.c.b16 %v5845, %v5837
    %v7526 = vpack.c.b16 %v5846, %v5838
    %v7527 = vpack.c.b16 %v5847, %v5839
    %v7528 = vpack.c.b16 %v5848, %v5840
    %v7529 = vpack.c.b16 %v5857, %v5849
    %v7530 = vpack.c.b16 %v5858, %v5850
    %v7531 = vpack.c.b16 %v5859, %v5851
    %v7532 = vpack.c.b16 %v5860, %v5852
    %v7533 = vpack.c.b16 %v5861, %v5853
    %v7534 = vpack.c.b16 %v5862, %v5854
    %v7535 = vpack.c.b16 %v5863, %v5855
    %v7536 = vpack.c.b16 %v5864, %v5856
    %v7537 = vpack.c.b16 %v5873, %v5865
    %v7538 = vpack.c.b16 %v5874, %v5866
    %v7539 = vpack.c.b16 %v5875, %v5867
    %v7540 = vpack.c.b16 %v5876, %v5868
    %v7541 = vpack.c.b16 %v5877, %v5869
    %v7542 = vpack.c.b16 %v5878, %v5870
    %v7543 = vpack.c.b16 %v5879, %v5871
    %v7544 = vpack.c.b16 %v5880, %v5872
    %v7545 = vpack.c.b16 %v5889, %v5881
    %v7546 = vpack.c.b16 %v5890, %v5882
    %v7547 = vpack.c.b16 %v5891, %v5883
    %v7548 = vpack.c.b16 %v5892, %v5884
    %v7549 = vpack.c.b16 %v5893, %v5885
    %v7550 = vpack.c.b16 %v5894, %v5886
    %v7551 = vpack.c.b16 %v5895, %v5887
    %v7552 = vpack.c.b16 %v5896, %v5888
    %v7553 = vpack.c.b16 %v5905, %v5897
    %v7554 = vpack.c.b16 %v5906, %v5898
    %v7555 = vpack.c.b16 %v5907, %v5899
    %v7556 = vpack.c.b16 %v5908, %v5900
    %v7557 = vpack.c.b16 %v5909, %v5901
    %v7558 = vpack.c.b16 %v5910, %v5902
    %v7559 = vpack.c.b16 %v5911, %v5903
    %v7560 = vpack.c.b16 %v5912, %v5904
    %v7561 = vpack.c.b16 %v5921, %v5913
    %v7562 = vpack.c.b16 %v5922, %v5914
    %v7563 = vpack.c.b16 %v5923, %v5915
    %v7564 = vpack.c.b16 %v5924, %v5916
    %v7565 = vpack.c.b16 %v5925, %v5917
    %v7566 = vpack.c.b16 %v5926, %v5918
    %v7567 = vpack.c.b16 %v5927, %v5919
    %v7568 = vpack.c.b16 %v5928, %v5920
    %v7569 = vpack.c.b16 %v5937, %v5929
    %v7570 = vpack.c.b16 %v5938, %v5930
    %v7571 = vpack.c.b16 %v5939, %v5931
    %v7572 = vpack.c.b16 %v5940, %v5932
    %v7573 = vpack.c.b16 %v5941, %v5933
    %v7574 = vpack.c.b16 %v5942, %v5934
    %v7575 = vpack.c.b16 %v5943, %v5935
    %v7576 = vpack.c.b16 %v5944, %v5936
    %v7577 = vpack.c.b16 %v5953, %v5945
    %v7578 = vpack.c.b16 %v5954, %v5946
    %v7579 = vpack.c.b16 %v5955, %v5947
    %v7580 = vpack.c.b16 %v5956, %v5948
    %v7581 = vpack.c.b16 %v5957, %v5949
    %v7582 = vpack.c.b16 %v5958, %v5950
    %v7583 = vpack.c.b16 %v5959, %v5951
    %v7584 = vpack.c.b16 %v5960, %v5952
    %v7585 = vpack.c.b16 %v5969, %v5961
    %v7586 = vpack.c.b16 %v5970, %v5962
    %v7587 = vpack.c.b16 %v5971, %v5963
    %v7588 = vpack.c.b16 %v5972, %v5964
    %v7589 = vpack.c.b16 %v5973, %v5965
    %v7590 = vpack.c.b16 %v5974, %v5966
    %v7591 = vpack.c.b16 %v5975, %v5967
    %v7592 = vpack.c.b16 %v5976, %v5968
    %v7593 = vpack.c.b16 %v5985, %v5977
    %v7594 = vpack.c.b16 %v5986, %v5978
    %v7595 = vpack.c.b16 %v5987, %v5979
    %v7596 = vpack.c.b16 %v5988, %v5980
    %v7597 = vpack.c.b16 %v5989, %v5981
    %v7598 = vpack.c.b16 %v5990, %v5982
    %v7599 = vpack.c.b16 %v5991, %v5983
    %v7600 = vpack.c.b16 %v5992, %v5984
    %v7601 = vpack.c.b16 %v6001, %v5993
    %v7602 = vpack.c.b16 %v6002, %v5994
    %v7603 = vpack.c.b16 %v6003, %v5995
    %v7604 = vpack.c.b16 %v6004, %v5996
    %v7605 = vpack.c.b16 %v6005, %v5997
    %v7606 = vpack.c.b16 %v6006, %v5998
    %v7607 = vpack.c.b16 %v6007, %v5999
    %v7608 = vpack.c.b16 %v6008, %v6000
    %v7609 = vpack.c.b16 %v6017, %v6009
    %v7610 = vpack.c.b16 %v6018, %v6010
    %v7611 = vpack.c.b16 %v6019, %v6011
    %v7612 = vpack.c.b16 %v6020, %v6012
    %v7613 = vpack.c.b16 %v6021, %v6013
    %v7614 = vpack.c.b16 %v6022, %v6014
    %v7615 = vpack.c.b16 %v6023, %v6015
    %v7616 = vpack.c.b16 %v6024, %v6016
    %v7617 = vpack.c.b16 %v6033, %v6025
    %v7618 = vpack.c.b16 %v6034, %v6026
    %v7619 = vpack.c.b16 %v6035, %v6027
    %v7620 = vpack.c.b16 %v6036, %v6028
    %v7621 = vpack.c.b16 %v6037, %v6029
    %v7622 = vpack.c.b16 %v6038, %v6030
    %v7623 = vpack.c.b16 %v6039, %v6031
    %v7624 = vpack.c.b16 %v6040, %v6032
    %v7625 = vpack.c.b16 %v6049, %v6041
    %v7626 = vpack.c.b16 %v6050, %v6042
    %v7627 = vpack.c.b16 %v6051, %v6043
    %v7628 = vpack.c.b16 %v6052, %v6044
    %v7629 = vpack.c.b16 %v6053, %v6045
    %v7630 = vpack.c.b16 %v6054, %v6046
    %v7631 = vpack.c.b16 %v6055, %v6047
    %v7632 = vpack.c.b16 %v6056, %v6048
    %v7633 = vpack.c.b16 %v6065, %v6057
    %v7634 = vpack.c.b16 %v6066, %v6058
    %v7635 = vpack.c.b16 %v6067, %v6059
    %v7636 = vpack.c.b16 %v6068, %v6060
    %v7637 = vpack.c.b16 %v6069, %v6061
    %v7638 = vpack.c.b16 %v6070, %v6062
    %v7639 = vpack.c.b16 %v6071, %v6063
    %v7640 = vpack.c.b16 %v6072, %v6064
    %v7641 = vpack.c.b16 %v6081, %v6073
    %v7642 = vpack.c.b16 %v6082, %v6074
    %v7643 = vpack.c.b16 %v6083, %v6075
    %v7644 = vpack.c.b16 %v6084, %v6076
    %v7645 = vpack.c.b16 %v6085, %v6077
    %v7646 = vpack.c.b16 %v6086, %v6078
    %v7647 = vpack.c.b16 %v6087, %v6079
    %v7648 = vpack.c.b16 %v6088, %v6080
    %v7649 = vpack.c.b16 %v6097, %v6089
    %v7650 = vpack.c.b16 %v6098, %v6090
    %v7651 = vpack.c.b16 %v6099, %v6091
    %v7652 = vpack.c.b16 %v6100, %v6092
    %v7653 = vpack.c.b16 %v6101, %v6093
    %v7654 = vpack.c.b16 %v6102, %v6094
    %v7655 = vpack.c.b16 %v6103, %v6095
    %v7656 = vpack.c.b16 %v6104, %v6096
    %v7657 = vpack.c.b16 %v6113, %v6105
    %v7658 = vpack.c.b16 %v6114, %v6106
    %v7659 = vpack.c.b16 %v6115, %v6107
    %v7660 = vpack.c.b16 %v6116, %v6108
    %v7661 = vpack.c.b16 %v6117, %v6109
    %v7662 = vpack.c.b16 %v6118, %v6110
    %v7663 = vpack.c.b16 %v6119, %v6111
    %v7664 = vpack.c.b16 %v6120, %v6112
    %v7665 = vpack.c.b16 %v6129, %v6121
    %v7666 = vpack.c.b16 %v6130, %v6122
    %v7667 = vpack.c.b16 %v6131, %v6123
    %v7668 = vpack.c.b16 %v6132, %v6124
    %v7669 = vpack.c.b16 %v6133, %v6125
    %v7670 = vpack.c.b16 %v6134, %v6126
    %v7671 = vpack.c.b16 %v6135, %v6127
    %v7672 = vpack.c.b16 %v6136, %v6128
    %v7673 = vpack.c.b16 %v6145, %v6137
    %v7674 = vpack.c.b16 %v6146, %v6138
    %v7675 = vpack.c.b16 %v6147, %v6139
    %v7676 = vpack.c.b16 %v6148, %v6140
    %v7677 = vpack.c.b16 %v6149, %v6141
    %v7678 = vpack.c.b16 %v6150, %v6142
    %v7679 = vpack.c.b16 %v6151, %v6143
    %v7680 = vpack.c.b16 %v6152, %v6144
    %v7681 = vpack.c.b16 %v6161, %v6153
    %v7682 = vpack.c.b16 %v6162, %v6154
    %v7683 = vpack.c.b16 %v6163, %v6155
    %v7684 = vpack.c.b16 %v6164, %v6156
    %v7685 = vpack.c.b16 %v6165, %v6157
    %v7686 = vpack.c.b16 %v6166, %v6158
    %v7687 = vpack.c.b16 %v6167, %v6159
    %v7688 = vpack.c.b16 %v6168, %v6160
    %v7689 = vpack.c.b16 %v6177, %v6169
    %v7690 = vpack.c.b16 %v6178, %v6170
    %v7691 = vpack.c.b16 %v6179, %v6171
    %v7692 = vpack.c.b16 %v6180, %v6172
    %v7693 = vpack.c.b16 %v6181, %v6173
    %v7694 = vpack.c.b16 %v6182, %v6174
    %v7695 = vpack.c.b16 %v6183, %v6175
    %v7696 = vpack.c.b16 %v6184, %v6176
    %v7697 = vpack.c.b16 %v6193, %v6185
    %v7698 = vpack.c.b16 %v6194, %v6186
    %v7699 = vpack.c.b16 %v6195, %v6187
    %v7700 = vpack.c.b16 %v6196, %v6188
    %v7701 = vpack.c.b16 %v6197, %v6189
    %v7702 = vpack.c.b16 %v6198, %v6190
    %v7703 = vpack.c.b16 %v6199, %v6191
    %v7704 = vpack.c.b16 %v6200, %v6192
    %v7705 = vpack.c.b16 %v6209, %v6201
    %v7706 = vpack.c.b16 %v6210, %v6202
    %v7707 = vpack.c.b16 %v6211, %v6203
    %v7708 = vpack.c.b16 %v6212, %v6204
    %v7709 = vpack.c.b16 %v6213, %v6205
    %v7710 = vpack.c.b16 %v6214, %v6206
    %v7711 = vpack.c.b16 %v6215, %v6207
    %v7712 = vpack.c.b16 %v6216, %v6208
    %v7713 = vpack.c.b16 %v6225, %v6217
    %v7714 = vpack.c.b16 %v6226, %v6218
    %v7715 = vpack.c.b16 %v6227, %v6219
    %v7716 = vpack.c.b16 %v6228, %v6220
    %v7717 = vpack.c.b16 %v6229, %v6221
    %v7718 = vpack.c.b16 %v6230, %v6222
    %v7719 = vpack.c.b16 %v6231, %v6223
    %v7720 = vpack.c.b16 %v6232, %v6224
    %v7721 = vpack.c.b16 %v6241, %v6233
    %v7722 = vpack.c.b16 %v6242, %v6234
    %v7723 = vpack.c.b16 %v6243, %v6235
    %v7724 = vpack.c.b16 %v6244, %v6236
    %v7725 = vpack.c.b16 %v6245, %v6237
    %v7726 = vpack.c.b16 %v6246, %v6238
    %v7727 = vpack.c.b16 %v6247, %v6239
    %v7728 = vpack.c.b16 %v6248, %v6240
    %v7729 = vpack.c.b16 %v6257, %v6249
    %v7730 = vpack.c.b16 %v6258, %v6250
    %v7731 = vpack.c.b16 %v6259, %v6251
    %v7732 = vpack.c.b16 %v6260, %v6252
    %v7733 = vpack.c.b16 %v6261, %v6253
    %v7734 = vpack.c.b16 %v6262, %v6254
    %v7735 = vpack.c.b16 %v6263, %v6255
    %v7736 = vpack.c.b16 %v6264, %v6256
    %v7737 = vpack.c.b16 %v6273, %v6265
    %v7738 = vpack.c.b16 %v6274, %v6266
    %v7739 = vpack.c.b16 %v6275, %v6267
    %v7740 = vpack.c.b16 %v6276, %v6268
    %v7741 = vpack.c.b16 %v6277, %v6269
    %v7742 = vpack.c.b16 %v6278, %v6270
    %v7743 = vpack.c.b16 %v6279, %v6271
    %v7744 = vpack.c.b16 %v6280, %v6272
    %v7745 = vpack.c.b16 %v6289, %v6281
    %v7746 = vpack.c.b16 %v6290, %v6282
    %v7747 = vpack.c.b16 %v6291, %v6283
    %v7748 = vpack.c.b16 %v6292, %v6284
    %v7749 = vpack.c.b16 %v6293, %v6285
    %v7750 = vpack.c.b16 %v6294, %v6286
    %v7751 = vpack.c.b16 %v6295, %v6287
    %v7752 = vpack.c.b16 %v6296, %v6288
    %v7753 = vpack.c.b16 %v6305, %v6297
    %v7754 = vpack.c.b16 %v6306, %v6298
    %v7755 = vpack.c.b16 %v6307, %v6299
    %v7756 = vpack.c.b16 %v6308, %v6300
    %v7757 = vpack.c.b16 %v6309, %v6301
    %v7758 = vpack.c.b16 %v6310, %v6302
    %v7759 = vpack.c.b16 %v6311, %v6303
    %v7760 = vpack.c.b16 %v6312, %v6304
    %v7761 = vpack.c.b16 %v6321, %v6313
    %v7762 = vpack.c.b16 %v6322, %v6314
    %v7763 = vpack.c.b16 %v6323, %v6315
    %v7764 = vpack.c.b16 %v6324, %v6316
    %v7765 = vpack.c.b16 %v6325, %v6317
    %v7766 = vpack.c.b16 %v6326, %v6318
    %v7767 = vpack.c.b16 %v6327, %v6319
    %v7768 = vpack.c.b16 %v6328, %v6320
    %v7769 = vpack.c.b16 %v6337, %v6329
    %v7770 = vpack.c.b16 %v6338, %v6330
    %v7771 = vpack.c.b16 %v6339, %v6331
    %v7772 = vpack.c.b16 %v6340, %v6332
    %v7773 = vpack.c.b16 %v6341, %v6333
    %v7774 = vpack.c.b16 %v6342, %v6334
    %v7775 = vpack.c.b16 %v6343, %v6335
    %v7776 = vpack.c.b16 %v6344, %v6336
    %v7777 = vpack.c.b16 %v6353, %v6345
    %v7778 = vpack.c.b16 %v6354, %v6346
    %v7779 = vpack.c.b16 %v6355, %v6347
    %v7780 = vpack.c.b16 %v6356, %v6348
    %v7781 = vpack.c.b16 %v6357, %v6349
    %v7782 = vpack.c.b16 %v6358, %v6350
    %v7783 = vpack.c.b16 %v6359, %v6351
    %v7784 = vpack.c.b16 %v6360, %v6352
    %v7785 = vpack.c.b16 %v6369, %v6361
    %v7786 = vpack.c.b16 %v6370, %v6362
    %v7787 = vpack.c.b16 %v6371, %v6363
    %v7788 = vpack.c.b16 %v6372, %v6364
    %v7789 = vpack.c.b16 %v6373, %v6365
    %v7790 = vpack.c.b16 %v6374, %v6366
    %v7791 = vpack.c.b16 %v6375, %v6367
    %v7792 = vpack.c.b16 %v6376, %v6368
    %v7793 = vpack.c.b16 %v6385, %v6377
    %v7794 = vpack.c.b16 %v6386, %v6378
    %v7795 = vpack.c.b16 %v6387, %v6379
    %v7796 = vpack.c.b16 %v6388, %v6380
    %v7797 = vpack.c.b16 %v6389, %v6381
    %v7798 = vpack.c.b16 %v6390, %v6382
    %v7799 = vpack.c.b16 %v6391, %v6383
    %v7800 = vpack.c.b16 %v6392, %v6384
    %v7801 = vpack.c.b16 %v6401, %v6393
    %v7802 = vpack.c.b16 %v6402, %v6394
    %v7803 = vpack.c.b16 %v6403, %v6395
    %v7804 = vpack.c.b16 %v6404, %v6396
    %v7805 = vpack.c.b16 %v6405, %v6397
    %v7806 = vpack.c.b16 %v6406, %v6398
    %v7807 = vpack.c.b16 %v6407, %v6399
    %v7808 = vpack.c.b16 %v6408, %v6400
    %v7809 = vpack.c.b16 %v6417, %v6409
    %v7810 = vpack.c.b16 %v6418, %v6410
    %v7811 = vpack.c.b16 %v6419, %v6411
    %v7812 = vpack.c.b16 %v6420, %v6412
    %v7813 = vpack.c.b16 %v6421, %v6413
    %v7814 = vpack.c.b16 %v6422, %v6414
    %v7815 = vpack.c.b16 %v6423, %v6415
    %v7816 = vpack.c.b16 %v6424, %v6416
    %v7817 = vpack.c.b16 %v6433, %v6425
    %v7818 = vpack.c.b16 %v6434, %v6426
    %v7819 = vpack.c.b16 %v6435, %v6427
    %v7820 = vpack.c.b16 %v6436, %v6428
    %v7821 = vpack.c.b16 %v6437, %v6429
    %v7822 = vpack.c.b16 %v6438, %v6430
    %v7823 = vpack.c.b16 %v6439, %v6431
    %v7824 = vpack.c.b16 %v6440, %v6432
    %v7825 = vpack.c.b16 %v6449, %v6441
    %v7826 = vpack.c.b16 %v6450, %v6442
    %v7827 = vpack.c.b16 %v6451, %v6443
    %v7828 = vpack.c.b16 %v6452, %v6444
    %v7829 = vpack.c.b16 %v6453, %v6445
    %v7830 = vpack.c.b16 %v6454, %v6446
    %v7831 = vpack.c.b16 %v6455, %v6447
    %v7832 = vpack.c.b16 %v6456, %v6448
    %v7833 = vpack.c.b16 %v6465, %v6457
    %v7834 = vpack.c.b16 %v6466, %v6458
    %v7835 = vpack.c.b16 %v6467, %v6459
    %v7836 = vpack.c.b16 %v6468, %v6460
    %v7837 = vpack.c.b16 %v6469, %v6461
    %v7838 = vpack.c.b16 %v6470, %v6462
    %v7839 = vpack.c.b16 %v6471, %v6463
    %v7840 = vpack.c.b16 %v6472, %v6464
    %v7841 = vpack.c.b16 %v6481, %v6473
    %v7842 = vpack.c.b16 %v6482, %v6474
    %v7843 = vpack.c.b16 %v6483, %v6475
    %v7844 = vpack.c.b16 %v6484, %v6476
    %v7845 = vpack.c.b16 %v6485, %v6477
    %v7846 = vpack.c.b16 %v6486, %v6478
    %v7847 = vpack.c.b16 %v6487, %v6479
    %v7848 = vpack.c.b16 %v6488, %v6480
    %v7849 = vpack.c.b16 %v6497, %v6489
    %v7850 = vpack.c.b16 %v6498, %v6490
    %v7851 = vpack.c.b16 %v6499, %v6491
    %v7852 = vpack.c.b16 %v6500, %v6492
    %v7853 = vpack.c.b16 %v6501, %v6493
    %v7854 = vpack.c.b16 %v6502, %v6494
    %v7855 = vpack.c.b16 %v6503, %v6495
    %v7856 = vpack.c.b16 %v6504, %v6496
    %v7857 = vpack.c.b16 %v6513, %v6505
    %v7858 = vpack.c.b16 %v6514, %v6506
    %v7859 = vpack.c.b16 %v6515, %v6507
    %v7860 = vpack.c.b16 %v6516, %v6508
    %v7861 = vpack.c.b16 %v6517, %v6509
    %v7862 = vpack.c.b16 %v6518, %v6510
    %v7863 = vpack.c.b16 %v6519, %v6511
    %v7864 = vpack.c.b16 %v6520, %v6512
    %v7865 = vpack.c.b16 %v6529, %v6521
    %v7866 = vpack.c.b16 %v6530, %v6522
    %v7867 = vpack.c.b16 %v6531, %v6523
    %v7868 = vpack.c.b16 %v6532, %v6524
    %v7869 = vpack.c.b16 %v6533, %v6525
    %v7870 = vpack.c.b16 %v6534, %v6526
    %v7871 = vpack.c.b16 %v6535, %v6527
    %v7872 = vpack.c.b16 %v6536, %v6528
    %v7873 = vpack.c.b16 %v6545, %v6537
    %v7874 = vpack.c.b16 %v6546, %v6538
    %v7875 = vpack.c.b16 %v6547, %v6539
    %v7876 = vpack.c.b16 %v6548, %v6540
    %v7877 = vpack.c.b16 %v6549, %v6541
    %v7878 = vpack.c.b16 %v6550, %v6542
    %v7879 = vpack.c.b16 %v6551, %v6543
    %v7880 = vpack.c.b16 %v6552, %v6544
    %v7881 = vpack.c.b16 %v6561, %v6553
    %v7882 = vpack.c.b16 %v6562, %v6554
    %v7883 = vpack.c.b16 %v6563, %v6555
    %v7884 = vpack.c.b16 %v6564, %v6556
    %v7885 = vpack.c.b16 %v6565, %v6557
    %v7886 = vpack.c.b16 %v6566, %v6558
    %v7887 = vpack.c.b16 %v6567, %v6559
    %v7888 = vpack.c.b16 %v6568, %v6560
    %v7889 = vpack.c.b16 %v6577, %v6569
    %v7890 = vpack.c.b16 %v6578, %v6570
    %v7891 = vpack.c.b16 %v6579, %v6571
    %v7892 = vpack.c.b16 %v6580, %v6572
    %v7893 = vpack.c.b16 %v6581, %v6573
    %v7894 = vpack.c.b16 %v6582, %v6574
    %v7895 = vpack.c.b16 %v6583, %v6575
    %v7896 = vpack.c.b16 %v6584, %v6576
    %v7897 = vpack.c.b16 %v6593, %v6585
    %v7898 = vpack.c.b16 %v6594, %v6586
    %v7899 = vpack.c.b16 %v6595, %v6587
    %v7900 = vpack.c.b16 %v6596, %v6588
    %v7901 = vpack.c.b16 %v6597, %v6589
    %v7902 = vpack.c.b16 %v6598, %v6590
    %v7903 = vpack.c.b16 %v6599, %v6591
    %v7904 = vpack.c.b16 %v6600, %v6592
    %v7905 = vpack.c.b16 %v6609, %v6601
    %v7906 = vpack.c.b16 %v6610, %v6602
    %v7907 = vpack.c.b16 %v6611, %v6603
    %v7908 = vpack.c.b16 %v6612, %v6604
    %v7909 = vpack.c.b16 %v6613, %v6605
    %v7910 = vpack.c.b16 %v6614, %v6606
    %v7911 = vpack.c.b16 %v6615, %v6607
    %v7912 = vpack.c.b16 %v6616, %v6608
    %v7913 = vpack.c.b16 %v6625, %v6617
    %v7914 = vpack.c.b16 %v6626, %v6618
    %v7915 = vpack.c.b16 %v6627, %v6619
    %v7916 = vpack.c.b16 %v6628, %v6620
    %v7917 = vpack.c.b16 %v6629, %v6621
    %v7918 = vpack.c.b16 %v6630, %v6622
    %v7919 = vpack.c.b16 %v6631, %v6623
    %v7920 = vpack.c.b16 %v6632, %v6624
    %v7921 = vpack.c.b16 %v6641, %v6633
    %v7922 = vpack.c.b16 %v6642, %v6634
    %v7923 = vpack.c.b16 %v6643, %v6635
    %v7924 = vpack.c.b16 %v6644, %v6636
    %v7925 = vpack.c.b16 %v6645, %v6637
    %v7926 = vpack.c.b16 %v6646, %v6638
    %v7927 = vpack.c.b16 %v6647, %v6639
    %v7928 = vpack.c.b16 %v6648, %v6640
    %v7929 = vpack.c.b16 %v6657, %v6649
    %v7930 = vpack.c.b16 %v6658, %v6650
    %v7931 = vpack.c.b16 %v6659, %v6651
    %v7932 = vpack.c.b16 %v6660, %v6652
    %v7933 = vpack.c.b16 %v6661, %v6653
    %v7934 = vpack.c.b16 %v6662, %v6654
    %v7935 = vpack.c.b16 %v6663, %v6655
    %v7936 = vpack.c.b16 %v6664, %v6656
    %v7937 = vpack.c.b16 %v6673, %v6665
    %v7938 = vpack.c.b16 %v6674, %v6666
    %v7939 = vpack.c.b16 %v6675, %v6667
    %v7940 = vpack.c.b16 %v6676, %v6668
    %v7941 = vpack.c.b16 %v6677, %v6669
    %v7942 = vpack.c.b16 %v6678, %v6670
    %v7943 = vpack.c.b16 %v6679, %v6671
    %v7944 = vpack.c.b16 %v6680, %v6672
    %v7945 = vpack.c.b16 %v6689, %v6681
    %v7946 = vpack.c.b16 %v6690, %v6682
    %v7947 = vpack.c.b16 %v6691, %v6683
    %v7948 = vpack.c.b16 %v6692, %v6684
    %v7949 = vpack.c.b16 %v6693, %v6685
    %v7950 = vpack.c.b16 %v6694, %v6686
    %v7951 = vpack.c.b16 %v6695, %v6687
    %v7952 = vpack.c.b16 %v6696, %v6688
    %v7953 = vpack.c.b16 %v6705, %v6697
    %v7954 = vpack.c.b16 %v6706, %v6698
    %v7955 = vpack.c.b16 %v6707, %v6699
    %v7956 = vpack.c.b16 %v6708, %v6700
    %v7957 = vpack.c.b16 %v6709, %v6701
    %v7958 = vpack.c.b16 %v6710, %v6702
    %v7959 = vpack.c.b16 %v6711, %v6703
    %v7960 = vpack.c.b16 %v6712, %v6704
    %v7961 = vpack.c.b16 %v6721, %v6713
    %v7962 = vpack.c.b16 %v6722, %v6714
    %v7963 = vpack.c.b16 %v6723, %v6715
    %v7964 = vpack.c.b16 %v6724, %v6716
    %v7965 = vpack.c.b16 %v6725, %v6717
    %v7966 = vpack.c.b16 %v6726, %v6718
    %v7967 = vpack.c.b16 %v6727, %v6719
    %v7968 = vpack.c.b16 %v6728, %v6720
    %v7969 = vpack.c.b16 %v6737, %v6729
    %v7970 = vpack.c.b16 %v6738, %v6730
    %v7971 = vpack.c.b16 %v6739, %v6731
    %v7972 = vpack.c.b16 %v6740, %v6732
    %v7973 = vpack.c.b16 %v6741, %v6733
    %v7974 = vpack.c.b16 %v6742, %v6734
    %v7975 = vpack.c.b16 %v6743, %v6735
    %v7976 = vpack.c.b16 %v6744, %v6736
    %v7977 = vpack.c.b16 %v6753, %v6745
    %v7978 = vpack.c.b16 %v6754, %v6746
    %v7979 = vpack.c.b16 %v6755, %v6747
    %v7980 = vpack.c.b16 %v6756, %v6748
    %v7981 = vpack.c.b16 %v6757, %v6749
    %v7982 = vpack.c.b16 %v6758, %v6750
    %v7983 = vpack.c.b16 %v6759, %v6751
    %v7984 = vpack.c.b16 %v6760, %v6752
    %v7985 = vpack.c.b16 %v6769, %v6761
    %v7986 = vpack.c.b16 %v6770, %v6762
    %v7987 = vpack.c.b16 %v6771, %v6763
    %v7988 = vpack.c.b16 %v6772, %v6764
    %v7989 = vpack.c.b16 %v6773, %v6765
    %v7990 = vpack.c.b16 %v6774, %v6766
    %v7991 = vpack.c.b16 %v6775, %v6767
    %v7992 = vpack.c.b16 %v6776, %v6768
    %v7993 = vpack.c.b16 %v6785, %v6777
    %v7994 = vpack.c.b16 %v6786, %v6778
    %v7995 = vpack.c.b16 %v6787, %v6779
    %v7996 = vpack.c.b16 %v6788, %v6780
    %v7997 = vpack.c.b16 %v6789, %v6781
    %v7998 = vpack.c.b16 %v6790, %v6782
    %v7999 = vpack.c.b16 %v6791, %v6783
    %v8000 = vpack.c.b16 %v6792, %v6784
    %v8001 = vpack.c.b16 %v6801, %v6793
    %v8002 = vpack.c.b16 %v6802, %v6794
    %v8003 = vpack.c.b16 %v6803, %v6795
    %v8004 = vpack.c.b16 %v6804, %v6796
    %v8005 = vpack.c.b16 %v6805, %v6797
    %v8006 = vpack.c.b16 %v6806, %v6798
    %v8007 = vpack.c.b16 %v6807, %v6799
    %v8008 = vpack.c.b16 %v6808, %v6800
    %v8009 = vpack.c.b16 %v6817, %v6809
    %v8010 = vpack.c.b16 %v6818, %v6810
    %v8011 = vpack.c.b16 %v6819, %v6811
    %v8012 = vpack.c.b16 %v6820, %v6812
    %v8013 = vpack.c.b16 %v6821, %v6813
    %v8014 = vpack.c.b16 %v6822, %v6814
    %v8015 = vpack.c.b16 %v6823, %v6815
    %v8016 = vpack.c.b16 %v6824, %v6816
    %v8017 = vpack.c.b16 %v6833, %v6825
    %v8018 = vpack.c.b16 %v6834, %v6826
    %v8019 = vpack.c.b16 %v6835, %v6827
    %v8020 = vpack.c.b16 %v6836, %v6828
    %v8021 = vpack.c.b16 %v6837, %v6829
    %v8022 = vpack.c.b16 %v6838, %v6830
    %v8023 = vpack.c.b16 %v6839, %v6831
    %v8024 = vpack.c.b16 %v6840, %v6832
    %v8025 = vpack.c.b16 %v6849, %v6841
    %v8026 = vpack.c.b16 %v6850, %v6842
    %v8027 = vpack.c.b16 %v6851, %v6843
    %v8028 = vpack.c.b16 %v6852, %v6844
    %v8029 = vpack.c.b16 %v6853, %v6845
    %v8030 = vpack.c.b16 %v6854, %v6846
    %v8031 = vpack.c.b16 %v6855, %v6847
    %v8032 = vpack.c.b16 %v6856, %v6848
    %v8033 = vpack.c.b16 %v6865, %v6857
    %v8034 = vpack.c.b16 %v6866, %v6858
    %v8035 = vpack.c.b16 %v6867, %v6859
    %v8036 = vpack.c.b16 %v6868, %v6860
    %v8037 = vpack.c.b16 %v6869, %v6861
    %v8038 = vpack.c.b16 %v6870, %v6862
    %v8039 = vpack.c.b16 %v6871, %v6863
    %v8040 = vpack.c.b16 %v6872, %v6864
    %v8041 = vpack.c.b16 %v6881, %v6873
    %v8042 = vpack.c.b16 %v6882, %v6874
    %v8043 = vpack.c.b16 %v6883, %v6875
    %v8044 = vpack.c.b16 %v6884, %v6876
    %v8045 = vpack.c.b16 %v6885, %v6877
    %v8046 = vpack.c.b16 %v6886, %v6878
    %v8047 = vpack.c.b16 %v6887, %v6879
    %v8048 = vpack.c.b16 %v6888, %v6880
    %v8049 = vpack.c.b16 %v6897, %v6889
    %v8050 = vpack.c.b16 %v6898, %v6890
    %v8051 = vpack.c.b16 %v6899, %v6891
    %v8052 = vpack.c.b16 %v6900, %v6892
    %v8053 = vpack.c.b16 %v6901, %v6893
    %v8054 = vpack.c.b16 %v6902, %v6894
    %v8055 = vpack.c.b16 %v6903, %v6895
    %v8056 = vpack.c.b16 %v6904, %v6896
    %v8057 = vpack.c.b16 %v6913, %v6905
    %v8058 = vpack.c.b16 %v6914, %v6906
    %v8059 = vpack.c.b16 %v6915, %v6907
    %v8060 = vpack.c.b16 %v6916, %v6908
    %v8061 = vpack.c.b16 %v6917, %v6909
    %v8062 = vpack.c.b16 %v6918, %v6910
    %v8063 = vpack.c.b16 %v6919, %v6911
    %v8064 = vpack.c.b16 %v6920, %v6912
    %v8065 = vpack.c.b16 %v6929, %v6921
    %v8066 = vpack.c.b16 %v6930, %v6922
    %v8067 = vpack.c.b16 %v6931, %v6923
    %v8068 = vpack.c.b16 %v6932, %v6924
    %v8069 = vpack.c.b16 %v6933, %v6925
    %v8070 = vpack.c.b16 %v6934, %v6926
    %v8071 = vpack.c.b16 %v6935, %v6927
    %v8072 = vpack.c.b16 %v6936, %v6928
    %v8073 = vpack.c.b16 %v6945, %v6937
    %v8074 = vpack.c.b16 %v6946, %v6938
    %v8075 = vpack.c.b16 %v6947, %v6939
    %v8076 = vpack.c.b16 %v6948, %v6940
    %v8077 = vpack.c.b16 %v6949, %v6941
    %v8078 = vpack.c.b16 %v6950, %v6942
    %v8079 = vpack.c.b16 %v6951, %v6943
    %v8080 = vpack.c.b16 %v6952, %v6944
    %v8081 = vpack.c.b16 %v6961, %v6953
    %v8082 = vpack.c.b16 %v6962, %v6954
    %v8083 = vpack.c.b16 %v6963, %v6955
    %v8084 = vpack.c.b16 %v6964, %v6956
    %v8085 = vpack.c.b16 %v6965, %v6957
    %v8086 = vpack.c.b16 %v6966, %v6958
    %v8087 = vpack.c.b16 %v6967, %v6959
    %v8088 = vpack.c.b16 %v6968, %v6960
    %v8089 = vpack.c.b16 %v6977, %v6969
    %v8090 = vpack.c.b16 %v6978, %v6970
    %v8091 = vpack.c.b16 %v6979, %v6971
    %v8092 = vpack.c.b16 %v6980, %v6972
    %v8093 = vpack.c.b16 %v6981, %v6973
    %v8094 = vpack.c.b16 %v6982, %v6974
    %v8095 = vpack.c.b16 %v6983, %v6975
    %v8096 = vpack.c.b16 %v6984, %v6976
    %v8097 = vpack.c.b16 %v6993, %v6985
    %v8098 = vpack.c.b16 %v6994, %v6986
    %v8099 = vpack.c.b16 %v6995, %v6987
    %v8100 = vpack.c.b16 %v6996, %v6988
    %v8101 = vpack.c.b16 %v6997, %v6989
    %v8102 = vpack.c.b16 %v6998, %v6990
    %v8103 = vpack.c.b16 %v6999, %v6991
    %v8104 = vpack.c.b16 %v7000, %v6992
    %v8105 = vpack.c.b16 %v7009, %v7001
    %v8106 = vpack.c.b16 %v7010, %v7002
    %v8107 = vpack.c.b16 %v7011, %v7003
    %v8108 = vpack.c.b16 %v7012, %v7004
    %v8109 = vpack.c.b16 %v7013, %v7005
    %v8110 = vpack.c.b16 %v7014, %v7006
    %v8111 = vpack.c.b16 %v7015, %v7007
    %v8112 = vpack.c.b16 %v7016, %v7008
    %v8113 = vpack.c.b16 %v7025, %v7017
    %v8114 = vpack.c.b16 %v7026, %v7018
    %v8115 = vpack.c.b16 %v7027, %v7019
    %v8116 = vpack.c.b16 %v7028, %v7020
    %v8117 = vpack.c.b16 %v7029, %v7021
    %v8118 = vpack.c.b16 %v7030, %v7022
    %v8119 = vpack.c.b16 %v7031, %v7023
    %v8120 = vpack.c.b16 %v7032, %v7024
    %v8121 = vpack.c.b16 %v7041, %v7033
    %v8122 = vpack.c.b16 %v7042, %v7034
    %v8123 = vpack.c.b16 %v7043, %v7035
    %v8124 = vpack.c.b16 %v7044, %v7036
    %v8125 = vpack.c.b16 %v7045, %v7037
    %v8126 = vpack.c.b16 %v7046, %v7038
    %v8127 = vpack.c.b16 %v7047, %v7039
    %v8128 = vpack.c.b16 %v7048, %v7040
    %v8129 = vpack.c.b16 %v7057, %v7049
    %v8130 = vpack.c.b16 %v7058, %v7050
    %v8131 = vpack.c.b16 %v7059, %v7051
    %v8132 = vpack.c.b16 %v7060, %v7052
    %v8133 = vpack.c.b16 %v7061, %v7053
    %v8134 = vpack.c.b16 %v7062, %v7054
    %v8135 = vpack.c.b16 %v7063, %v7055
    %v8136 = vpack.c.b16 %v7064, %v7056
    %v8137 = vpack.c.b16 %v7073, %v7065
    %v8138 = vpack.c.b16 %v7074, %v7066
    %v8139 = vpack.c.b16 %v7075, %v7067
    %v8140 = vpack.c.b16 %v7076, %v7068
    %v8141 = vpack.c.b16 %v7077, %v7069
    %v8142 = vpack.c.b16 %v7078, %v7070
    %v8143 = vpack.c.b16 %v7079, %v7071
    %v8144 = vpack.c.b16 %v7080, %v7072
    %v8145 = vpack.c.b16 %v7089, %v7081
    %v8146 = vpack.c.b16 %v7090, %v7082
    %v8147 = vpack.c.b16 %v7091, %v7083
    %v8148 = vpack.c.b16 %v7092, %v7084
    %v8149 = vpack.c.b16 %v7093, %v7085
    %v8150 = vpack.c.b16 %v7094, %v7086
    %v8151 = vpack.c.b16 %v7095, %v7087
    %v8152 = vpack.c.b16 %v7096, %v7088
    %v8153 = vpack.c.b16 %v7105, %v7097
    %v8154 = vpack.c.b16 %v7106, %v7098
    %v8155 = vpack.c.b16 %v7107, %v7099
    %v8156 = vpack.c.b16 %v7108, %v7100
    %v8157 = vpack.c.b16 %v7109, %v7101
    %v8158 = vpack.c.b16 %v7110, %v7102
    %v8159 = vpack.c.b16 %v7111, %v7103
    %v8160 = vpack.c.b16 %v7112, %v7104
    %v8161 = vpack.c.b16 %v7121, %v7113
    %v8162 = vpack.c.b16 %v7122, %v7114
    %v8163 = vpack.c.b16 %v7123, %v7115
    %v8164 = vpack.c.b16 %v7124, %v7116
    %v8165 = vpack.c.b16 %v7125, %v7117
    %v8166 = vpack.c.b16 %v7126, %v7118
    %v8167 = vpack.c.b16 %v7127, %v7119
    %v8168 = vpack.c.b16 %v7128, %v7120
    %v8169 = vpack.c.b16 %v7137, %v7129
    %v8170 = vpack.c.b16 %v7138, %v7130
    %v8171 = vpack.c.b16 %v7139, %v7131
    %v8172 = vpack.c.b16 %v7140, %v7132
    %v8173 = vpack.c.b16 %v7141, %v7133
    %v8174 = vpack.c.b16 %v7142, %v7134
    %v8175 = vpack.c.b16 %v7143, %v7135
    %v8176 = vpack.c.b16 %v7144, %v7136
    %v8177 = vpack.c.b16 %v7153, %v7145
    %v8178 = vpack.c.b16 %v7154, %v7146
    %v8179 = vpack.c.b16 %v7155, %v7147
    %v8180 = vpack.c.b16 %v7156, %v7148
    %v8181 = vpack.c.b16 %v7157, %v7149
    %v8182 = vpack.c.b16 %v7158, %v7150
    %v8183 = vpack.c.b16 %v7159, %v7151
    %v8184 = vpack.c.b16 %v7160, %v7152
    %9209 = vmatprep.subr.bf16.mxu0 %v7218
    %9210 = vmatpush1.bf16.msra.mxu0 %v7217
    %9211 = vmatprep.subr.bf16.mxu0 %v7210
    %9212 = vmatpush1.bf16.msra.mxu0 %v7209
    %9213 = vmatprep.subr.bf16.mxu0 %v7202
    %9214 = vmatpush1.bf16.msra.mxu0 %v7201
    %9215 = vmatprep.subr.bf16.mxu0 %v7194
    %9216 = vmatpush1.bf16.msra.mxu0 %v7193
    %9217 = vmatprep.subr.bf16.mxu0 %v7186
    %9218 = vmatpush1.bf16.msra.mxu0 %v7185
    %9219 = vmatprep.subr.bf16.mxu0 %v7178
    %9220 = vmatpush1.bf16.msra.mxu0 %v7177
    %9221 = vmatprep.subr.bf16.mxu0 %v7170
    %9222 = vmatpush1.bf16.msra.mxu0 %v7169
    %9223 = vmatprep.subr.bf16.mxu0 %v7162
    %9224 = vmatpush1.bf16.msra.mxu0 %v7161
    %9225 = vmatprep.subr.bf16.mxu0 %v7282
    %9226 = vmatpush2.bf16.msra.mxu0 %v7281
    %9227 = vmatprep.subr.bf16.mxu0 %v7274
    %9228 = vmatpush2.bf16.msra.mxu0 %v7273
    %9229 = vmatprep.subr.bf16.mxu0 %v7266
    %9230 = vmatpush2.bf16.msra.mxu0 %v7265
    %9231 = vmatprep.subr.bf16.mxu0 %v7258
    %9232 = vmatpush2.bf16.msra.mxu0 %v7257
    %9233 = vmatprep.subr.bf16.mxu0 %v7250
    %9234 = vmatpush2.bf16.msra.mxu0 %v7249
    %9235 = vmatprep.subr.bf16.mxu0 %v7242
    %9236 = vmatpush2.bf16.msra.mxu0 %v7241
    %9237 = vmatprep.subr.bf16.mxu0 %v7234
    %9238 = vmatpush2.bf16.msra.mxu0 %v7233
    %9239 = vmatprep.subr.bf16.mxu0 %v7226
    %9240 = vmatpush2.bf16.msra.mxu0 %v7225
    %9241 = vmatprep.mubr.bf16.mxu0 %v213
    %9242 = vmatmul.mubr.bf16.gmra.mxu0 %v212
    %v9243 = vpop.f32.mrf.mxu0
    %v9244 = vadd.f32 %v3714, %v9243
    %v9245 = vpop.f32.mrf.mxu0
    %v9246 = vadd.f32 %v3716, %v9245
    %v9247 = vpop.f32.mrf.mxu0
    %v9248 = vpop.f32.mrf.mxu0
    %9249 = vdwg.mxu0
    %9250 = vmatprep.subr.bf16.mxu0 %v7346
    %9251 = vmatpush1.bf16.msra.mxu0 %v7345
    %9252 = vmatprep.subr.bf16.mxu0 %v7338
    %9253 = vmatpush1.bf16.msra.mxu0 %v7337
    %9254 = vmatprep.subr.bf16.mxu0 %v7330
    %9255 = vmatpush1.bf16.msra.mxu0 %v7329
    %9256 = vmatprep.subr.bf16.mxu0 %v7322
    %9257 = vmatpush1.bf16.msra.mxu0 %v7321
    %9258 = vmatprep.subr.bf16.mxu0 %v7314
    %9259 = vmatpush1.bf16.msra.mxu0 %v7313
    %9260 = vmatprep.subr.bf16.mxu0 %v7306
    %9261 = vmatpush1.bf16.msra.mxu0 %v7305
    %9262 = vmatprep.subr.bf16.mxu0 %v7298
    %9263 = vmatpush1.bf16.msra.mxu0 %v7297
    %9264 = vmatprep.subr.bf16.mxu0 %v7290
    %9265 = vmatpush1.bf16.msra.mxu0 %v7289
    %9266 = vmatprep.subr.bf16.mxu0 %v7410
    %9267 = vmatpush2.bf16.msra.mxu0 %v7409
    %9268 = vmatprep.subr.bf16.mxu0 %v7402
    %9269 = vmatpush2.bf16.msra.mxu0 %v7401
    %9270 = vmatprep.subr.bf16.mxu0 %v7394
    %9271 = vmatpush2.bf16.msra.mxu0 %v7393
    %9272 = vmatprep.subr.bf16.mxu0 %v7386
    %9273 = vmatpush2.bf16.msra.mxu0 %v7385
    %9274 = vmatprep.subr.bf16.mxu0 %v7378
    %9275 = vmatpush2.bf16.msra.mxu0 %v7377
    %9276 = vmatprep.subr.bf16.mxu0 %v7370
    %9277 = vmatpush2.bf16.msra.mxu0 %v7369
    %9278 = vmatprep.subr.bf16.mxu0 %v7362
    %9279 = vmatpush2.bf16.msra.mxu0 %v7361
    %9280 = vmatprep.subr.bf16.mxu0 %v7354
    %9281 = vmatpush2.bf16.msra.mxu0 %v7353
    %9282 = vmatprep.mubr.bf16.mxu0 %v215
    %9283 = vmatmul.mubr.bf16.gmra.mxu0 %v214
    %v9284 = vpop.f32.mrf.mxu0
    %v9285 = vadd.f32 %v9244, %v9284
    %v9286 = vpop.f32.mrf.mxu0
    %v9287 = vadd.f32 %v9246, %v9286
    %v9288 = vpop.f32.mrf.mxu0
    %v9289 = vpop.f32.mrf.mxu0
    %9290 = vdwg.mxu0
    %9291 = vmatprep.subr.bf16.mxu0 %v7474
    %9292 = vmatpush1.bf16.msra.mxu0 %v7473
    %9293 = vmatprep.subr.bf16.mxu0 %v7466
    %9294 = vmatpush1.bf16.msra.mxu0 %v7465
    %9295 = vmatprep.subr.bf16.mxu0 %v7458
    %9296 = vmatpush1.bf16.msra.mxu0 %v7457
    %9297 = vmatprep.subr.bf16.mxu0 %v7450
    %9298 = vmatpush1.bf16.msra.mxu0 %v7449
    %9299 = vmatprep.subr.bf16.mxu0 %v7442
    %9300 = vmatpush1.bf16.msra.mxu0 %v7441
    %9301 = vmatprep.subr.bf16.mxu0 %v7434
    %9302 = vmatpush1.bf16.msra.mxu0 %v7433
    %9303 = vmatprep.subr.bf16.mxu0 %v7426
    %9304 = vmatpush1.bf16.msra.mxu0 %v7425
    %9305 = vmatprep.subr.bf16.mxu0 %v7418
    %9306 = vmatpush1.bf16.msra.mxu0 %v7417
    %9307 = vmatprep.subr.bf16.mxu0 %v7538
    %9308 = vmatpush2.bf16.msra.mxu0 %v7537
    %9309 = vmatprep.subr.bf16.mxu0 %v7530
    %9310 = vmatpush2.bf16.msra.mxu0 %v7529
    %9311 = vmatprep.subr.bf16.mxu0 %v7522
    %9312 = vmatpush2.bf16.msra.mxu0 %v7521
    %9313 = vmatprep.subr.bf16.mxu0 %v7514
    %9314 = vmatpush2.bf16.msra.mxu0 %v7513
    %9315 = vmatprep.subr.bf16.mxu0 %v7506
    %9316 = vmatpush2.bf16.msra.mxu0 %v7505
    %9317 = vmatprep.subr.bf16.mxu0 %v7498
    %9318 = vmatpush2.bf16.msra.mxu0 %v7497
    %9319 = vmatprep.subr.bf16.mxu0 %v7490
    %9320 = vmatpush2.bf16.msra.mxu0 %v7489
    %9321 = vmatprep.subr.bf16.mxu0 %v7482
    %9322 = vmatpush2.bf16.msra.mxu0 %v7481
    %9323 = vmatprep.mubr.bf16.mxu0 %v217
    %9324 = vmatmul.mubr.bf16.gmra.mxu0 %v216
    %v9325 = vpop.f32.mrf.mxu0
    %v9326 = vadd.f32 %v9285, %v9325
    %v9327 = vpop.f32.mrf.mxu0
    %v9328 = vadd.f32 %v9287, %v9327
    %v9329 = vpop.f32.mrf.mxu0
    %v9330 = vpop.f32.mrf.mxu0
    %9331 = vdwg.mxu0
    %9332 = vmatprep.subr.bf16.mxu0 %v7602
    %9333 = vmatpush1.bf16.msra.mxu0 %v7601
    %9334 = vmatprep.subr.bf16.mxu0 %v7594
    %9335 = vmatpush1.bf16.msra.mxu0 %v7593
    %9336 = vmatprep.subr.bf16.mxu0 %v7586
    %9337 = vmatpush1.bf16.msra.mxu0 %v7585
    %9338 = vmatprep.subr.bf16.mxu0 %v7578
    %9339 = vmatpush1.bf16.msra.mxu0 %v7577
    %9340 = vmatprep.subr.bf16.mxu0 %v7570
    %9341 = vmatpush1.bf16.msra.mxu0 %v7569
    %9342 = vmatprep.subr.bf16.mxu0 %v7562
    %9343 = vmatpush1.bf16.msra.mxu0 %v7561
    %9344 = vmatprep.subr.bf16.mxu0 %v7554
    %9345 = vmatpush1.bf16.msra.mxu0 %v7553
    %9346 = vmatprep.subr.bf16.mxu0 %v7546
    %9347 = vmatpush1.bf16.msra.mxu0 %v7545
    %9348 = vmatprep.subr.bf16.mxu0 %v7666
    %9349 = vmatpush2.bf16.msra.mxu0 %v7665
    %9350 = vmatprep.subr.bf16.mxu0 %v7658
    %9351 = vmatpush2.bf16.msra.mxu0 %v7657
    %9352 = vmatprep.subr.bf16.mxu0 %v7650
    %9353 = vmatpush2.bf16.msra.mxu0 %v7649
    %9354 = vmatprep.subr.bf16.mxu0 %v7642
    %9355 = vmatpush2.bf16.msra.mxu0 %v7641
    %9356 = vmatprep.subr.bf16.mxu0 %v7634
    %9357 = vmatpush2.bf16.msra.mxu0 %v7633
    %9358 = vmatprep.subr.bf16.mxu0 %v7626
    %9359 = vmatpush2.bf16.msra.mxu0 %v7625
    %9360 = vmatprep.subr.bf16.mxu0 %v7618
    %9361 = vmatpush2.bf16.msra.mxu0 %v7617
    %9362 = vmatprep.subr.bf16.mxu0 %v7610
    %9363 = vmatpush2.bf16.msra.mxu0 %v7609
    %9364 = vmatprep.mubr.bf16.mxu0 %v219
    %9365 = vmatmul.mubr.bf16.gmra.mxu0 %v218
    %v9366 = vpop.f32.mrf.mxu0
    %v9367 = vadd.f32 %v9326, %v9366
    %v9368 = vpop.f32.mrf.mxu0
    %v9369 = vadd.f32 %v9328, %v9368
    %v9370 = vpop.f32.mrf.mxu0
    %v9371 = vpop.f32.mrf.mxu0
    %9372 = vdwg.mxu0
    %9373 = vmatprep.subr.bf16.mxu0 %v7730
    %9374 = vmatpush1.bf16.msra.mxu0 %v7729
    %9375 = vmatprep.subr.bf16.mxu0 %v7722
    %9376 = vmatpush1.bf16.msra.mxu0 %v7721
    %9377 = vmatprep.subr.bf16.mxu0 %v7714
    %9378 = vmatpush1.bf16.msra.mxu0 %v7713
    %9379 = vmatprep.subr.bf16.mxu0 %v7706
    %9380 = vmatpush1.bf16.msra.mxu0 %v7705
    %9381 = vmatprep.subr.bf16.mxu0 %v7698
    %9382 = vmatpush1.bf16.msra.mxu0 %v7697
    %9383 = vmatprep.subr.bf16.mxu0 %v7690
    %9384 = vmatpush1.bf16.msra.mxu0 %v7689
    %9385 = vmatprep.subr.bf16.mxu0 %v7682
    %9386 = vmatpush1.bf16.msra.mxu0 %v7681
    %9387 = vmatprep.subr.bf16.mxu0 %v7674
    %9388 = vmatpush1.bf16.msra.mxu0 %v7673
    %9389 = vmatprep.subr.bf16.mxu0 %v7794
    %9390 = vmatpush2.bf16.msra.mxu0 %v7793
    %9391 = vmatprep.subr.bf16.mxu0 %v7786
    %9392 = vmatpush2.bf16.msra.mxu0 %v7785
    %9393 = vmatprep.subr.bf16.mxu0 %v7778
    %9394 = vmatpush2.bf16.msra.mxu0 %v7777
    %9395 = vmatprep.subr.bf16.mxu0 %v7770
    %9396 = vmatpush2.bf16.msra.mxu0 %v7769
    %9397 = vmatprep.subr.bf16.mxu0 %v7762
    %9398 = vmatpush2.bf16.msra.mxu0 %v7761
    %9399 = vmatprep.subr.bf16.mxu0 %v7754
    %9400 = vmatpush2.bf16.msra.mxu0 %v7753
    %9401 = vmatprep.subr.bf16.mxu0 %v7746
    %9402 = vmatpush2.bf16.msra.mxu0 %v7745
    %9403 = vmatprep.subr.bf16.mxu0 %v7738
    %9404 = vmatpush2.bf16.msra.mxu0 %v7737
    %9405 = vmatprep.mubr.bf16.mxu0 %v221
    %9406 = vmatmul.mubr.bf16.gmra.mxu0 %v220
    %v9407 = vpop.f32.mrf.mxu0
    %v9408 = vadd.f32 %v9367, %v9407
    %v9409 = vpop.f32.mrf.mxu0
    %v9410 = vadd.f32 %v9369, %v9409
    %v9411 = vpop.f32.mrf.mxu0
    %v9412 = vpop.f32.mrf.mxu0
    %9413 = vdwg.mxu0
    %9414 = vmatprep.subr.bf16.mxu0 %v7858
    %9415 = vmatpush1.bf16.msra.mxu0 %v7857
    %9416 = vmatprep.subr.bf16.mxu0 %v7850
    %9417 = vmatpush1.bf16.msra.mxu0 %v7849
    %9418 = vmatprep.subr.bf16.mxu0 %v7842
    %9419 = vmatpush1.bf16.msra.mxu0 %v7841
    %9420 = vmatprep.subr.bf16.mxu0 %v7834
    %9421 = vmatpush1.bf16.msra.mxu0 %v7833
    %9422 = vmatprep.subr.bf16.mxu0 %v7826
    %9423 = vmatpush1.bf16.msra.mxu0 %v7825
    %9424 = vmatprep.subr.bf16.mxu0 %v7818
    %9425 = vmatpush1.bf16.msra.mxu0 %v7817
    %9426 = vmatprep.subr.bf16.mxu0 %v7810
    %9427 = vmatpush1.bf16.msra.mxu0 %v7809
    %9428 = vmatprep.subr.bf16.mxu0 %v7802
    %9429 = vmatpush1.bf16.msra.mxu0 %v7801
    %9430 = vmatprep.subr.bf16.mxu0 %v7922
    %9431 = vmatpush2.bf16.msra.mxu0 %v7921
    %9432 = vmatprep.subr.bf16.mxu0 %v7914
    %9433 = vmatpush2.bf16.msra.mxu0 %v7913
    %9434 = vmatprep.subr.bf16.mxu0 %v7906
    %9435 = vmatpush2.bf16.msra.mxu0 %v7905
    %9436 = vmatprep.subr.bf16.mxu0 %v7898
    %9437 = vmatpush2.bf16.msra.mxu0 %v7897
    %9438 = vmatprep.subr.bf16.mxu0 %v7890
    %9439 = vmatpush2.bf16.msra.mxu0 %v7889
    %9440 = vmatprep.subr.bf16.mxu0 %v7882
    %9441 = vmatpush2.bf16.msra.mxu0 %v7881
    %9442 = vmatprep.subr.bf16.mxu0 %v7874
    %9443 = vmatpush2.bf16.msra.mxu0 %v7873
    %9444 = vmatprep.subr.bf16.mxu0 %v7866
    %9445 = vmatpush2.bf16.msra.mxu0 %v7865
    %9446 = vmatprep.mubr.bf16.mxu0 %v223
    %9447 = vmatmul.mubr.bf16.gmra.mxu0 %v222
    %v9448 = vpop.f32.mrf.mxu0
    %v9449 = vadd.f32 %v9408, %v9448
    %v9450 = vpop.f32.mrf.mxu0
    %v9451 = vadd.f32 %v9410, %v9450
    %v9452 = vpop.f32.mrf.mxu0
    %v9453 = vpop.f32.mrf.mxu0
    %9454 = vdwg.mxu0
    %9455 = vmatprep.subr.bf16.mxu0 %v7986
    %9456 = vmatpush1.bf16.msra.mxu0 %v7985
    %9457 = vmatprep.subr.bf16.mxu0 %v7978
    %9458 = vmatpush1.bf16.msra.mxu0 %v7977
    %9459 = vmatprep.subr.bf16.mxu0 %v7970
    %9460 = vmatpush1.bf16.msra.mxu0 %v7969
    %9461 = vmatprep.subr.bf16.mxu0 %v7962
    %9462 = vmatpush1.bf16.msra.mxu0 %v7961
    %9463 = vmatprep.subr.bf16.mxu0 %v7954
    %9464 = vmatpush1.bf16.msra.mxu0 %v7953
    %9465 = vmatprep.subr.bf16.mxu0 %v7946
    %9466 = vmatpush1.bf16.msra.mxu0 %v7945
    %9467 = vmatprep.subr.bf16.mxu0 %v7938
    %9468 = vmatpush1.bf16.msra.mxu0 %v7937
    %9469 = vmatprep.subr.bf16.mxu0 %v7930
    %9470 = vmatpush1.bf16.msra.mxu0 %v7929
    %9471 = vmatprep.subr.bf16.mxu0 %v8050
    %9472 = vmatpush2.bf16.msra.mxu0 %v8049
    %9473 = vmatprep.subr.bf16.mxu0 %v8042
    %9474 = vmatpush2.bf16.msra.mxu0 %v8041
    %9475 = vmatprep.subr.bf16.mxu0 %v8034
    %9476 = vmatpush2.bf16.msra.mxu0 %v8033
    %9477 = vmatprep.subr.bf16.mxu0 %v8026
    %9478 = vmatpush2.bf16.msra.mxu0 %v8025
    %9479 = vmatprep.subr.bf16.mxu0 %v8018
    %9480 = vmatpush2.bf16.msra.mxu0 %v8017
    %9481 = vmatprep.subr.bf16.mxu0 %v8010
    %9482 = vmatpush2.bf16.msra.mxu0 %v8009
    %9483 = vmatprep.subr.bf16.mxu0 %v8002
    %9484 = vmatpush2.bf16.msra.mxu0 %v8001
    %9485 = vmatprep.subr.bf16.mxu0 %v7994
    %9486 = vmatpush2.bf16.msra.mxu0 %v7993
    %9487 = vmatprep.mubr.bf16.mxu0 %v225
    %9488 = vmatmul.mubr.bf16.gmra.mxu0 %v224
    %v9489 = vpop.f32.mrf.mxu0
    %v9490 = vadd.f32 %v9449, %v9489
    %v9491 = vpop.f32.mrf.mxu0
    %v9492 = vadd.f32 %v9451, %v9491
    %v9493 = vpop.f32.mrf.mxu0
    %v9494 = vpop.f32.mrf.mxu0
    %9495 = vdwg.mxu0
    %9496 = vmatprep.subr.bf16.mxu0 %v8114
    %9497 = vmatpush1.bf16.msra.mxu0 %v8113
    %9498 = vmatprep.subr.bf16.mxu0 %v8106
    %9499 = vmatpush1.bf16.msra.mxu0 %v8105
    %9500 = vmatprep.subr.bf16.mxu0 %v8098
    %9501 = vmatpush1.bf16.msra.mxu0 %v8097
    %9502 = vmatprep.subr.bf16.mxu0 %v8090
    %9503 = vmatpush1.bf16.msra.mxu0 %v8089
    %9504 = vmatprep.subr.bf16.mxu0 %v8082
    %9505 = vmatpush1.bf16.msra.mxu0 %v8081
    %9506 = vmatprep.subr.bf16.mxu0 %v8074
    %9507 = vmatpush1.bf16.msra.mxu0 %v8073
    %9508 = vmatprep.subr.bf16.mxu0 %v8066
    %9509 = vmatpush1.bf16.msra.mxu0 %v8065
    %9510 = vmatprep.subr.bf16.mxu0 %v8058
    %9511 = vmatpush1.bf16.msra.mxu0 %v8057
    %9512 = vmatprep.subr.bf16.mxu0 %v8178
    %9513 = vmatpush2.bf16.msra.mxu0 %v8177
    %9514 = vmatprep.subr.bf16.mxu0 %v8170
    %9515 = vmatpush2.bf16.msra.mxu0 %v8169
    %9516 = vmatprep.subr.bf16.mxu0 %v8162
    %9517 = vmatpush2.bf16.msra.mxu0 %v8161
    %9518 = vmatprep.subr.bf16.mxu0 %v8154
    %9519 = vmatpush2.bf16.msra.mxu0 %v8153
    %9520 = vmatprep.subr.bf16.mxu0 %v8146
    %9521 = vmatpush2.bf16.msra.mxu0 %v8145
    %9522 = vmatprep.subr.bf16.mxu0 %v8138
    %9523 = vmatpush2.bf16.msra.mxu0 %v8137
    %9524 = vmatprep.subr.bf16.mxu0 %v8130
    %9525 = vmatpush2.bf16.msra.mxu0 %v8129
    %9526 = vmatprep.subr.bf16.mxu0 %v8122
    %9527 = vmatpush2.bf16.msra.mxu0 %v8121
    %9528 = vmatprep.mubr.bf16.mxu0 %v227
    %9529 = vmatmul.mubr.bf16.gmra.mxu0 %v226
    %v9530 = vpop.f32.mrf.mxu0
    %v9531 = vadd.f32 %v9490, %v9530
    %v9532 = vpop.f32.mrf.mxu0
    %v9533 = vadd.f32 %v9492, %v9532
    %v9534 = vpop.f32.mrf.mxu0
    %v9535 = vpop.f32.mrf.mxu0
    %9536 = vdwg.mxu0
    %9537 = vmatprep.subr.bf16.mxu0 %v7220
    %9538 = vmatpush1.bf16.msra.mxu0 %v7219
    %9539 = vmatprep.subr.bf16.mxu0 %v7212
    %9540 = vmatpush1.bf16.msra.mxu0 %v7211
    %9541 = vmatprep.subr.bf16.mxu0 %v7204
    %9542 = vmatpush1.bf16.msra.mxu0 %v7203
    %9543 = vmatprep.subr.bf16.mxu0 %v7196
    %9544 = vmatpush1.bf16.msra.mxu0 %v7195
    %9545 = vmatprep.subr.bf16.mxu0 %v7188
    %9546 = vmatpush1.bf16.msra.mxu0 %v7187
    %9547 = vmatprep.subr.bf16.mxu0 %v7180
    %9548 = vmatpush1.bf16.msra.mxu0 %v7179
    %9549 = vmatprep.subr.bf16.mxu0 %v7172
    %9550 = vmatpush1.bf16.msra.mxu0 %v7171
    %9551 = vmatprep.subr.bf16.mxu0 %v7164
    %9552 = vmatpush1.bf16.msra.mxu0 %v7163
    %9553 = vmatprep.subr.bf16.mxu0 %v7284
    %9554 = vmatpush2.bf16.msra.mxu0 %v7283
    %9555 = vmatprep.subr.bf16.mxu0 %v7276
    %9556 = vmatpush2.bf16.msra.mxu0 %v7275
    %9557 = vmatprep.subr.bf16.mxu0 %v7268
    %9558 = vmatpush2.bf16.msra.mxu0 %v7267
    %9559 = vmatprep.subr.bf16.mxu0 %v7260
    %9560 = vmatpush2.bf16.msra.mxu0 %v7259
    %9561 = vmatprep.subr.bf16.mxu0 %v7252
    %9562 = vmatpush2.bf16.msra.mxu0 %v7251
    %9563 = vmatprep.subr.bf16.mxu0 %v7244
    %9564 = vmatpush2.bf16.msra.mxu0 %v7243
    %9565 = vmatprep.subr.bf16.mxu0 %v7236
    %9566 = vmatpush2.bf16.msra.mxu0 %v7235
    %9567 = vmatprep.subr.bf16.mxu0 %v7228
    %9568 = vmatpush2.bf16.msra.mxu0 %v7227
    %9569 = vmatprep.mubr.bf16.mxu0 %v213
    %9570 = vmatmul.mubr.bf16.gmra.mxu0 %v212
    %v9571 = vpop.f32.mrf.mxu0
    %v9572 = vadd.f32 %v3837, %v9571
    %v9573 = vpop.f32.mrf.mxu0
    %v9574 = vadd.f32 %v3839, %v9573
    %v9575 = vpop.f32.mrf.mxu0
    %v9576 = vpop.f32.mrf.mxu0
    %9577 = vdwg.mxu0
    %9578 = vmatprep.subr.bf16.mxu0 %v7348
    %9579 = vmatpush1.bf16.msra.mxu0 %v7347
    %9580 = vmatprep.subr.bf16.mxu0 %v7340
    %9581 = vmatpush1.bf16.msra.mxu0 %v7339
    %9582 = vmatprep.subr.bf16.mxu0 %v7332
    %9583 = vmatpush1.bf16.msra.mxu0 %v7331
    %9584 = vmatprep.subr.bf16.mxu0 %v7324
    %9585 = vmatpush1.bf16.msra.mxu0 %v7323
    %9586 = vmatprep.subr.bf16.mxu0 %v7316
    %9587 = vmatpush1.bf16.msra.mxu0 %v7315
    %9588 = vmatprep.subr.bf16.mxu0 %v7308
    %9589 = vmatpush1.bf16.msra.mxu0 %v7307
    %9590 = vmatprep.subr.bf16.mxu0 %v7300
    %9591 = vmatpush1.bf16.msra.mxu0 %v7299
    %9592 = vmatprep.subr.bf16.mxu0 %v7292
    %9593 = vmatpush1.bf16.msra.mxu0 %v7291
    %9594 = vmatprep.subr.bf16.mxu0 %v7412
    %9595 = vmatpush2.bf16.msra.mxu0 %v7411
    %9596 = vmatprep.subr.bf16.mxu0 %v7404
    %9597 = vmatpush2.bf16.msra.mxu0 %v7403
    %9598 = vmatprep.subr.bf16.mxu0 %v7396
    %9599 = vmatpush2.bf16.msra.mxu0 %v7395
    %9600 = vmatprep.subr.bf16.mxu0 %v7388
    %9601 = vmatpush2.bf16.msra.mxu0 %v7387
    %9602 = vmatprep.subr.bf16.mxu0 %v7380
    %9603 = vmatpush2.bf16.msra.mxu0 %v7379
    %9604 = vmatprep.subr.bf16.mxu0 %v7372
    %9605 = vmatpush2.bf16.msra.mxu0 %v7371
    %9606 = vmatprep.subr.bf16.mxu0 %v7364
    %9607 = vmatpush2.bf16.msra.mxu0 %v7363
    %9608 = vmatprep.subr.bf16.mxu0 %v7356
    %9609 = vmatpush2.bf16.msra.mxu0 %v7355
    %9610 = vmatprep.mubr.bf16.mxu0 %v215
    %9611 = vmatmul.mubr.bf16.gmra.mxu0 %v214
    %v9612 = vpop.f32.mrf.mxu0
    %v9613 = vadd.f32 %v9572, %v9612
    %v9614 = vpop.f32.mrf.mxu0
    %v9615 = vadd.f32 %v9574, %v9614
    %v9616 = vpop.f32.mrf.mxu0
    %v9617 = vpop.f32.mrf.mxu0
    %9618 = vdwg.mxu0
    %9619 = vmatprep.subr.bf16.mxu0 %v7476
    %9620 = vmatpush1.bf16.msra.mxu0 %v7475
    %9621 = vmatprep.subr.bf16.mxu0 %v7468
    %9622 = vmatpush1.bf16.msra.mxu0 %v7467
    %9623 = vmatprep.subr.bf16.mxu0 %v7460
    %9624 = vmatpush1.bf16.msra.mxu0 %v7459
    %9625 = vmatprep.subr.bf16.mxu0 %v7452
    %9626 = vmatpush1.bf16.msra.mxu0 %v7451
    %9627 = vmatprep.subr.bf16.mxu0 %v7444
    %9628 = vmatpush1.bf16.msra.mxu0 %v7443
    %9629 = vmatprep.subr.bf16.mxu0 %v7436
    %9630 = vmatpush1.bf16.msra.mxu0 %v7435
    %9631 = vmatprep.subr.bf16.mxu0 %v7428
    %9632 = vmatpush1.bf16.msra.mxu0 %v7427
    %9633 = vmatprep.subr.bf16.mxu0 %v7420
    %9634 = vmatpush1.bf16.msra.mxu0 %v7419
    %9635 = vmatprep.subr.bf16.mxu0 %v7540
    %9636 = vmatpush2.bf16.msra.mxu0 %v7539
    %9637 = vmatprep.subr.bf16.mxu0 %v7532
    %9638 = vmatpush2.bf16.msra.mxu0 %v7531
    %9639 = vmatprep.subr.bf16.mxu0 %v7524
    %9640 = vmatpush2.bf16.msra.mxu0 %v7523
    %9641 = vmatprep.subr.bf16.mxu0 %v7516
    %9642 = vmatpush2.bf16.msra.mxu0 %v7515
    %9643 = vmatprep.subr.bf16.mxu0 %v7508
    %9644 = vmatpush2.bf16.msra.mxu0 %v7507
    %9645 = vmatprep.subr.bf16.mxu0 %v7500
    %9646 = vmatpush2.bf16.msra.mxu0 %v7499
    %9647 = vmatprep.subr.bf16.mxu0 %v7492
    %9648 = vmatpush2.bf16.msra.mxu0 %v7491
    %9649 = vmatprep.subr.bf16.mxu0 %v7484
    %9650 = vmatpush2.bf16.msra.mxu0 %v7483
    %9651 = vmatprep.mubr.bf16.mxu0 %v217
    %9652 = vmatmul.mubr.bf16.gmra.mxu0 %v216
    %v9653 = vpop.f32.mrf.mxu0
    %v9654 = vadd.f32 %v9613, %v9653
    %v9655 = vpop.f32.mrf.mxu0
    %v9656 = vadd.f32 %v9615, %v9655
    %v9657 = vpop.f32.mrf.mxu0
    %v9658 = vpop.f32.mrf.mxu0
    %9659 = vdwg.mxu0
    %9660 = vmatprep.subr.bf16.mxu0 %v7604
    %9661 = vmatpush1.bf16.msra.mxu0 %v7603
    %9662 = vmatprep.subr.bf16.mxu0 %v7596
    %9663 = vmatpush1.bf16.msra.mxu0 %v7595
    %9664 = vmatprep.subr.bf16.mxu0 %v7588
    %9665 = vmatpush1.bf16.msra.mxu0 %v7587
    %9666 = vmatprep.subr.bf16.mxu0 %v7580
    %9667 = vmatpush1.bf16.msra.mxu0 %v7579
    %9668 = vmatprep.subr.bf16.mxu0 %v7572
    %9669 = vmatpush1.bf16.msra.mxu0 %v7571
    %9670 = vmatprep.subr.bf16.mxu0 %v7564
    %9671 = vmatpush1.bf16.msra.mxu0 %v7563
    %9672 = vmatprep.subr.bf16.mxu0 %v7556
    %9673 = vmatpush1.bf16.msra.mxu0 %v7555
    %9674 = vmatprep.subr.bf16.mxu0 %v7548
    %9675 = vmatpush1.bf16.msra.mxu0 %v7547
    %9676 = vmatprep.subr.bf16.mxu0 %v7668
    %9677 = vmatpush2.bf16.msra.mxu0 %v7667
    %9678 = vmatprep.subr.bf16.mxu0 %v7660
    %9679 = vmatpush2.bf16.msra.mxu0 %v7659
    %9680 = vmatprep.subr.bf16.mxu0 %v7652
    %9681 = vmatpush2.bf16.msra.mxu0 %v7651
    %9682 = vmatprep.subr.bf16.mxu0 %v7644
    %9683 = vmatpush2.bf16.msra.mxu0 %v7643
    %9684 = vmatprep.subr.bf16.mxu0 %v7636
    %9685 = vmatpush2.bf16.msra.mxu0 %v7635
    %9686 = vmatprep.subr.bf16.mxu0 %v7628
    %9687 = vmatpush2.bf16.msra.mxu0 %v7627
    %9688 = vmatprep.subr.bf16.mxu0 %v7620
    %9689 = vmatpush2.bf16.msra.mxu0 %v7619
    %9690 = vmatprep.subr.bf16.mxu0 %v7612
    %9691 = vmatpush2.bf16.msra.mxu0 %v7611
    %9692 = vmatprep.mubr.bf16.mxu0 %v219
    %9693 = vmatmul.mubr.bf16.gmra.mxu0 %v218
    %v9694 = vpop.f32.mrf.mxu0
    %v9695 = vadd.f32 %v9654, %v9694
    %v9696 = vpop.f32.mrf.mxu0
    %v9697 = vadd.f32 %v9656, %v9696
    %v9698 = vpop.f32.mrf.mxu0
    %v9699 = vpop.f32.mrf.mxu0
    %9700 = vdwg.mxu0
    %9701 = vmatprep.subr.bf16.mxu0 %v7732
    %9702 = vmatpush1.bf16.msra.mxu0 %v7731
    %9703 = vmatprep.subr.bf16.mxu0 %v7724
    %9704 = vmatpush1.bf16.msra.mxu0 %v7723
    %9705 = vmatprep.subr.bf16.mxu0 %v7716
    %9706 = vmatpush1.bf16.msra.mxu0 %v7715
    %9707 = vmatprep.subr.bf16.mxu0 %v7708
    %9708 = vmatpush1.bf16.msra.mxu0 %v7707
    %9709 = vmatprep.subr.bf16.mxu0 %v7700
    %9710 = vmatpush1.bf16.msra.mxu0 %v7699
    %9711 = vmatprep.subr.bf16.mxu0 %v7692
    %9712 = vmatpush1.bf16.msra.mxu0 %v7691
    %9713 = vmatprep.subr.bf16.mxu0 %v7684
    %9714 = vmatpush1.bf16.msra.mxu0 %v7683
    %9715 = vmatprep.subr.bf16.mxu0 %v7676
    %9716 = vmatpush1.bf16.msra.mxu0 %v7675
    %9717 = vmatprep.subr.bf16.mxu0 %v7796
    %9718 = vmatpush2.bf16.msra.mxu0 %v7795
    %9719 = vmatprep.subr.bf16.mxu0 %v7788
    %9720 = vmatpush2.bf16.msra.mxu0 %v7787
    %9721 = vmatprep.subr.bf16.mxu0 %v7780
    %9722 = vmatpush2.bf16.msra.mxu0 %v7779
    %9723 = vmatprep.subr.bf16.mxu0 %v7772
    %9724 = vmatpush2.bf16.msra.mxu0 %v7771
    %9725 = vmatprep.subr.bf16.mxu0 %v7764
    %9726 = vmatpush2.bf16.msra.mxu0 %v7763
    %9727 = vmatprep.subr.bf16.mxu0 %v7756
    %9728 = vmatpush2.bf16.msra.mxu0 %v7755
    %9729 = vmatprep.subr.bf16.mxu0 %v7748
    %9730 = vmatpush2.bf16.msra.mxu0 %v7747
    %9731 = vmatprep.subr.bf16.mxu0 %v7740
    %9732 = vmatpush2.bf16.msra.mxu0 %v7739
    %9733 = vmatprep.mubr.bf16.mxu0 %v221
    %9734 = vmatmul.mubr.bf16.gmra.mxu0 %v220
    %v9735 = vpop.f32.mrf.mxu0
    %v9736 = vadd.f32 %v9695, %v9735
    %v9737 = vpop.f32.mrf.mxu0
    %v9738 = vadd.f32 %v9697, %v9737
    %v9739 = vpop.f32.mrf.mxu0
    %v9740 = vpop.f32.mrf.mxu0
    %9741 = vdwg.mxu0
    %9742 = vmatprep.subr.bf16.mxu0 %v7860
    %9743 = vmatpush1.bf16.msra.mxu0 %v7859
    %9744 = vmatprep.subr.bf16.mxu0 %v7852
    %9745 = vmatpush1.bf16.msra.mxu0 %v7851
    %9746 = vmatprep.subr.bf16.mxu0 %v7844
    %9747 = vmatpush1.bf16.msra.mxu0 %v7843
    %9748 = vmatprep.subr.bf16.mxu0 %v7836
    %9749 = vmatpush1.bf16.msra.mxu0 %v7835
    %9750 = vmatprep.subr.bf16.mxu0 %v7828
    %9751 = vmatpush1.bf16.msra.mxu0 %v7827
    %9752 = vmatprep.subr.bf16.mxu0 %v7820
    %9753 = vmatpush1.bf16.msra.mxu0 %v7819
    %9754 = vmatprep.subr.bf16.mxu0 %v7812
    %9755 = vmatpush1.bf16.msra.mxu0 %v7811
    %9756 = vmatprep.subr.bf16.mxu0 %v7804
    %9757 = vmatpush1.bf16.msra.mxu0 %v7803
    %9758 = vmatprep.subr.bf16.mxu0 %v7924
    %9759 = vmatpush2.bf16.msra.mxu0 %v7923
    %9760 = vmatprep.subr.bf16.mxu0 %v7916
    %9761 = vmatpush2.bf16.msra.mxu0 %v7915
    %9762 = vmatprep.subr.bf16.mxu0 %v7908
    %9763 = vmatpush2.bf16.msra.mxu0 %v7907
    %9764 = vmatprep.subr.bf16.mxu0 %v7900
    %9765 = vmatpush2.bf16.msra.mxu0 %v7899
    %9766 = vmatprep.subr.bf16.mxu0 %v7892
    %9767 = vmatpush2.bf16.msra.mxu0 %v7891
    %9768 = vmatprep.subr.bf16.mxu0 %v7884
    %9769 = vmatpush2.bf16.msra.mxu0 %v7883
    %9770 = vmatprep.subr.bf16.mxu0 %v7876
    %9771 = vmatpush2.bf16.msra.mxu0 %v7875
    %9772 = vmatprep.subr.bf16.mxu0 %v7868
    %9773 = vmatpush2.bf16.msra.mxu0 %v7867
    %9774 = vmatprep.mubr.bf16.mxu0 %v223
    %9775 = vmatmul.mubr.bf16.gmra.mxu0 %v222
    %v9776 = vpop.f32.mrf.mxu0
    %v9777 = vadd.f32 %v9736, %v9776
    %v9778 = vpop.f32.mrf.mxu0
    %v9779 = vadd.f32 %v9738, %v9778
    %v9780 = vpop.f32.mrf.mxu0
    %v9781 = vpop.f32.mrf.mxu0
    %9782 = vdwg.mxu0
    %9783 = vmatprep.subr.bf16.mxu0 %v7988
    %9784 = vmatpush1.bf16.msra.mxu0 %v7987
    %9785 = vmatprep.subr.bf16.mxu0 %v7980
    %9786 = vmatpush1.bf16.msra.mxu0 %v7979
    %9787 = vmatprep.subr.bf16.mxu0 %v7972
    %9788 = vmatpush1.bf16.msra.mxu0 %v7971
    %9789 = vmatprep.subr.bf16.mxu0 %v7964
    %9790 = vmatpush1.bf16.msra.mxu0 %v7963
    %9791 = vmatprep.subr.bf16.mxu0 %v7956
    %9792 = vmatpush1.bf16.msra.mxu0 %v7955
    %9793 = vmatprep.subr.bf16.mxu0 %v7948
    %9794 = vmatpush1.bf16.msra.mxu0 %v7947
    %9795 = vmatprep.subr.bf16.mxu0 %v7940
    %9796 = vmatpush1.bf16.msra.mxu0 %v7939
    %9797 = vmatprep.subr.bf16.mxu0 %v7932
    %9798 = vmatpush1.bf16.msra.mxu0 %v7931
    %9799 = vmatprep.subr.bf16.mxu0 %v8052
    %9800 = vmatpush2.bf16.msra.mxu0 %v8051
    %9801 = vmatprep.subr.bf16.mxu0 %v8044
    %9802 = vmatpush2.bf16.msra.mxu0 %v8043
    %9803 = vmatprep.subr.bf16.mxu0 %v8036
    %9804 = vmatpush2.bf16.msra.mxu0 %v8035
    %9805 = vmatprep.subr.bf16.mxu0 %v8028
    %9806 = vmatpush2.bf16.msra.mxu0 %v8027
    %9807 = vmatprep.subr.bf16.mxu0 %v8020
    %9808 = vmatpush2.bf16.msra.mxu0 %v8019
    %9809 = vmatprep.subr.bf16.mxu0 %v8012
    %9810 = vmatpush2.bf16.msra.mxu0 %v8011
    %9811 = vmatprep.subr.bf16.mxu0 %v8004
    %9812 = vmatpush2.bf16.msra.mxu0 %v8003
    %9813 = vmatprep.subr.bf16.mxu0 %v7996
    %9814 = vmatpush2.bf16.msra.mxu0 %v7995
    %9815 = vmatprep.mubr.bf16.mxu0 %v225
    %9816 = vmatmul.mubr.bf16.gmra.mxu0 %v224
    %v9817 = vpop.f32.mrf.mxu0
    %v9818 = vadd.f32 %v9777, %v9817
    %v9819 = vpop.f32.mrf.mxu0
    %v9820 = vadd.f32 %v9779, %v9819
    %v9821 = vpop.f32.mrf.mxu0
    %v9822 = vpop.f32.mrf.mxu0
    %9823 = vdwg.mxu0
    %9824 = vmatprep.subr.bf16.mxu0 %v8116
    %9825 = vmatpush1.bf16.msra.mxu0 %v8115
    %9826 = vmatprep.subr.bf16.mxu0 %v8108
    %9827 = vmatpush1.bf16.msra.mxu0 %v8107
    %9828 = vmatprep.subr.bf16.mxu0 %v8100
    %9829 = vmatpush1.bf16.msra.mxu0 %v8099
    %9830 = vmatprep.subr.bf16.mxu0 %v8092
    %9831 = vmatpush1.bf16.msra.mxu0 %v8091
    %9832 = vmatprep.subr.bf16.mxu0 %v8084
    %9833 = vmatpush1.bf16.msra.mxu0 %v8083
    %9834 = vmatprep.subr.bf16.mxu0 %v8076
    %9835 = vmatpush1.bf16.msra.mxu0 %v8075
    %9836 = vmatprep.subr.bf16.mxu0 %v8068
    %9837 = vmatpush1.bf16.msra.mxu0 %v8067
    %9838 = vmatprep.subr.bf16.mxu0 %v8060
    %9839 = vmatpush1.bf16.msra.mxu0 %v8059
    %9840 = vmatprep.subr.bf16.mxu0 %v8180
    %9841 = vmatpush2.bf16.msra.mxu0 %v8179
    %9842 = vmatprep.subr.bf16.mxu0 %v8172
    %9843 = vmatpush2.bf16.msra.mxu0 %v8171
    %9844 = vmatprep.subr.bf16.mxu0 %v8164
    %9845 = vmatpush2.bf16.msra.mxu0 %v8163
    %9846 = vmatprep.subr.bf16.mxu0 %v8156
    %9847 = vmatpush2.bf16.msra.mxu0 %v8155
    %9848 = vmatprep.subr.bf16.mxu0 %v8148
    %9849 = vmatpush2.bf16.msra.mxu0 %v8147
    %9850 = vmatprep.subr.bf16.mxu0 %v8140
    %9851 = vmatpush2.bf16.msra.mxu0 %v8139
    %9852 = vmatprep.subr.bf16.mxu0 %v8132
    %9853 = vmatpush2.bf16.msra.mxu0 %v8131
    %9854 = vmatprep.subr.bf16.mxu0 %v8124
    %9855 = vmatpush2.bf16.msra.mxu0 %v8123
    %9856 = vmatprep.mubr.bf16.mxu0 %v227
    %9857 = vmatmul.mubr.bf16.gmra.mxu0 %v226
    %v9858 = vpop.f32.mrf.mxu0
    %v9859 = vadd.f32 %v9818, %v9858
    %v9860 = vpop.f32.mrf.mxu0
    %v9861 = vadd.f32 %v9820, %v9860
    %v9862 = vpop.f32.mrf.mxu0
    %v9863 = vpop.f32.mrf.mxu0
    %9864 = vdwg.mxu0
    %9865 = vmatprep.subr.bf16.mxu0 %v7222
    %9866 = vmatpush1.bf16.msra.mxu0 %v7221
    %9867 = vmatprep.subr.bf16.mxu0 %v7214
    %9868 = vmatpush1.bf16.msra.mxu0 %v7213
    %9869 = vmatprep.subr.bf16.mxu0 %v7206
    %9870 = vmatpush1.bf16.msra.mxu0 %v7205
    %9871 = vmatprep.subr.bf16.mxu0 %v7198
    %9872 = vmatpush1.bf16.msra.mxu0 %v7197
    %9873 = vmatprep.subr.bf16.mxu0 %v7190
    %9874 = vmatpush1.bf16.msra.mxu0 %v7189
    %9875 = vmatprep.subr.bf16.mxu0 %v7182
    %9876 = vmatpush1.bf16.msra.mxu0 %v7181
    %9877 = vmatprep.subr.bf16.mxu0 %v7174
    %9878 = vmatpush1.bf16.msra.mxu0 %v7173
    %9879 = vmatprep.subr.bf16.mxu0 %v7166
    %9880 = vmatpush1.bf16.msra.mxu0 %v7165
    %9881 = vmatprep.subr.bf16.mxu0 %v7286
    %9882 = vmatpush2.bf16.msra.mxu0 %v7285
    %9883 = vmatprep.subr.bf16.mxu0 %v7278
    %9884 = vmatpush2.bf16.msra.mxu0 %v7277
    %9885 = vmatprep.subr.bf16.mxu0 %v7270
    %9886 = vmatpush2.bf16.msra.mxu0 %v7269
    %9887 = vmatprep.subr.bf16.mxu0 %v7262
    %9888 = vmatpush2.bf16.msra.mxu0 %v7261
    %9889 = vmatprep.subr.bf16.mxu0 %v7254
    %9890 = vmatpush2.bf16.msra.mxu0 %v7253
    %9891 = vmatprep.subr.bf16.mxu0 %v7246
    %9892 = vmatpush2.bf16.msra.mxu0 %v7245
    %9893 = vmatprep.subr.bf16.mxu0 %v7238
    %9894 = vmatpush2.bf16.msra.mxu0 %v7237
    %9895 = vmatprep.subr.bf16.mxu0 %v7230
    %9896 = vmatpush2.bf16.msra.mxu0 %v7229
    %9897 = vmatprep.mubr.bf16.mxu0 %v213
    %9898 = vmatmul.mubr.bf16.gmra.mxu0 %v212
    %v9899 = vpop.f32.mrf.mxu0
    %v9900 = vadd.f32 %v3960, %v9899
    %v9901 = vpop.f32.mrf.mxu0
    %v9902 = vadd.f32 %v3962, %v9901
    %v9903 = vpop.f32.mrf.mxu0
    %v9904 = vpop.f32.mrf.mxu0
    %9905 = vdwg.mxu0
    %9906 = vmatprep.subr.bf16.mxu0 %v7350
    %9907 = vmatpush1.bf16.msra.mxu0 %v7349
    %9908 = vmatprep.subr.bf16.mxu0 %v7342
    %9909 = vmatpush1.bf16.msra.mxu0 %v7341
    %9910 = vmatprep.subr.bf16.mxu0 %v7334
    %9911 = vmatpush1.bf16.msra.mxu0 %v7333
    %9912 = vmatprep.subr.bf16.mxu0 %v7326
    %9913 = vmatpush1.bf16.msra.mxu0 %v7325
    %9914 = vmatprep.subr.bf16.mxu0 %v7318
    %9915 = vmatpush1.bf16.msra.mxu0 %v7317
    %9916 = vmatprep.subr.bf16.mxu0 %v7310
    %9917 = vmatpush1.bf16.msra.mxu0 %v7309
    %9918 = vmatprep.subr.bf16.mxu0 %v7302
    %9919 = vmatpush1.bf16.msra.mxu0 %v7301
    %9920 = vmatprep.subr.bf16.mxu0 %v7294
    %9921 = vmatpush1.bf16.msra.mxu0 %v7293
    %9922 = vmatprep.subr.bf16.mxu0 %v7414
    %9923 = vmatpush2.bf16.msra.mxu0 %v7413
    %9924 = vmatprep.subr.bf16.mxu0 %v7406
    %9925 = vmatpush2.bf16.msra.mxu0 %v7405
    %9926 = vmatprep.subr.bf16.mxu0 %v7398
    %9927 = vmatpush2.bf16.msra.mxu0 %v7397
    %9928 = vmatprep.subr.bf16.mxu0 %v7390
    %9929 = vmatpush2.bf16.msra.mxu0 %v7389
    %9930 = vmatprep.subr.bf16.mxu0 %v7382
    %9931 = vmatpush2.bf16.msra.mxu0 %v7381
    %9932 = vmatprep.subr.bf16.mxu0 %v7374
    %9933 = vmatpush2.bf16.msra.mxu0 %v7373
    %9934 = vmatprep.subr.bf16.mxu0 %v7366
    %9935 = vmatpush2.bf16.msra.mxu0 %v7365
    %9936 = vmatprep.subr.bf16.mxu0 %v7358
    %9937 = vmatpush2.bf16.msra.mxu0 %v7357
    %9938 = vmatprep.mubr.bf16.mxu0 %v215
    %9939 = vmatmul.mubr.bf16.gmra.mxu0 %v214
    %v9940 = vpop.f32.mrf.mxu0
    %v9941 = vadd.f32 %v9900, %v9940
    %v9942 = vpop.f32.mrf.mxu0
    %v9943 = vadd.f32 %v9902, %v9942
    %v9944 = vpop.f32.mrf.mxu0
    %v9945 = vpop.f32.mrf.mxu0
    %9946 = vdwg.mxu0
    %9947 = vmatprep.subr.bf16.mxu0 %v7478
    %9948 = vmatpush1.bf16.msra.mxu0 %v7477
    %9949 = vmatprep.subr.bf16.mxu0 %v7470
    %9950 = vmatpush1.bf16.msra.mxu0 %v7469
    %9951 = vmatprep.subr.bf16.mxu0 %v7462
    %9952 = vmatpush1.bf16.msra.mxu0 %v7461
    %9953 = vmatprep.subr.bf16.mxu0 %v7454
    %9954 = vmatpush1.bf16.msra.mxu0 %v7453
    %9955 = vmatprep.subr.bf16.mxu0 %v7446
    %9956 = vmatpush1.bf16.msra.mxu0 %v7445
    %9957 = vmatprep.subr.bf16.mxu0 %v7438
    %9958 = vmatpush1.bf16.msra.mxu0 %v7437
    %9959 = vmatprep.subr.bf16.mxu0 %v7430
    %9960 = vmatpush1.bf16.msra.mxu0 %v7429
    %9961 = vmatprep.subr.bf16.mxu0 %v7422
    %9962 = vmatpush1.bf16.msra.mxu0 %v7421
    %9963 = vmatprep.subr.bf16.mxu0 %v7542
    %9964 = vmatpush2.bf16.msra.mxu0 %v7541
    %9965 = vmatprep.subr.bf16.mxu0 %v7534
    %9966 = vmatpush2.bf16.msra.mxu0 %v7533
    %9967 = vmatprep.subr.bf16.mxu0 %v7526
    %9968 = vmatpush2.bf16.msra.mxu0 %v7525
    %9969 = vmatprep.subr.bf16.mxu0 %v7518
    %9970 = vmatpush2.bf16.msra.mxu0 %v7517
    %9971 = vmatprep.subr.bf16.mxu0 %v7510
    %9972 = vmatpush2.bf16.msra.mxu0 %v7509
    %9973 = vmatprep.subr.bf16.mxu0 %v7502
    %9974 = vmatpush2.bf16.msra.mxu0 %v7501
    %9975 = vmatprep.subr.bf16.mxu0 %v7494
    %9976 = vmatpush2.bf16.msra.mxu0 %v7493
    %9977 = vmatprep.subr.bf16.mxu0 %v7486
    %9978 = vmatpush2.bf16.msra.mxu0 %v7485
    %9979 = vmatprep.mubr.bf16.mxu0 %v217
    %9980 = vmatmul.mubr.bf16.gmra.mxu0 %v216
    %v9981 = vpop.f32.mrf.mxu0
    %v9982 = vadd.f32 %v9941, %v9981
    %v9983 = vpop.f32.mrf.mxu0
    %v9984 = vadd.f32 %v9943, %v9983
    %v9985 = vpop.f32.mrf.mxu0
    %v9986 = vpop.f32.mrf.mxu0
    %9987 = vdwg.mxu0
    %9988 = vmatprep.subr.bf16.mxu0 %v7606
    %9989 = vmatpush1.bf16.msra.mxu0 %v7605
    %9990 = vmatprep.subr.bf16.mxu0 %v7598
    %9991 = vmatpush1.bf16.msra.mxu0 %v7597
    %9992 = vmatprep.subr.bf16.mxu0 %v7590
    %9993 = vmatpush1.bf16.msra.mxu0 %v7589
    %9994 = vmatprep.subr.bf16.mxu0 %v7582
    %9995 = vmatpush1.bf16.msra.mxu0 %v7581
    %9996 = vmatprep.subr.bf16.mxu0 %v7574
    %9997 = vmatpush1.bf16.msra.mxu0 %v7573
    %9998 = vmatprep.subr.bf16.mxu0 %v7566
    %9999 = vmatpush1.bf16.msra.mxu0 %v7565
    %10000 = vmatprep.subr.bf16.mxu0 %v7558
    %10001 = vmatpush1.bf16.msra.mxu0 %v7557
    %10002 = vmatprep.subr.bf16.mxu0 %v7550
    %10003 = vmatpush1.bf16.msra.mxu0 %v7549
    %10004 = vmatprep.subr.bf16.mxu0 %v7670
    %10005 = vmatpush2.bf16.msra.mxu0 %v7669
    %10006 = vmatprep.subr.bf16.mxu0 %v7662
    %10007 = vmatpush2.bf16.msra.mxu0 %v7661
    %10008 = vmatprep.subr.bf16.mxu0 %v7654
    %10009 = vmatpush2.bf16.msra.mxu0 %v7653
    %10010 = vmatprep.subr.bf16.mxu0 %v7646
    %10011 = vmatpush2.bf16.msra.mxu0 %v7645
    %10012 = vmatprep.subr.bf16.mxu0 %v7638
    %10013 = vmatpush2.bf16.msra.mxu0 %v7637
    %10014 = vmatprep.subr.bf16.mxu0 %v7630
    %10015 = vmatpush2.bf16.msra.mxu0 %v7629
    %10016 = vmatprep.subr.bf16.mxu0 %v7622
    %10017 = vmatpush2.bf16.msra.mxu0 %v7621
    %10018 = vmatprep.subr.bf16.mxu0 %v7614
    %10019 = vmatpush2.bf16.msra.mxu0 %v7613
    %10020 = vmatprep.mubr.bf16.mxu0 %v219
    %10021 = vmatmul.mubr.bf16.gmra.mxu0 %v218
    %v10022 = vpop.f32.mrf.mxu0
    %v10023 = vadd.f32 %v9982, %v10022
    %v10024 = vpop.f32.mrf.mxu0
    %v10025 = vadd.f32 %v9984, %v10024
    %v10026 = vpop.f32.mrf.mxu0
    %v10027 = vpop.f32.mrf.mxu0
    %10028 = vdwg.mxu0
    %10029 = vmatprep.subr.bf16.mxu0 %v7734
    %10030 = vmatpush1.bf16.msra.mxu0 %v7733
    %10031 = vmatprep.subr.bf16.mxu0 %v7726
    %10032 = vmatpush1.bf16.msra.mxu0 %v7725
    %10033 = vmatprep.subr.bf16.mxu0 %v7718
    %10034 = vmatpush1.bf16.msra.mxu0 %v7717
    %10035 = vmatprep.subr.bf16.mxu0 %v7710
    %10036 = vmatpush1.bf16.msra.mxu0 %v7709
    %10037 = vmatprep.subr.bf16.mxu0 %v7702
    %10038 = vmatpush1.bf16.msra.mxu0 %v7701
    %10039 = vmatprep.subr.bf16.mxu0 %v7694
    %10040 = vmatpush1.bf16.msra.mxu0 %v7693
    %10041 = vmatprep.subr.bf16.mxu0 %v7686
    %10042 = vmatpush1.bf16.msra.mxu0 %v7685
    %10043 = vmatprep.subr.bf16.mxu0 %v7678
    %10044 = vmatpush1.bf16.msra.mxu0 %v7677
    %10045 = vmatprep.subr.bf16.mxu0 %v7798
    %10046 = vmatpush2.bf16.msra.mxu0 %v7797
    %10047 = vmatprep.subr.bf16.mxu0 %v7790
    %10048 = vmatpush2.bf16.msra.mxu0 %v7789
    %10049 = vmatprep.subr.bf16.mxu0 %v7782
    %10050 = vmatpush2.bf16.msra.mxu0 %v7781
    %10051 = vmatprep.subr.bf16.mxu0 %v7774
    %10052 = vmatpush2.bf16.msra.mxu0 %v7773
    %10053 = vmatprep.subr.bf16.mxu0 %v7766
    %10054 = vmatpush2.bf16.msra.mxu0 %v7765
    %10055 = vmatprep.subr.bf16.mxu0 %v7758
    %10056 = vmatpush2.bf16.msra.mxu0 %v7757
    %10057 = vmatprep.subr.bf16.mxu0 %v7750
    %10058 = vmatpush2.bf16.msra.mxu0 %v7749
    %10059 = vmatprep.subr.bf16.mxu0 %v7742
    %10060 = vmatpush2.bf16.msra.mxu0 %v7741
    %10061 = vmatprep.mubr.bf16.mxu0 %v221
    %10062 = vmatmul.mubr.bf16.gmra.mxu0 %v220
    %v10063 = vpop.f32.mrf.mxu0
    %v10064 = vadd.f32 %v10023, %v10063
    %v10065 = vpop.f32.mrf.mxu0
    %v10066 = vadd.f32 %v10025, %v10065
    %v10067 = vpop.f32.mrf.mxu0
    %v10068 = vpop.f32.mrf.mxu0
    %10069 = vdwg.mxu0
    %10070 = vmatprep.subr.bf16.mxu0 %v7862
    %10071 = vmatpush1.bf16.msra.mxu0 %v7861
    %10072 = vmatprep.subr.bf16.mxu0 %v7854
    %10073 = vmatpush1.bf16.msra.mxu0 %v7853
    %10074 = vmatprep.subr.bf16.mxu0 %v7846
    %10075 = vmatpush1.bf16.msra.mxu0 %v7845
    %10076 = vmatprep.subr.bf16.mxu0 %v7838
    %10077 = vmatpush1.bf16.msra.mxu0 %v7837
    %10078 = vmatprep.subr.bf16.mxu0 %v7830
    %10079 = vmatpush1.bf16.msra.mxu0 %v7829
    %10080 = vmatprep.subr.bf16.mxu0 %v7822
    %10081 = vmatpush1.bf16.msra.mxu0 %v7821
    %10082 = vmatprep.subr.bf16.mxu0 %v7814
    %10083 = vmatpush1.bf16.msra.mxu0 %v7813
    %10084 = vmatprep.subr.bf16.mxu0 %v7806
    %10085 = vmatpush1.bf16.msra.mxu0 %v7805
    %10086 = vmatprep.subr.bf16.mxu0 %v7926
    %10087 = vmatpush2.bf16.msra.mxu0 %v7925
    %10088 = vmatprep.subr.bf16.mxu0 %v7918
    %10089 = vmatpush2.bf16.msra.mxu0 %v7917
    %10090 = vmatprep.subr.bf16.mxu0 %v7910
    %10091 = vmatpush2.bf16.msra.mxu0 %v7909
    %10092 = vmatprep.subr.bf16.mxu0 %v7902
    %10093 = vmatpush2.bf16.msra.mxu0 %v7901
    %10094 = vmatprep.subr.bf16.mxu0 %v7894
    %10095 = vmatpush2.bf16.msra.mxu0 %v7893
    %10096 = vmatprep.subr.bf16.mxu0 %v7886
    %10097 = vmatpush2.bf16.msra.mxu0 %v7885
    %10098 = vmatprep.subr.bf16.mxu0 %v7878
    %10099 = vmatpush2.bf16.msra.mxu0 %v7877
    %10100 = vmatprep.subr.bf16.mxu0 %v7870
    %10101 = vmatpush2.bf16.msra.mxu0 %v7869
    %10102 = vmatprep.mubr.bf16.mxu0 %v223
    %10103 = vmatmul.mubr.bf16.gmra.mxu0 %v222
    %v10104 = vpop.f32.mrf.mxu0
    %v10105 = vadd.f32 %v10064, %v10104
    %v10106 = vpop.f32.mrf.mxu0
    %v10107 = vadd.f32 %v10066, %v10106
    %v10108 = vpop.f32.mrf.mxu0
    %v10109 = vpop.f32.mrf.mxu0
    %10110 = vdwg.mxu0
    %10111 = vmatprep.subr.bf16.mxu0 %v7990
    %10112 = vmatpush1.bf16.msra.mxu0 %v7989
    %10113 = vmatprep.subr.bf16.mxu0 %v7982
    %10114 = vmatpush1.bf16.msra.mxu0 %v7981
    %10115 = vmatprep.subr.bf16.mxu0 %v7974
    %10116 = vmatpush1.bf16.msra.mxu0 %v7973
    %10117 = vmatprep.subr.bf16.mxu0 %v7966
    %10118 = vmatpush1.bf16.msra.mxu0 %v7965
    %10119 = vmatprep.subr.bf16.mxu0 %v7958
    %10120 = vmatpush1.bf16.msra.mxu0 %v7957
    %10121 = vmatprep.subr.bf16.mxu0 %v7950
    %10122 = vmatpush1.bf16.msra.mxu0 %v7949
    %10123 = vmatprep.subr.bf16.mxu0 %v7942
    %10124 = vmatpush1.bf16.msra.mxu0 %v7941
    %10125 = vmatprep.subr.bf16.mxu0 %v7934
    %10126 = vmatpush1.bf16.msra.mxu0 %v7933
    %10127 = vmatprep.subr.bf16.mxu0 %v8054
    %10128 = vmatpush2.bf16.msra.mxu0 %v8053
    %10129 = vmatprep.subr.bf16.mxu0 %v8046
    %10130 = vmatpush2.bf16.msra.mxu0 %v8045
    %10131 = vmatprep.subr.bf16.mxu0 %v8038
    %10132 = vmatpush2.bf16.msra.mxu0 %v8037
    %10133 = vmatprep.subr.bf16.mxu0 %v8030
    %10134 = vmatpush2.bf16.msra.mxu0 %v8029
    %10135 = vmatprep.subr.bf16.mxu0 %v8022
    %10136 = vmatpush2.bf16.msra.mxu0 %v8021
    %10137 = vmatprep.subr.bf16.mxu0 %v8014
    %10138 = vmatpush2.bf16.msra.mxu0 %v8013
    %10139 = vmatprep.subr.bf16.mxu0 %v8006
    %10140 = vmatpush2.bf16.msra.mxu0 %v8005
    %10141 = vmatprep.subr.bf16.mxu0 %v7998
    %10142 = vmatpush2.bf16.msra.mxu0 %v7997
    %10143 = vmatprep.mubr.bf16.mxu0 %v225
    %10144 = vmatmul.mubr.bf16.gmra.mxu0 %v224
    %v10145 = vpop.f32.mrf.mxu0
    %v10146 = vadd.f32 %v10105, %v10145
    %v10147 = vpop.f32.mrf.mxu0
    %v10148 = vadd.f32 %v10107, %v10147
    %v10149 = vpop.f32.mrf.mxu0
    %v10150 = vpop.f32.mrf.mxu0
    %10151 = vdwg.mxu0
    %10152 = vmatprep.subr.bf16.mxu0 %v8118
    %10153 = vmatpush1.bf16.msra.mxu0 %v8117
    %10154 = vmatprep.subr.bf16.mxu0 %v8110
    %10155 = vmatpush1.bf16.msra.mxu0 %v8109
    %10156 = vmatprep.subr.bf16.mxu0 %v8102
    %10157 = vmatpush1.bf16.msra.mxu0 %v8101
    %10158 = vmatprep.subr.bf16.mxu0 %v8094
    %10159 = vmatpush1.bf16.msra.mxu0 %v8093
    %10160 = vmatprep.subr.bf16.mxu0 %v8086
    %10161 = vmatpush1.bf16.msra.mxu0 %v8085
    %10162 = vmatprep.subr.bf16.mxu0 %v8078
    %10163 = vmatpush1.bf16.msra.mxu0 %v8077
    %10164 = vmatprep.subr.bf16.mxu0 %v8070
    %10165 = vmatpush1.bf16.msra.mxu0 %v8069
    %10166 = vmatprep.subr.bf16.mxu0 %v8062
    %10167 = vmatpush1.bf16.msra.mxu0 %v8061
    %10168 = vmatprep.subr.bf16.mxu0 %v8182
    %10169 = vmatpush2.bf16.msra.mxu0 %v8181
    %10170 = vmatprep.subr.bf16.mxu0 %v8174
    %10171 = vmatpush2.bf16.msra.mxu0 %v8173
    %10172 = vmatprep.subr.bf16.mxu0 %v8166
    %10173 = vmatpush2.bf16.msra.mxu0 %v8165
    %10174 = vmatprep.subr.bf16.mxu0 %v8158
    %10175 = vmatpush2.bf16.msra.mxu0 %v8157
    %10176 = vmatprep.subr.bf16.mxu0 %v8150
    %10177 = vmatpush2.bf16.msra.mxu0 %v8149
    %10178 = vmatprep.subr.bf16.mxu0 %v8142
    %10179 = vmatpush2.bf16.msra.mxu0 %v8141
    %10180 = vmatprep.subr.bf16.mxu0 %v8134
    %10181 = vmatpush2.bf16.msra.mxu0 %v8133
    %10182 = vmatprep.subr.bf16.mxu0 %v8126
    %10183 = vmatpush2.bf16.msra.mxu0 %v8125
    %10184 = vmatprep.mubr.bf16.mxu0 %v227
    %10185 = vmatmul.mubr.bf16.gmra.mxu0 %v226
    %v10186 = vpop.f32.mrf.mxu0
    %v10187 = vadd.f32 %v10146, %v10186
    %v10188 = vpop.f32.mrf.mxu0
    %v10189 = vadd.f32 %v10148, %v10188
    %v10190 = vpop.f32.mrf.mxu0
    %v10191 = vpop.f32.mrf.mxu0
    %10192 = vdwg.mxu0
    %10193 = vmatprep.subr.bf16.mxu0 %v7224
    %10194 = vmatpush1.bf16.msra.mxu0 %v7223
    %10195 = vmatprep.subr.bf16.mxu0 %v7216
    %10196 = vmatpush1.bf16.msra.mxu0 %v7215
    %10197 = vmatprep.subr.bf16.mxu0 %v7208
    %10198 = vmatpush1.bf16.msra.mxu0 %v7207
    %10199 = vmatprep.subr.bf16.mxu0 %v7200
    %10200 = vmatpush1.bf16.msra.mxu0 %v7199
    %10201 = vmatprep.subr.bf16.mxu0 %v7192
    %10202 = vmatpush1.bf16.msra.mxu0 %v7191
    %10203 = vmatprep.subr.bf16.mxu0 %v7184
    %10204 = vmatpush1.bf16.msra.mxu0 %v7183
    %10205 = vmatprep.subr.bf16.mxu0 %v7176
    %10206 = vmatpush1.bf16.msra.mxu0 %v7175
    %10207 = vmatprep.subr.bf16.mxu0 %v7168
    %10208 = vmatpush1.bf16.msra.mxu0 %v7167
    %10209 = vmatprep.subr.bf16.mxu0 %v7288
    %10210 = vmatpush2.bf16.msra.mxu0 %v7287
    %10211 = vmatprep.subr.bf16.mxu0 %v7280
    %10212 = vmatpush2.bf16.msra.mxu0 %v7279
    %10213 = vmatprep.subr.bf16.mxu0 %v7272
    %10214 = vmatpush2.bf16.msra.mxu0 %v7271
    %10215 = vmatprep.subr.bf16.mxu0 %v7264
    %10216 = vmatpush2.bf16.msra.mxu0 %v7263
    %10217 = vmatprep.subr.bf16.mxu0 %v7256
    %10218 = vmatpush2.bf16.msra.mxu0 %v7255
    %10219 = vmatprep.subr.bf16.mxu0 %v7248
    %10220 = vmatpush2.bf16.msra.mxu0 %v7247
    %10221 = vmatprep.subr.bf16.mxu0 %v7240
    %10222 = vmatpush2.bf16.msra.mxu0 %v7239
    %10223 = vmatprep.subr.bf16.mxu0 %v7232
    %10224 = vmatpush2.bf16.msra.mxu0 %v7231
    %10225 = vmatprep.mubr.bf16.mxu0 %v213
    %10226 = vmatmul.mubr.bf16.gmra.mxu0 %v212
    %v10227 = vpop.f32.mrf.mxu0
    %v10228 = vadd.f32 %v4083, %v10227
    %v10229 = vpop.f32.mrf.mxu0
    %v10230 = vadd.f32 %v4085, %v10229
    %v10231 = vpop.f32.mrf.mxu0
    %v10232 = vpop.f32.mrf.mxu0
    %10233 = vdwg.mxu0
    %10234 = vmatprep.subr.bf16.mxu0 %v7352
    %10235 = vmatpush1.bf16.msra.mxu0 %v7351
    %10236 = vmatprep.subr.bf16.mxu0 %v7344
    %10237 = vmatpush1.bf16.msra.mxu0 %v7343
    %10238 = vmatprep.subr.bf16.mxu0 %v7336
    %10239 = vmatpush1.bf16.msra.mxu0 %v7335
    %10240 = vmatprep.subr.bf16.mxu0 %v7328
    %10241 = vmatpush1.bf16.msra.mxu0 %v7327
    %10242 = vmatprep.subr.bf16.mxu0 %v7320
    %10243 = vmatpush1.bf16.msra.mxu0 %v7319
    %10244 = vmatprep.subr.bf16.mxu0 %v7312
    %10245 = vmatpush1.bf16.msra.mxu0 %v7311
    %10246 = vmatprep.subr.bf16.mxu0 %v7304
    %10247 = vmatpush1.bf16.msra.mxu0 %v7303
    %10248 = vmatprep.subr.bf16.mxu0 %v7296
    %10249 = vmatpush1.bf16.msra.mxu0 %v7295
    %10250 = vmatprep.subr.bf16.mxu0 %v7416
    %10251 = vmatpush2.bf16.msra.mxu0 %v7415
    %10252 = vmatprep.subr.bf16.mxu0 %v7408
    %10253 = vmatpush2.bf16.msra.mxu0 %v7407
    %10254 = vmatprep.subr.bf16.mxu0 %v7400
    %10255 = vmatpush2.bf16.msra.mxu0 %v7399
    %10256 = vmatprep.subr.bf16.mxu0 %v7392
    %10257 = vmatpush2.bf16.msra.mxu0 %v7391
    %10258 = vmatprep.subr.bf16.mxu0 %v7384
    %10259 = vmatpush2.bf16.msra.mxu0 %v7383
    %10260 = vmatprep.subr.bf16.mxu0 %v7376
    %10261 = vmatpush2.bf16.msra.mxu0 %v7375
    %10262 = vmatprep.subr.bf16.mxu0 %v7368
    %10263 = vmatpush2.bf16.msra.mxu0 %v7367
    %10264 = vmatprep.subr.bf16.mxu0 %v7360
    %10265 = vmatpush2.bf16.msra.mxu0 %v7359
    %10266 = vmatprep.mubr.bf16.mxu0 %v215
    %10267 = vmatmul.mubr.bf16.gmra.mxu0 %v214
    %v10268 = vpop.f32.mrf.mxu0
    %v10269 = vadd.f32 %v10228, %v10268
    %v10270 = vpop.f32.mrf.mxu0
    %v10271 = vadd.f32 %v10230, %v10270
    %v10272 = vpop.f32.mrf.mxu0
    %v10273 = vpop.f32.mrf.mxu0
    %10274 = vdwg.mxu0
    %10275 = vmatprep.subr.bf16.mxu0 %v7480
    %10276 = vmatpush1.bf16.msra.mxu0 %v7479
    %10277 = vmatprep.subr.bf16.mxu0 %v7472
    %10278 = vmatpush1.bf16.msra.mxu0 %v7471
    %10279 = vmatprep.subr.bf16.mxu0 %v7464
    %10280 = vmatpush1.bf16.msra.mxu0 %v7463
    %10281 = vmatprep.subr.bf16.mxu0 %v7456
    %10282 = vmatpush1.bf16.msra.mxu0 %v7455
    %10283 = vmatprep.subr.bf16.mxu0 %v7448
    %10284 = vmatpush1.bf16.msra.mxu0 %v7447
    %10285 = vmatprep.subr.bf16.mxu0 %v7440
    %10286 = vmatpush1.bf16.msra.mxu0 %v7439
    %10287 = vmatprep.subr.bf16.mxu0 %v7432
    %10288 = vmatpush1.bf16.msra.mxu0 %v7431
    %10289 = vmatprep.subr.bf16.mxu0 %v7424
    %10290 = vmatpush1.bf16.msra.mxu0 %v7423
    %10291 = vmatprep.subr.bf16.mxu0 %v7544
    %10292 = vmatpush2.bf16.msra.mxu0 %v7543
    %10293 = vmatprep.subr.bf16.mxu0 %v7536
    %10294 = vmatpush2.bf16.msra.mxu0 %v7535
    %10295 = vmatprep.subr.bf16.mxu0 %v7528
    %10296 = vmatpush2.bf16.msra.mxu0 %v7527
    %10297 = vmatprep.subr.bf16.mxu0 %v7520
    %10298 = vmatpush2.bf16.msra.mxu0 %v7519
    %10299 = vmatprep.subr.bf16.mxu0 %v7512
    %10300 = vmatpush2.bf16.msra.mxu0 %v7511
    %10301 = vmatprep.subr.bf16.mxu0 %v7504
    %10302 = vmatpush2.bf16.msra.mxu0 %v7503
    %10303 = vmatprep.subr.bf16.mxu0 %v7496
    %10304 = vmatpush2.bf16.msra.mxu0 %v7495
    %10305 = vmatprep.subr.bf16.mxu0 %v7488
    %10306 = vmatpush2.bf16.msra.mxu0 %v7487
    %10307 = vmatprep.mubr.bf16.mxu0 %v217
    %10308 = vmatmul.mubr.bf16.gmra.mxu0 %v216
    %v10309 = vpop.f32.mrf.mxu0
    %v10310 = vadd.f32 %v10269, %v10309
    %v10311 = vpop.f32.mrf.mxu0
    %v10312 = vadd.f32 %v10271, %v10311
    %v10313 = vpop.f32.mrf.mxu0
    %v10314 = vpop.f32.mrf.mxu0
    %10315 = vdwg.mxu0
    %10316 = vmatprep.subr.bf16.mxu0 %v7608
    %10317 = vmatpush1.bf16.msra.mxu0 %v7607
    %10318 = vmatprep.subr.bf16.mxu0 %v7600
    %10319 = vmatpush1.bf16.msra.mxu0 %v7599
    %10320 = vmatprep.subr.bf16.mxu0 %v7592
    %10321 = vmatpush1.bf16.msra.mxu0 %v7591
    %10322 = vmatprep.subr.bf16.mxu0 %v7584
    %10323 = vmatpush1.bf16.msra.mxu0 %v7583
    %10324 = vmatprep.subr.bf16.mxu0 %v7576
    %10325 = vmatpush1.bf16.msra.mxu0 %v7575
    %10326 = vmatprep.subr.bf16.mxu0 %v7568
    %10327 = vmatpush1.bf16.msra.mxu0 %v7567
    %10328 = vmatprep.subr.bf16.mxu0 %v7560
    %10329 = vmatpush1.bf16.msra.mxu0 %v7559
    %10330 = vmatprep.subr.bf16.mxu0 %v7552
    %10331 = vmatpush1.bf16.msra.mxu0 %v7551
    %10332 = vmatprep.subr.bf16.mxu0 %v7672
    %10333 = vmatpush2.bf16.msra.mxu0 %v7671
    %10334 = vmatprep.subr.bf16.mxu0 %v7664
    %10335 = vmatpush2.bf16.msra.mxu0 %v7663
    %10336 = vmatprep.subr.bf16.mxu0 %v7656
    %10337 = vmatpush2.bf16.msra.mxu0 %v7655
    %10338 = vmatprep.subr.bf16.mxu0 %v7648
    %10339 = vmatpush2.bf16.msra.mxu0 %v7647
    %10340 = vmatprep.subr.bf16.mxu0 %v7640
    %10341 = vmatpush2.bf16.msra.mxu0 %v7639
    %10342 = vmatprep.subr.bf16.mxu0 %v7632
    %10343 = vmatpush2.bf16.msra.mxu0 %v7631
    %10344 = vmatprep.subr.bf16.mxu0 %v7624
    %10345 = vmatpush2.bf16.msra.mxu0 %v7623
    %10346 = vmatprep.subr.bf16.mxu0 %v7616
    %10347 = vmatpush2.bf16.msra.mxu0 %v7615
    %10348 = vmatprep.mubr.bf16.mxu0 %v219
    %10349 = vmatmul.mubr.bf16.gmra.mxu0 %v218
    %v10350 = vpop.f32.mrf.mxu0
    %v10351 = vadd.f32 %v10310, %v10350
    %v10352 = vpop.f32.mrf.mxu0
    %v10353 = vadd.f32 %v10312, %v10352
    %v10354 = vpop.f32.mrf.mxu0
    %v10355 = vpop.f32.mrf.mxu0
    %10356 = vdwg.mxu0
    %10357 = vmatprep.subr.bf16.mxu0 %v7736
    %10358 = vmatpush1.bf16.msra.mxu0 %v7735
    %10359 = vmatprep.subr.bf16.mxu0 %v7728
    %10360 = vmatpush1.bf16.msra.mxu0 %v7727
    %10361 = vmatprep.subr.bf16.mxu0 %v7720
    %10362 = vmatpush1.bf16.msra.mxu0 %v7719
    %10363 = vmatprep.subr.bf16.mxu0 %v7712
    %10364 = vmatpush1.bf16.msra.mxu0 %v7711
    %10365 = vmatprep.subr.bf16.mxu0 %v7704
    %10366 = vmatpush1.bf16.msra.mxu0 %v7703
    %10367 = vmatprep.subr.bf16.mxu0 %v7696
    %10368 = vmatpush1.bf16.msra.mxu0 %v7695
    %10369 = vmatprep.subr.bf16.mxu0 %v7688
    %10370 = vmatpush1.bf16.msra.mxu0 %v7687
    %10371 = vmatprep.subr.bf16.mxu0 %v7680
    %10372 = vmatpush1.bf16.msra.mxu0 %v7679
    %10373 = vmatprep.subr.bf16.mxu0 %v7800
    %10374 = vmatpush2.bf16.msra.mxu0 %v7799
    %10375 = vmatprep.subr.bf16.mxu0 %v7792
    %10376 = vmatpush2.bf16.msra.mxu0 %v7791
    %10377 = vmatprep.subr.bf16.mxu0 %v7784
    %10378 = vmatpush2.bf16.msra.mxu0 %v7783
    %10379 = vmatprep.subr.bf16.mxu0 %v7776
    %10380 = vmatpush2.bf16.msra.mxu0 %v7775
    %10381 = vmatprep.subr.bf16.mxu0 %v7768
    %10382 = vmatpush2.bf16.msra.mxu0 %v7767
    %10383 = vmatprep.subr.bf16.mxu0 %v7760
    %10384 = vmatpush2.bf16.msra.mxu0 %v7759
    %10385 = vmatprep.subr.bf16.mxu0 %v7752
    %10386 = vmatpush2.bf16.msra.mxu0 %v7751
    %10387 = vmatprep.subr.bf16.mxu0 %v7744
    %10388 = vmatpush2.bf16.msra.mxu0 %v7743
    %10389 = vmatprep.mubr.bf16.mxu0 %v221
    %10390 = vmatmul.mubr.bf16.gmra.mxu0 %v220
    %v10391 = vpop.f32.mrf.mxu0
    %v10392 = vadd.f32 %v10351, %v10391
    %v10393 = vpop.f32.mrf.mxu0
    %v10394 = vadd.f32 %v10353, %v10393
    %v10395 = vpop.f32.mrf.mxu0
    %v10396 = vpop.f32.mrf.mxu0
    %10397 = vdwg.mxu0
    %10398 = vmatprep.subr.bf16.mxu0 %v7864
    %10399 = vmatpush1.bf16.msra.mxu0 %v7863
    %10400 = vmatprep.subr.bf16.mxu0 %v7856
    %10401 = vmatpush1.bf16.msra.mxu0 %v7855
    %10402 = vmatprep.subr.bf16.mxu0 %v7848
    %10403 = vmatpush1.bf16.msra.mxu0 %v7847
    %10404 = vmatprep.subr.bf16.mxu0 %v7840
    %10405 = vmatpush1.bf16.msra.mxu0 %v7839
    %10406 = vmatprep.subr.bf16.mxu0 %v7832
    %10407 = vmatpush1.bf16.msra.mxu0 %v7831
    %10408 = vmatprep.subr.bf16.mxu0 %v7824
    %10409 = vmatpush1.bf16.msra.mxu0 %v7823
    %10410 = vmatprep.subr.bf16.mxu0 %v7816
    %10411 = vmatpush1.bf16.msra.mxu0 %v7815
    %10412 = vmatprep.subr.bf16.mxu0 %v7808
    %10413 = vmatpush1.bf16.msra.mxu0 %v7807
    %10414 = vmatprep.subr.bf16.mxu0 %v7928
    %10415 = vmatpush2.bf16.msra.mxu0 %v7927
    %10416 = vmatprep.subr.bf16.mxu0 %v7920
    %10417 = vmatpush2.bf16.msra.mxu0 %v7919
    %10418 = vmatprep.subr.bf16.mxu0 %v7912
    %10419 = vmatpush2.bf16.msra.mxu0 %v7911
    %10420 = vmatprep.subr.bf16.mxu0 %v7904
    %10421 = vmatpush2.bf16.msra.mxu0 %v7903
    %10422 = vmatprep.subr.bf16.mxu0 %v7896
    %10423 = vmatpush2.bf16.msra.mxu0 %v7895
    %10424 = vmatprep.subr.bf16.mxu0 %v7888
    %10425 = vmatpush2.bf16.msra.mxu0 %v7887
    %10426 = vmatprep.subr.bf16.mxu0 %v7880
    %10427 = vmatpush2.bf16.msra.mxu0 %v7879
    %10428 = vmatprep.subr.bf16.mxu0 %v7872
    %10429 = vmatpush2.bf16.msra.mxu0 %v7871
    %10430 = vmatprep.mubr.bf16.mxu0 %v223
    %10431 = vmatmul.mubr.bf16.gmra.mxu0 %v222
    %v10432 = vpop.f32.mrf.mxu0
    %v10433 = vadd.f32 %v10392, %v10432
    %v10434 = vpop.f32.mrf.mxu0
    %v10435 = vadd.f32 %v10394, %v10434
    %v10436 = vpop.f32.mrf.mxu0
    %v10437 = vpop.f32.mrf.mxu0
    %10438 = vdwg.mxu0
    %10439 = vmatprep.subr.bf16.mxu0 %v7992
    %10440 = vmatpush1.bf16.msra.mxu0 %v7991
    %10441 = vmatprep.subr.bf16.mxu0 %v7984
    %10442 = vmatpush1.bf16.msra.mxu0 %v7983
    %10443 = vmatprep.subr.bf16.mxu0 %v7976
    %10444 = vmatpush1.bf16.msra.mxu0 %v7975
    %10445 = vmatprep.subr.bf16.mxu0 %v7968
    %10446 = vmatpush1.bf16.msra.mxu0 %v7967
    %10447 = vmatprep.subr.bf16.mxu0 %v7960
    %10448 = vmatpush1.bf16.msra.mxu0 %v7959
    %10449 = vmatprep.subr.bf16.mxu0 %v7952
    %10450 = vmatpush1.bf16.msra.mxu0 %v7951
    %10451 = vmatprep.subr.bf16.mxu0 %v7944
    %10452 = vmatpush1.bf16.msra.mxu0 %v7943
    %10453 = vmatprep.subr.bf16.mxu0 %v7936
    %10454 = vmatpush1.bf16.msra.mxu0 %v7935
    %10455 = vmatprep.subr.bf16.mxu0 %v8056
    %10456 = vmatpush2.bf16.msra.mxu0 %v8055
    %10457 = vmatprep.subr.bf16.mxu0 %v8048
    %10458 = vmatpush2.bf16.msra.mxu0 %v8047
    %10459 = vmatprep.subr.bf16.mxu0 %v8040
    %10460 = vmatpush2.bf16.msra.mxu0 %v8039
    %10461 = vmatprep.subr.bf16.mxu0 %v8032
    %10462 = vmatpush2.bf16.msra.mxu0 %v8031
    %10463 = vmatprep.subr.bf16.mxu0 %v8024
    %10464 = vmatpush2.bf16.msra.mxu0 %v8023
    %10465 = vmatprep.subr.bf16.mxu0 %v8016
    %10466 = vmatpush2.bf16.msra.mxu0 %v8015
    %10467 = vmatprep.subr.bf16.mxu0 %v8008
    %10468 = vmatpush2.bf16.msra.mxu0 %v8007
    %10469 = vmatprep.subr.bf16.mxu0 %v8000
    %10470 = vmatpush2.bf16.msra.mxu0 %v7999
    %10471 = vmatprep.mubr.bf16.mxu0 %v225
    %10472 = vmatmul.mubr.bf16.gmra.mxu0 %v224
    %v10473 = vpop.f32.mrf.mxu0
    %v10474 = vadd.f32 %v10433, %v10473
    %v10475 = vpop.f32.mrf.mxu0
    %v10476 = vadd.f32 %v10435, %v10475
    %v10477 = vpop.f32.mrf.mxu0
    %v10478 = vpop.f32.mrf.mxu0
    %10479 = vdwg.mxu0
    %10480 = vmatprep.subr.bf16.mxu0 %v8120
    %10481 = vmatpush1.bf16.msra.mxu0 %v8119
    %10482 = vmatprep.subr.bf16.mxu0 %v8112
    %10483 = vmatpush1.bf16.msra.mxu0 %v8111
    %10484 = vmatprep.subr.bf16.mxu0 %v8104
    %10485 = vmatpush1.bf16.msra.mxu0 %v8103
    %10486 = vmatprep.subr.bf16.mxu0 %v8096
    %10487 = vmatpush1.bf16.msra.mxu0 %v8095
    %10488 = vmatprep.subr.bf16.mxu0 %v8088
    %10489 = vmatpush1.bf16.msra.mxu0 %v8087
    %10490 = vmatprep.subr.bf16.mxu0 %v8080
    %10491 = vmatpush1.bf16.msra.mxu0 %v8079
    %10492 = vmatprep.subr.bf16.mxu0 %v8072
    %10493 = vmatpush1.bf16.msra.mxu0 %v8071
    %10494 = vmatprep.subr.bf16.mxu0 %v8064
    %10495 = vmatpush1.bf16.msra.mxu0 %v8063
    %10496 = vmatprep.subr.bf16.mxu0 %v8184
    %10497 = vmatpush2.bf16.msra.mxu0 %v8183
    %10498 = vmatprep.subr.bf16.mxu0 %v8176
    %10499 = vmatpush2.bf16.msra.mxu0 %v8175
    %10500 = vmatprep.subr.bf16.mxu0 %v8168
    %10501 = vmatpush2.bf16.msra.mxu0 %v8167
    %10502 = vmatprep.subr.bf16.mxu0 %v8160
    %10503 = vmatpush2.bf16.msra.mxu0 %v8159
    %10504 = vmatprep.subr.bf16.mxu0 %v8152
    %10505 = vmatpush2.bf16.msra.mxu0 %v8151
    %10506 = vmatprep.subr.bf16.mxu0 %v8144
    %10507 = vmatpush2.bf16.msra.mxu0 %v8143
    %10508 = vmatprep.subr.bf16.mxu0 %v8136
    %10509 = vmatpush2.bf16.msra.mxu0 %v8135
    %10510 = vmatprep.subr.bf16.mxu0 %v8128
    %10511 = vmatpush2.bf16.msra.mxu0 %v8127
    %10512 = vmatprep.mubr.bf16.mxu0 %v227
    %10513 = vmatmul.mubr.bf16.gmra.mxu0 %v226
    %v10514 = vpop.f32.mrf.mxu0
    %v10515 = vadd.f32 %v10474, %v10514
    %v10516 = vpop.f32.mrf.mxu0
    %v10517 = vadd.f32 %v10476, %v10516
    %v10518 = vpop.f32.mrf.mxu0
    %v10519 = vpop.f32.mrf.mxu0
    %10520 = vdwg.mxu0
    %v10521 = vld [vmem:[#allocation10] sm:$0xff]
    %v10523 = vlaneseq
    %v10524 = vshrl.u32 %v10523, 7
    %v10525 = vsub.s32 0, %v10524
    %v10526 = vrot.slane %v10521, %v10525
    %v10527 = vlaneseq
    %v10528 = vshrl.u32 %v10527, 7
    %v10529 = vsub.s32 1, %v10528
    %v10530 = vrot.slane %v10521, %v10529
    %v10531 = vlaneseq
    %v10532 = vshrl.u32 %v10531, 7
    %v10533 = vsub.s32 2, %v10532
    %v10534 = vrot.slane %v10521, %v10533
    %v10535 = vlaneseq
    %v10536 = vshrl.u32 %v10535, 7
    %v10537 = vsub.s32 3, %v10536
    %v10538 = vrot.slane %v10521, %v10537
    %v10539 = vlaneseq
    %v10540 = vshrl.u32 %v10539, 7
    %v10541 = vsub.s32 4, %v10540
    %v10542 = vrot.slane %v10521, %v10541
    %v10543 = vlaneseq
    %v10544 = vshrl.u32 %v10543, 7
    %v10545 = vsub.s32 5, %v10544
    %v10546 = vrot.slane %v10521, %v10545
    %v10547 = vlaneseq
    %v10548 = vshrl.u32 %v10547, 7
    %v10549 = vsub.s32 6, %v10548
    %v10550 = vrot.slane %v10521, %v10549
    %v10551 = vlaneseq
    %v10552 = vshrl.u32 %v10551, 7
    %v10553 = vsub.s32 7, %v10552
    %v10554 = vrot.slane %v10521, %v10553
    %v10563 = vadd.f32 %v9531, %v10526
    %v10564 = vadd.f32 %v9533, %v10530
    %v10565 = vadd.f32 %v9859, %v10534
    %v10566 = vadd.f32 %v9861, %v10538
    %v10567 = vadd.f32 %v10187, %v10542
    %v10568 = vadd.f32 %v10189, %v10546
    %v10569 = vadd.f32 %v10515, %v10550
    %v10570 = vadd.f32 %v10517, %v10554
    %v10571 = vmax.f32 %v10563, 0.0
    %v10572 = vmax.f32 %v10564, 0.0
    %v10573 = vmax.f32 %v10565, 0.0
    %v10574 = vmax.f32 %v10566, 0.0
    %v10575 = vmax.f32 %v10567, 0.0
    %v10576 = vmax.f32 %v10568, 0.0
    %v10577 = vmax.f32 %v10569, 0.0
    %v10578 = vmax.f32 %v10570, 0.0
    %v10579 = vld [vmem:[#allocation14] sm:$0x3]
    %v10580 = vpack.c.bf16 %v10571, %v10571
    %v10581 = vpack.c.bf16 %v10572, %v10572
    %v10582 = vpack.c.bf16 %v10573, %v10573
    %v10583 = vpack.c.bf16 %v10574, %v10574
    %v10584 = vpack.c.bf16 %v10575, %v10575
    %v10585 = vpack.c.bf16 %v10576, %v10576
    %v10586 = vpack.c.bf16 %v10577, %v10577
    %v10587 = vpack.c.bf16 %v10578, %v10578
    %v10588 = vld [vmem:[#allocation11] sm:$0xf]
    %v10589 = vld [vmem:[#allocation11 + $0x4] sm:$0xf]
    %v10590 = vld [vmem:[#allocation11 + $0x8] sm:$0xf]
    %v10591 = vld [vmem:[#allocation11 + $0xc] sm:$0xf]
    %v10592 = vld [vmem:[#allocation11 + $0x10] sm:$0xf]
    %v10593 = vld [vmem:[#allocation11 + $0x14] sm:$0xf]
    %v10594 = vld [vmem:[#allocation11 + $0x18] sm:$0xf]
    %v10595 = vld [vmem:[#allocation11 + $0x1c] sm:$0xf]
    %v10596 = vld [vmem:[#allocation11 + $0x20] sm:$0xf]
    %v10597 = vld [vmem:[#allocation11 + $0x24] sm:$0xf]
    %v10598 = vld [vmem:[#allocation11 + $0x28] sm:$0xf]
    %v10599 = vld [vmem:[#allocation11 + $0x2c] sm:$0xf]
    %v10600 = vld [vmem:[#allocation11 + $0x30] sm:$0xf]
    %v10601 = vld [vmem:[#allocation11 + $0x34] sm:$0xf]
    %v10602 = vld [vmem:[#allocation11 + $0x38] sm:$0xf]
    %v10603 = vld [vmem:[#allocation11 + $0x3c] sm:$0xf]
    %v10604 = vld [vmem:[#allocation11 + $0x40] sm:$0xf]
    %v10605 = vld [vmem:[#allocation11 + $0x44] sm:$0xf]
    %v10606 = vld [vmem:[#allocation11 + $0x48] sm:$0xf]
    %v10607 = vld [vmem:[#allocation11 + $0x4c] sm:$0xf]
    %v10608 = vld [vmem:[#allocation11 + $0x50] sm:$0xf]
    %v10609 = vld [vmem:[#allocation11 + $0x54] sm:$0xf]
    %v10610 = vld [vmem:[#allocation11 + $0x58] sm:$0xf]
    %v10611 = vld [vmem:[#allocation11 + $0x5c] sm:$0xf]
    %v10612 = vld [vmem:[#allocation11 + $0x60] sm:$0xf]
    %v10613 = vld [vmem:[#allocation11 + $0x64] sm:$0xf]
    %v10614 = vld [vmem:[#allocation11 + $0x68] sm:$0xf]
    %v10615 = vld [vmem:[#allocation11 + $0x6c] sm:$0xf]
    %v10616 = vld [vmem:[#allocation11 + $0x70] sm:$0xf]
    %v10617 = vld [vmem:[#allocation11 + $0x74] sm:$0xf]
    %v10618 = vld [vmem:[#allocation11 + $0x78] sm:$0xf]
    %v10619 = vld [vmem:[#allocation11 + $0x7c] sm:$0xf]
    %v10620 = vld [vmem:[#allocation11 + $0x80] sm:$0xf]
    %v10621 = vld [vmem:[#allocation11 + $0x84] sm:$0xf]
    %v10622 = vld [vmem:[#allocation11 + $0x88] sm:$0xf]
    %v10623 = vld [vmem:[#allocation11 + $0x8c] sm:$0xf]
    %v10624 = vld [vmem:[#allocation11 + $0x90] sm:$0xf]
    %v10625 = vld [vmem:[#allocation11 + $0x94] sm:$0xf]
    %v10626 = vld [vmem:[#allocation11 + $0x98] sm:$0xf]
    %v10627 = vld [vmem:[#allocation11 + $0x9c] sm:$0xf]
    %v10628 = vld [vmem:[#allocation11 + $0xa0] sm:$0xf]
    %v10629 = vld [vmem:[#allocation11 + $0xa4] sm:$0xf]
    %v10630 = vld [vmem:[#allocation11 + $0xa8] sm:$0xf]
    %v10631 = vld [vmem:[#allocation11 + $0xac] sm:$0xf]
    %v10632 = vld [vmem:[#allocation11 + $0xb0] sm:$0xf]
    %v10633 = vld [vmem:[#allocation11 + $0xb4] sm:$0xf]
    %v10634 = vld [vmem:[#allocation11 + $0xb8] sm:$0xf]
    %v10635 = vld [vmem:[#allocation11 + $0xbc] sm:$0xf]
    %v10636 = vld [vmem:[#allocation11 + $0xc0] sm:$0xf]
    %v10637 = vld [vmem:[#allocation11 + $0xc4] sm:$0xf]
    %v10638 = vld [vmem:[#allocation11 + $0xc8] sm:$0xf]
    %v10639 = vld [vmem:[#allocation11 + $0xcc] sm:$0xf]
    %v10640 = vld [vmem:[#allocation11 + $0xd0] sm:$0xf]
    %v10641 = vld [vmem:[#allocation11 + $0xd4] sm:$0xf]
    %v10642 = vld [vmem:[#allocation11 + $0xd8] sm:$0xf]
    %v10643 = vld [vmem:[#allocation11 + $0xdc] sm:$0xf]
    %v10644 = vld [vmem:[#allocation11 + $0xe0] sm:$0xf]
    %v10645 = vld [vmem:[#allocation11 + $0xe4] sm:$0xf]
    %v10646 = vld [vmem:[#allocation11 + $0xe8] sm:$0xf]
    %v10647 = vld [vmem:[#allocation11 + $0xec] sm:$0xf]
    %v10648 = vld [vmem:[#allocation11 + $0xf0] sm:$0xf]
    %v10649 = vld [vmem:[#allocation11 + $0xf4] sm:$0xf]
    %v10650 = vld [vmem:[#allocation11 + $0xf8] sm:$0xf]
    %v10651 = vld [vmem:[#allocation11 + $0xfc] sm:$0xf]
    %v10652 = vld [vmem:[#allocation11 + $0x100] sm:$0xf]
    %v10653 = vld [vmem:[#allocation11 + $0x104] sm:$0xf]
    %v10654 = vld [vmem:[#allocation11 + $0x108] sm:$0xf]
    %v10655 = vld [vmem:[#allocation11 + $0x10c] sm:$0xf]
    %v10656 = vld [vmem:[#allocation11 + $0x110] sm:$0xf]
    %v10657 = vld [vmem:[#allocation11 + $0x114] sm:$0xf]
    %v10658 = vld [vmem:[#allocation11 + $0x118] sm:$0xf]
    %v10659 = vld [vmem:[#allocation11 + $0x11c] sm:$0xf]
    %v10660 = vld [vmem:[#allocation11 + $0x120] sm:$0xf]
    %v10661 = vld [vmem:[#allocation11 + $0x124] sm:$0xf]
    %v10662 = vld [vmem:[#allocation11 + $0x128] sm:$0xf]
    %v10663 = vld [vmem:[#allocation11 + $0x12c] sm:$0xf]
    %v10664 = vld [vmem:[#allocation11 + $0x130] sm:$0xf]
    %v10665 = vld [vmem:[#allocation11 + $0x134] sm:$0xf]
    %v10666 = vld [vmem:[#allocation11 + $0x138] sm:$0xf]
    %v10667 = vld [vmem:[#allocation11 + $0x13c] sm:$0xf]
    %v10668 = vld [vmem:[#allocation11 + $0x140] sm:$0xf]
    %v10669 = vld [vmem:[#allocation11 + $0x144] sm:$0xf]
    %v10670 = vld [vmem:[#allocation11 + $0x148] sm:$0xf]
    %v10671 = vld [vmem:[#allocation11 + $0x14c] sm:$0xf]
    %v10672 = vld [vmem:[#allocation11 + $0x150] sm:$0xf]
    %v10673 = vld [vmem:[#allocation11 + $0x154] sm:$0xf]
    %v10674 = vld [vmem:[#allocation11 + $0x158] sm:$0xf]
    %v10675 = vld [vmem:[#allocation11 + $0x15c] sm:$0xf]
    %v10676 = vld [vmem:[#allocation11 + $0x160] sm:$0xf]
    %v10677 = vld [vmem:[#allocation11 + $0x164] sm:$0xf]
    %v10678 = vld [vmem:[#allocation11 + $0x168] sm:$0xf]
    %v10679 = vld [vmem:[#allocation11 + $0x16c] sm:$0xf]
    %v10680 = vld [vmem:[#allocation11 + $0x170] sm:$0xf]
    %v10681 = vld [vmem:[#allocation11 + $0x174] sm:$0xf]
    %v10682 = vld [vmem:[#allocation11 + $0x178] sm:$0xf]
    %v10683 = vld [vmem:[#allocation11 + $0x17c] sm:$0xf]
    %v10684 = vld [vmem:[#allocation11 + $0x180] sm:$0xf]
    %v10685 = vld [vmem:[#allocation11 + $0x184] sm:$0xf]
    %v10686 = vld [vmem:[#allocation11 + $0x188] sm:$0xf]
    %v10687 = vld [vmem:[#allocation11 + $0x18c] sm:$0xf]
    %v10688 = vld [vmem:[#allocation11 + $0x190] sm:$0xf]
    %v10689 = vld [vmem:[#allocation11 + $0x194] sm:$0xf]
    %v10690 = vld [vmem:[#allocation11 + $0x198] sm:$0xf]
    %v10691 = vld [vmem:[#allocation11 + $0x19c] sm:$0xf]
    %v10692 = vld [vmem:[#allocation11 + $0x1a0] sm:$0xf]
    %v10693 = vld [vmem:[#allocation11 + $0x1a4] sm:$0xf]
    %v10694 = vld [vmem:[#allocation11 + $0x1a8] sm:$0xf]
    %v10695 = vld [vmem:[#allocation11 + $0x1ac] sm:$0xf]
    %v10696 = vld [vmem:[#allocation11 + $0x1b0] sm:$0xf]
    %v10697 = vld [vmem:[#allocation11 + $0x1b4] sm:$0xf]
    %v10698 = vld [vmem:[#allocation11 + $0x1b8] sm:$0xf]
    %v10699 = vld [vmem:[#allocation11 + $0x1bc] sm:$0xf]
    %v10700 = vld [vmem:[#allocation11 + $0x1c0] sm:$0xf]
    %v10701 = vld [vmem:[#allocation11 + $0x1c4] sm:$0xf]
    %v10702 = vld [vmem:[#allocation11 + $0x1c8] sm:$0xf]
    %v10703 = vld [vmem:[#allocation11 + $0x1cc] sm:$0xf]
    %v10704 = vld [vmem:[#allocation11 + $0x1d0] sm:$0xf]
    %v10705 = vld [vmem:[#allocation11 + $0x1d4] sm:$0xf]
    %v10706 = vld [vmem:[#allocation11 + $0x1d8] sm:$0xf]
    %v10707 = vld [vmem:[#allocation11 + $0x1dc] sm:$0xf]
    %v10708 = vld [vmem:[#allocation11 + $0x1e0] sm:$0xf]
    %v10709 = vld [vmem:[#allocation11 + $0x1e4] sm:$0xf]
    %v10710 = vld [vmem:[#allocation11 + $0x1e8] sm:$0xf]
    %v10711 = vld [vmem:[#allocation11 + $0x1ec] sm:$0xf]
    %v10712 = vld [vmem:[#allocation11 + $0x1f0] sm:$0xf]
    %v10713 = vld [vmem:[#allocation11 + $0x1f4] sm:$0xf]
    %v10714 = vld [vmem:[#allocation11 + $0x1f8] sm:$0xf]
    %v10715 = vld [vmem:[#allocation11 + $0x1fc] sm:$0xf]
    %v10844 = vunpack.c.l.b16 %v10588
    %v10845 = vunpack.c.l.b16 %v10589
    %v10846 = vunpack.c.l.b16 %v10590
    %v10847 = vunpack.c.l.b16 %v10591
    %v10848 = vunpack.c.l.b16 %v10592
    %v10849 = vunpack.c.l.b16 %v10593
    %v10850 = vunpack.c.l.b16 %v10594
    %v10851 = vunpack.c.l.b16 %v10595
    %v10852 = vunpack.c.l.b16 %v10596
    %v10853 = vunpack.c.l.b16 %v10597
    %v10854 = vunpack.c.l.b16 %v10598
    %v10855 = vunpack.c.l.b16 %v10599
    %v10856 = vunpack.c.l.b16 %v10600
    %v10857 = vunpack.c.l.b16 %v10601
    %v10858 = vunpack.c.l.b16 %v10602
    %v10859 = vunpack.c.l.b16 %v10603
    %v10860 = vunpack.c.l.b16 %v10604
    %v10861 = vunpack.c.l.b16 %v10605
    %v10862 = vunpack.c.l.b16 %v10606
    %v10863 = vunpack.c.l.b16 %v10607
    %v10864 = vunpack.c.l.b16 %v10608
    %v10865 = vunpack.c.l.b16 %v10609
    %v10866 = vunpack.c.l.b16 %v10610
    %v10867 = vunpack.c.l.b16 %v10611
    %v10868 = vunpack.c.l.b16 %v10612
    %v10869 = vunpack.c.l.b16 %v10613
    %v10870 = vunpack.c.l.b16 %v10614
    %v10871 = vunpack.c.l.b16 %v10615
    %v10872 = vunpack.c.l.b16 %v10616
    %v10873 = vunpack.c.l.b16 %v10617
    %v10874 = vunpack.c.l.b16 %v10618
    %v10875 = vunpack.c.l.b16 %v10619
    %v10876 = vunpack.c.l.b16 %v10620
    %v10877 = vunpack.c.l.b16 %v10621
    %v10878 = vunpack.c.l.b16 %v10622
    %v10879 = vunpack.c.l.b16 %v10623
    %v10880 = vunpack.c.l.b16 %v10624
    %v10881 = vunpack.c.l.b16 %v10625
    %v10882 = vunpack.c.l.b16 %v10626
    %v10883 = vunpack.c.l.b16 %v10627
    %v10884 = vunpack.c.l.b16 %v10628
    %v10885 = vunpack.c.l.b16 %v10629
    %v10886 = vunpack.c.l.b16 %v10630
    %v10887 = vunpack.c.l.b16 %v10631
    %v10888 = vunpack.c.l.b16 %v10632
    %v10889 = vunpack.c.l.b16 %v10633
    %v10890 = vunpack.c.l.b16 %v10634
    %v10891 = vunpack.c.l.b16 %v10635
    %v10892 = vunpack.c.l.b16 %v10636
    %v10893 = vunpack.c.l.b16 %v10637
    %v10894 = vunpack.c.l.b16 %v10638
    %v10895 = vunpack.c.l.b16 %v10639
    %v10896 = vunpack.c.l.b16 %v10640
    %v10897 = vunpack.c.l.b16 %v10641
    %v10898 = vunpack.c.l.b16 %v10642
    %v10899 = vunpack.c.l.b16 %v10643
    %v10900 = vunpack.c.l.b16 %v10644
    %v10901 = vunpack.c.l.b16 %v10645
    %v10902 = vunpack.c.l.b16 %v10646
    %v10903 = vunpack.c.l.b16 %v10647
    %v10904 = vunpack.c.l.b16 %v10648
    %v10905 = vunpack.c.l.b16 %v10649
    %v10906 = vunpack.c.l.b16 %v10650
    %v10907 = vunpack.c.l.b16 %v10651
    %v10908 = vunpack.c.l.b16 %v10652
    %v10909 = vunpack.c.l.b16 %v10653
    %v10910 = vunpack.c.l.b16 %v10654
    %v10911 = vunpack.c.l.b16 %v10655
    %v10912 = vunpack.c.l.b16 %v10656
    %v10913 = vunpack.c.l.b16 %v10657
    %v10914 = vunpack.c.l.b16 %v10658
    %v10915 = vunpack.c.l.b16 %v10659
    %v10916 = vunpack.c.l.b16 %v10660
    %v10917 = vunpack.c.l.b16 %v10661
    %v10918 = vunpack.c.l.b16 %v10662
    %v10919 = vunpack.c.l.b16 %v10663
    %v10920 = vunpack.c.l.b16 %v10664
    %v10921 = vunpack.c.l.b16 %v10665
    %v10922 = vunpack.c.l.b16 %v10666
    %v10923 = vunpack.c.l.b16 %v10667
    %v10924 = vunpack.c.l.b16 %v10668
    %v10925 = vunpack.c.l.b16 %v10669
    %v10926 = vunpack.c.l.b16 %v10670
    %v10927 = vunpack.c.l.b16 %v10671
    %v10928 = vunpack.c.l.b16 %v10672
    %v10929 = vunpack.c.l.b16 %v10673
    %v10930 = vunpack.c.l.b16 %v10674
    %v10931 = vunpack.c.l.b16 %v10675
    %v10932 = vunpack.c.l.b16 %v10676
    %v10933 = vunpack.c.l.b16 %v10677
    %v10934 = vunpack.c.l.b16 %v10678
    %v10935 = vunpack.c.l.b16 %v10679
    %v10936 = vunpack.c.l.b16 %v10680
    %v10937 = vunpack.c.l.b16 %v10681
    %v10938 = vunpack.c.l.b16 %v10682
    %v10939 = vunpack.c.l.b16 %v10683
    %v10940 = vunpack.c.l.b16 %v10684
    %v10941 = vunpack.c.l.b16 %v10685
    %v10942 = vunpack.c.l.b16 %v10686
    %v10943 = vunpack.c.l.b16 %v10687
    %v10944 = vunpack.c.l.b16 %v10688
    %v10945 = vunpack.c.l.b16 %v10689
    %v10946 = vunpack.c.l.b16 %v10690
    %v10947 = vunpack.c.l.b16 %v10691
    %v10948 = vunpack.c.l.b16 %v10692
    %v10949 = vunpack.c.l.b16 %v10693
    %v10950 = vunpack.c.l.b16 %v10694
    %v10951 = vunpack.c.l.b16 %v10695
    %v10952 = vunpack.c.l.b16 %v10696
    %v10953 = vunpack.c.l.b16 %v10697
    %v10954 = vunpack.c.l.b16 %v10698
    %v10955 = vunpack.c.l.b16 %v10699
    %v10956 = vunpack.c.l.b16 %v10700
    %v10957 = vunpack.c.l.b16 %v10701
    %v10958 = vunpack.c.l.b16 %v10702
    %v10959 = vunpack.c.l.b16 %v10703
    %v10960 = vunpack.c.l.b16 %v10704
    %v10961 = vunpack.c.l.b16 %v10705
    %v10962 = vunpack.c.l.b16 %v10706
    %v10963 = vunpack.c.l.b16 %v10707
    %v10964 = vunpack.c.l.b16 %v10708
    %v10965 = vunpack.c.l.b16 %v10709
    %v10966 = vunpack.c.l.b16 %v10710
    %v10967 = vunpack.c.l.b16 %v10711
    %v10968 = vunpack.c.l.b16 %v10712
    %v10969 = vunpack.c.l.b16 %v10713
    %v10970 = vunpack.c.l.b16 %v10714
    %v10971 = vunpack.c.l.b16 %v10715
    %v10972 = vpack.c.b16 %v10845, %v10844
    %v10973 = vpack.c.b16 %v10847, %v10846
    %v10974 = vpack.c.b16 %v10849, %v10848
    %v10975 = vpack.c.b16 %v10851, %v10850
    %v10976 = vpack.c.b16 %v10853, %v10852
    %v10977 = vpack.c.b16 %v10855, %v10854
    %v10978 = vpack.c.b16 %v10857, %v10856
    %v10979 = vpack.c.b16 %v10859, %v10858
    %v10980 = vpack.c.b16 %v10861, %v10860
    %v10981 = vpack.c.b16 %v10863, %v10862
    %v10982 = vpack.c.b16 %v10865, %v10864
    %v10983 = vpack.c.b16 %v10867, %v10866
    %v10984 = vpack.c.b16 %v10869, %v10868
    %v10985 = vpack.c.b16 %v10871, %v10870
    %v10986 = vpack.c.b16 %v10873, %v10872
    %v10987 = vpack.c.b16 %v10875, %v10874
    %v10988 = vpack.c.b16 %v10877, %v10876
    %v10989 = vpack.c.b16 %v10879, %v10878
    %v10990 = vpack.c.b16 %v10881, %v10880
    %v10991 = vpack.c.b16 %v10883, %v10882
    %v10992 = vpack.c.b16 %v10885, %v10884
    %v10993 = vpack.c.b16 %v10887, %v10886
    %v10994 = vpack.c.b16 %v10889, %v10888
    %v10995 = vpack.c.b16 %v10891, %v10890
    %v10996 = vpack.c.b16 %v10893, %v10892
    %v10997 = vpack.c.b16 %v10895, %v10894
    %v10998 = vpack.c.b16 %v10897, %v10896
    %v10999 = vpack.c.b16 %v10899, %v10898
    %v11000 = vpack.c.b16 %v10901, %v10900
    %v11001 = vpack.c.b16 %v10903, %v10902
    %v11002 = vpack.c.b16 %v10905, %v10904
    %v11003 = vpack.c.b16 %v10907, %v10906
    %v11004 = vpack.c.b16 %v10909, %v10908
    %v11005 = vpack.c.b16 %v10911, %v10910
    %v11006 = vpack.c.b16 %v10913, %v10912
    %v11007 = vpack.c.b16 %v10915, %v10914
    %v11008 = vpack.c.b16 %v10917, %v10916
    %v11009 = vpack.c.b16 %v10919, %v10918
    %v11010 = vpack.c.b16 %v10921, %v10920
    %v11011 = vpack.c.b16 %v10923, %v10922
    %v11012 = vpack.c.b16 %v10925, %v10924
    %v11013 = vpack.c.b16 %v10927, %v10926
    %v11014 = vpack.c.b16 %v10929, %v10928
    %v11015 = vpack.c.b16 %v10931, %v10930
    %v11016 = vpack.c.b16 %v10933, %v10932
    %v11017 = vpack.c.b16 %v10935, %v10934
    %v11018 = vpack.c.b16 %v10937, %v10936
    %v11019 = vpack.c.b16 %v10939, %v10938
    %v11020 = vpack.c.b16 %v10941, %v10940
    %v11021 = vpack.c.b16 %v10943, %v10942
    %v11022 = vpack.c.b16 %v10945, %v10944
    %v11023 = vpack.c.b16 %v10947, %v10946
    %v11024 = vpack.c.b16 %v10949, %v10948
    %v11025 = vpack.c.b16 %v10951, %v10950
    %v11026 = vpack.c.b16 %v10953, %v10952
    %v11027 = vpack.c.b16 %v10955, %v10954
    %v11028 = vpack.c.b16 %v10957, %v10956
    %v11029 = vpack.c.b16 %v10959, %v10958
    %v11030 = vpack.c.b16 %v10961, %v10960
    %v11031 = vpack.c.b16 %v10963, %v10962
    %v11032 = vpack.c.b16 %v10965, %v10964
    %v11033 = vpack.c.b16 %v10967, %v10966
    %v11034 = vpack.c.b16 %v10969, %v10968
    %v11035 = vpack.c.b16 %v10971, %v10970
    %11100 = vmatprep.subr.bf16.mxu0 0
    %11101 = vmatpush1.bf16.msra.mxu0 %v10979
    %11102 = vmatprep.subr.bf16.mxu0 0
    %11103 = vmatpush1.bf16.msra.mxu0 %v10978
    %11104 = vmatprep.subr.bf16.mxu0 0
    %11105 = vmatpush1.bf16.msra.mxu0 %v10977
    %11106 = vmatprep.subr.bf16.mxu0 0
    %11107 = vmatpush1.bf16.msra.mxu0 %v10976
    %11108 = vmatprep.subr.bf16.mxu0 0
    %11109 = vmatpush1.bf16.msra.mxu0 %v10975
    %11110 = vmatprep.subr.bf16.mxu0 0
    %11111 = vmatpush1.bf16.msra.mxu0 %v10974
    %11112 = vmatprep.subr.bf16.mxu0 0
    %11113 = vmatpush1.bf16.msra.mxu0 %v10973
    %11114 = vmatprep.subr.bf16.mxu0 0
    %11115 = vmatpush1.bf16.msra.mxu0 %v10972
    %11116 = vmatprep.subr.bf16.mxu0 0
    %11117 = vmatpush2.bf16.msra.mxu0 %v10987
    %11118 = vmatprep.subr.bf16.mxu0 0
    %11119 = vmatpush2.bf16.msra.mxu0 %v10986
    %11120 = vmatprep.subr.bf16.mxu0 0
    %11121 = vmatpush2.bf16.msra.mxu0 %v10985
    %11122 = vmatprep.subr.bf16.mxu0 0
    %11123 = vmatpush2.bf16.msra.mxu0 %v10984
    %11124 = vmatprep.subr.bf16.mxu0 0
    %11125 = vmatpush2.bf16.msra.mxu0 %v10983
    %11126 = vmatprep.subr.bf16.mxu0 0
    %11127 = vmatpush2.bf16.msra.mxu0 %v10982
    %11128 = vmatprep.subr.bf16.mxu0 0
    %11129 = vmatpush2.bf16.msra.mxu0 %v10981
    %11130 = vmatprep.subr.bf16.mxu0 0
    %11131 = vmatpush2.bf16.msra.mxu0 %v10980
    %11132 = vmatprep.mubr.bf16.mxu0 %v10581
    %11133 = vmatmul.mubr.bf16.gmra.mxu0 %v10580
    %v11134 = vpop.f32.mrf.mxu0
    %v11135 = vadd.f32 0.0, %v11134
    %v11136 = vpop.f32.mrf.mxu0
    %v11137 = vpop.f32.mrf.mxu0
    %v11138 = vpop.f32.mrf.mxu0
    %11139 = vdwg.mxu0
    %11140 = vmatprep.subr.bf16.mxu0 0
    %11141 = vmatpush1.bf16.msra.mxu0 %v10995
    %11142 = vmatprep.subr.bf16.mxu0 0
    %11143 = vmatpush1.bf16.msra.mxu0 %v10994
    %11144 = vmatprep.subr.bf16.mxu0 0
    %11145 = vmatpush1.bf16.msra.mxu0 %v10993
    %11146 = vmatprep.subr.bf16.mxu0 0
    %11147 = vmatpush1.bf16.msra.mxu0 %v10992
    %11148 = vmatprep.subr.bf16.mxu0 0
    %11149 = vmatpush1.bf16.msra.mxu0 %v10991
    %11150 = vmatprep.subr.bf16.mxu0 0
    %11151 = vmatpush1.bf16.msra.mxu0 %v10990
    %11152 = vmatprep.subr.bf16.mxu0 0
    %11153 = vmatpush1.bf16.msra.mxu0 %v10989
    %11154 = vmatprep.subr.bf16.mxu0 0
    %11155 = vmatpush1.bf16.msra.mxu0 %v10988
    %11156 = vmatprep.subr.bf16.mxu0 0
    %11157 = vmatpush2.bf16.msra.mxu0 %v11003
    %11158 = vmatprep.subr.bf16.mxu0 0
    %11159 = vmatpush2.bf16.msra.mxu0 %v11002
    %11160 = vmatprep.subr.bf16.mxu0 0
    %11161 = vmatpush2.bf16.msra.mxu0 %v11001
    %11162 = vmatprep.subr.bf16.mxu0 0
    %11163 = vmatpush2.bf16.msra.mxu0 %v11000
    %11164 = vmatprep.subr.bf16.mxu0 0
    %11165 = vmatpush2.bf16.msra.mxu0 %v10999
    %11166 = vmatprep.subr.bf16.mxu0 0
    %11167 = vmatpush2.bf16.msra.mxu0 %v10998
    %11168 = vmatprep.subr.bf16.mxu0 0
    %11169 = vmatpush2.bf16.msra.mxu0 %v10997
    %11170 = vmatprep.subr.bf16.mxu0 0
    %11171 = vmatpush2.bf16.msra.mxu0 %v10996
    %11172 = vmatprep.mubr.bf16.mxu0 %v10583
    %11173 = vmatmul.mubr.bf16.gmra.mxu0 %v10582
    %v11174 = vpop.f32.mrf.mxu0
    %v11175 = vadd.f32 %v11135, %v11174
    %v11176 = vpop.f32.mrf.mxu0
    %v11177 = vpop.f32.mrf.mxu0
    %v11178 = vpop.f32.mrf.mxu0
    %11179 = vdwg.mxu0
    %11180 = vmatprep.subr.bf16.mxu0 0
    %11181 = vmatpush1.bf16.msra.mxu0 %v11011
    %11182 = vmatprep.subr.bf16.mxu0 0
    %11183 = vmatpush1.bf16.msra.mxu0 %v11010
    %11184 = vmatprep.subr.bf16.mxu0 0
    %11185 = vmatpush1.bf16.msra.mxu0 %v11009
    %11186 = vmatprep.subr.bf16.mxu0 0
    %11187 = vmatpush1.bf16.msra.mxu0 %v11008
    %11188 = vmatprep.subr.bf16.mxu0 0
    %11189 = vmatpush1.bf16.msra.mxu0 %v11007
    %11190 = vmatprep.subr.bf16.mxu0 0
    %11191 = vmatpush1.bf16.msra.mxu0 %v11006
    %11192 = vmatprep.subr.bf16.mxu0 0
    %11193 = vmatpush1.bf16.msra.mxu0 %v11005
    %11194 = vmatprep.subr.bf16.mxu0 0
    %11195 = vmatpush1.bf16.msra.mxu0 %v11004
    %11196 = vmatprep.subr.bf16.mxu0 0
    %11197 = vmatpush2.bf16.msra.mxu0 %v11019
    %11198 = vmatprep.subr.bf16.mxu0 0
    %11199 = vmatpush2.bf16.msra.mxu0 %v11018
    %11200 = vmatprep.subr.bf16.mxu0 0
    %11201 = vmatpush2.bf16.msra.mxu0 %v11017
    %11202 = vmatprep.subr.bf16.mxu0 0
    %11203 = vmatpush2.bf16.msra.mxu0 %v11016
    %11204 = vmatprep.subr.bf16.mxu0 0
    %11205 = vmatpush2.bf16.msra.mxu0 %v11015
    %11206 = vmatprep.subr.bf16.mxu0 0
    %11207 = vmatpush2.bf16.msra.mxu0 %v11014
    %11208 = vmatprep.subr.bf16.mxu0 0
    %11209 = vmatpush2.bf16.msra.mxu0 %v11013
    %11210 = vmatprep.subr.bf16.mxu0 0
    %11211 = vmatpush2.bf16.msra.mxu0 %v11012
    %11212 = vmatprep.mubr.bf16.mxu0 %v10585
    %11213 = vmatmul.mubr.bf16.gmra.mxu0 %v10584
    %v11214 = vpop.f32.mrf.mxu0
    %v11215 = vadd.f32 %v11175, %v11214
    %v11216 = vpop.f32.mrf.mxu0
    %v11217 = vpop.f32.mrf.mxu0
    %v11218 = vpop.f32.mrf.mxu0
    %11219 = vdwg.mxu0
    %11220 = vmatprep.subr.bf16.mxu0 0
    %11221 = vmatpush1.bf16.msra.mxu0 %v11027
    %11222 = vmatprep.subr.bf16.mxu0 0
    %11223 = vmatpush1.bf16.msra.mxu0 %v11026
    %11224 = vmatprep.subr.bf16.mxu0 0
    %11225 = vmatpush1.bf16.msra.mxu0 %v11025
    %11226 = vmatprep.subr.bf16.mxu0 0
    %11227 = vmatpush1.bf16.msra.mxu0 %v11024
    %11228 = vmatprep.subr.bf16.mxu0 0
    %11229 = vmatpush1.bf16.msra.mxu0 %v11023
    %11230 = vmatprep.subr.bf16.mxu0 0
    %11231 = vmatpush1.bf16.msra.mxu0 %v11022
    %11232 = vmatprep.subr.bf16.mxu0 0
    %11233 = vmatpush1.bf16.msra.mxu0 %v11021
    %11234 = vmatprep.subr.bf16.mxu0 0
    %11235 = vmatpush1.bf16.msra.mxu0 %v11020
    %11236 = vmatprep.subr.bf16.mxu0 0
    %11237 = vmatpush2.bf16.msra.mxu0 %v11035
    %11238 = vmatprep.subr.bf16.mxu0 0
    %11239 = vmatpush2.bf16.msra.mxu0 %v11034
    %11240 = vmatprep.subr.bf16.mxu0 0
    %11241 = vmatpush2.bf16.msra.mxu0 %v11033
    %11242 = vmatprep.subr.bf16.mxu0 0
    %11243 = vmatpush2.bf16.msra.mxu0 %v11032
    %11244 = vmatprep.subr.bf16.mxu0 0
    %11245 = vmatpush2.bf16.msra.mxu0 %v11031
    %11246 = vmatprep.subr.bf16.mxu0 0
    %11247 = vmatpush2.bf16.msra.mxu0 %v11030
    %11248 = vmatprep.subr.bf16.mxu0 0
    %11249 = vmatpush2.bf16.msra.mxu0 %v11029
    %11250 = vmatprep.subr.bf16.mxu0 0
    %11251 = vmatpush2.bf16.msra.mxu0 %v11028
    %11252 = vmatprep.mubr.bf16.mxu0 %v10587
    %11253 = vmatmul.mubr.bf16.gmra.mxu0 %v10586
    %v11254 = vpop.f32.mrf.mxu0
    %v11255 = vadd.f32 %v11215, %v11254
    %v11256 = vpop.f32.mrf.mxu0
    %v11257 = vpop.f32.mrf.mxu0
    %v11258 = vpop.f32.mrf.mxu0
    %11259 = vdwg.mxu0
    %v11260 = vadd.f32 %v10579, %v11255
    %11261 = vst [vmem:[#allocation14] sm:$0x3] %v11260
    // Predicated region
    $region62: #{tpu_custom_call.1} parent=1 // pred_check
      %p11262 = pneg %p115
    $region63: #{tpu_custom_call.1} parent=1 // pred_check_branch
      %11264 = sbr.rel (%p11262) target = $region65
    $region64: #{tpu_custom_call.1} parent=1 // pred_region
      %v11265 = vld [vmem:[#allocation14] sm:$0x3]
      %v11266 = vld [vmem:[#allocation13] sm:$0x1]
      %v11268 = vlaneseq
      %v11269 = vshrl.u32 %v11268, 7
      %v11270 = vsub.s32 0, %v11269
      %v11271 = vrot.slane %v11266, %v11270
      %v11273 = vadd.f32 %v11265, %v11271
      %11274 = vst [vmem:[#allocation14] sm:$0x3] %v11273
    $region65: #{tpu_custom_call.1} parent=1 // pred_fallthru
      _
    // Predicated region
    $region66: #{tpu_custom_call.1} parent=1 // pred_check
      _
    $region67: #{tpu_custom_call.1} parent=1 // pred_check_branch
      %11276 = sbr.rel (0) target = $region69
    $region68: #{tpu_custom_call.1} parent=1 // pred_region
      %s11278 = ssub.s32 32, 32
      %11279 = vsyncadd [#allocation4], %s11278
      %s11281 = sshll.u32 [#allocation14], 4
      %s11282 = int_to_ptr.vmem [resolvable:$true] %s11281
      %11284 = dma.vmem_to_hbm [thread:$0]  %s11282, 32, %s7, [#allocation4]
    $region69: #{tpu_custom_call.1} parent=1 // pred_fallthru
      _
    // Predicated region
    $region70: #{tpu_custom_call.1} parent=1 // pred_check
      _
    $region71: #{tpu_custom_call.1} parent=1 // pred_check_branch
      %11286 = sbr.rel (0) target = $region73
    $region72: #{tpu_custom_call.1} parent=1 // pred_region
      %11287 = dma.done [#allocation4], 32
    $region73: #{tpu_custom_call.1} parent=1 // pred_fallthru
      _
    %11288 = vsyncpa [#allocation3], 1
    %11289 = vsyncpa [#allocation6], 1
    %11290 = vsyncpa [#allocation9], 1
    %11291 = vsyncpa [#allocation12], 1
    %11292 = vsyncpa [#allocation4], 1

</llo_original>
